<compile_context>
chip_gen: v6e
topology: v6e:2x2x1
jax: 0.10.0
libtpu: 0.0.40
codegen_flags: <defaults>
</compile_context>

<pallas_src>
import functools

import jax
import jax.numpy as jnp
from jax import lax
from jax.experimental import pallas as pl
from jax.experimental.pallas import tpu as pltpu

H = 5  # hidden size of every LSTM layer / Linear in this model


# --------------------------------------------------------------------------------------
# Packed-weight layout: one (rows, 4H) f32 slab, every section starts on an 8-row
# (sublane) boundary so every in-kernel slice is tile-aligned.
# --------------------------------------------------------------------------------------
def _pack_layout(d_in, hidden):
    g = 4 * hidden
    spec = [
        ("wih0", d_in, g), ("whh0", hidden, g), ("b0", 1, g),          # LSTM-1 layer 0
        ("wih1", hidden, g), ("whh1", hidden, g), ("b1", 1, g),        # LSTM-1 layer 1
        ("wl1", hidden, hidden), ("bl1", 1, hidden),                   # Linear 1
        ("wih20", hidden, g), ("whh20", hidden, g), ("b20", 1, g),     # LSTM-2 layer 0
        ("wih21", hidden, g), ("whh21", hidden, g), ("b21", 1, g),     # LSTM-2 layer 1
        ("wl2", hidden, hidden), ("bl2", 1, hidden),                   # Linear 2
    ]
    offs, row = {}, 0
    for name, nr, nc in spec:
        offs[name] = (row, nr, nc)
        row += -(-nr // 8) * 8          # round each section up to 8 rows
    return offs, row, g


def pack_params(params):
    """One-time parameter prep: pre-scale g-gate columns by 2 (so the kernel can use
    tanh(z) = 2*sigmoid(2z) - 1) and pack everything into a single f32 slab."""
    s1, hd1, s2, hd2 = params["lstm1"], params["head1"], params["lstm2"], params["head2"]
    h = hd1["w"].shape[0]
    d_in = s1["wih0"].shape[0]
    offs, total_rows, g = _pack_layout(d_in, h)

    def scale_g(w):  # scale the third (g-gate) group of columns by 2
        return w.at[:, 2 * h:3 * h].multiply(2.0)

    tensors = {
        "wih0": scale_g(s1["wih0"]), "whh0": scale_g(s1["whh0"]), "b0": scale_g(s1["b0"]),
        "wih1": scale_g(s1["wih1"]), "whh1": scale_g(s1["whh1"]), "b1": scale_g(s1["b1"]),
        "wl1": hd1["w"], "bl1": hd1["b"],
        "wih20": scale_g(s2["wih0"]), "whh20": scale_g(s2["whh0"]), "b20": scale_g(s2["b0"]),
        "wih21": scale_g(s2["wih1"]), "whh21": scale_g(s2["whh1"]), "b21": scale_g(s2["b1"]),
        "wl2": hd2["w"], "bl2": hd2["b"],
    }
    slab = jnp.zeros((total_rows, g), jnp.float32)
    for name, (row, nr, nc) in offs.items():
        slab = slab.at[row:row + nr, :nc].set(tensors[name].astype(jnp.float32))
    return slab


# --------------------------------------------------------------------------------------
# The fused kernel: whole model in one grid-less pallas_call.
# --------------------------------------------------------------------------------------
def _fused_lstm_model_kernel(x_ref, w_ref, o_ref, *, T, Hh, offs):
    B = x_ref.shape[0]
    f32 = jnp.float32

    def sec(name):
        row, nr, nc = offs[name]
        return w_ref[row:row + nr, 0:nc]

    # Load the (tiny) packed weights once; a single HBM->VMEM DMA delivered them all.
    whh0 = sec("whh0")
    wih1, whh1, b1 = sec("wih1"), sec("whh1"), sec("b1")
    wl1, bl1 = sec("wl1"), sec("bl1")
    wih20, whh20, b20 = sec("wih20"), sec("whh20"), sec("b20")
    wih21, whh21, b21 = sec("wih21"), sec("whh21"), sec("b21")
    wl2, bl2 = sec("wl2"), sec("bl2")

    # LSTM-1 layer-0 input projection (K=225), hoisted off the recurrence: these dots
    # depend only on x / weights, so the scheduler issues them whenever the MXU is free.
    wih0, b0 = sec("wih0"), sec("b0")
    xg0 = [jnp.dot(x_ref[:, t, :], wih0, preferred_element_type=f32) + b0
           for t in range(T)]                                   # T x (B, 4H)

    def lstm_update(gates, c_prev):
        # g-gate columns / bias were pre-scaled by 2 at pack time, so one full-width
        # sigmoid (single EUP op) yields i, f, o directly and tanh(z_g) = 2*sig(2 z_g)-1
        # is a VALU fix-up.  PyTorch gate order [i, f, g, o].
        sg = jax.nn.sigmoid(gates)
        i = sg[:, 0 * Hh:1 * Hh]
        f = sg[:, 1 * Hh:2 * Hh]
        g = 2.0 * sg[:, 2 * Hh:3 * Hh] - 1.0
        o = sg[:, 3 * Hh:4 * Hh]
        c_new = f * c_prev + i * g
        h_new = o * jnp.tanh(c_new)
        return h_new, c_new

    def cell(x_in, h_prev, c_prev, wih, whh, b):
        # Two independent small dots (no lane-concatenate on the critical path).
        gates = (jnp.dot(x_in, wih, preferred_element_type=f32)
                 + jnp.dot(h_prev, whh, preferred_element_type=f32) + b)
        return lstm_update(gates, c_prev)

    zeros = jnp.zeros((B, Hh), f32)
    h0 = c0 = h1 = c1 = h2 = c2 = h3 = c3 = zeros
    a1 = a2 = a3 = zeros        # stage->stage pipeline registers (skewed schedule)
    outs = []

    # Wavefront over (time, layer): at macro-step s, stage k processes timestep s-k.
    # All stages within a macro-step are mutually independent (they read only states /
    # pipeline registers committed at the previous macro-step), so their MXU/EUP work
    # overlaps instead of serializing.  T + 3 macro-steps total.
    for s in range(T + 3):
        n0 = n1 = n2 = n3 = None
        if s < T:                                  # stage 0: LSTM-1 layer 0 at t = s
            g0 = xg0[s] + jnp.dot(h0, whh0, preferred_element_type=f32)
            nh0, nc0 = lstm_update(g0, c0)
            n0 = (nh0, nc0, nh0)
        if 1 <= s <= T:                            # stage 1: LSTM-1 layer 1 at t = s-1
            nh1, nc1 = cell(a1, h1, c1, wih1, whh1, b1)
            # Dropout (eval: identity) -> Linear(5,5) -> ReLU
            y = jnp.maximum(jnp.dot(nh1, wl1, preferred_element_type=f32) + bl1, 0.0)
            n1 = (nh1, nc1, y)
        if 2 <= s <= T + 1:                        # stage 2: LSTM-2 layer 0 at t = s-2
            nh2, nc2 = cell(a2, h2, c2, wih20, whh20, b20)
            n2 = (nh2, nc2, nh2)
        if 3 <= s <= T + 2:                        # stage 3: LSTM-2 layer 1 at t = s-3
            nh3, nc3 = cell(a3, h3, c3, wih21, whh21, b21)
            # Dropout (eval: identity) -> Linear(5,5) -> Sigmoid
            out_t = jax.nn.sigmoid(jnp.dot(nh3, wl2, preferred_element_type=f32) + bl2)
            n3 = (nh3, nc3)
            outs.append(out_t)
        # Commit carried state / pipeline registers for the next macro-step.
        if n0 is not None: h0, c0, a1 = n0
        if n1 is not None: h1, c1, a2 = n1
        if n2 is not None: h2, c2, a3 = n2
        if n3 is not None: h3, c3 = n3

    # Accumulated in registers; single lane-concatenated store (wrapper reshapes back).
    o_ref[...] = jnp.concatenate(outs, axis=1)      # (B, T*H)


def lstm_model_forward(x, packed_weights):
    """x: (B, T, 225) f32, packed_weights: pack_params(...) slab -> (B, T, 5) f32."""
    B, T, d_in = x.shape
    offs, total_rows, g = _pack_layout(d_in, H)
    assert packed_weights.shape == (total_rows, g), packed_weights.shape

    vmem = pl.BlockSpec(memory_space=pltpu.MemorySpace.VMEM)
    out_flat = pl.pallas_call(
        functools.partial(_fused_lstm_model_kernel, T=T, Hh=H, offs=offs),
        out_shape=jax.ShapeDtypeStruct((B, T * H), jnp.float32),
        in_specs=[vmem, vmem],
        out_specs=vmem,
    )(x, packed_weights)
    return out_flat.reshape(B, T, H)   # free reshape (row-major contiguous)


# --------------------------------------------------------------------------------------
# Plain-JAX reference of the PyTorch forward (eval mode), for validation.
# --------------------------------------------------------------------------------------
def _mm(a, b):
    return jnp.matmul(a, b, precision=lax.Precision.HIGHEST)


def _ref_lstm_stack(x_seq, p):
    B, T, _ = x_seq.shape
    Hh = p["whh0"].shape[0]

    def run_layer(inp, wih, whh, b):
        h = jnp.zeros((B, Hh), jnp.float32)
        c = jnp.zeros((B, Hh), jnp.float32)
        ys = []
        for t in range(T):
            z = _mm(inp[:, t, :], wih) + _mm(h, whh) + b
            i = jax.nn.sigmoid(z[:, 0 * Hh:1 * Hh])
            f = jax.nn.sigmoid(z[:, 1 * Hh:2 * Hh])
            g = jnp.tanh(z[:, 2 * Hh:3 * Hh])
            o = jax.nn.sigmoid(z[:, 3 * Hh:4 * Hh])
            c = f * c + i * g
            h = o * jnp.tanh(c)
            ys.append(h)
        return jnp.stack(ys, axis=1)

    y = run_layer(x_seq, p["wih0"], p["whh0"], p["b0"])
    return run_layer(y, p["wih1"], p["whh1"], p["b1"])


def lstm_model_reference(x, params):
    s1, hd1, s2, hd2 = params["lstm1"], params["head1"], params["lstm2"], params["head2"]
    y = _ref_lstm_stack(x, s1)
    y = jnp.maximum(_mm(y, hd1["w"]) + hd1["b"], 0.0)   # Dropout(eval)=id, Linear, ReLU
    y = _ref_lstm_stack(y, s2)
    return jax.nn.sigmoid(_mm(y, hd2["w"]) + hd2["b"])  # Dropout(eval)=id, Linear, Sigmoid


# --------------------------------------------------------------------------------------
# Deterministic parameter init (PyTorch default U(-1/sqrt(hidden), 1/sqrt(hidden))).
# --------------------------------------------------------------------------------------
def make_lstm_stack_params(key, input_size, hidden):
    scale = 1.0 / (hidden ** 0.5)
    ks = jax.random.split(key, 8)

    def u(kk, shape):
        return jax.random.uniform(kk, shape, jnp.float32, -scale, scale)

    # PyTorch shapes (4H, in)/(4H, H); transpose for (B,K)@(K,4H) and sum the two biases.
    wih0 = u(ks[0], (4 * hidden, input_size))
    whh0 = u(ks[1], (4 * hidden, hidden))
    b0 = (u(ks[2], (4 * hidden,)) + u(ks[3], (4 * hidden,)))[None, :]
    wih1 = u(ks[4], (4 * hidden, hidden))
    whh1 = u(ks[5], (4 * hidden, hidden))
    b1 = (u(ks[6], (4 * hidden,)) + u(ks[7], (4 * hidden,)))[None, :]
    return dict(wih0=wih0.T, whh0=whh0.T, b0=b0, wih1=wih1.T, whh1=whh1.T, b1=b1)


def make_linear_params(key, in_f, out_f):
    scale = 1.0 / (in_f ** 0.5)
    k1, k2 = jax.random.split(key)
    w = jax.random.uniform(k1, (out_f, in_f), jnp.float32, -scale, scale)
    b = jax.random.uniform(k2, (out_f,), jnp.float32, -scale, scale)
    return dict(w=w.T, b=b[None, :])


if __name__ == "__main__":
    key = jax.random.PRNGKey(0)
    k_x, k_l1, k_h1, k_l2, k_h2 = jax.random.split(key, 5)

    B, T, D_IN = 2, 8, 225
    x = jax.random.normal(k_x, (B, T, D_IN), dtype=jnp.float32)

    params = {
        "lstm1": make_lstm_stack_params(k_l1, D_IN, H),
        "head1": make_linear_params(k_h1, H, H),
        "lstm2": make_lstm_stack_params(k_l2, H, H),
        "head2": make_linear_params(k_h2, H, H),
    }
    slab = pack_params(params)   # one-time parameter preparation (pre-scale + pack)

    out = jax.jit(lstm_model_forward)(x, slab)
    out = jax.block_until_ready(out)

    assert out.shape == (B, T, H), out.shape
    assert bool(jnp.all(jnp.isfinite(out)))
    assert bool(jnp.all((out >= 0.0) & (out <= 1.0)))   # sigmoid output range

    # Numerical check against the plain-JAX reference of the PyTorch forward.
    ref = jax.block_until_ready(jax.jit(lstm_model_reference)(x, params))
    err = float(jnp.max(jnp.abs(out - ref)))
    assert err < 3e-2, f"max |kernel - reference| = {err}"

    print("KERNEL_OK")
</pallas_src>

<mosaic_0001>
module attributes {stable_mosaic.version = 11 : i64} {
  func.func @_fused_lstm_model_kernel(%arg0: memref<2x8x225xf32, #tpu.memory_space<vmem>>, %arg1: memref<352x20xf32, #tpu.memory_space<vmem>>, %arg2: memref<2x40xf32, #tpu.memory_space<vmem>>) attributes {dimension_semantics = [], scalar_prefetch = 0 : i64, scratch_operands = 0 : i64, tpu.core_type = #tpu.core_type<tc>} {
    %c232 = arith.constant 232 : index
    %c0 = arith.constant 0 : index
    %0 = vector.load %arg1[%c232, %c0] : memref<352x20xf32, #tpu.memory_space<vmem>>, vector<5x20xf32>
    %c248 = arith.constant 248 : index
    %c0_0 = arith.constant 0 : index
    %1 = vector.load %arg1[%c248, %c0_0] : memref<352x20xf32, #tpu.memory_space<vmem>>, vector<5x20xf32>
    %c256 = arith.constant 256 : index
    %c0_1 = arith.constant 0 : index
    %2 = vector.load %arg1[%c256, %c0_1] : memref<352x20xf32, #tpu.memory_space<vmem>>, vector<5x20xf32>
    %c264 = arith.constant 264 : index
    %c0_2 = arith.constant 0 : index
    %3 = vector.load %arg1[%c264, %c0_2] : memref<352x20xf32, #tpu.memory_space<vmem>>, vector<1x20xf32>
    %c272 = arith.constant 272 : index
    %c0_3 = arith.constant 0 : index
    %4 = vector.load %arg1[%c272, %c0_3] : memref<352x20xf32, #tpu.memory_space<vmem>>, vector<5x5xf32>
    %c280 = arith.constant 280 : index
    %c0_4 = arith.constant 0 : index
    %5 = vector.load %arg1[%c280, %c0_4] : memref<352x20xf32, #tpu.memory_space<vmem>>, vector<1x5xf32>
    %c288 = arith.constant 288 : index
    %c0_5 = arith.constant 0 : index
    %6 = vector.load %arg1[%c288, %c0_5] : memref<352x20xf32, #tpu.memory_space<vmem>>, vector<5x20xf32>
    %c296 = arith.constant 296 : index
    %c0_6 = arith.constant 0 : index
    %7 = vector.load %arg1[%c296, %c0_6] : memref<352x20xf32, #tpu.memory_space<vmem>>, vector<5x20xf32>
    %c304 = arith.constant 304 : index
    %c0_7 = arith.constant 0 : index
    %8 = vector.load %arg1[%c304, %c0_7] : memref<352x20xf32, #tpu.memory_space<vmem>>, vector<1x20xf32>
    %c312 = arith.constant 312 : index
    %c0_8 = arith.constant 0 : index
    %9 = vector.load %arg1[%c312, %c0_8] : memref<352x20xf32, #tpu.memory_space<vmem>>, vector<5x20xf32>
    %c320 = arith.constant 320 : index
    %c0_9 = arith.constant 0 : index
    %10 = vector.load %arg1[%c320, %c0_9] : memref<352x20xf32, #tpu.memory_space<vmem>>, vector<5x20xf32>
    %c328 = arith.constant 328 : index
    %c0_10 = arith.constant 0 : index
    %11 = vector.load %arg1[%c328, %c0_10] : memref<352x20xf32, #tpu.memory_space<vmem>>, vector<1x20xf32>
    %c336 = arith.constant 336 : index
    %c0_11 = arith.constant 0 : index
    %12 = vector.load %arg1[%c336, %c0_11] : memref<352x20xf32, #tpu.memory_space<vmem>>, vector<5x5xf32>
    %c344 = arith.constant 344 : index
    %c0_12 = arith.constant 0 : index
    %13 = vector.load %arg1[%c344, %c0_12] : memref<352x20xf32, #tpu.memory_space<vmem>>, vector<1x5xf32>
    %c0_13 = arith.constant 0 : index
    %c0_14 = arith.constant 0 : index
    %14 = vector.load %arg1[%c0_13, %c0_14] : memref<352x20xf32, #tpu.memory_space<vmem>>, vector<225x20xf32>
    %c240 = arith.constant 240 : index
    %c0_15 = arith.constant 0 : index
    %15 = vector.load %arg1[%c240, %c0_15] : memref<352x20xf32, #tpu.memory_space<vmem>>, vector<1x20xf32>
    %c0_16 = arith.constant 0 : index
    %c0_17 = arith.constant 0 : index
    %c0_18 = arith.constant 0 : index
    %16 = vector.load %arg0[%c0_16, %c0_17, %c0_18] : memref<2x8x225xf32, #tpu.memory_space<vmem>>, vector<2x1x225xf32>
    %17 = vector.shape_cast %16 : vector<2x1x225xf32> to vector<2x225xf32>
    %cst = arith.constant dense<0.000000e+00> : vector<2x20xf32>
    %18 = tpu.matmul %17, %14, %cst {dimension_numbers = #tpu.dot_dimension_numbers<[1], [0], [0], [1], [0, 0, 1, 1], [], []>} : vector<2x225xf32>, vector<225x20xf32>, vector<2x20xf32> -> vector<2x20xf32>
    %19 = vector.broadcast %15 : vector<1x20xf32> to vector<2x20xf32>
    %20 = arith.addf %18, %19 : vector<2x20xf32>
    %c0_19 = arith.constant 0 : index
    %c1 = arith.constant 1 : index
    %c0_20 = arith.constant 0 : index
    %21 = vector.load %arg0[%c0_19, %c1, %c0_20] : memref<2x8x225xf32, #tpu.memory_space<vmem>>, vector<2x1x225xf32>
    %22 = vector.shape_cast %21 : vector<2x1x225xf32> to vector<2x225xf32>
    %cst_21 = arith.constant dense<0.000000e+00> : vector<2x20xf32>
    %23 = tpu.matmul %22, %14, %cst_21 {dimension_numbers = #tpu.dot_dimension_numbers<[1], [0], [0], [1], [0, 0, 1, 1], [], []>} : vector<2x225xf32>, vector<225x20xf32>, vector<2x20xf32> -> vector<2x20xf32>
    %24 = vector.broadcast %15 : vector<1x20xf32> to vector<2x20xf32>
    %25 = arith.addf %23, %24 : vector<2x20xf32>
    %c0_22 = arith.constant 0 : index
    %c2 = arith.constant 2 : index
    %c0_23 = arith.constant 0 : index
    %26 = vector.load %arg0[%c0_22, %c2, %c0_23] : memref<2x8x225xf32, #tpu.memory_space<vmem>>, vector<2x1x225xf32>
    %27 = vector.shape_cast %26 : vector<2x1x225xf32> to vector<2x225xf32>
    %cst_24 = arith.constant dense<0.000000e+00> : vector<2x20xf32>
    %28 = tpu.matmul %27, %14, %cst_24 {dimension_numbers = #tpu.dot_dimension_numbers<[1], [0], [0], [1], [0, 0, 1, 1], [], []>} : vector<2x225xf32>, vector<225x20xf32>, vector<2x20xf32> -> vector<2x20xf32>
    %29 = vector.broadcast %15 : vector<1x20xf32> to vector<2x20xf32>
    %30 = arith.addf %28, %29 : vector<2x20xf32>
    %c0_25 = arith.constant 0 : index
    %c3 = arith.constant 3 : index
    %c0_26 = arith.constant 0 : index
    %31 = vector.load %arg0[%c0_25, %c3, %c0_26] : memref<2x8x225xf32, #tpu.memory_space<vmem>>, vector<2x1x225xf32>
    %32 = vector.shape_cast %31 : vector<2x1x225xf32> to vector<2x225xf32>
    %cst_27 = arith.constant dense<0.000000e+00> : vector<2x20xf32>
    %33 = tpu.matmul %32, %14, %cst_27 {dimension_numbers = #tpu.dot_dimension_numbers<[1], [0], [0], [1], [0, 0, 1, 1], [], []>} : vector<2x225xf32>, vector<225x20xf32>, vector<2x20xf32> -> vector<2x20xf32>
    %34 = vector.broadcast %15 : vector<1x20xf32> to vector<2x20xf32>
    %35 = arith.addf %33, %34 : vector<2x20xf32>
    %c0_28 = arith.constant 0 : index
    %c4 = arith.constant 4 : index
    %c0_29 = arith.constant 0 : index
    %36 = vector.load %arg0[%c0_28, %c4, %c0_29] : memref<2x8x225xf32, #tpu.memory_space<vmem>>, vector<2x1x225xf32>
    %37 = vector.shape_cast %36 : vector<2x1x225xf32> to vector<2x225xf32>
    %cst_30 = arith.constant dense<0.000000e+00> : vector<2x20xf32>
    %38 = tpu.matmul %37, %14, %cst_30 {dimension_numbers = #tpu.dot_dimension_numbers<[1], [0], [0], [1], [0, 0, 1, 1], [], []>} : vector<2x225xf32>, vector<225x20xf32>, vector<2x20xf32> -> vector<2x20xf32>
    %39 = vector.broadcast %15 : vector<1x20xf32> to vector<2x20xf32>
    %40 = arith.addf %38, %39 : vector<2x20xf32>
    %c0_31 = arith.constant 0 : index
    %c5 = arith.constant 5 : index
    %c0_32 = arith.constant 0 : index
    %41 = vector.load %arg0[%c0_31, %c5, %c0_32] : memref<2x8x225xf32, #tpu.memory_space<vmem>>, vector<2x1x225xf32>
    %42 = vector.shape_cast %41 : vector<2x1x225xf32> to vector<2x225xf32>
    %cst_33 = arith.constant dense<0.000000e+00> : vector<2x20xf32>
    %43 = tpu.matmul %42, %14, %cst_33 {dimension_numbers = #tpu.dot_dimension_numbers<[1], [0], [0], [1], [0, 0, 1, 1], [], []>} : vector<2x225xf32>, vector<225x20xf32>, vector<2x20xf32> -> vector<2x20xf32>
    %44 = vector.broadcast %15 : vector<1x20xf32> to vector<2x20xf32>
    %45 = arith.addf %43, %44 : vector<2x20xf32>
    %c0_34 = arith.constant 0 : index
    %c6 = arith.constant 6 : index
    %c0_35 = arith.constant 0 : index
    %46 = vector.load %arg0[%c0_34, %c6, %c0_35] : memref<2x8x225xf32, #tpu.memory_space<vmem>>, vector<2x1x225xf32>
    %47 = vector.shape_cast %46 : vector<2x1x225xf32> to vector<2x225xf32>
    %cst_36 = arith.constant dense<0.000000e+00> : vector<2x20xf32>
    %48 = tpu.matmul %47, %14, %cst_36 {dimension_numbers = #tpu.dot_dimension_numbers<[1], [0], [0], [1], [0, 0, 1, 1], [], []>} : vector<2x225xf32>, vector<225x20xf32>, vector<2x20xf32> -> vector<2x20xf32>
    %49 = vector.broadcast %15 : vector<1x20xf32> to vector<2x20xf32>
    %50 = arith.addf %48, %49 : vector<2x20xf32>
    %c0_37 = arith.constant 0 : index
    %c7 = arith.constant 7 : index
    %c0_38 = arith.constant 0 : index
    %51 = vector.load %arg0[%c0_37, %c7, %c0_38] : memref<2x8x225xf32, #tpu.memory_space<vmem>>, vector<2x1x225xf32>
    %52 = vector.shape_cast %51 : vector<2x1x225xf32> to vector<2x225xf32>
    %cst_39 = arith.constant dense<0.000000e+00> : vector<2x20xf32>
    %53 = tpu.matmul %52, %14, %cst_39 {dimension_numbers = #tpu.dot_dimension_numbers<[1], [0], [0], [1], [0, 0, 1, 1], [], []>} : vector<2x225xf32>, vector<225x20xf32>, vector<2x20xf32> -> vector<2x20xf32>
    %54 = vector.broadcast %15 : vector<1x20xf32> to vector<2x20xf32>
    %55 = arith.addf %53, %54 : vector<2x20xf32>
    %cst_40 = arith.constant 0.000000e+00 : f32
    %56 = vector.broadcast %cst_40 : f32 to vector<2x5xf32>
    %cst_41 = arith.constant dense<0.000000e+00> : vector<2x20xf32>
    %57 = tpu.matmul %56, %0, %cst_41 {dimension_numbers = #tpu.dot_dimension_numbers<[1], [0], [0], [1], [0, 0, 1, 1], [], []>} : vector<2x5xf32>, vector<5x20xf32>, vector<2x20xf32> -> vector<2x20xf32>
    %58 = arith.addf %20, %57 : vector<2x20xf32>
    %59 = arith.negf %58 : vector<2x20xf32>
    %60 = math.exp %59 : vector<2x20xf32>
    %cst_42 = arith.constant 1.000000e+00 : f32
    %61 = vector.broadcast %cst_42 : f32 to vector<2x20xf32>
    %62 = arith.addf %61, %60 : vector<2x20xf32>
    %63 = arith.divf %61, %62 : vector<2x20xf32>
    %64 = vector.extract_strided_slice %63 {offsets = [0, 0], sizes = [2, 5], strides = [1, 1]} : vector<2x20xf32> to vector<2x5xf32>
    %65 = vector.extract_strided_slice %63 {offsets = [0, 5], sizes = [2, 5], strides = [1, 1]} : vector<2x20xf32> to vector<2x5xf32>
    %66 = vector.extract_strided_slice %63 {offsets = [0, 10], sizes = [2, 5], strides = [1, 1]} : vector<2x20xf32> to vector<2x5xf32>
    %cst_43 = arith.constant 2.000000e+00 : f32
    %67 = vector.broadcast %cst_43 : f32 to vector<2x5xf32>
    %68 = arith.mulf %67, %66 : vector<2x5xf32>
    %cst_44 = arith.constant 1.000000e+00 : f32
    %69 = vector.broadcast %cst_44 : f32 to vector<2x5xf32>
    %70 = arith.subf %68, %69 : vector<2x5xf32>
    %71 = vector.extract_strided_slice %63 {offsets = [0, 15], sizes = [2, 5], strides = [1, 1]} : vector<2x20xf32> to vector<2x5xf32>
    %72 = arith.mulf %65, %56 : vector<2x5xf32>
    %73 = arith.mulf %64, %70 : vector<2x5xf32>
    %74 = arith.addf %72, %73 : vector<2x5xf32>
    %75 = math.tanh %74 : vector<2x5xf32>
    %76 = arith.mulf %71, %75 : vector<2x5xf32>
    %cst_45 = arith.constant dense<0.000000e+00> : vector<2x20xf32>
    %77 = tpu.matmul %76, %0, %cst_45 {dimension_numbers = #tpu.dot_dimension_numbers<[1], [0], [0], [1], [0, 0, 1, 1], [], []>} : vector<2x5xf32>, vector<5x20xf32>, vector<2x20xf32> -> vector<2x20xf32>
    %78 = arith.addf %25, %77 : vector<2x20xf32>
    %79 = arith.negf %78 : vector<2x20xf32>
    %80 = math.exp %79 : vector<2x20xf32>
    %cst_46 = arith.constant 1.000000e+00 : f32
    %81 = vector.broadcast %cst_46 : f32 to vector<2x20xf32>
    %82 = arith.addf %81, %80 : vector<2x20xf32>
    %83 = arith.divf %81, %82 : vector<2x20xf32>
    %84 = vector.extract_strided_slice %83 {offsets = [0, 0], sizes = [2, 5], strides = [1, 1]} : vector<2x20xf32> to vector<2x5xf32>
    %85 = vector.extract_strided_slice %83 {offsets = [0, 5], sizes = [2, 5], strides = [1, 1]} : vector<2x20xf32> to vector<2x5xf32>
    %86 = vector.extract_strided_slice %83 {offsets = [0, 10], sizes = [2, 5], strides = [1, 1]} : vector<2x20xf32> to vector<2x5xf32>
    %cst_47 = arith.constant 2.000000e+00 : f32
    %87 = vector.broadcast %cst_47 : f32 to vector<2x5xf32>
    %88 = arith.mulf %87, %86 : vector<2x5xf32>
    %cst_48 = arith.constant 1.000000e+00 : f32
    %89 = vector.broadcast %cst_48 : f32 to vector<2x5xf32>
    %90 = arith.subf %88, %89 : vector<2x5xf32>
    %91 = vector.extract_strided_slice %83 {offsets = [0, 15], sizes = [2, 5], strides = [1, 1]} : vector<2x20xf32> to vector<2x5xf32>
    %92 = arith.mulf %85, %74 : vector<2x5xf32>
    %93 = arith.mulf %84, %90 : vector<2x5xf32>
    %94 = arith.addf %92, %93 : vector<2x5xf32>
    %95 = math.tanh %94 : vector<2x5xf32>
    %96 = arith.mulf %91, %95 : vector<2x5xf32>
    %cst_49 = arith.constant dense<0.000000e+00> : vector<2x20xf32>
    %97 = tpu.matmul %76, %1, %cst_49 {dimension_numbers = #tpu.dot_dimension_numbers<[1], [0], [0], [1], [0, 0, 1, 1], [], []>} : vector<2x5xf32>, vector<5x20xf32>, vector<2x20xf32> -> vector<2x20xf32>
    %cst_50 = arith.constant dense<0.000000e+00> : vector<2x20xf32>
    %98 = tpu.matmul %56, %2, %cst_50 {dimension_numbers = #tpu.dot_dimension_numbers<[1], [0], [0], [1], [0, 0, 1, 1], [], []>} : vector<2x5xf32>, vector<5x20xf32>, vector<2x20xf32> -> vector<2x20xf32>
    %99 = arith.addf %97, %98 : vector<2x20xf32>
    %100 = vector.broadcast %3 : vector<1x20xf32> to vector<2x20xf32>
    %101 = arith.addf %99, %100 : vector<2x20xf32>
    %102 = arith.negf %101 : vector<2x20xf32>
    %103 = math.exp %102 : vector<2x20xf32>
    %cst_51 = arith.constant 1.000000e+00 : f32
    %104 = vector.broadcast %cst_51 : f32 to vector<2x20xf32>
    %105 = arith.addf %104, %103 : vector<2x20xf32>
    %106 = arith.divf %104, %105 : vector<2x20xf32>
    %107 = vector.extract_strided_slice %106 {offsets = [0, 0], sizes = [2, 5], strides = [1, 1]} : vector<2x20xf32> to vector<2x5xf32>
    %108 = vector.extract_strided_slice %106 {offsets = [0, 5], sizes = [2, 5], strides = [1, 1]} : vector<2x20xf32> to vector<2x5xf32>
    %109 = vector.extract_strided_slice %106 {offsets = [0, 10], sizes = [2, 5], strides = [1, 1]} : vector<2x20xf32> to vector<2x5xf32>
    %cst_52 = arith.constant 2.000000e+00 : f32
    %110 = vector.broadcast %cst_52 : f32 to vector<2x5xf32>
    %111 = arith.mulf %110, %109 : vector<2x5xf32>
    %cst_53 = arith.constant 1.000000e+00 : f32
    %112 = vector.broadcast %cst_53 : f32 to vector<2x5xf32>
    %113 = arith.subf %111, %112 : vector<2x5xf32>
    %114 = vector.extract_strided_slice %106 {offsets = [0, 15], sizes = [2, 5], strides = [1, 1]} : vector<2x20xf32> to vector<2x5xf32>
    %115 = arith.mulf %108, %56 : vector<2x5xf32>
    %116 = arith.mulf %107, %113 : vector<2x5xf32>
    %117 = arith.addf %115, %116 : vector<2x5xf32>
    %118 = math.tanh %117 : vector<2x5xf32>
    %119 = arith.mulf %114, %118 : vector<2x5xf32>
    %cst_54 = arith.constant dense<0.000000e+00> : vector<2x5xf32>
    %120 = tpu.matmul %119, %4, %cst_54 {dimension_numbers = #tpu.dot_dimension_numbers<[1], [0], [0], [1], [0, 0, 1, 1], [], []>} : vector<2x5xf32>, vector<5x5xf32>, vector<2x5xf32> -> vector<2x5xf32>
    %121 = vector.broadcast %5 : vector<1x5xf32> to vector<2x5xf32>
    %122 = arith.addf %120, %121 : vector<2x5xf32>
    %cst_55 = arith.constant 0.000000e+00 : f32
    %123 = vector.broadcast %cst_55 : f32 to vector<2x5xf32>
    %124 = arith.maximumf %122, %123 : vector<2x5xf32>
    %cst_56 = arith.constant dense<0.000000e+00> : vector<2x20xf32>
    %125 = tpu.matmul %96, %0, %cst_56 {dimension_numbers = #tpu.dot_dimension_numbers<[1], [0], [0], [1], [0, 0, 1, 1], [], []>} : vector<2x5xf32>, vector<5x20xf32>, vector<2x20xf32> -> vector<2x20xf32>
    %126 = arith.addf %30, %125 : vector<2x20xf32>
    %127 = arith.negf %126 : vector<2x20xf32>
    %128 = math.exp %127 : vector<2x20xf32>
    %cst_57 = arith.constant 1.000000e+00 : f32
    %129 = vector.broadcast %cst_57 : f32 to vector<2x20xf32>
    %130 = arith.addf %129, %128 : vector<2x20xf32>
    %131 = arith.divf %129, %130 : vector<2x20xf32>
    %132 = vector.extract_strided_slice %131 {offsets = [0, 0], sizes = [2, 5], strides = [1, 1]} : vector<2x20xf32> to vector<2x5xf32>
    %133 = vector.extract_strided_slice %131 {offsets = [0, 5], sizes = [2, 5], strides = [1, 1]} : vector<2x20xf32> to vector<2x5xf32>
    %134 = vector.extract_strided_slice %131 {offsets = [0, 10], sizes = [2, 5], strides = [1, 1]} : vector<2x20xf32> to vector<2x5xf32>
    %cst_58 = arith.constant 2.000000e+00 : f32
    %135 = vector.broadcast %cst_58 : f32 to vector<2x5xf32>
    %136 = arith.mulf %135, %134 : vector<2x5xf32>
    %cst_59 = arith.constant 1.000000e+00 : f32
    %137 = vector.broadcast %cst_59 : f32 to vector<2x5xf32>
    %138 = arith.subf %136, %137 : vector<2x5xf32>
    %139 = vector.extract_strided_slice %131 {offsets = [0, 15], sizes = [2, 5], strides = [1, 1]} : vector<2x20xf32> to vector<2x5xf32>
    %140 = arith.mulf %133, %94 : vector<2x5xf32>
    %141 = arith.mulf %132, %138 : vector<2x5xf32>
    %142 = arith.addf %140, %141 : vector<2x5xf32>
    %143 = math.tanh %142 : vector<2x5xf32>
    %144 = arith.mulf %139, %143 : vector<2x5xf32>
    %cst_60 = arith.constant dense<0.000000e+00> : vector<2x20xf32>
    %145 = tpu.matmul %96, %1, %cst_60 {dimension_numbers = #tpu.dot_dimension_numbers<[1], [0], [0], [1], [0, 0, 1, 1], [], []>} : vector<2x5xf32>, vector<5x20xf32>, vector<2x20xf32> -> vector<2x20xf32>
    %cst_61 = arith.constant dense<0.000000e+00> : vector<2x20xf32>
    %146 = tpu.matmul %119, %2, %cst_61 {dimension_numbers = #tpu.dot_dimension_numbers<[1], [0], [0], [1], [0, 0, 1, 1], [], []>} : vector<2x5xf32>, vector<5x20xf32>, vector<2x20xf32> -> vector<2x20xf32>
    %147 = arith.addf %145, %146 : vector<2x20xf32>
    %148 = vector.broadcast %3 : vector<1x20xf32> to vector<2x20xf32>
    %149 = arith.addf %147, %148 : vector<2x20xf32>
    %150 = arith.negf %149 : vector<2x20xf32>
    %151 = math.exp %150 : vector<2x20xf32>
    %cst_62 = arith.constant 1.000000e+00 : f32
    %152 = vector.broadcast %cst_62 : f32 to vector<2x20xf32>
    %153 = arith.addf %152, %151 : vector<2x20xf32>
    %154 = arith.divf %152, %153 : vector<2x20xf32>
    %155 = vector.extract_strided_slice %154 {offsets = [0, 0], sizes = [2, 5], strides = [1, 1]} : vector<2x20xf32> to vector<2x5xf32>
    %156 = vector.extract_strided_slice %154 {offsets = [0, 5], sizes = [2, 5], strides = [1, 1]} : vector<2x20xf32> to vector<2x5xf32>
    %157 = vector.extract_strided_slice %154 {offsets = [0, 10], sizes = [2, 5], strides = [1, 1]} : vector<2x20xf32> to vector<2x5xf32>
    %cst_63 = arith.constant 2.000000e+00 : f32
    %158 = vector.broadcast %cst_63 : f32 to vector<2x5xf32>
    %159 = arith.mulf %158, %157 : vector<2x5xf32>
    %cst_64 = arith.constant 1.000000e+00 : f32
    %160 = vector.broadcast %cst_64 : f32 to vector<2x5xf32>
    %161 = arith.subf %159, %160 : vector<2x5xf32>
    %162 = vector.extract_strided_slice %154 {offsets = [0, 15], sizes = [2, 5], strides = [1, 1]} : vector<2x20xf32> to vector<2x5xf32>
    %163 = arith.mulf %156, %117 : vector<2x5xf32>
    %164 = arith.mulf %155, %161 : vector<2x5xf32>
    %165 = arith.addf %163, %164 : vector<2x5xf32>
    %166 = math.tanh %165 : vector<2x5xf32>
    %167 = arith.mulf %162, %166 : vector<2x5xf32>
    %cst_65 = arith.constant dense<0.000000e+00> : vector<2x5xf32>
    %168 = tpu.matmul %167, %4, %cst_65 {dimension_numbers = #tpu.dot_dimension_numbers<[1], [0], [0], [1], [0, 0, 1, 1], [], []>} : vector<2x5xf32>, vector<5x5xf32>, vector<2x5xf32> -> vector<2x5xf32>
    %169 = vector.broadcast %5 : vector<1x5xf32> to vector<2x5xf32>
    %170 = arith.addf %168, %169 : vector<2x5xf32>
    %cst_66 = arith.constant 0.000000e+00 : f32
    %171 = vector.broadcast %cst_66 : f32 to vector<2x5xf32>
    %172 = arith.maximumf %170, %171 : vector<2x5xf32>
    %cst_67 = arith.constant dense<0.000000e+00> : vector<2x20xf32>
    %173 = tpu.matmul %124, %6, %cst_67 {dimension_numbers = #tpu.dot_dimension_numbers<[1], [0], [0], [1], [0, 0, 1, 1], [], []>} : vector<2x5xf32>, vector<5x20xf32>, vector<2x20xf32> -> vector<2x20xf32>
    %cst_68 = arith.constant dense<0.000000e+00> : vector<2x20xf32>
    %174 = tpu.matmul %56, %7, %cst_68 {dimension_numbers = #tpu.dot_dimension_numbers<[1], [0], [0], [1], [0, 0, 1, 1], [], []>} : vector<2x5xf32>, vector<5x20xf32>, vector<2x20xf32> -> vector<2x20xf32>
    %175 = arith.addf %173, %174 : vector<2x20xf32>
    %176 = vector.broadcast %8 : vector<1x20xf32> to vector<2x20xf32>
    %177 = arith.addf %175, %176 : vector<2x20xf32>
    %178 = arith.negf %177 : vector<2x20xf32>
    %179 = math.exp %178 : vector<2x20xf32>
    %cst_69 = arith.constant 1.000000e+00 : f32
    %180 = vector.broadcast %cst_69 : f32 to vector<2x20xf32>
    %181 = arith.addf %180, %179 : vector<2x20xf32>
    %182 = arith.divf %180, %181 : vector<2x20xf32>
    %183 = vector.extract_strided_slice %182 {offsets = [0, 0], sizes = [2, 5], strides = [1, 1]} : vector<2x20xf32> to vector<2x5xf32>
    %184 = vector.extract_strided_slice %182 {offsets = [0, 5], sizes = [2, 5], strides = [1, 1]} : vector<2x20xf32> to vector<2x5xf32>
    %185 = vector.extract_strided_slice %182 {offsets = [0, 10], sizes = [2, 5], strides = [1, 1]} : vector<2x20xf32> to vector<2x5xf32>
    %cst_70 = arith.constant 2.000000e+00 : f32
    %186 = vector.broadcast %cst_70 : f32 to vector<2x5xf32>
    %187 = arith.mulf %186, %185 : vector<2x5xf32>
    %cst_71 = arith.constant 1.000000e+00 : f32
    %188 = vector.broadcast %cst_71 : f32 to vector<2x5xf32>
    %189 = arith.subf %187, %188 : vector<2x5xf32>
    %190 = vector.extract_strided_slice %182 {offsets = [0, 15], sizes = [2, 5], strides = [1, 1]} : vector<2x20xf32> to vector<2x5xf32>
    %191 = arith.mulf %184, %56 : vector<2x5xf32>
    %192 = arith.mulf %183, %189 : vector<2x5xf32>
    %193 = arith.addf %191, %192 : vector<2x5xf32>
    %194 = math.tanh %193 : vector<2x5xf32>
    %195 = arith.mulf %190, %194 : vector<2x5xf32>
    %cst_72 = arith.constant dense<0.000000e+00> : vector<2x20xf32>
    %196 = tpu.matmul %144, %0, %cst_72 {dimension_numbers = #tpu.dot_dimension_numbers<[1], [0], [0], [1], [0, 0, 1, 1], [], []>} : vector<2x5xf32>, vector<5x20xf32>, vector<2x20xf32> -> vector<2x20xf32>
    %197 = arith.addf %35, %196 : vector<2x20xf32>
    %198 = arith.negf %197 : vector<2x20xf32>
    %199 = math.exp %198 : vector<2x20xf32>
    %cst_73 = arith.constant 1.000000e+00 : f32
    %200 = vector.broadcast %cst_73 : f32 to vector<2x20xf32>
    %201 = arith.addf %200, %199 : vector<2x20xf32>
    %202 = arith.divf %200, %201 : vector<2x20xf32>
    %203 = vector.extract_strided_slice %202 {offsets = [0, 0], sizes = [2, 5], strides = [1, 1]} : vector<2x20xf32> to vector<2x5xf32>
    %204 = vector.extract_strided_slice %202 {offsets = [0, 5], sizes = [2, 5], strides = [1, 1]} : vector<2x20xf32> to vector<2x5xf32>
    %205 = vector.extract_strided_slice %202 {offsets = [0, 10], sizes = [2, 5], strides = [1, 1]} : vector<2x20xf32> to vector<2x5xf32>
    %cst_74 = arith.constant 2.000000e+00 : f32
    %206 = vector.broadcast %cst_74 : f32 to vector<2x5xf32>
    %207 = arith.mulf %206, %205 : vector<2x5xf32>
    %cst_75 = arith.constant 1.000000e+00 : f32
    %208 = vector.broadcast %cst_75 : f32 to vector<2x5xf32>
    %209 = arith.subf %207, %208 : vector<2x5xf32>
    %210 = vector.extract_strided_slice %202 {offsets = [0, 15], sizes = [2, 5], strides = [1, 1]} : vector<2x20xf32> to vector<2x5xf32>
    %211 = arith.mulf %204, %142 : vector<2x5xf32>
    %212 = arith.mulf %203, %209 : vector<2x5xf32>
    %213 = arith.addf %211, %212 : vector<2x5xf32>
    %214 = math.tanh %213 : vector<2x5xf32>
    %215 = arith.mulf %210, %214 : vector<2x5xf32>
    %cst_76 = arith.constant dense<0.000000e+00> : vector<2x20xf32>
    %216 = tpu.matmul %144, %1, %cst_76 {dimension_numbers = #tpu.dot_dimension_numbers<[1], [0], [0], [1], [0, 0, 1, 1], [], []>} : vector<2x5xf32>, vector<5x20xf32>, vector<2x20xf32> -> vector<2x20xf32>
    %cst_77 = arith.constant dense<0.000000e+00> : vector<2x20xf32>
    %217 = tpu.matmul %167, %2, %cst_77 {dimension_numbers = #tpu.dot_dimension_numbers<[1], [0], [0], [1], [0, 0, 1, 1], [], []>} : vector<2x5xf32>, vector<5x20xf32>, vector<2x20xf32> -> vector<2x20xf32>
    %218 = arith.addf %216, %217 : vector<2x20xf32>
    %219 = vector.broadcast %3 : vector<1x20xf32> to vector<2x20xf32>
    %220 = arith.addf %218, %219 : vector<2x20xf32>
    %221 = arith.negf %220 : vector<2x20xf32>
    %222 = math.exp %221 : vector<2x20xf32>
    %cst_78 = arith.constant 1.000000e+00 : f32
    %223 = vector.broadcast %cst_78 : f32 to vector<2x20xf32>
    %224 = arith.addf %223, %222 : vector<2x20xf32>
    %225 = arith.divf %223, %224 : vector<2x20xf32>
    %226 = vector.extract_strided_slice %225 {offsets = [0, 0], sizes = [2, 5], strides = [1, 1]} : vector<2x20xf32> to vector<2x5xf32>
    %227 = vector.extract_strided_slice %225 {offsets = [0, 5], sizes = [2, 5], strides = [1, 1]} : vector<2x20xf32> to vector<2x5xf32>
    %228 = vector.extract_strided_slice %225 {offsets = [0, 10], sizes = [2, 5], strides = [1, 1]} : vector<2x20xf32> to vector<2x5xf32>
    %cst_79 = arith.constant 2.000000e+00 : f32
    %229 = vector.broadcast %cst_79 : f32 to vector<2x5xf32>
    %230 = arith.mulf %229, %228 : vector<2x5xf32>
    %cst_80 = arith.constant 1.000000e+00 : f32
    %231 = vector.broadcast %cst_80 : f32 to vector<2x5xf32>
    %232 = arith.subf %230, %231 : vector<2x5xf32>
    %233 = vector.extract_strided_slice %225 {offsets = [0, 15], sizes = [2, 5], strides = [1, 1]} : vector<2x20xf32> to vector<2x5xf32>
    %234 = arith.mulf %227, %165 : vector<2x5xf32>
    %235 = arith.mulf %226, %232 : vector<2x5xf32>
    %236 = arith.addf %234, %235 : vector<2x5xf32>
    %237 = math.tanh %236 : vector<2x5xf32>
    %238 = arith.mulf %233, %237 : vector<2x5xf32>
    %cst_81 = arith.constant dense<0.000000e+00> : vector<2x5xf32>
    %239 = tpu.matmul %238, %4, %cst_81 {dimension_numbers = #tpu.dot_dimension_numbers<[1], [0], [0], [1], [0, 0, 1, 1], [], []>} : vector<2x5xf32>, vector<5x5xf32>, vector<2x5xf32> -> vector<2x5xf32>
    %240 = vector.broadcast %5 : vector<1x5xf32> to vector<2x5xf32>
    %241 = arith.addf %239, %240 : vector<2x5xf32>
    %cst_82 = arith.constant 0.000000e+00 : f32
    %242 = vector.broadcast %cst_82 : f32 to vector<2x5xf32>
    %243 = arith.maximumf %241, %242 : vector<2x5xf32>
    %cst_83 = arith.constant dense<0.000000e+00> : vector<2x20xf32>
    %244 = tpu.matmul %172, %6, %cst_83 {dimension_numbers = #tpu.dot_dimension_numbers<[1], [0], [0], [1], [0, 0, 1, 1], [], []>} : vector<2x5xf32>, vector<5x20xf32>, vector<2x20xf32> -> vector<2x20xf32>
    %cst_84 = arith.constant dense<0.000000e+00> : vector<2x20xf32>
    %245 = tpu.matmul %195, %7, %cst_84 {dimension_numbers = #tpu.dot_dimension_numbers<[1], [0], [0], [1], [0, 0, 1, 1], [], []>} : vector<2x5xf32>, vector<5x20xf32>, vector<2x20xf32> -> vector<2x20xf32>
    %246 = arith.addf %244, %245 : vector<2x20xf32>
    %247 = vector.broadcast %8 : vector<1x20xf32> to vector<2x20xf32>
    %248 = arith.addf %246, %247 : vector<2x20xf32>
    %249 = arith.negf %248 : vector<2x20xf32>
    %250 = math.exp %249 : vector<2x20xf32>
    %cst_85 = arith.constant 1.000000e+00 : f32
    %251 = vector.broadcast %cst_85 : f32 to vector<2x20xf32>
    %252 = arith.addf %251, %250 : vector<2x20xf32>
    %253 = arith.divf %251, %252 : vector<2x20xf32>
    %254 = vector.extract_strided_slice %253 {offsets = [0, 0], sizes = [2, 5], strides = [1, 1]} : vector<2x20xf32> to vector<2x5xf32>
    %255 = vector.extract_strided_slice %253 {offsets = [0, 5], sizes = [2, 5], strides = [1, 1]} : vector<2x20xf32> to vector<2x5xf32>
    %256 = vector.extract_strided_slice %253 {offsets = [0, 10], sizes = [2, 5], strides = [1, 1]} : vector<2x20xf32> to vector<2x5xf32>
    %cst_86 = arith.constant 2.000000e+00 : f32
    %257 = vector.broadcast %cst_86 : f32 to vector<2x5xf32>
    %258 = arith.mulf %257, %256 : vector<2x5xf32>
    %cst_87 = arith.constant 1.000000e+00 : f32
    %259 = vector.broadcast %cst_87 : f32 to vector<2x5xf32>
    %260 = arith.subf %258, %259 : vector<2x5xf32>
    %261 = vector.extract_strided_slice %253 {offsets = [0, 15], sizes = [2, 5], strides = [1, 1]} : vector<2x20xf32> to vector<2x5xf32>
    %262 = arith.mulf %255, %193 : vector<2x5xf32>
    %263 = arith.mulf %254, %260 : vector<2x5xf32>
    %264 = arith.addf %262, %263 : vector<2x5xf32>
    %265 = math.tanh %264 : vector<2x5xf32>
    %266 = arith.mulf %261, %265 : vector<2x5xf32>
    %cst_88 = arith.constant dense<0.000000e+00> : vector<2x20xf32>
    %267 = tpu.matmul %195, %9, %cst_88 {dimension_numbers = #tpu.dot_dimension_numbers<[1], [0], [0], [1], [0, 0, 1, 1], [], []>} : vector<2x5xf32>, vector<5x20xf32>, vector<2x20xf32> -> vector<2x20xf32>
    %cst_89 = arith.constant dense<0.000000e+00> : vector<2x20xf32>
    %268 = tpu.matmul %56, %10, %cst_89 {dimension_numbers = #tpu.dot_dimension_numbers<[1], [0], [0], [1], [0, 0, 1, 1], [], []>} : vector<2x5xf32>, vector<5x20xf32>, vector<2x20xf32> -> vector<2x20xf32>
    %269 = arith.addf %267, %268 : vector<2x20xf32>
    %270 = vector.broadcast %11 : vector<1x20xf32> to vector<2x20xf32>
    %271 = arith.addf %269, %270 : vector<2x20xf32>
    %272 = arith.negf %271 : vector<2x20xf32>
    %273 = math.exp %272 : vector<2x20xf32>
    %cst_90 = arith.constant 1.000000e+00 : f32
    %274 = vector.broadcast %cst_90 : f32 to vector<2x20xf32>
    %275 = arith.addf %274, %273 : vector<2x20xf32>
    %276 = arith.divf %274, %275 : vector<2x20xf32>
    %277 = vector.extract_strided_slice %276 {offsets = [0, 0], sizes = [2, 5], strides = [1, 1]} : vector<2x20xf32> to vector<2x5xf32>
    %278 = vector.extract_strided_slice %276 {offsets = [0, 5], sizes = [2, 5], strides = [1, 1]} : vector<2x20xf32> to vector<2x5xf32>
    %279 = vector.extract_strided_slice %276 {offsets = [0, 10], sizes = [2, 5], strides = [1, 1]} : vector<2x20xf32> to vector<2x5xf32>
    %cst_91 = arith.constant 2.000000e+00 : f32
    %280 = vector.broadcast %cst_91 : f32 to vector<2x5xf32>
    %281 = arith.mulf %280, %279 : vector<2x5xf32>
    %cst_92 = arith.constant 1.000000e+00 : f32
    %282 = vector.broadcast %cst_92 : f32 to vector<2x5xf32>
    %283 = arith.subf %281, %282 : vector<2x5xf32>
    %284 = vector.extract_strided_slice %276 {offsets = [0, 15], sizes = [2, 5], strides = [1, 1]} : vector<2x20xf32> to vector<2x5xf32>
    %285 = arith.mulf %278, %56 : vector<2x5xf32>
    %286 = arith.mulf %277, %283 : vector<2x5xf32>
    %287 = arith.addf %285, %286 : vector<2x5xf32>
    %288 = math.tanh %287 : vector<2x5xf32>
    %289 = arith.mulf %284, %288 : vector<2x5xf32>
    %cst_93 = arith.constant dense<0.000000e+00> : vector<2x5xf32>
    %290 = tpu.matmul %289, %12, %cst_93 {dimension_numbers = #tpu.dot_dimension_numbers<[1], [0], [0], [1], [0, 0, 1, 1], [], []>} : vector<2x5xf32>, vector<5x5xf32>, vector<2x5xf32> -> vector<2x5xf32>
    %291 = vector.broadcast %13 : vector<1x5xf32> to vector<2x5xf32>
    %292 = arith.addf %290, %291 : vector<2x5xf32>
    %293 = arith.negf %292 : vector<2x5xf32>
    %294 = math.exp %293 : vector<2x5xf32>
    %cst_94 = arith.constant 1.000000e+00 : f32
    %295 = vector.broadcast %cst_94 : f32 to vector<2x5xf32>
    %296 = arith.addf %295, %294 : vector<2x5xf32>
    %297 = arith.divf %295, %296 : vector<2x5xf32>
    %cst_95 = arith.constant dense<0.000000e+00> : vector<2x20xf32>
    %298 = tpu.matmul %215, %0, %cst_95 {dimension_numbers = #tpu.dot_dimension_numbers<[1], [0], [0], [1], [0, 0, 1, 1], [], []>} : vector<2x5xf32>, vector<5x20xf32>, vector<2x20xf32> -> vector<2x20xf32>
    %299 = arith.addf %40, %298 : vector<2x20xf32>
    %300 = arith.negf %299 : vector<2x20xf32>
    %301 = math.exp %300 : vector<2x20xf32>
    %cst_96 = arith.constant 1.000000e+00 : f32
    %302 = vector.broadcast %cst_96 : f32 to vector<2x20xf32>
    %303 = arith.addf %302, %301 : vector<2x20xf32>
    %304 = arith.divf %302, %303 : vector<2x20xf32>
    %305 = vector.extract_strided_slice %304 {offsets = [0, 0], sizes = [2, 5], strides = [1, 1]} : vector<2x20xf32> to vector<2x5xf32>
    %306 = vector.extract_strided_slice %304 {offsets = [0, 5], sizes = [2, 5], strides = [1, 1]} : vector<2x20xf32> to vector<2x5xf32>
    %307 = vector.extract_strided_slice %304 {offsets = [0, 10], sizes = [2, 5], strides = [1, 1]} : vector<2x20xf32> to vector<2x5xf32>
    %cst_97 = arith.constant 2.000000e+00 : f32
    %308 = vector.broadcast %cst_97 : f32 to vector<2x5xf32>
    %309 = arith.mulf %308, %307 : vector<2x5xf32>
    %cst_98 = arith.constant 1.000000e+00 : f32
    %310 = vector.broadcast %cst_98 : f32 to vector<2x5xf32>
    %311 = arith.subf %309, %310 : vector<2x5xf32>
    %312 = vector.extract_strided_slice %304 {offsets = [0, 15], sizes = [2, 5], strides = [1, 1]} : vector<2x20xf32> to vector<2x5xf32>
    %313 = arith.mulf %306, %213 : vector<2x5xf32>
    %314 = arith.mulf %305, %311 : vector<2x5xf32>
    %315 = arith.addf %313, %314 : vector<2x5xf32>
    %316 = math.tanh %315 : vector<2x5xf32>
    %317 = arith.mulf %312, %316 : vector<2x5xf32>
    %cst_99 = arith.constant dense<0.000000e+00> : vector<2x20xf32>
    %318 = tpu.matmul %215, %1, %cst_99 {dimension_numbers = #tpu.dot_dimension_numbers<[1], [0], [0], [1], [0, 0, 1, 1], [], []>} : vector<2x5xf32>, vector<5x20xf32>, vector<2x20xf32> -> vector<2x20xf32>
    %cst_100 = arith.constant dense<0.000000e+00> : vector<2x20xf32>
    %319 = tpu.matmul %238, %2, %cst_100 {dimension_numbers = #tpu.dot_dimension_numbers<[1], [0], [0], [1], [0, 0, 1, 1], [], []>} : vector<2x5xf32>, vector<5x20xf32>, vector<2x20xf32> -> vector<2x20xf32>
    %320 = arith.addf %318, %319 : vector<2x20xf32>
    %321 = vector.broadcast %3 : vector<1x20xf32> to vector<2x20xf32>
    %322 = arith.addf %320, %321 : vector<2x20xf32>
    %323 = arith.negf %322 : vector<2x20xf32>
    %324 = math.exp %323 : vector<2x20xf32>
    %cst_101 = arith.constant 1.000000e+00 : f32
    %325 = vector.broadcast %cst_101 : f32 to vector<2x20xf32>
    %326 = arith.addf %325, %324 : vector<2x20xf32>
    %327 = arith.divf %325, %326 : vector<2x20xf32>
    %328 = vector.extract_strided_slice %327 {offsets = [0, 0], sizes = [2, 5], strides = [1, 1]} : vector<2x20xf32> to vector<2x5xf32>
    %329 = vector.extract_strided_slice %327 {offsets = [0, 5], sizes = [2, 5], strides = [1, 1]} : vector<2x20xf32> to vector<2x5xf32>
    %330 = vector.extract_strided_slice %327 {offsets = [0, 10], sizes = [2, 5], strides = [1, 1]} : vector<2x20xf32> to vector<2x5xf32>
    %cst_102 = arith.constant 2.000000e+00 : f32
    %331 = vector.broadcast %cst_102 : f32 to vector<2x5xf32>
    %332 = arith.mulf %331, %330 : vector<2x5xf32>
    %cst_103 = arith.constant 1.000000e+00 : f32
    %333 = vector.broadcast %cst_103 : f32 to vector<2x5xf32>
    %334 = arith.subf %332, %333 : vector<2x5xf32>
    %335 = vector.extract_strided_slice %327 {offsets = [0, 15], sizes = [2, 5], strides = [1, 1]} : vector<2x20xf32> to vector<2x5xf32>
    %336 = arith.mulf %329, %236 : vector<2x5xf32>
    %337 = arith.mulf %328, %334 : vector<2x5xf32>
    %338 = arith.addf %336, %337 : vector<2x5xf32>
    %339 = math.tanh %338 : vector<2x5xf32>
    %340 = arith.mulf %335, %339 : vector<2x5xf32>
    %cst_104 = arith.constant dense<0.000000e+00> : vector<2x5xf32>
    %341 = tpu.matmul %340, %4, %cst_104 {dimension_numbers = #tpu.dot_dimension_numbers<[1], [0], [0], [1], [0, 0, 1, 1], [], []>} : vector<2x5xf32>, vector<5x5xf32>, vector<2x5xf32> -> vector<2x5xf32>
    %342 = vector.broadcast %5 : vector<1x5xf32> to vector<2x5xf32>
    %343 = arith.addf %341, %342 : vector<2x5xf32>
    %cst_105 = arith.constant 0.000000e+00 : f32
    %344 = vector.broadcast %cst_105 : f32 to vector<2x5xf32>
    %345 = arith.maximumf %343, %344 : vector<2x5xf32>
    %cst_106 = arith.constant dense<0.000000e+00> : vector<2x20xf32>
    %346 = tpu.matmul %243, %6, %cst_106 {dimension_numbers = #tpu.dot_dimension_numbers<[1], [0], [0], [1], [0, 0, 1, 1], [], []>} : vector<2x5xf32>, vector<5x20xf32>, vector<2x20xf32> -> vector<2x20xf32>
    %cst_107 = arith.constant dense<0.000000e+00> : vector<2x20xf32>
    %347 = tpu.matmul %266, %7, %cst_107 {dimension_numbers = #tpu.dot_dimension_numbers<[1], [0], [0], [1], [0, 0, 1, 1], [], []>} : vector<2x5xf32>, vector<5x20xf32>, vector<2x20xf32> -> vector<2x20xf32>
    %348 = arith.addf %346, %347 : vector<2x20xf32>
    %349 = vector.broadcast %8 : vector<1x20xf32> to vector<2x20xf32>
    %350 = arith.addf %348, %349 : vector<2x20xf32>
    %351 = arith.negf %350 : vector<2x20xf32>
    %352 = math.exp %351 : vector<2x20xf32>
    %cst_108 = arith.constant 1.000000e+00 : f32
    %353 = vector.broadcast %cst_108 : f32 to vector<2x20xf32>
    %354 = arith.addf %353, %352 : vector<2x20xf32>
    %355 = arith.divf %353, %354 : vector<2x20xf32>
    %356 = vector.extract_strided_slice %355 {offsets = [0, 0], sizes = [2, 5], strides = [1, 1]} : vector<2x20xf32> to vector<2x5xf32>
    %357 = vector.extract_strided_slice %355 {offsets = [0, 5], sizes = [2, 5], strides = [1, 1]} : vector<2x20xf32> to vector<2x5xf32>
    %358 = vector.extract_strided_slice %355 {offsets = [0, 10], sizes = [2, 5], strides = [1, 1]} : vector<2x20xf32> to vector<2x5xf32>
    %cst_109 = arith.constant 2.000000e+00 : f32
    %359 = vector.broadcast %cst_109 : f32 to vector<2x5xf32>
    %360 = arith.mulf %359, %358 : vector<2x5xf32>
    %cst_110 = arith.constant 1.000000e+00 : f32
    %361 = vector.broadcast %cst_110 : f32 to vector<2x5xf32>
    %362 = arith.subf %360, %361 : vector<2x5xf32>
    %363 = vector.extract_strided_slice %355 {offsets = [0, 15], sizes = [2, 5], strides = [1, 1]} : vector<2x20xf32> to vector<2x5xf32>
    %364 = arith.mulf %357, %264 : vector<2x5xf32>
    %365 = arith.mulf %356, %362 : vector<2x5xf32>
    %366 = arith.addf %364, %365 : vector<2x5xf32>
    %367 = math.tanh %366 : vector<2x5xf32>
    %368 = arith.mulf %363, %367 : vector<2x5xf32>
    %cst_111 = arith.constant dense<0.000000e+00> : vector<2x20xf32>
    %369 = tpu.matmul %266, %9, %cst_111 {dimension_numbers = #tpu.dot_dimension_numbers<[1], [0], [0], [1], [0, 0, 1, 1], [], []>} : vector<2x5xf32>, vector<5x20xf32>, vector<2x20xf32> -> vector<2x20xf32>
    %cst_112 = arith.constant dense<0.000000e+00> : vector<2x20xf32>
    %370 = tpu.matmul %289, %10, %cst_112 {dimension_numbers = #tpu.dot_dimension_numbers<[1], [0], [0], [1], [0, 0, 1, 1], [], []>} : vector<2x5xf32>, vector<5x20xf32>, vector<2x20xf32> -> vector<2x20xf32>
    %371 = arith.addf %369, %370 : vector<2x20xf32>
    %372 = vector.broadcast %11 : vector<1x20xf32> to vector<2x20xf32>
    %373 = arith.addf %371, %372 : vector<2x20xf32>
    %374 = arith.negf %373 : vector<2x20xf32>
    %375 = math.exp %374 : vector<2x20xf32>
    %cst_113 = arith.constant 1.000000e+00 : f32
    %376 = vector.broadcast %cst_113 : f32 to vector<2x20xf32>
    %377 = arith.addf %376, %375 : vector<2x20xf32>
    %378 = arith.divf %376, %377 : vector<2x20xf32>
    %379 = vector.extract_strided_slice %378 {offsets = [0, 0], sizes = [2, 5], strides = [1, 1]} : vector<2x20xf32> to vector<2x5xf32>
    %380 = vector.extract_strided_slice %378 {offsets = [0, 5], sizes = [2, 5], strides = [1, 1]} : vector<2x20xf32> to vector<2x5xf32>
    %381 = vector.extract_strided_slice %378 {offsets = [0, 10], sizes = [2, 5], strides = [1, 1]} : vector<2x20xf32> to vector<2x5xf32>
    %cst_114 = arith.constant 2.000000e+00 : f32
    %382 = vector.broadcast %cst_114 : f32 to vector<2x5xf32>
    %383 = arith.mulf %382, %381 : vector<2x5xf32>
    %cst_115 = arith.constant 1.000000e+00 : f32
    %384 = vector.broadcast %cst_115 : f32 to vector<2x5xf32>
    %385 = arith.subf %383, %384 : vector<2x5xf32>
    %386 = vector.extract_strided_slice %378 {offsets = [0, 15], sizes = [2, 5], strides = [1, 1]} : vector<2x20xf32> to vector<2x5xf32>
    %387 = arith.mulf %380, %287 : vector<2x5xf32>
    %388 = arith.mulf %379, %385 : vector<2x5xf32>
    %389 = arith.addf %387, %388 : vector<2x5xf32>
    %390 = math.tanh %389 : vector<2x5xf32>
    %391 = arith.mulf %386, %390 : vector<2x5xf32>
    %cst_116 = arith.constant dense<0.000000e+00> : vector<2x5xf32>
    %392 = tpu.matmul %391, %12, %cst_116 {dimension_numbers = #tpu.dot_dimension_numbers<[1], [0], [0], [1], [0, 0, 1, 1], [], []>} : vector<2x5xf32>, vector<5x5xf32>, vector<2x5xf32> -> vector<2x5xf32>
    %393 = vector.broadcast %13 : vector<1x5xf32> to vector<2x5xf32>
    %394 = arith.addf %392, %393 : vector<2x5xf32>
    %395 = arith.negf %394 : vector<2x5xf32>
    %396 = math.exp %395 : vector<2x5xf32>
    %cst_117 = arith.constant 1.000000e+00 : f32
    %397 = vector.broadcast %cst_117 : f32 to vector<2x5xf32>
    %398 = arith.addf %397, %396 : vector<2x5xf32>
    %399 = arith.divf %397, %398 : vector<2x5xf32>
    %cst_118 = arith.constant dense<0.000000e+00> : vector<2x20xf32>
    %400 = tpu.matmul %317, %0, %cst_118 {dimension_numbers = #tpu.dot_dimension_numbers<[1], [0], [0], [1], [0, 0, 1, 1], [], []>} : vector<2x5xf32>, vector<5x20xf32>, vector<2x20xf32> -> vector<2x20xf32>
    %401 = arith.addf %45, %400 : vector<2x20xf32>
    %402 = arith.negf %401 : vector<2x20xf32>
    %403 = math.exp %402 : vector<2x20xf32>
    %cst_119 = arith.constant 1.000000e+00 : f32
    %404 = vector.broadcast %cst_119 : f32 to vector<2x20xf32>
    %405 = arith.addf %404, %403 : vector<2x20xf32>
    %406 = arith.divf %404, %405 : vector<2x20xf32>
    %407 = vector.extract_strided_slice %406 {offsets = [0, 0], sizes = [2, 5], strides = [1, 1]} : vector<2x20xf32> to vector<2x5xf32>
    %408 = vector.extract_strided_slice %406 {offsets = [0, 5], sizes = [2, 5], strides = [1, 1]} : vector<2x20xf32> to vector<2x5xf32>
    %409 = vector.extract_strided_slice %406 {offsets = [0, 10], sizes = [2, 5], strides = [1, 1]} : vector<2x20xf32> to vector<2x5xf32>
    %cst_120 = arith.constant 2.000000e+00 : f32
    %410 = vector.broadcast %cst_120 : f32 to vector<2x5xf32>
    %411 = arith.mulf %410, %409 : vector<2x5xf32>
    %cst_121 = arith.constant 1.000000e+00 : f32
    %412 = vector.broadcast %cst_121 : f32 to vector<2x5xf32>
    %413 = arith.subf %411, %412 : vector<2x5xf32>
    %414 = vector.extract_strided_slice %406 {offsets = [0, 15], sizes = [2, 5], strides = [1, 1]} : vector<2x20xf32> to vector<2x5xf32>
    %415 = arith.mulf %408, %315 : vector<2x5xf32>
    %416 = arith.mulf %407, %413 : vector<2x5xf32>
    %417 = arith.addf %415, %416 : vector<2x5xf32>
    %418 = math.tanh %417 : vector<2x5xf32>
    %419 = arith.mulf %414, %418 : vector<2x5xf32>
    %cst_122 = arith.constant dense<0.000000e+00> : vector<2x20xf32>
    %420 = tpu.matmul %317, %1, %cst_122 {dimension_numbers = #tpu.dot_dimension_numbers<[1], [0], [0], [1], [0, 0, 1, 1], [], []>} : vector<2x5xf32>, vector<5x20xf32>, vector<2x20xf32> -> vector<2x20xf32>
    %cst_123 = arith.constant dense<0.000000e+00> : vector<2x20xf32>
    %421 = tpu.matmul %340, %2, %cst_123 {dimension_numbers = #tpu.dot_dimension_numbers<[1], [0], [0], [1], [0, 0, 1, 1], [], []>} : vector<2x5xf32>, vector<5x20xf32>, vector<2x20xf32> -> vector<2x20xf32>
    %422 = arith.addf %420, %421 : vector<2x20xf32>
    %423 = vector.broadcast %3 : vector<1x20xf32> to vector<2x20xf32>
    %424 = arith.addf %422, %423 : vector<2x20xf32>
    %425 = arith.negf %424 : vector<2x20xf32>
    %426 = math.exp %425 : vector<2x20xf32>
    %cst_124 = arith.constant 1.000000e+00 : f32
    %427 = vector.broadcast %cst_124 : f32 to vector<2x20xf32>
    %428 = arith.addf %427, %426 : vector<2x20xf32>
    %429 = arith.divf %427, %428 : vector<2x20xf32>
    %430 = vector.extract_strided_slice %429 {offsets = [0, 0], sizes = [2, 5], strides = [1, 1]} : vector<2x20xf32> to vector<2x5xf32>
    %431 = vector.extract_strided_slice %429 {offsets = [0, 5], sizes = [2, 5], strides = [1, 1]} : vector<2x20xf32> to vector<2x5xf32>
    %432 = vector.extract_strided_slice %429 {offsets = [0, 10], sizes = [2, 5], strides = [1, 1]} : vector<2x20xf32> to vector<2x5xf32>
    %cst_125 = arith.constant 2.000000e+00 : f32
    %433 = vector.broadcast %cst_125 : f32 to vector<2x5xf32>
    %434 = arith.mulf %433, %432 : vector<2x5xf32>
    %cst_126 = arith.constant 1.000000e+00 : f32
    %435 = vector.broadcast %cst_126 : f32 to vector<2x5xf32>
    %436 = arith.subf %434, %435 : vector<2x5xf32>
    %437 = vector.extract_strided_slice %429 {offsets = [0, 15], sizes = [2, 5], strides = [1, 1]} : vector<2x20xf32> to vector<2x5xf32>
    %438 = arith.mulf %431, %338 : vector<2x5xf32>
    %439 = arith.mulf %430, %436 : vector<2x5xf32>
    %440 = arith.addf %438, %439 : vector<2x5xf32>
    %441 = math.tanh %440 : vector<2x5xf32>
    %442 = arith.mulf %437, %441 : vector<2x5xf32>
    %cst_127 = arith.constant dense<0.000000e+00> : vector<2x5xf32>
    %443 = tpu.matmul %442, %4, %cst_127 {dimension_numbers = #tpu.dot_dimension_numbers<[1], [0], [0], [1], [0, 0, 1, 1], [], []>} : vector<2x5xf32>, vector<5x5xf32>, vector<2x5xf32> -> vector<2x5xf32>
    %444 = vector.broadcast %5 : vector<1x5xf32> to vector<2x5xf32>
    %445 = arith.addf %443, %444 : vector<2x5xf32>
    %cst_128 = arith.constant 0.000000e+00 : f32
    %446 = vector.broadcast %cst_128 : f32 to vector<2x5xf32>
    %447 = arith.maximumf %445, %446 : vector<2x5xf32>
    %cst_129 = arith.constant dense<0.000000e+00> : vector<2x20xf32>
    %448 = tpu.matmul %345, %6, %cst_129 {dimension_numbers = #tpu.dot_dimension_numbers<[1], [0], [0], [1], [0, 0, 1, 1], [], []>} : vector<2x5xf32>, vector<5x20xf32>, vector<2x20xf32> -> vector<2x20xf32>
    %cst_130 = arith.constant dense<0.000000e+00> : vector<2x20xf32>
    %449 = tpu.matmul %368, %7, %cst_130 {dimension_numbers = #tpu.dot_dimension_numbers<[1], [0], [0], [1], [0, 0, 1, 1], [], []>} : vector<2x5xf32>, vector<5x20xf32>, vector<2x20xf32> -> vector<2x20xf32>
    %450 = arith.addf %448, %449 : vector<2x20xf32>
    %451 = vector.broadcast %8 : vector<1x20xf32> to vector<2x20xf32>
    %452 = arith.addf %450, %451 : vector<2x20xf32>
    %453 = arith.negf %452 : vector<2x20xf32>
    %454 = math.exp %453 : vector<2x20xf32>
    %cst_131 = arith.constant 1.000000e+00 : f32
    %455 = vector.broadcast %cst_131 : f32 to vector<2x20xf32>
    %456 = arith.addf %455, %454 : vector<2x20xf32>
    %457 = arith.divf %455, %456 : vector<2x20xf32>
    %458 = vector.extract_strided_slice %457 {offsets = [0, 0], sizes = [2, 5], strides = [1, 1]} : vector<2x20xf32> to vector<2x5xf32>
    %459 = vector.extract_strided_slice %457 {offsets = [0, 5], sizes = [2, 5], strides = [1, 1]} : vector<2x20xf32> to vector<2x5xf32>
    %460 = vector.extract_strided_slice %457 {offsets = [0, 10], sizes = [2, 5], strides = [1, 1]} : vector<2x20xf32> to vector<2x5xf32>
    %cst_132 = arith.constant 2.000000e+00 : f32
    %461 = vector.broadcast %cst_132 : f32 to vector<2x5xf32>
    %462 = arith.mulf %461, %460 : vector<2x5xf32>
    %cst_133 = arith.constant 1.000000e+00 : f32
    %463 = vector.broadcast %cst_133 : f32 to vector<2x5xf32>
    %464 = arith.subf %462, %463 : vector<2x5xf32>
    %465 = vector.extract_strided_slice %457 {offsets = [0, 15], sizes = [2, 5], strides = [1, 1]} : vector<2x20xf32> to vector<2x5xf32>
    %466 = arith.mulf %459, %366 : vector<2x5xf32>
    %467 = arith.mulf %458, %464 : vector<2x5xf32>
    %468 = arith.addf %466, %467 : vector<2x5xf32>
    %469 = math.tanh %468 : vector<2x5xf32>
    %470 = arith.mulf %465, %469 : vector<2x5xf32>
    %cst_134 = arith.constant dense<0.000000e+00> : vector<2x20xf32>
    %471 = tpu.matmul %368, %9, %cst_134 {dimension_numbers = #tpu.dot_dimension_numbers<[1], [0], [0], [1], [0, 0, 1, 1], [], []>} : vector<2x5xf32>, vector<5x20xf32>, vector<2x20xf32> -> vector<2x20xf32>
    %cst_135 = arith.constant dense<0.000000e+00> : vector<2x20xf32>
    %472 = tpu.matmul %391, %10, %cst_135 {dimension_numbers = #tpu.dot_dimension_numbers<[1], [0], [0], [1], [0, 0, 1, 1], [], []>} : vector<2x5xf32>, vector<5x20xf32>, vector<2x20xf32> -> vector<2x20xf32>
    %473 = arith.addf %471, %472 : vector<2x20xf32>
    %474 = vector.broadcast %11 : vector<1x20xf32> to vector<2x20xf32>
    %475 = arith.addf %473, %474 : vector<2x20xf32>
    %476 = arith.negf %475 : vector<2x20xf32>
    %477 = math.exp %476 : vector<2x20xf32>
    %cst_136 = arith.constant 1.000000e+00 : f32
    %478 = vector.broadcast %cst_136 : f32 to vector<2x20xf32>
    %479 = arith.addf %478, %477 : vector<2x20xf32>
    %480 = arith.divf %478, %479 : vector<2x20xf32>
    %481 = vector.extract_strided_slice %480 {offsets = [0, 0], sizes = [2, 5], strides = [1, 1]} : vector<2x20xf32> to vector<2x5xf32>
    %482 = vector.extract_strided_slice %480 {offsets = [0, 5], sizes = [2, 5], strides = [1, 1]} : vector<2x20xf32> to vector<2x5xf32>
    %483 = vector.extract_strided_slice %480 {offsets = [0, 10], sizes = [2, 5], strides = [1, 1]} : vector<2x20xf32> to vector<2x5xf32>
    %cst_137 = arith.constant 2.000000e+00 : f32
    %484 = vector.broadcast %cst_137 : f32 to vector<2x5xf32>
    %485 = arith.mulf %484, %483 : vector<2x5xf32>
    %cst_138 = arith.constant 1.000000e+00 : f32
    %486 = vector.broadcast %cst_138 : f32 to vector<2x5xf32>
    %487 = arith.subf %485, %486 : vector<2x5xf32>
    %488 = vector.extract_strided_slice %480 {offsets = [0, 15], sizes = [2, 5], strides = [1, 1]} : vector<2x20xf32> to vector<2x5xf32>
    %489 = arith.mulf %482, %389 : vector<2x5xf32>
    %490 = arith.mulf %481, %487 : vector<2x5xf32>
    %491 = arith.addf %489, %490 : vector<2x5xf32>
    %492 = math.tanh %491 : vector<2x5xf32>
    %493 = arith.mulf %488, %492 : vector<2x5xf32>
    %cst_139 = arith.constant dense<0.000000e+00> : vector<2x5xf32>
    %494 = tpu.matmul %493, %12, %cst_139 {dimension_numbers = #tpu.dot_dimension_numbers<[1], [0], [0], [1], [0, 0, 1, 1], [], []>} : vector<2x5xf32>, vector<5x5xf32>, vector<2x5xf32> -> vector<2x5xf32>
    %495 = vector.broadcast %13 : vector<1x5xf32> to vector<2x5xf32>
    %496 = arith.addf %494, %495 : vector<2x5xf32>
    %497 = arith.negf %496 : vector<2x5xf32>
    %498 = math.exp %497 : vector<2x5xf32>
    %cst_140 = arith.constant 1.000000e+00 : f32
    %499 = vector.broadcast %cst_140 : f32 to vector<2x5xf32>
    %500 = arith.addf %499, %498 : vector<2x5xf32>
    %501 = arith.divf %499, %500 : vector<2x5xf32>
    %cst_141 = arith.constant dense<0.000000e+00> : vector<2x20xf32>
    %502 = tpu.matmul %419, %0, %cst_141 {dimension_numbers = #tpu.dot_dimension_numbers<[1], [0], [0], [1], [0, 0, 1, 1], [], []>} : vector<2x5xf32>, vector<5x20xf32>, vector<2x20xf32> -> vector<2x20xf32>
    %503 = arith.addf %50, %502 : vector<2x20xf32>
    %504 = arith.negf %503 : vector<2x20xf32>
    %505 = math.exp %504 : vector<2x20xf32>
    %cst_142 = arith.constant 1.000000e+00 : f32
    %506 = vector.broadcast %cst_142 : f32 to vector<2x20xf32>
    %507 = arith.addf %506, %505 : vector<2x20xf32>
    %508 = arith.divf %506, %507 : vector<2x20xf32>
    %509 = vector.extract_strided_slice %508 {offsets = [0, 0], sizes = [2, 5], strides = [1, 1]} : vector<2x20xf32> to vector<2x5xf32>
    %510 = vector.extract_strided_slice %508 {offsets = [0, 5], sizes = [2, 5], strides = [1, 1]} : vector<2x20xf32> to vector<2x5xf32>
    %511 = vector.extract_strided_slice %508 {offsets = [0, 10], sizes = [2, 5], strides = [1, 1]} : vector<2x20xf32> to vector<2x5xf32>
    %cst_143 = arith.constant 2.000000e+00 : f32
    %512 = vector.broadcast %cst_143 : f32 to vector<2x5xf32>
    %513 = arith.mulf %512, %511 : vector<2x5xf32>
    %cst_144 = arith.constant 1.000000e+00 : f32
    %514 = vector.broadcast %cst_144 : f32 to vector<2x5xf32>
    %515 = arith.subf %513, %514 : vector<2x5xf32>
    %516 = vector.extract_strided_slice %508 {offsets = [0, 15], sizes = [2, 5], strides = [1, 1]} : vector<2x20xf32> to vector<2x5xf32>
    %517 = arith.mulf %510, %417 : vector<2x5xf32>
    %518 = arith.mulf %509, %515 : vector<2x5xf32>
    %519 = arith.addf %517, %518 : vector<2x5xf32>
    %520 = math.tanh %519 : vector<2x5xf32>
    %521 = arith.mulf %516, %520 : vector<2x5xf32>
    %cst_145 = arith.constant dense<0.000000e+00> : vector<2x20xf32>
    %522 = tpu.matmul %419, %1, %cst_145 {dimension_numbers = #tpu.dot_dimension_numbers<[1], [0], [0], [1], [0, 0, 1, 1], [], []>} : vector<2x5xf32>, vector<5x20xf32>, vector<2x20xf32> -> vector<2x20xf32>
    %cst_146 = arith.constant dense<0.000000e+00> : vector<2x20xf32>
    %523 = tpu.matmul %442, %2, %cst_146 {dimension_numbers = #tpu.dot_dimension_numbers<[1], [0], [0], [1], [0, 0, 1, 1], [], []>} : vector<2x5xf32>, vector<5x20xf32>, vector<2x20xf32> -> vector<2x20xf32>
    %524 = arith.addf %522, %523 : vector<2x20xf32>
    %525 = vector.broadcast %3 : vector<1x20xf32> to vector<2x20xf32>
    %526 = arith.addf %524, %525 : vector<2x20xf32>
    %527 = arith.negf %526 : vector<2x20xf32>
    %528 = math.exp %527 : vector<2x20xf32>
    %cst_147 = arith.constant 1.000000e+00 : f32
    %529 = vector.broadcast %cst_147 : f32 to vector<2x20xf32>
    %530 = arith.addf %529, %528 : vector<2x20xf32>
    %531 = arith.divf %529, %530 : vector<2x20xf32>
    %532 = vector.extract_strided_slice %531 {offsets = [0, 0], sizes = [2, 5], strides = [1, 1]} : vector<2x20xf32> to vector<2x5xf32>
    %533 = vector.extract_strided_slice %531 {offsets = [0, 5], sizes = [2, 5], strides = [1, 1]} : vector<2x20xf32> to vector<2x5xf32>
    %534 = vector.extract_strided_slice %531 {offsets = [0, 10], sizes = [2, 5], strides = [1, 1]} : vector<2x20xf32> to vector<2x5xf32>
    %cst_148 = arith.constant 2.000000e+00 : f32
    %535 = vector.broadcast %cst_148 : f32 to vector<2x5xf32>
    %536 = arith.mulf %535, %534 : vector<2x5xf32>
    %cst_149 = arith.constant 1.000000e+00 : f32
    %537 = vector.broadcast %cst_149 : f32 to vector<2x5xf32>
    %538 = arith.subf %536, %537 : vector<2x5xf32>
    %539 = vector.extract_strided_slice %531 {offsets = [0, 15], sizes = [2, 5], strides = [1, 1]} : vector<2x20xf32> to vector<2x5xf32>
    %540 = arith.mulf %533, %440 : vector<2x5xf32>
    %541 = arith.mulf %532, %538 : vector<2x5xf32>
    %542 = arith.addf %540, %541 : vector<2x5xf32>
    %543 = math.tanh %542 : vector<2x5xf32>
    %544 = arith.mulf %539, %543 : vector<2x5xf32>
    %cst_150 = arith.constant dense<0.000000e+00> : vector<2x5xf32>
    %545 = tpu.matmul %544, %4, %cst_150 {dimension_numbers = #tpu.dot_dimension_numbers<[1], [0], [0], [1], [0, 0, 1, 1], [], []>} : vector<2x5xf32>, vector<5x5xf32>, vector<2x5xf32> -> vector<2x5xf32>
    %546 = vector.broadcast %5 : vector<1x5xf32> to vector<2x5xf32>
    %547 = arith.addf %545, %546 : vector<2x5xf32>
    %cst_151 = arith.constant 0.000000e+00 : f32
    %548 = vector.broadcast %cst_151 : f32 to vector<2x5xf32>
    %549 = arith.maximumf %547, %548 : vector<2x5xf32>
    %cst_152 = arith.constant dense<0.000000e+00> : vector<2x20xf32>
    %550 = tpu.matmul %447, %6, %cst_152 {dimension_numbers = #tpu.dot_dimension_numbers<[1], [0], [0], [1], [0, 0, 1, 1], [], []>} : vector<2x5xf32>, vector<5x20xf32>, vector<2x20xf32> -> vector<2x20xf32>
    %cst_153 = arith.constant dense<0.000000e+00> : vector<2x20xf32>
    %551 = tpu.matmul %470, %7, %cst_153 {dimension_numbers = #tpu.dot_dimension_numbers<[1], [0], [0], [1], [0, 0, 1, 1], [], []>} : vector<2x5xf32>, vector<5x20xf32>, vector<2x20xf32> -> vector<2x20xf32>
    %552 = arith.addf %550, %551 : vector<2x20xf32>
    %553 = vector.broadcast %8 : vector<1x20xf32> to vector<2x20xf32>
    %554 = arith.addf %552, %553 : vector<2x20xf32>
    %555 = arith.negf %554 : vector<2x20xf32>
    %556 = math.exp %555 : vector<2x20xf32>
    %cst_154 = arith.constant 1.000000e+00 : f32
    %557 = vector.broadcast %cst_154 : f32 to vector<2x20xf32>
    %558 = arith.addf %557, %556 : vector<2x20xf32>
    %559 = arith.divf %557, %558 : vector<2x20xf32>
    %560 = vector.extract_strided_slice %559 {offsets = [0, 0], sizes = [2, 5], strides = [1, 1]} : vector<2x20xf32> to vector<2x5xf32>
    %561 = vector.extract_strided_slice %559 {offsets = [0, 5], sizes = [2, 5], strides = [1, 1]} : vector<2x20xf32> to vector<2x5xf32>
    %562 = vector.extract_strided_slice %559 {offsets = [0, 10], sizes = [2, 5], strides = [1, 1]} : vector<2x20xf32> to vector<2x5xf32>
    %cst_155 = arith.constant 2.000000e+00 : f32
    %563 = vector.broadcast %cst_155 : f32 to vector<2x5xf32>
    %564 = arith.mulf %563, %562 : vector<2x5xf32>
    %cst_156 = arith.constant 1.000000e+00 : f32
    %565 = vector.broadcast %cst_156 : f32 to vector<2x5xf32>
    %566 = arith.subf %564, %565 : vector<2x5xf32>
    %567 = vector.extract_strided_slice %559 {offsets = [0, 15], sizes = [2, 5], strides = [1, 1]} : vector<2x20xf32> to vector<2x5xf32>
    %568 = arith.mulf %561, %468 : vector<2x5xf32>
    %569 = arith.mulf %560, %566 : vector<2x5xf32>
    %570 = arith.addf %568, %569 : vector<2x5xf32>
    %571 = math.tanh %570 : vector<2x5xf32>
    %572 = arith.mulf %567, %571 : vector<2x5xf32>
    %cst_157 = arith.constant dense<0.000000e+00> : vector<2x20xf32>
    %573 = tpu.matmul %470, %9, %cst_157 {dimension_numbers = #tpu.dot_dimension_numbers<[1], [0], [0], [1], [0, 0, 1, 1], [], []>} : vector<2x5xf32>, vector<5x20xf32>, vector<2x20xf32> -> vector<2x20xf32>
    %cst_158 = arith.constant dense<0.000000e+00> : vector<2x20xf32>
    %574 = tpu.matmul %493, %10, %cst_158 {dimension_numbers = #tpu.dot_dimension_numbers<[1], [0], [0], [1], [0, 0, 1, 1], [], []>} : vector<2x5xf32>, vector<5x20xf32>, vector<2x20xf32> -> vector<2x20xf32>
    %575 = arith.addf %573, %574 : vector<2x20xf32>
    %576 = vector.broadcast %11 : vector<1x20xf32> to vector<2x20xf32>
    %577 = arith.addf %575, %576 : vector<2x20xf32>
    %578 = arith.negf %577 : vector<2x20xf32>
    %579 = math.exp %578 : vector<2x20xf32>
    %cst_159 = arith.constant 1.000000e+00 : f32
    %580 = vector.broadcast %cst_159 : f32 to vector<2x20xf32>
    %581 = arith.addf %580, %579 : vector<2x20xf32>
    %582 = arith.divf %580, %581 : vector<2x20xf32>
    %583 = vector.extract_strided_slice %582 {offsets = [0, 0], sizes = [2, 5], strides = [1, 1]} : vector<2x20xf32> to vector<2x5xf32>
    %584 = vector.extract_strided_slice %582 {offsets = [0, 5], sizes = [2, 5], strides = [1, 1]} : vector<2x20xf32> to vector<2x5xf32>
    %585 = vector.extract_strided_slice %582 {offsets = [0, 10], sizes = [2, 5], strides = [1, 1]} : vector<2x20xf32> to vector<2x5xf32>
    %cst_160 = arith.constant 2.000000e+00 : f32
    %586 = vector.broadcast %cst_160 : f32 to vector<2x5xf32>
    %587 = arith.mulf %586, %585 : vector<2x5xf32>
    %cst_161 = arith.constant 1.000000e+00 : f32
    %588 = vector.broadcast %cst_161 : f32 to vector<2x5xf32>
    %589 = arith.subf %587, %588 : vector<2x5xf32>
    %590 = vector.extract_strided_slice %582 {offsets = [0, 15], sizes = [2, 5], strides = [1, 1]} : vector<2x20xf32> to vector<2x5xf32>
    %591 = arith.mulf %584, %491 : vector<2x5xf32>
    %592 = arith.mulf %583, %589 : vector<2x5xf32>
    %593 = arith.addf %591, %592 : vector<2x5xf32>
    %594 = math.tanh %593 : vector<2x5xf32>
    %595 = arith.mulf %590, %594 : vector<2x5xf32>
    %cst_162 = arith.constant dense<0.000000e+00> : vector<2x5xf32>
    %596 = tpu.matmul %595, %12, %cst_162 {dimension_numbers = #tpu.dot_dimension_numbers<[1], [0], [0], [1], [0, 0, 1, 1], [], []>} : vector<2x5xf32>, vector<5x5xf32>, vector<2x5xf32> -> vector<2x5xf32>
    %597 = vector.broadcast %13 : vector<1x5xf32> to vector<2x5xf32>
    %598 = arith.addf %596, %597 : vector<2x5xf32>
    %599 = arith.negf %598 : vector<2x5xf32>
    %600 = math.exp %599 : vector<2x5xf32>
    %cst_163 = arith.constant 1.000000e+00 : f32
    %601 = vector.broadcast %cst_163 : f32 to vector<2x5xf32>
    %602 = arith.addf %601, %600 : vector<2x5xf32>
    %603 = arith.divf %601, %602 : vector<2x5xf32>
    %cst_164 = arith.constant dense<0.000000e+00> : vector<2x20xf32>
    %604 = tpu.matmul %521, %0, %cst_164 {dimension_numbers = #tpu.dot_dimension_numbers<[1], [0], [0], [1], [0, 0, 1, 1], [], []>} : vector<2x5xf32>, vector<5x20xf32>, vector<2x20xf32> -> vector<2x20xf32>
    %605 = arith.addf %55, %604 : vector<2x20xf32>
    %606 = arith.negf %605 : vector<2x20xf32>
    %607 = math.exp %606 : vector<2x20xf32>
    %cst_165 = arith.constant 1.000000e+00 : f32
    %608 = vector.broadcast %cst_165 : f32 to vector<2x20xf32>
    %609 = arith.addf %608, %607 : vector<2x20xf32>
    %610 = arith.divf %608, %609 : vector<2x20xf32>
    %611 = vector.extract_strided_slice %610 {offsets = [0, 0], sizes = [2, 5], strides = [1, 1]} : vector<2x20xf32> to vector<2x5xf32>
    %612 = vector.extract_strided_slice %610 {offsets = [0, 5], sizes = [2, 5], strides = [1, 1]} : vector<2x20xf32> to vector<2x5xf32>
    %613 = vector.extract_strided_slice %610 {offsets = [0, 10], sizes = [2, 5], strides = [1, 1]} : vector<2x20xf32> to vector<2x5xf32>
    %cst_166 = arith.constant 2.000000e+00 : f32
    %614 = vector.broadcast %cst_166 : f32 to vector<2x5xf32>
    %615 = arith.mulf %614, %613 : vector<2x5xf32>
    %cst_167 = arith.constant 1.000000e+00 : f32
    %616 = vector.broadcast %cst_167 : f32 to vector<2x5xf32>
    %617 = arith.subf %615, %616 : vector<2x5xf32>
    %618 = vector.extract_strided_slice %610 {offsets = [0, 15], sizes = [2, 5], strides = [1, 1]} : vector<2x20xf32> to vector<2x5xf32>
    %619 = arith.mulf %612, %519 : vector<2x5xf32>
    %620 = arith.mulf %611, %617 : vector<2x5xf32>
    %621 = arith.addf %619, %620 : vector<2x5xf32>
    %622 = math.tanh %621 : vector<2x5xf32>
    %623 = arith.mulf %618, %622 : vector<2x5xf32>
    %cst_168 = arith.constant dense<0.000000e+00> : vector<2x20xf32>
    %624 = tpu.matmul %521, %1, %cst_168 {dimension_numbers = #tpu.dot_dimension_numbers<[1], [0], [0], [1], [0, 0, 1, 1], [], []>} : vector<2x5xf32>, vector<5x20xf32>, vector<2x20xf32> -> vector<2x20xf32>
    %cst_169 = arith.constant dense<0.000000e+00> : vector<2x20xf32>
    %625 = tpu.matmul %544, %2, %cst_169 {dimension_numbers = #tpu.dot_dimension_numbers<[1], [0], [0], [1], [0, 0, 1, 1], [], []>} : vector<2x5xf32>, vector<5x20xf32>, vector<2x20xf32> -> vector<2x20xf32>
    %626 = arith.addf %624, %625 : vector<2x20xf32>
    %627 = vector.broadcast %3 : vector<1x20xf32> to vector<2x20xf32>
    %628 = arith.addf %626, %627 : vector<2x20xf32>
    %629 = arith.negf %628 : vector<2x20xf32>
    %630 = math.exp %629 : vector<2x20xf32>
    %cst_170 = arith.constant 1.000000e+00 : f32
    %631 = vector.broadcast %cst_170 : f32 to vector<2x20xf32>
    %632 = arith.addf %631, %630 : vector<2x20xf32>
    %633 = arith.divf %631, %632 : vector<2x20xf32>
    %634 = vector.extract_strided_slice %633 {offsets = [0, 0], sizes = [2, 5], strides = [1, 1]} : vector<2x20xf32> to vector<2x5xf32>
    %635 = vector.extract_strided_slice %633 {offsets = [0, 5], sizes = [2, 5], strides = [1, 1]} : vector<2x20xf32> to vector<2x5xf32>
    %636 = vector.extract_strided_slice %633 {offsets = [0, 10], sizes = [2, 5], strides = [1, 1]} : vector<2x20xf32> to vector<2x5xf32>
    %cst_171 = arith.constant 2.000000e+00 : f32
    %637 = vector.broadcast %cst_171 : f32 to vector<2x5xf32>
    %638 = arith.mulf %637, %636 : vector<2x5xf32>
    %cst_172 = arith.constant 1.000000e+00 : f32
    %639 = vector.broadcast %cst_172 : f32 to vector<2x5xf32>
    %640 = arith.subf %638, %639 : vector<2x5xf32>
    %641 = vector.extract_strided_slice %633 {offsets = [0, 15], sizes = [2, 5], strides = [1, 1]} : vector<2x20xf32> to vector<2x5xf32>
    %642 = arith.mulf %635, %542 : vector<2x5xf32>
    %643 = arith.mulf %634, %640 : vector<2x5xf32>
    %644 = arith.addf %642, %643 : vector<2x5xf32>
    %645 = math.tanh %644 : vector<2x5xf32>
    %646 = arith.mulf %641, %645 : vector<2x5xf32>
    %cst_173 = arith.constant dense<0.000000e+00> : vector<2x5xf32>
    %647 = tpu.matmul %646, %4, %cst_173 {dimension_numbers = #tpu.dot_dimension_numbers<[1], [0], [0], [1], [0, 0, 1, 1], [], []>} : vector<2x5xf32>, vector<5x5xf32>, vector<2x5xf32> -> vector<2x5xf32>
    %648 = vector.broadcast %5 : vector<1x5xf32> to vector<2x5xf32>
    %649 = arith.addf %647, %648 : vector<2x5xf32>
    %cst_174 = arith.constant 0.000000e+00 : f32
    %650 = vector.broadcast %cst_174 : f32 to vector<2x5xf32>
    %651 = arith.maximumf %649, %650 : vector<2x5xf32>
    %cst_175 = arith.constant dense<0.000000e+00> : vector<2x20xf32>
    %652 = tpu.matmul %549, %6, %cst_175 {dimension_numbers = #tpu.dot_dimension_numbers<[1], [0], [0], [1], [0, 0, 1, 1], [], []>} : vector<2x5xf32>, vector<5x20xf32>, vector<2x20xf32> -> vector<2x20xf32>
    %cst_176 = arith.constant dense<0.000000e+00> : vector<2x20xf32>
    %653 = tpu.matmul %572, %7, %cst_176 {dimension_numbers = #tpu.dot_dimension_numbers<[1], [0], [0], [1], [0, 0, 1, 1], [], []>} : vector<2x5xf32>, vector<5x20xf32>, vector<2x20xf32> -> vector<2x20xf32>
    %654 = arith.addf %652, %653 : vector<2x20xf32>
    %655 = vector.broadcast %8 : vector<1x20xf32> to vector<2x20xf32>
    %656 = arith.addf %654, %655 : vector<2x20xf32>
    %657 = arith.negf %656 : vector<2x20xf32>
    %658 = math.exp %657 : vector<2x20xf32>
    %cst_177 = arith.constant 1.000000e+00 : f32
    %659 = vector.broadcast %cst_177 : f32 to vector<2x20xf32>
    %660 = arith.addf %659, %658 : vector<2x20xf32>
    %661 = arith.divf %659, %660 : vector<2x20xf32>
    %662 = vector.extract_strided_slice %661 {offsets = [0, 0], sizes = [2, 5], strides = [1, 1]} : vector<2x20xf32> to vector<2x5xf32>
    %663 = vector.extract_strided_slice %661 {offsets = [0, 5], sizes = [2, 5], strides = [1, 1]} : vector<2x20xf32> to vector<2x5xf32>
    %664 = vector.extract_strided_slice %661 {offsets = [0, 10], sizes = [2, 5], strides = [1, 1]} : vector<2x20xf32> to vector<2x5xf32>
    %cst_178 = arith.constant 2.000000e+00 : f32
    %665 = vector.broadcast %cst_178 : f32 to vector<2x5xf32>
    %666 = arith.mulf %665, %664 : vector<2x5xf32>
    %cst_179 = arith.constant 1.000000e+00 : f32
    %667 = vector.broadcast %cst_179 : f32 to vector<2x5xf32>
    %668 = arith.subf %666, %667 : vector<2x5xf32>
    %669 = vector.extract_strided_slice %661 {offsets = [0, 15], sizes = [2, 5], strides = [1, 1]} : vector<2x20xf32> to vector<2x5xf32>
    %670 = arith.mulf %663, %570 : vector<2x5xf32>
    %671 = arith.mulf %662, %668 : vector<2x5xf32>
    %672 = arith.addf %670, %671 : vector<2x5xf32>
    %673 = math.tanh %672 : vector<2x5xf32>
    %674 = arith.mulf %669, %673 : vector<2x5xf32>
    %cst_180 = arith.constant dense<0.000000e+00> : vector<2x20xf32>
    %675 = tpu.matmul %572, %9, %cst_180 {dimension_numbers = #tpu.dot_dimension_numbers<[1], [0], [0], [1], [0, 0, 1, 1], [], []>} : vector<2x5xf32>, vector<5x20xf32>, vector<2x20xf32> -> vector<2x20xf32>
    %cst_181 = arith.constant dense<0.000000e+00> : vector<2x20xf32>
    %676 = tpu.matmul %595, %10, %cst_181 {dimension_numbers = #tpu.dot_dimension_numbers<[1], [0], [0], [1], [0, 0, 1, 1], [], []>} : vector<2x5xf32>, vector<5x20xf32>, vector<2x20xf32> -> vector<2x20xf32>
    %677 = arith.addf %675, %676 : vector<2x20xf32>
    %678 = vector.broadcast %11 : vector<1x20xf32> to vector<2x20xf32>
    %679 = arith.addf %677, %678 : vector<2x20xf32>
    %680 = arith.negf %679 : vector<2x20xf32>
    %681 = math.exp %680 : vector<2x20xf32>
    %cst_182 = arith.constant 1.000000e+00 : f32
    %682 = vector.broadcast %cst_182 : f32 to vector<2x20xf32>
    %683 = arith.addf %682, %681 : vector<2x20xf32>
    %684 = arith.divf %682, %683 : vector<2x20xf32>
    %685 = vector.extract_strided_slice %684 {offsets = [0, 0], sizes = [2, 5], strides = [1, 1]} : vector<2x20xf32> to vector<2x5xf32>
    %686 = vector.extract_strided_slice %684 {offsets = [0, 5], sizes = [2, 5], strides = [1, 1]} : vector<2x20xf32> to vector<2x5xf32>
    %687 = vector.extract_strided_slice %684 {offsets = [0, 10], sizes = [2, 5], strides = [1, 1]} : vector<2x20xf32> to vector<2x5xf32>
    %cst_183 = arith.constant 2.000000e+00 : f32
    %688 = vector.broadcast %cst_183 : f32 to vector<2x5xf32>
    %689 = arith.mulf %688, %687 : vector<2x5xf32>
    %cst_184 = arith.constant 1.000000e+00 : f32
    %690 = vector.broadcast %cst_184 : f32 to vector<2x5xf32>
    %691 = arith.subf %689, %690 : vector<2x5xf32>
    %692 = vector.extract_strided_slice %684 {offsets = [0, 15], sizes = [2, 5], strides = [1, 1]} : vector<2x20xf32> to vector<2x5xf32>
    %693 = arith.mulf %686, %593 : vector<2x5xf32>
    %694 = arith.mulf %685, %691 : vector<2x5xf32>
    %695 = arith.addf %693, %694 : vector<2x5xf32>
    %696 = math.tanh %695 : vector<2x5xf32>
    %697 = arith.mulf %692, %696 : vector<2x5xf32>
    %cst_185 = arith.constant dense<0.000000e+00> : vector<2x5xf32>
    %698 = tpu.matmul %697, %12, %cst_185 {dimension_numbers = #tpu.dot_dimension_numbers<[1], [0], [0], [1], [0, 0, 1, 1], [], []>} : vector<2x5xf32>, vector<5x5xf32>, vector<2x5xf32> -> vector<2x5xf32>
    %699 = vector.broadcast %13 : vector<1x5xf32> to vector<2x5xf32>
    %700 = arith.addf %698, %699 : vector<2x5xf32>
    %701 = arith.negf %700 : vector<2x5xf32>
    %702 = math.exp %701 : vector<2x5xf32>
    %cst_186 = arith.constant 1.000000e+00 : f32
    %703 = vector.broadcast %cst_186 : f32 to vector<2x5xf32>
    %704 = arith.addf %703, %702 : vector<2x5xf32>
    %705 = arith.divf %703, %704 : vector<2x5xf32>
    %cst_187 = arith.constant dense<0.000000e+00> : vector<2x20xf32>
    %706 = tpu.matmul %623, %1, %cst_187 {dimension_numbers = #tpu.dot_dimension_numbers<[1], [0], [0], [1], [0, 0, 1, 1], [], []>} : vector<2x5xf32>, vector<5x20xf32>, vector<2x20xf32> -> vector<2x20xf32>
    %cst_188 = arith.constant dense<0.000000e+00> : vector<2x20xf32>
    %707 = tpu.matmul %646, %2, %cst_188 {dimension_numbers = #tpu.dot_dimension_numbers<[1], [0], [0], [1], [0, 0, 1, 1], [], []>} : vector<2x5xf32>, vector<5x20xf32>, vector<2x20xf32> -> vector<2x20xf32>
    %708 = arith.addf %706, %707 : vector<2x20xf32>
    %709 = vector.broadcast %3 : vector<1x20xf32> to vector<2x20xf32>
    %710 = arith.addf %708, %709 : vector<2x20xf32>
    %711 = arith.negf %710 : vector<2x20xf32>
    %712 = math.exp %711 : vector<2x20xf32>
    %cst_189 = arith.constant 1.000000e+00 : f32
    %713 = vector.broadcast %cst_189 : f32 to vector<2x20xf32>
    %714 = arith.addf %713, %712 : vector<2x20xf32>
    %715 = arith.divf %713, %714 : vector<2x20xf32>
    %716 = vector.extract_strided_slice %715 {offsets = [0, 0], sizes = [2, 5], strides = [1, 1]} : vector<2x20xf32> to vector<2x5xf32>
    %717 = vector.extract_strided_slice %715 {offsets = [0, 5], sizes = [2, 5], strides = [1, 1]} : vector<2x20xf32> to vector<2x5xf32>
    %718 = vector.extract_strided_slice %715 {offsets = [0, 10], sizes = [2, 5], strides = [1, 1]} : vector<2x20xf32> to vector<2x5xf32>
    %cst_190 = arith.constant 2.000000e+00 : f32
    %719 = vector.broadcast %cst_190 : f32 to vector<2x5xf32>
    %720 = arith.mulf %719, %718 : vector<2x5xf32>
    %cst_191 = arith.constant 1.000000e+00 : f32
    %721 = vector.broadcast %cst_191 : f32 to vector<2x5xf32>
    %722 = arith.subf %720, %721 : vector<2x5xf32>
    %723 = vector.extract_strided_slice %715 {offsets = [0, 15], sizes = [2, 5], strides = [1, 1]} : vector<2x20xf32> to vector<2x5xf32>
    %724 = arith.mulf %717, %644 : vector<2x5xf32>
    %725 = arith.mulf %716, %722 : vector<2x5xf32>
    %726 = arith.addf %724, %725 : vector<2x5xf32>
    %727 = math.tanh %726 : vector<2x5xf32>
    %728 = arith.mulf %723, %727 : vector<2x5xf32>
    %cst_192 = arith.constant dense<0.000000e+00> : vector<2x5xf32>
    %729 = tpu.matmul %728, %4, %cst_192 {dimension_numbers = #tpu.dot_dimension_numbers<[1], [0], [0], [1], [0, 0, 1, 1], [], []>} : vector<2x5xf32>, vector<5x5xf32>, vector<2x5xf32> -> vector<2x5xf32>
    %730 = vector.broadcast %5 : vector<1x5xf32> to vector<2x5xf32>
    %731 = arith.addf %729, %730 : vector<2x5xf32>
    %cst_193 = arith.constant 0.000000e+00 : f32
    %732 = vector.broadcast %cst_193 : f32 to vector<2x5xf32>
    %733 = arith.maximumf %731, %732 : vector<2x5xf32>
    %cst_194 = arith.constant dense<0.000000e+00> : vector<2x20xf32>
    %734 = tpu.matmul %651, %6, %cst_194 {dimension_numbers = #tpu.dot_dimension_numbers<[1], [0], [0], [1], [0, 0, 1, 1], [], []>} : vector<2x5xf32>, vector<5x20xf32>, vector<2x20xf32> -> vector<2x20xf32>
    %cst_195 = arith.constant dense<0.000000e+00> : vector<2x20xf32>
    %735 = tpu.matmul %674, %7, %cst_195 {dimension_numbers = #tpu.dot_dimension_numbers<[1], [0], [0], [1], [0, 0, 1, 1], [], []>} : vector<2x5xf32>, vector<5x20xf32>, vector<2x20xf32> -> vector<2x20xf32>
    %736 = arith.addf %734, %735 : vector<2x20xf32>
    %737 = vector.broadcast %8 : vector<1x20xf32> to vector<2x20xf32>
    %738 = arith.addf %736, %737 : vector<2x20xf32>
    %739 = arith.negf %738 : vector<2x20xf32>
    %740 = math.exp %739 : vector<2x20xf32>
    %cst_196 = arith.constant 1.000000e+00 : f32
    %741 = vector.broadcast %cst_196 : f32 to vector<2x20xf32>
    %742 = arith.addf %741, %740 : vector<2x20xf32>
    %743 = arith.divf %741, %742 : vector<2x20xf32>
    %744 = vector.extract_strided_slice %743 {offsets = [0, 0], sizes = [2, 5], strides = [1, 1]} : vector<2x20xf32> to vector<2x5xf32>
    %745 = vector.extract_strided_slice %743 {offsets = [0, 5], sizes = [2, 5], strides = [1, 1]} : vector<2x20xf32> to vector<2x5xf32>
    %746 = vector.extract_strided_slice %743 {offsets = [0, 10], sizes = [2, 5], strides = [1, 1]} : vector<2x20xf32> to vector<2x5xf32>
    %cst_197 = arith.constant 2.000000e+00 : f32
    %747 = vector.broadcast %cst_197 : f32 to vector<2x5xf32>
    %748 = arith.mulf %747, %746 : vector<2x5xf32>
    %cst_198 = arith.constant 1.000000e+00 : f32
    %749 = vector.broadcast %cst_198 : f32 to vector<2x5xf32>
    %750 = arith.subf %748, %749 : vector<2x5xf32>
    %751 = vector.extract_strided_slice %743 {offsets = [0, 15], sizes = [2, 5], strides = [1, 1]} : vector<2x20xf32> to vector<2x5xf32>
    %752 = arith.mulf %745, %672 : vector<2x5xf32>
    %753 = arith.mulf %744, %750 : vector<2x5xf32>
    %754 = arith.addf %752, %753 : vector<2x5xf32>
    %755 = math.tanh %754 : vector<2x5xf32>
    %756 = arith.mulf %751, %755 : vector<2x5xf32>
    %cst_199 = arith.constant dense<0.000000e+00> : vector<2x20xf32>
    %757 = tpu.matmul %674, %9, %cst_199 {dimension_numbers = #tpu.dot_dimension_numbers<[1], [0], [0], [1], [0, 0, 1, 1], [], []>} : vector<2x5xf32>, vector<5x20xf32>, vector<2x20xf32> -> vector<2x20xf32>
    %cst_200 = arith.constant dense<0.000000e+00> : vector<2x20xf32>
    %758 = tpu.matmul %697, %10, %cst_200 {dimension_numbers = #tpu.dot_dimension_numbers<[1], [0], [0], [1], [0, 0, 1, 1], [], []>} : vector<2x5xf32>, vector<5x20xf32>, vector<2x20xf32> -> vector<2x20xf32>
    %759 = arith.addf %757, %758 : vector<2x20xf32>
    %760 = vector.broadcast %11 : vector<1x20xf32> to vector<2x20xf32>
    %761 = arith.addf %759, %760 : vector<2x20xf32>
    %762 = arith.negf %761 : vector<2x20xf32>
    %763 = math.exp %762 : vector<2x20xf32>
    %cst_201 = arith.constant 1.000000e+00 : f32
    %764 = vector.broadcast %cst_201 : f32 to vector<2x20xf32>
    %765 = arith.addf %764, %763 : vector<2x20xf32>
    %766 = arith.divf %764, %765 : vector<2x20xf32>
    %767 = vector.extract_strided_slice %766 {offsets = [0, 0], sizes = [2, 5], strides = [1, 1]} : vector<2x20xf32> to vector<2x5xf32>
    %768 = vector.extract_strided_slice %766 {offsets = [0, 5], sizes = [2, 5], strides = [1, 1]} : vector<2x20xf32> to vector<2x5xf32>
    %769 = vector.extract_strided_slice %766 {offsets = [0, 10], sizes = [2, 5], strides = [1, 1]} : vector<2x20xf32> to vector<2x5xf32>
    %cst_202 = arith.constant 2.000000e+00 : f32
    %770 = vector.broadcast %cst_202 : f32 to vector<2x5xf32>
    %771 = arith.mulf %770, %769 : vector<2x5xf32>
    %cst_203 = arith.constant 1.000000e+00 : f32
    %772 = vector.broadcast %cst_203 : f32 to vector<2x5xf32>
    %773 = arith.subf %771, %772 : vector<2x5xf32>
    %774 = vector.extract_strided_slice %766 {offsets = [0, 15], sizes = [2, 5], strides = [1, 1]} : vector<2x20xf32> to vector<2x5xf32>
    %775 = arith.mulf %768, %695 : vector<2x5xf32>
    %776 = arith.mulf %767, %773 : vector<2x5xf32>
    %777 = arith.addf %775, %776 : vector<2x5xf32>
    %778 = math.tanh %777 : vector<2x5xf32>
    %779 = arith.mulf %774, %778 : vector<2x5xf32>
    %cst_204 = arith.constant dense<0.000000e+00> : vector<2x5xf32>
    %780 = tpu.matmul %779, %12, %cst_204 {dimension_numbers = #tpu.dot_dimension_numbers<[1], [0], [0], [1], [0, 0, 1, 1], [], []>} : vector<2x5xf32>, vector<5x5xf32>, vector<2x5xf32> -> vector<2x5xf32>
    %781 = vector.broadcast %13 : vector<1x5xf32> to vector<2x5xf32>
    %782 = arith.addf %780, %781 : vector<2x5xf32>
    %783 = arith.negf %782 : vector<2x5xf32>
    %784 = math.exp %783 : vector<2x5xf32>
    %cst_205 = arith.constant 1.000000e+00 : f32
    %785 = vector.broadcast %cst_205 : f32 to vector<2x5xf32>
    %786 = arith.addf %785, %784 : vector<2x5xf32>
    %787 = arith.divf %785, %786 : vector<2x5xf32>
    %cst_206 = arith.constant dense<0.000000e+00> : vector<2x20xf32>
    %788 = tpu.matmul %733, %6, %cst_206 {dimension_numbers = #tpu.dot_dimension_numbers<[1], [0], [0], [1], [0, 0, 1, 1], [], []>} : vector<2x5xf32>, vector<5x20xf32>, vector<2x20xf32> -> vector<2x20xf32>
    %cst_207 = arith.constant dense<0.000000e+00> : vector<2x20xf32>
    %789 = tpu.matmul %756, %7, %cst_207 {dimension_numbers = #tpu.dot_dimension_numbers<[1], [0], [0], [1], [0, 0, 1, 1], [], []>} : vector<2x5xf32>, vector<5x20xf32>, vector<2x20xf32> -> vector<2x20xf32>
    %790 = arith.addf %788, %789 : vector<2x20xf32>
    %791 = vector.broadcast %8 : vector<1x20xf32> to vector<2x20xf32>
    %792 = arith.addf %790, %791 : vector<2x20xf32>
    %793 = arith.negf %792 : vector<2x20xf32>
    %794 = math.exp %793 : vector<2x20xf32>
    %cst_208 = arith.constant 1.000000e+00 : f32
    %795 = vector.broadcast %cst_208 : f32 to vector<2x20xf32>
    %796 = arith.addf %795, %794 : vector<2x20xf32>
    %797 = arith.divf %795, %796 : vector<2x20xf32>
    %798 = vector.extract_strided_slice %797 {offsets = [0, 0], sizes = [2, 5], strides = [1, 1]} : vector<2x20xf32> to vector<2x5xf32>
    %799 = vector.extract_strided_slice %797 {offsets = [0, 5], sizes = [2, 5], strides = [1, 1]} : vector<2x20xf32> to vector<2x5xf32>
    %800 = vector.extract_strided_slice %797 {offsets = [0, 10], sizes = [2, 5], strides = [1, 1]} : vector<2x20xf32> to vector<2x5xf32>
    %cst_209 = arith.constant 2.000000e+00 : f32
    %801 = vector.broadcast %cst_209 : f32 to vector<2x5xf32>
    %802 = arith.mulf %801, %800 : vector<2x5xf32>
    %cst_210 = arith.constant 1.000000e+00 : f32
    %803 = vector.broadcast %cst_210 : f32 to vector<2x5xf32>
    %804 = arith.subf %802, %803 : vector<2x5xf32>
    %805 = vector.extract_strided_slice %797 {offsets = [0, 15], sizes = [2, 5], strides = [1, 1]} : vector<2x20xf32> to vector<2x5xf32>
    %806 = arith.mulf %799, %754 : vector<2x5xf32>
    %807 = arith.mulf %798, %804 : vector<2x5xf32>
    %808 = arith.addf %806, %807 : vector<2x5xf32>
    %809 = math.tanh %808 : vector<2x5xf32>
    %810 = arith.mulf %805, %809 : vector<2x5xf32>
    %cst_211 = arith.constant dense<0.000000e+00> : vector<2x20xf32>
    %811 = tpu.matmul %756, %9, %cst_211 {dimension_numbers = #tpu.dot_dimension_numbers<[1], [0], [0], [1], [0, 0, 1, 1], [], []>} : vector<2x5xf32>, vector<5x20xf32>, vector<2x20xf32> -> vector<2x20xf32>
    %cst_212 = arith.constant dense<0.000000e+00> : vector<2x20xf32>
    %812 = tpu.matmul %779, %10, %cst_212 {dimension_numbers = #tpu.dot_dimension_numbers<[1], [0], [0], [1], [0, 0, 1, 1], [], []>} : vector<2x5xf32>, vector<5x20xf32>, vector<2x20xf32> -> vector<2x20xf32>
    %813 = arith.addf %811, %812 : vector<2x20xf32>
    %814 = vector.broadcast %11 : vector<1x20xf32> to vector<2x20xf32>
    %815 = arith.addf %813, %814 : vector<2x20xf32>
    %816 = arith.negf %815 : vector<2x20xf32>
    %817 = math.exp %816 : vector<2x20xf32>
    %cst_213 = arith.constant 1.000000e+00 : f32
    %818 = vector.broadcast %cst_213 : f32 to vector<2x20xf32>
    %819 = arith.addf %818, %817 : vector<2x20xf32>
    %820 = arith.divf %818, %819 : vector<2x20xf32>
    %821 = vector.extract_strided_slice %820 {offsets = [0, 0], sizes = [2, 5], strides = [1, 1]} : vector<2x20xf32> to vector<2x5xf32>
    %822 = vector.extract_strided_slice %820 {offsets = [0, 5], sizes = [2, 5], strides = [1, 1]} : vector<2x20xf32> to vector<2x5xf32>
    %823 = vector.extract_strided_slice %820 {offsets = [0, 10], sizes = [2, 5], strides = [1, 1]} : vector<2x20xf32> to vector<2x5xf32>
    %cst_214 = arith.constant 2.000000e+00 : f32
    %824 = vector.broadcast %cst_214 : f32 to vector<2x5xf32>
    %825 = arith.mulf %824, %823 : vector<2x5xf32>
    %cst_215 = arith.constant 1.000000e+00 : f32
    %826 = vector.broadcast %cst_215 : f32 to vector<2x5xf32>
    %827 = arith.subf %825, %826 : vector<2x5xf32>
    %828 = vector.extract_strided_slice %820 {offsets = [0, 15], sizes = [2, 5], strides = [1, 1]} : vector<2x20xf32> to vector<2x5xf32>
    %829 = arith.mulf %822, %777 : vector<2x5xf32>
    %830 = arith.mulf %821, %827 : vector<2x5xf32>
    %831 = arith.addf %829, %830 : vector<2x5xf32>
    %832 = math.tanh %831 : vector<2x5xf32>
    %833 = arith.mulf %828, %832 : vector<2x5xf32>
    %cst_216 = arith.constant dense<0.000000e+00> : vector<2x5xf32>
    %834 = tpu.matmul %833, %12, %cst_216 {dimension_numbers = #tpu.dot_dimension_numbers<[1], [0], [0], [1], [0, 0, 1, 1], [], []>} : vector<2x5xf32>, vector<5x5xf32>, vector<2x5xf32> -> vector<2x5xf32>
    %835 = vector.broadcast %13 : vector<1x5xf32> to vector<2x5xf32>
    %836 = arith.addf %834, %835 : vector<2x5xf32>
    %837 = arith.negf %836 : vector<2x5xf32>
    %838 = math.exp %837 : vector<2x5xf32>
    %cst_217 = arith.constant 1.000000e+00 : f32
    %839 = vector.broadcast %cst_217 : f32 to vector<2x5xf32>
    %840 = arith.addf %839, %838 : vector<2x5xf32>
    %841 = arith.divf %839, %840 : vector<2x5xf32>
    %cst_218 = arith.constant dense<0.000000e+00> : vector<2x20xf32>
    %842 = tpu.matmul %810, %9, %cst_218 {dimension_numbers = #tpu.dot_dimension_numbers<[1], [0], [0], [1], [0, 0, 1, 1], [], []>} : vector<2x5xf32>, vector<5x20xf32>, vector<2x20xf32> -> vector<2x20xf32>
    %cst_219 = arith.constant dense<0.000000e+00> : vector<2x20xf32>
    %843 = tpu.matmul %833, %10, %cst_219 {dimension_numbers = #tpu.dot_dimension_numbers<[1], [0], [0], [1], [0, 0, 1, 1], [], []>} : vector<2x5xf32>, vector<5x20xf32>, vector<2x20xf32> -> vector<2x20xf32>
    %844 = arith.addf %842, %843 : vector<2x20xf32>
    %845 = vector.broadcast %11 : vector<1x20xf32> to vector<2x20xf32>
    %846 = arith.addf %844, %845 : vector<2x20xf32>
    %847 = arith.negf %846 : vector<2x20xf32>
    %848 = math.exp %847 : vector<2x20xf32>
    %cst_220 = arith.constant 1.000000e+00 : f32
    %849 = vector.broadcast %cst_220 : f32 to vector<2x20xf32>
    %850 = arith.addf %849, %848 : vector<2x20xf32>
    %851 = arith.divf %849, %850 : vector<2x20xf32>
    %852 = vector.extract_strided_slice %851 {offsets = [0, 0], sizes = [2, 5], strides = [1, 1]} : vector<2x20xf32> to vector<2x5xf32>
    %853 = vector.extract_strided_slice %851 {offsets = [0, 5], sizes = [2, 5], strides = [1, 1]} : vector<2x20xf32> to vector<2x5xf32>
    %854 = vector.extract_strided_slice %851 {offsets = [0, 10], sizes = [2, 5], strides = [1, 1]} : vector<2x20xf32> to vector<2x5xf32>
    %cst_221 = arith.constant 2.000000e+00 : f32
    %855 = vector.broadcast %cst_221 : f32 to vector<2x5xf32>
    %856 = arith.mulf %855, %854 : vector<2x5xf32>
    %cst_222 = arith.constant 1.000000e+00 : f32
    %857 = vector.broadcast %cst_222 : f32 to vector<2x5xf32>
    %858 = arith.subf %856, %857 : vector<2x5xf32>
    %859 = vector.extract_strided_slice %851 {offsets = [0, 15], sizes = [2, 5], strides = [1, 1]} : vector<2x20xf32> to vector<2x5xf32>
    %860 = arith.mulf %853, %831 : vector<2x5xf32>
    %861 = arith.mulf %852, %858 : vector<2x5xf32>
    %862 = arith.addf %860, %861 : vector<2x5xf32>
    %863 = math.tanh %862 : vector<2x5xf32>
    %864 = arith.mulf %859, %863 : vector<2x5xf32>
    %cst_223 = arith.constant dense<0.000000e+00> : vector<2x5xf32>
    %865 = tpu.matmul %864, %12, %cst_223 {dimension_numbers = #tpu.dot_dimension_numbers<[1], [0], [0], [1], [0, 0, 1, 1], [], []>} : vector<2x5xf32>, vector<5x5xf32>, vector<2x5xf32> -> vector<2x5xf32>
    %866 = vector.broadcast %13 : vector<1x5xf32> to vector<2x5xf32>
    %867 = arith.addf %865, %866 : vector<2x5xf32>
    %868 = arith.negf %867 : vector<2x5xf32>
    %869 = math.exp %868 : vector<2x5xf32>
    %cst_224 = arith.constant 1.000000e+00 : f32
    %870 = vector.broadcast %cst_224 : f32 to vector<2x5xf32>
    %871 = arith.addf %870, %869 : vector<2x5xf32>
    %872 = arith.divf %870, %871 : vector<2x5xf32>
    %873 = tpu.concatenate %297, %399, %501, %603, %705, %787, %841, %872 in 1 : vector<2x5xf32>, vector<2x5xf32>, vector<2x5xf32>, vector<2x5xf32>, vector<2x5xf32>, vector<2x5xf32>, vector<2x5xf32>, vector<2x5xf32> -> vector<2x40xf32>
    %c0_225 = arith.constant 0 : index
    %c0_226 = arith.constant 0 : index
    %874 = vector.load %arg2[%c0_225, %c0_226] : memref<2x40xf32, #tpu.memory_space<vmem>>, vector<2x40xf32>
    tpu.vector_store %arg2[%c0_225, %c0_226], %873 {strides = array<i32>} : memref<2x40xf32, #tpu.memory_space<vmem>>, vector<2x40xf32>,
    return
  }
}

</mosaic_0001>

<llo_original>
// kernel: lstm_model_forward.1
$region0: #{lstm_model_forward.1}
  #allocation0 [shape = 'u32[]', space=smem, size = 0x4, offset = 0x4, fixed_abs, tag = 'smem constant byte address 0x4 - core index']
  #allocation1 [shape = 'u32[144,128]{1,0:T(1,128)}', space=vmem, size = 0x12000, scoped, tag = 'internal scratch']
  %s0 = inlined_call_operand.vmem [shape: f32[2,8,225], index: 0, kind: input, shape index: {}]
  %s1 = inlined_call_operand.vmem [shape: f32[352,20], index: 1, kind: input, shape index: {}]
  %s2 = inlined_call_operand.vmem [shape: f32[2,40], index: 2, kind: output, shape index: {}]
  %s3 = sld [smem:[#allocation0]]
  $region18: #{lstm_model_forward.1} parent=0
    _
  %s5 = ssub.s32 1, %s3
  %s6 = scalar_select 0, %s5, %s3
  // Predicated region
  $region2: #{lstm_model_forward.1} parent=0 // pred_check
    _
  $region3: #{lstm_model_forward.1} parent=0 // pred_check_branch
    %8 = sbr.rel (0) target = $region5
  $region4: #{lstm_model_forward.1} parent=0 // pred_region
    _
  $region5: #{lstm_model_forward.1} parent=0 // pred_fallthru
    _
  // Predicated region
  $region6: #{lstm_model_forward.1} parent=0 // pred_check
    _
  $region7: #{lstm_model_forward.1} parent=0 // pred_check_branch
    %10 = sbr.rel (0) target = $region9
  $region8: #{lstm_model_forward.1} parent=0 // pred_region
    _
  $region9: #{lstm_model_forward.1} parent=0 // pred_fallthru
    _
  %v11 = vld [vmem:[%s1 + $0xe8] sm:$0x1f]
  %v12 = vld [vmem:[%s1 + $0xf8] sm:$0x1f]
  %v13 = vld [vmem:[%s1 + $0x100] sm:$0x1f]
  %v14 = vld [vmem:[%s1 + $0x108] sm:$0x1]
  %v15 = vld [vmem:[%s1 + $0x110] sm:$0x1f]
  %v16 = vld [vmem:[%s1 + $0x118] sm:$0x1]
  %v17 = vld [vmem:[%s1 + $0x120] sm:$0x1f]
  %v18 = vld [vmem:[%s1 + $0x128] sm:$0x1f]
  %v19 = vld [vmem:[%s1 + $0x130] sm:$0x1]
  %v20 = vld [vmem:[%s1 + $0x138] sm:$0x1f]
  %v21 = vld [vmem:[%s1 + $0x140] sm:$0x1f]
  %v22 = vld [vmem:[%s1 + $0x148] sm:$0x1]
  %v23 = vld [vmem:[%s1 + $0x150] sm:$0x1f]
  %v24 = vld [vmem:[%s1 + $0x158] sm:$0x1]
  %v25 = vld [vmem:[%s1] sm:$0xff]
  %v26 = vld [vmem:[%s1 + $0x8] sm:$0xff]
  %v27 = vld [vmem:[%s1 + $0x10] sm:$0xff]
  %v28 = vld [vmem:[%s1 + $0x18] sm:$0xff]
  %v29 = vld [vmem:[%s1 + $0x20] sm:$0xff]
  %v30 = vld [vmem:[%s1 + $0x28] sm:$0xff]
  %v31 = vld [vmem:[%s1 + $0x30] sm:$0xff]
  %v32 = vld [vmem:[%s1 + $0x38] sm:$0xff]
  %v33 = vld [vmem:[%s1 + $0x40] sm:$0xff]
  %v34 = vld [vmem:[%s1 + $0x48] sm:$0xff]
  %v35 = vld [vmem:[%s1 + $0x50] sm:$0xff]
  %v36 = vld [vmem:[%s1 + $0x58] sm:$0xff]
  %v37 = vld [vmem:[%s1 + $0x60] sm:$0xff]
  %v38 = vld [vmem:[%s1 + $0x68] sm:$0xff]
  %v39 = vld [vmem:[%s1 + $0x70] sm:$0xff]
  %v40 = vld [vmem:[%s1 + $0x78] sm:$0xff]
  %v41 = vld [vmem:[%s1 + $0x80] sm:$0xff]
  %v42 = vld [vmem:[%s1 + $0x88] sm:$0xff]
  %v43 = vld [vmem:[%s1 + $0x90] sm:$0xff]
  %v44 = vld [vmem:[%s1 + $0x98] sm:$0xff]
  %v45 = vld [vmem:[%s1 + $0xa0] sm:$0xff]
  %v46 = vld [vmem:[%s1 + $0xa8] sm:$0xff]
  %v47 = vld [vmem:[%s1 + $0xb0] sm:$0xff]
  %v48 = vld [vmem:[%s1 + $0xb8] sm:$0xff]
  %v49 = vld [vmem:[%s1 + $0xc0] sm:$0xff]
  %v50 = vld [vmem:[%s1 + $0xc8] sm:$0xff]
  %v51 = vld [vmem:[%s1 + $0xd0] sm:$0xff]
  %v52 = vld [vmem:[%s1 + $0xd8] sm:$0xff]
  %v53 = vld [vmem:[%s1 + $0xe0] sm:$0x1]
  %v54 = vld [vmem:[%s1 + $0xf0] sm:$0x1]
  %v55 = vld [vmem:[%s0] ss:$8 sm:$0x3]
  %s56 = scalar_lea.vmem %s0, 16
  %v57 = vld [vmem:[%s56] ss:$8 sm:$0x3]
  %v58 = vlaneseq
  %v59 = vshrl.u32 %v58, 7
  %v60 = vsub.s32 0, %v59
  %v61 = vrot.slane %v54, %v60
  %v64 = vcombine.low %v55, %v57
  %v66 = vunpack.c.l.s4 1966171168
  %v67 = vunpack.c.0.s8 %v66
  %v68 = vlaneseq
  %v69 = vshrl.u32 %v68, 7
  %v70 = vsub.s32 %v67, %v69
  %v71 = vrot.slane %v64, %v70
  %v72 = vcombine.high %v71, %v71
  %v74 = vunpack.c.l.s4 1966171168
  %v75 = vunpack.c.0.s8 %v74
  %v76 = vlaneseq
  %v77 = vshrl.u32 %v76, 7
  %v78 = vsub.s32 %v75, %v77
  %v79 = vrot.slane %v71, %v78
  %v81 = vunpack.c.l.s4 1966171168
  %v82 = vunpack.c.0.s8 %v81
  %v83 = vlaneseq
  %v84 = vshrl.u32 %v83, 7
  %v85 = vsub.s32 %v82, %v84
  %v86 = vrot.slane %v72, %v85
  %vm88 = vcmask 793600
  %v89 = vsel %vm88, %v86, 0
  %vm91 = vcmask 1040384
  %v93 = vsel %vm91, %v53, 0
  %95 = vmatprep.subr.mxu0 0.0
  %96 = vmatpush1.msra.mxu0 %v40
  %97 = vmatprep.subr.mxu0 0.0
  %98 = vmatpush1.msra.mxu0 %v39
  %99 = vmatprep.subr.mxu0 0.0
  %100 = vmatpush1.msra.mxu0 %v38
  %101 = vmatprep.subr.mxu0 0.0
  %102 = vmatpush1.msra.mxu0 %v37
  %103 = vmatprep.subr.mxu0 0.0
  %104 = vmatpush1.msra.mxu0 %v36
  %105 = vmatprep.subr.mxu0 0.0
  %106 = vmatpush1.msra.mxu0 %v35
  %107 = vmatprep.subr.mxu0 0.0
  %108 = vmatpush1.msra.mxu0 %v34
  %109 = vmatprep.subr.mxu0 0.0
  %110 = vmatpush1.msra.mxu0 %v33
  %111 = vmatprep.subr.mxu0 0.0
  %112 = vmatpush1.msra.mxu0 %v32
  %113 = vmatprep.subr.mxu0 0.0
  %114 = vmatpush1.msra.mxu0 %v31
  %115 = vmatprep.subr.mxu0 0.0
  %116 = vmatpush1.msra.mxu0 %v30
  %117 = vmatprep.subr.mxu0 0.0
  %118 = vmatpush1.msra.mxu0 %v29
  %119 = vmatprep.subr.mxu0 0.0
  %120 = vmatpush1.msra.mxu0 %v28
  %121 = vmatprep.subr.mxu0 0.0
  %122 = vmatpush1.msra.mxu0 %v27
  %123 = vmatprep.subr.mxu0 0.0
  %124 = vmatpush1.msra.mxu0 %v26
  %125 = vmatprep.subr.mxu0 0.0
  %126 = vmatpush1.msra.mxu0 %v25
  %127 = vmatprep.subr.mxu0 0.0
  %128 = vmatpush2.msra.mxu0 0.0
  %129 = vmatprep.subr.mxu0 0.0
  %130 = vmatpush2.msra.mxu0 0.0
  %131 = vmatprep.subr.mxu0 0.0
  %132 = vmatpush2.msra.mxu0 0.0
  %133 = vmatprep.subr.mxu0 0.0
  %134 = vmatpush2.msra.mxu0 %v93
  %135 = vmatprep.subr.mxu0 0.0
  %136 = vmatpush2.msra.mxu0 %v52
  %137 = vmatprep.subr.mxu0 0.0
  %138 = vmatpush2.msra.mxu0 %v51
  %139 = vmatprep.subr.mxu0 0.0
  %140 = vmatpush2.msra.mxu0 %v50
  %141 = vmatprep.subr.mxu0 0.0
  %142 = vmatpush2.msra.mxu0 %v49
  %143 = vmatprep.subr.mxu0 0.0
  %144 = vmatpush2.msra.mxu0 %v48
  %145 = vmatprep.subr.mxu0 0.0
  %146 = vmatpush2.msra.mxu0 %v47
  %147 = vmatprep.subr.mxu0 0.0
  %148 = vmatpush2.msra.mxu0 %v46
  %149 = vmatprep.subr.mxu0 0.0
  %150 = vmatpush2.msra.mxu0 %v45
  %151 = vmatprep.subr.mxu0 0.0
  %152 = vmatpush2.msra.mxu0 %v44
  %153 = vmatprep.subr.mxu0 0.0
  %154 = vmatpush2.msra.mxu0 %v43
  %155 = vmatprep.subr.mxu0 0.0
  %156 = vmatpush2.msra.mxu0 %v42
  %157 = vmatprep.subr.mxu0 0.0
  %158 = vmatpush2.msra.mxu0 %v41
  %159 = vmatprep.mubr.f32.mxu0 %v89
  %160 = vmatmul.mubr.f32.gmra.mxu0 %v79
  %v161 = vpop.f32.mrf.mxu0
  %v162 = vadd.f32 %v61, %v161
  %v163 = vpop.f32.mrf.mxu0
  %164 = vdwg.mxu0
  %s165 = scalar_lea.vmem %s0, 1
  %v166 = vld [vmem:[%s165] ss:$8 sm:$0x3]
  %s167 = scalar_lea.vmem %s0, 17
  %v168 = vld [vmem:[%s167] ss:$8 sm:$0x3]
  %v171 = vcombine.low %v166, %v168
  %v173 = vunpack.c.l.s4 1966171168
  %v174 = vunpack.c.0.s8 %v173
  %v175 = vlaneseq
  %v176 = vshrl.u32 %v175, 7
  %v177 = vsub.s32 %v174, %v176
  %v178 = vrot.slane %v171, %v177
  %v179 = vcombine.high %v178, %v178
  %v181 = vunpack.c.l.s4 1966171168
  %v182 = vunpack.c.0.s8 %v181
  %v183 = vlaneseq
  %v184 = vshrl.u32 %v183, 7
  %v185 = vsub.s32 %v182, %v184
  %v186 = vrot.slane %v178, %v185
  %v188 = vunpack.c.l.s4 1966171168
  %v189 = vunpack.c.0.s8 %v188
  %v190 = vlaneseq
  %v191 = vshrl.u32 %v190, 7
  %v192 = vsub.s32 %v189, %v191
  %v193 = vrot.slane %v179, %v192
  %v195 = vsel %vm88, %v193, 0
  %197 = vmatprep.subr.mxu0 0.0
  %198 = vmatpush1.msra.mxu0 %v40
  %199 = vmatprep.subr.mxu0 0.0
  %200 = vmatpush1.msra.mxu0 %v39
  %201 = vmatprep.subr.mxu0 0.0
  %202 = vmatpush1.msra.mxu0 %v38
  %203 = vmatprep.subr.mxu0 0.0
  %204 = vmatpush1.msra.mxu0 %v37
  %205 = vmatprep.subr.mxu0 0.0
  %206 = vmatpush1.msra.mxu0 %v36
  %207 = vmatprep.subr.mxu0 0.0
  %208 = vmatpush1.msra.mxu0 %v35
  %209 = vmatprep.subr.mxu0 0.0
  %210 = vmatpush1.msra.mxu0 %v34
  %211 = vmatprep.subr.mxu0 0.0
  %212 = vmatpush1.msra.mxu0 %v33
  %213 = vmatprep.subr.mxu0 0.0
  %214 = vmatpush1.msra.mxu0 %v32
  %215 = vmatprep.subr.mxu0 0.0
  %216 = vmatpush1.msra.mxu0 %v31
  %217 = vmatprep.subr.mxu0 0.0
  %218 = vmatpush1.msra.mxu0 %v30
  %219 = vmatprep.subr.mxu0 0.0
  %220 = vmatpush1.msra.mxu0 %v29
  %221 = vmatprep.subr.mxu0 0.0
  %222 = vmatpush1.msra.mxu0 %v28
  %223 = vmatprep.subr.mxu0 0.0
  %224 = vmatpush1.msra.mxu0 %v27
  %225 = vmatprep.subr.mxu0 0.0
  %226 = vmatpush1.msra.mxu0 %v26
  %227 = vmatprep.subr.mxu0 0.0
  %228 = vmatpush1.msra.mxu0 %v25
  %229 = vmatprep.subr.mxu0 0.0
  %230 = vmatpush2.msra.mxu0 0.0
  %231 = vmatprep.subr.mxu0 0.0
  %232 = vmatpush2.msra.mxu0 0.0
  %233 = vmatprep.subr.mxu0 0.0
  %234 = vmatpush2.msra.mxu0 0.0
  %235 = vmatprep.subr.mxu0 0.0
  %236 = vmatpush2.msra.mxu0 %v93
  %237 = vmatprep.subr.mxu0 0.0
  %238 = vmatpush2.msra.mxu0 %v52
  %239 = vmatprep.subr.mxu0 0.0
  %240 = vmatpush2.msra.mxu0 %v51
  %241 = vmatprep.subr.mxu0 0.0
  %242 = vmatpush2.msra.mxu0 %v50
  %243 = vmatprep.subr.mxu0 0.0
  %244 = vmatpush2.msra.mxu0 %v49
  %245 = vmatprep.subr.mxu0 0.0
  %246 = vmatpush2.msra.mxu0 %v48
  %247 = vmatprep.subr.mxu0 0.0
  %248 = vmatpush2.msra.mxu0 %v47
  %249 = vmatprep.subr.mxu0 0.0
  %250 = vmatpush2.msra.mxu0 %v46
  %251 = vmatprep.subr.mxu0 0.0
  %252 = vmatpush2.msra.mxu0 %v45
  %253 = vmatprep.subr.mxu0 0.0
  %254 = vmatpush2.msra.mxu0 %v44
  %255 = vmatprep.subr.mxu0 0.0
  %256 = vmatpush2.msra.mxu0 %v43
  %257 = vmatprep.subr.mxu0 0.0
  %258 = vmatpush2.msra.mxu0 %v42
  %259 = vmatprep.subr.mxu0 0.0
  %260 = vmatpush2.msra.mxu0 %v41
  %261 = vmatprep.mubr.f32.mxu0 %v195
  %262 = vmatmul.mubr.f32.gmra.mxu0 %v186
  %v263 = vpop.f32.mrf.mxu0
  %v264 = vadd.f32 %v61, %v263
  %v265 = vpop.f32.mrf.mxu0
  %266 = vdwg.mxu0
  %s267 = scalar_lea.vmem %s0, 2
  %v268 = vld [vmem:[%s267] ss:$8 sm:$0x3]
  %s269 = scalar_lea.vmem %s0, 18
  %v270 = vld [vmem:[%s269] ss:$8 sm:$0x3]
  %v273 = vcombine.low %v268, %v270
  %v275 = vunpack.c.l.s4 1966171168
  %v276 = vunpack.c.0.s8 %v275
  %v277 = vlaneseq
  %v278 = vshrl.u32 %v277, 7
  %v279 = vsub.s32 %v276, %v278
  %v280 = vrot.slane %v273, %v279
  %v281 = vcombine.high %v280, %v280
  %v283 = vunpack.c.l.s4 1966171168
  %v284 = vunpack.c.0.s8 %v283
  %v285 = vlaneseq
  %v286 = vshrl.u32 %v285, 7
  %v287 = vsub.s32 %v284, %v286
  %v288 = vrot.slane %v280, %v287
  %v290 = vunpack.c.l.s4 1966171168
  %v291 = vunpack.c.0.s8 %v290
  %v292 = vlaneseq
  %v293 = vshrl.u32 %v292, 7
  %v294 = vsub.s32 %v291, %v293
  %v295 = vrot.slane %v281, %v294
  %v297 = vsel %vm88, %v295, 0
  %299 = vmatprep.subr.mxu0 0.0
  %300 = vmatpush1.msra.mxu0 %v40
  %301 = vmatprep.subr.mxu0 0.0
  %302 = vmatpush1.msra.mxu0 %v39
  %303 = vmatprep.subr.mxu0 0.0
  %304 = vmatpush1.msra.mxu0 %v38
  %305 = vmatprep.subr.mxu0 0.0
  %306 = vmatpush1.msra.mxu0 %v37
  %307 = vmatprep.subr.mxu0 0.0
  %308 = vmatpush1.msra.mxu0 %v36
  %309 = vmatprep.subr.mxu0 0.0
  %310 = vmatpush1.msra.mxu0 %v35
  %311 = vmatprep.subr.mxu0 0.0
  %312 = vmatpush1.msra.mxu0 %v34
  %313 = vmatprep.subr.mxu0 0.0
  %314 = vmatpush1.msra.mxu0 %v33
  %315 = vmatprep.subr.mxu0 0.0
  %316 = vmatpush1.msra.mxu0 %v32
  %317 = vmatprep.subr.mxu0 0.0
  %318 = vmatpush1.msra.mxu0 %v31
  %319 = vmatprep.subr.mxu0 0.0
  %320 = vmatpush1.msra.mxu0 %v30
  %321 = vmatprep.subr.mxu0 0.0
  %322 = vmatpush1.msra.mxu0 %v29
  %323 = vmatprep.subr.mxu0 0.0
  %324 = vmatpush1.msra.mxu0 %v28
  %325 = vmatprep.subr.mxu0 0.0
  %326 = vmatpush1.msra.mxu0 %v27
  %327 = vmatprep.subr.mxu0 0.0
  %328 = vmatpush1.msra.mxu0 %v26
  %329 = vmatprep.subr.mxu0 0.0
  %330 = vmatpush1.msra.mxu0 %v25
  %331 = vmatprep.subr.mxu0 0.0
  %332 = vmatpush2.msra.mxu0 0.0
  %333 = vmatprep.subr.mxu0 0.0
  %334 = vmatpush2.msra.mxu0 0.0
  %335 = vmatprep.subr.mxu0 0.0
  %336 = vmatpush2.msra.mxu0 0.0
  %337 = vmatprep.subr.mxu0 0.0
  %338 = vmatpush2.msra.mxu0 %v93
  %339 = vmatprep.subr.mxu0 0.0
  %340 = vmatpush2.msra.mxu0 %v52
  %341 = vmatprep.subr.mxu0 0.0
  %342 = vmatpush2.msra.mxu0 %v51
  %343 = vmatprep.subr.mxu0 0.0
  %344 = vmatpush2.msra.mxu0 %v50
  %345 = vmatprep.subr.mxu0 0.0
  %346 = vmatpush2.msra.mxu0 %v49
  %347 = vmatprep.subr.mxu0 0.0
  %348 = vmatpush2.msra.mxu0 %v48
  %349 = vmatprep.subr.mxu0 0.0
  %350 = vmatpush2.msra.mxu0 %v47
  %351 = vmatprep.subr.mxu0 0.0
  %352 = vmatpush2.msra.mxu0 %v46
  %353 = vmatprep.subr.mxu0 0.0
  %354 = vmatpush2.msra.mxu0 %v45
  %355 = vmatprep.subr.mxu0 0.0
  %356 = vmatpush2.msra.mxu0 %v44
  %357 = vmatprep.subr.mxu0 0.0
  %358 = vmatpush2.msra.mxu0 %v43
  %359 = vmatprep.subr.mxu0 0.0
  %360 = vmatpush2.msra.mxu0 %v42
  %361 = vmatprep.subr.mxu0 0.0
  %362 = vmatpush2.msra.mxu0 %v41
  %363 = vmatprep.mubr.f32.mxu0 %v297
  %364 = vmatmul.mubr.f32.gmra.mxu0 %v288
  %v365 = vpop.f32.mrf.mxu0
  %v366 = vadd.f32 %v61, %v365
  %v367 = vpop.f32.mrf.mxu0
  %368 = vdwg.mxu0
  %s369 = scalar_lea.vmem %s0, 3
  %v370 = vld [vmem:[%s369] ss:$8 sm:$0x3]
  %s371 = scalar_lea.vmem %s0, 19
  %v372 = vld [vmem:[%s371] ss:$8 sm:$0x3]
  %v375 = vcombine.low %v370, %v372
  %v377 = vunpack.c.l.s4 1966171168
  %v378 = vunpack.c.0.s8 %v377
  %v379 = vlaneseq
  %v380 = vshrl.u32 %v379, 7
  %v381 = vsub.s32 %v378, %v380
  %v382 = vrot.slane %v375, %v381
  %v383 = vcombine.high %v382, %v382
  %v385 = vunpack.c.l.s4 1966171168
  %v386 = vunpack.c.0.s8 %v385
  %v387 = vlaneseq
  %v388 = vshrl.u32 %v387, 7
  %v389 = vsub.s32 %v386, %v388
  %v390 = vrot.slane %v382, %v389
  %v392 = vunpack.c.l.s4 1966171168
  %v393 = vunpack.c.0.s8 %v392
  %v394 = vlaneseq
  %v395 = vshrl.u32 %v394, 7
  %v396 = vsub.s32 %v393, %v395
  %v397 = vrot.slane %v383, %v396
  %v399 = vsel %vm88, %v397, 0
  %401 = vmatprep.subr.mxu0 0.0
  %402 = vmatpush1.msra.mxu0 %v40
  %403 = vmatprep.subr.mxu0 0.0
  %404 = vmatpush1.msra.mxu0 %v39
  %405 = vmatprep.subr.mxu0 0.0
  %406 = vmatpush1.msra.mxu0 %v38
  %407 = vmatprep.subr.mxu0 0.0
  %408 = vmatpush1.msra.mxu0 %v37
  %409 = vmatprep.subr.mxu0 0.0
  %410 = vmatpush1.msra.mxu0 %v36
  %411 = vmatprep.subr.mxu0 0.0
  %412 = vmatpush1.msra.mxu0 %v35
  %413 = vmatprep.subr.mxu0 0.0
  %414 = vmatpush1.msra.mxu0 %v34
  %415 = vmatprep.subr.mxu0 0.0
  %416 = vmatpush1.msra.mxu0 %v33
  %417 = vmatprep.subr.mxu0 0.0
  %418 = vmatpush1.msra.mxu0 %v32
  %419 = vmatprep.subr.mxu0 0.0
  %420 = vmatpush1.msra.mxu0 %v31
  %421 = vmatprep.subr.mxu0 0.0
  %422 = vmatpush1.msra.mxu0 %v30
  %423 = vmatprep.subr.mxu0 0.0
  %424 = vmatpush1.msra.mxu0 %v29
  %425 = vmatprep.subr.mxu0 0.0
  %426 = vmatpush1.msra.mxu0 %v28
  %427 = vmatprep.subr.mxu0 0.0
  %428 = vmatpush1.msra.mxu0 %v27
  %429 = vmatprep.subr.mxu0 0.0
  %430 = vmatpush1.msra.mxu0 %v26
  %431 = vmatprep.subr.mxu0 0.0
  %432 = vmatpush1.msra.mxu0 %v25
  %433 = vmatprep.subr.mxu0 0.0
  %434 = vmatpush2.msra.mxu0 0.0
  %435 = vmatprep.subr.mxu0 0.0
  %436 = vmatpush2.msra.mxu0 0.0
  %437 = vmatprep.subr.mxu0 0.0
  %438 = vmatpush2.msra.mxu0 0.0
  %439 = vmatprep.subr.mxu0 0.0
  %440 = vmatpush2.msra.mxu0 %v93
  %441 = vmatprep.subr.mxu0 0.0
  %442 = vmatpush2.msra.mxu0 %v52
  %443 = vmatprep.subr.mxu0 0.0
  %444 = vmatpush2.msra.mxu0 %v51
  %445 = vmatprep.subr.mxu0 0.0
  %446 = vmatpush2.msra.mxu0 %v50
  %447 = vmatprep.subr.mxu0 0.0
  %448 = vmatpush2.msra.mxu0 %v49
  %449 = vmatprep.subr.mxu0 0.0
  %450 = vmatpush2.msra.mxu0 %v48
  %451 = vmatprep.subr.mxu0 0.0
  %452 = vmatpush2.msra.mxu0 %v47
  %453 = vmatprep.subr.mxu0 0.0
  %454 = vmatpush2.msra.mxu0 %v46
  %455 = vmatprep.subr.mxu0 0.0
  %456 = vmatpush2.msra.mxu0 %v45
  %457 = vmatprep.subr.mxu0 0.0
  %458 = vmatpush2.msra.mxu0 %v44
  %459 = vmatprep.subr.mxu0 0.0
  %460 = vmatpush2.msra.mxu0 %v43
  %461 = vmatprep.subr.mxu0 0.0
  %462 = vmatpush2.msra.mxu0 %v42
  %463 = vmatprep.subr.mxu0 0.0
  %464 = vmatpush2.msra.mxu0 %v41
  %465 = vmatprep.mubr.f32.mxu0 %v399
  %466 = vmatmul.mubr.f32.gmra.mxu0 %v390
  %v467 = vpop.f32.mrf.mxu0
  %v468 = vadd.f32 %v61, %v467
  %v469 = vpop.f32.mrf.mxu0
  %470 = vdwg.mxu0
  %s471 = scalar_lea.vmem %s0, 4
  %v472 = vld [vmem:[%s471] ss:$8 sm:$0x3]
  %s473 = scalar_lea.vmem %s0, 20
  %v474 = vld [vmem:[%s473] ss:$8 sm:$0x3]
  %v477 = vcombine.low %v472, %v474
  %v479 = vunpack.c.l.s4 1966171168
  %v480 = vunpack.c.0.s8 %v479
  %v481 = vlaneseq
  %v482 = vshrl.u32 %v481, 7
  %v483 = vsub.s32 %v480, %v482
  %v484 = vrot.slane %v477, %v483
  %v485 = vcombine.high %v484, %v484
  %v487 = vunpack.c.l.s4 1966171168
  %v488 = vunpack.c.0.s8 %v487
  %v489 = vlaneseq
  %v490 = vshrl.u32 %v489, 7
  %v491 = vsub.s32 %v488, %v490
  %v492 = vrot.slane %v484, %v491
  %v494 = vunpack.c.l.s4 1966171168
  %v495 = vunpack.c.0.s8 %v494
  %v496 = vlaneseq
  %v497 = vshrl.u32 %v496, 7
  %v498 = vsub.s32 %v495, %v497
  %v499 = vrot.slane %v485, %v498
  %v501 = vsel %vm88, %v499, 0
  %503 = vmatprep.subr.mxu0 0.0
  %504 = vmatpush1.msra.mxu0 %v40
  %505 = vmatprep.subr.mxu0 0.0
  %506 = vmatpush1.msra.mxu0 %v39
  %507 = vmatprep.subr.mxu0 0.0
  %508 = vmatpush1.msra.mxu0 %v38
  %509 = vmatprep.subr.mxu0 0.0
  %510 = vmatpush1.msra.mxu0 %v37
  %511 = vmatprep.subr.mxu0 0.0
  %512 = vmatpush1.msra.mxu0 %v36
  %513 = vmatprep.subr.mxu0 0.0
  %514 = vmatpush1.msra.mxu0 %v35
  %515 = vmatprep.subr.mxu0 0.0
  %516 = vmatpush1.msra.mxu0 %v34
  %517 = vmatprep.subr.mxu0 0.0
  %518 = vmatpush1.msra.mxu0 %v33
  %519 = vmatprep.subr.mxu0 0.0
  %520 = vmatpush1.msra.mxu0 %v32
  %521 = vmatprep.subr.mxu0 0.0
  %522 = vmatpush1.msra.mxu0 %v31
  %523 = vmatprep.subr.mxu0 0.0
  %524 = vmatpush1.msra.mxu0 %v30
  %525 = vmatprep.subr.mxu0 0.0
  %526 = vmatpush1.msra.mxu0 %v29
  %527 = vmatprep.subr.mxu0 0.0
  %528 = vmatpush1.msra.mxu0 %v28
  %529 = vmatprep.subr.mxu0 0.0
  %530 = vmatpush1.msra.mxu0 %v27
  %531 = vmatprep.subr.mxu0 0.0
  %532 = vmatpush1.msra.mxu0 %v26
  %533 = vmatprep.subr.mxu0 0.0
  %534 = vmatpush1.msra.mxu0 %v25
  %535 = vmatprep.subr.mxu0 0.0
  %536 = vmatpush2.msra.mxu0 0.0
  %537 = vmatprep.subr.mxu0 0.0
  %538 = vmatpush2.msra.mxu0 0.0
  %539 = vmatprep.subr.mxu0 0.0
  %540 = vmatpush2.msra.mxu0 0.0
  %541 = vmatprep.subr.mxu0 0.0
  %542 = vmatpush2.msra.mxu0 %v93
  %543 = vmatprep.subr.mxu0 0.0
  %544 = vmatpush2.msra.mxu0 %v52
  %545 = vmatprep.subr.mxu0 0.0
  %546 = vmatpush2.msra.mxu0 %v51
  %547 = vmatprep.subr.mxu0 0.0
  %548 = vmatpush2.msra.mxu0 %v50
  %549 = vmatprep.subr.mxu0 0.0
  %550 = vmatpush2.msra.mxu0 %v49
  %551 = vmatprep.subr.mxu0 0.0
  %552 = vmatpush2.msra.mxu0 %v48
  %553 = vmatprep.subr.mxu0 0.0
  %554 = vmatpush2.msra.mxu0 %v47
  %555 = vmatprep.subr.mxu0 0.0
  %556 = vmatpush2.msra.mxu0 %v46
  %557 = vmatprep.subr.mxu0 0.0
  %558 = vmatpush2.msra.mxu0 %v45
  %559 = vmatprep.subr.mxu0 0.0
  %560 = vmatpush2.msra.mxu0 %v44
  %561 = vmatprep.subr.mxu0 0.0
  %562 = vmatpush2.msra.mxu0 %v43
  %563 = vmatprep.subr.mxu0 0.0
  %564 = vmatpush2.msra.mxu0 %v42
  %565 = vmatprep.subr.mxu0 0.0
  %566 = vmatpush2.msra.mxu0 %v41
  %567 = vmatprep.mubr.f32.mxu0 %v501
  %568 = vmatmul.mubr.f32.gmra.mxu0 %v492
  %v569 = vpop.f32.mrf.mxu0
  %v570 = vadd.f32 %v61, %v569
  %v571 = vpop.f32.mrf.mxu0
  %572 = vdwg.mxu0
  %s573 = scalar_lea.vmem %s0, 5
  %v574 = vld [vmem:[%s573] ss:$8 sm:$0x3]
  %s575 = scalar_lea.vmem %s0, 21
  %v576 = vld [vmem:[%s575] ss:$8 sm:$0x3]
  %v579 = vcombine.low %v574, %v576
  %v581 = vunpack.c.l.s4 1966171168
  %v582 = vunpack.c.0.s8 %v581
  %v583 = vlaneseq
  %v584 = vshrl.u32 %v583, 7
  %v585 = vsub.s32 %v582, %v584
  %v586 = vrot.slane %v579, %v585
  %v587 = vcombine.high %v586, %v586
  %v589 = vunpack.c.l.s4 1966171168
  %v590 = vunpack.c.0.s8 %v589
  %v591 = vlaneseq
  %v592 = vshrl.u32 %v591, 7
  %v593 = vsub.s32 %v590, %v592
  %v594 = vrot.slane %v586, %v593
  %v596 = vunpack.c.l.s4 1966171168
  %v597 = vunpack.c.0.s8 %v596
  %v598 = vlaneseq
  %v599 = vshrl.u32 %v598, 7
  %v600 = vsub.s32 %v597, %v599
  %v601 = vrot.slane %v587, %v600
  %v603 = vsel %vm88, %v601, 0
  %605 = vmatprep.subr.mxu0 0.0
  %606 = vmatpush1.msra.mxu0 %v40
  %607 = vmatprep.subr.mxu0 0.0
  %608 = vmatpush1.msra.mxu0 %v39
  %609 = vmatprep.subr.mxu0 0.0
  %610 = vmatpush1.msra.mxu0 %v38
  %611 = vmatprep.subr.mxu0 0.0
  %612 = vmatpush1.msra.mxu0 %v37
  %613 = vmatprep.subr.mxu0 0.0
  %614 = vmatpush1.msra.mxu0 %v36
  %615 = vmatprep.subr.mxu0 0.0
  %616 = vmatpush1.msra.mxu0 %v35
  %617 = vmatprep.subr.mxu0 0.0
  %618 = vmatpush1.msra.mxu0 %v34
  %619 = vmatprep.subr.mxu0 0.0
  %620 = vmatpush1.msra.mxu0 %v33
  %621 = vmatprep.subr.mxu0 0.0
  %622 = vmatpush1.msra.mxu0 %v32
  %623 = vmatprep.subr.mxu0 0.0
  %624 = vmatpush1.msra.mxu0 %v31
  %625 = vmatprep.subr.mxu0 0.0
  %626 = vmatpush1.msra.mxu0 %v30
  %627 = vmatprep.subr.mxu0 0.0
  %628 = vmatpush1.msra.mxu0 %v29
  %629 = vmatprep.subr.mxu0 0.0
  %630 = vmatpush1.msra.mxu0 %v28
  %631 = vmatprep.subr.mxu0 0.0
  %632 = vmatpush1.msra.mxu0 %v27
  %633 = vmatprep.subr.mxu0 0.0
  %634 = vmatpush1.msra.mxu0 %v26
  %635 = vmatprep.subr.mxu0 0.0
  %636 = vmatpush1.msra.mxu0 %v25
  %637 = vmatprep.subr.mxu0 0.0
  %638 = vmatpush2.msra.mxu0 0.0
  %639 = vmatprep.subr.mxu0 0.0
  %640 = vmatpush2.msra.mxu0 0.0
  %641 = vmatprep.subr.mxu0 0.0
  %642 = vmatpush2.msra.mxu0 0.0
  %643 = vmatprep.subr.mxu0 0.0
  %644 = vmatpush2.msra.mxu0 %v93
  %645 = vmatprep.subr.mxu0 0.0
  %646 = vmatpush2.msra.mxu0 %v52
  %647 = vmatprep.subr.mxu0 0.0
  %648 = vmatpush2.msra.mxu0 %v51
  %649 = vmatprep.subr.mxu0 0.0
  %650 = vmatpush2.msra.mxu0 %v50
  %651 = vmatprep.subr.mxu0 0.0
  %652 = vmatpush2.msra.mxu0 %v49
  %653 = vmatprep.subr.mxu0 0.0
  %654 = vmatpush2.msra.mxu0 %v48
  %655 = vmatprep.subr.mxu0 0.0
  %656 = vmatpush2.msra.mxu0 %v47
  %657 = vmatprep.subr.mxu0 0.0
  %658 = vmatpush2.msra.mxu0 %v46
  %659 = vmatprep.subr.mxu0 0.0
  %660 = vmatpush2.msra.mxu0 %v45
  %661 = vmatprep.subr.mxu0 0.0
  %662 = vmatpush2.msra.mxu0 %v44
  %663 = vmatprep.subr.mxu0 0.0
  %664 = vmatpush2.msra.mxu0 %v43
  %665 = vmatprep.subr.mxu0 0.0
  %666 = vmatpush2.msra.mxu0 %v42
  %667 = vmatprep.subr.mxu0 0.0
  %668 = vmatpush2.msra.mxu0 %v41
  %669 = vmatprep.mubr.f32.mxu0 %v603
  %670 = vmatmul.mubr.f32.gmra.mxu0 %v594
  %v671 = vpop.f32.mrf.mxu0
  %v672 = vadd.f32 %v61, %v671
  %v673 = vpop.f32.mrf.mxu0
  %674 = vdwg.mxu0
  %s675 = scalar_lea.vmem %s0, 6
  %v676 = vld [vmem:[%s675] ss:$8 sm:$0x3]
  %s677 = scalar_lea.vmem %s0, 22
  %v678 = vld [vmem:[%s677] ss:$8 sm:$0x3]
  %v681 = vcombine.low %v676, %v678
  %v683 = vunpack.c.l.s4 1966171168
  %v684 = vunpack.c.0.s8 %v683
  %v685 = vlaneseq
  %v686 = vshrl.u32 %v685, 7
  %v687 = vsub.s32 %v684, %v686
  %v688 = vrot.slane %v681, %v687
  %v689 = vcombine.high %v688, %v688
  %v691 = vunpack.c.l.s4 1966171168
  %v692 = vunpack.c.0.s8 %v691
  %v693 = vlaneseq
  %v694 = vshrl.u32 %v693, 7
  %v695 = vsub.s32 %v692, %v694
  %v696 = vrot.slane %v688, %v695
  %v698 = vunpack.c.l.s4 1966171168
  %v699 = vunpack.c.0.s8 %v698
  %v700 = vlaneseq
  %v701 = vshrl.u32 %v700, 7
  %v702 = vsub.s32 %v699, %v701
  %v703 = vrot.slane %v689, %v702
  %v705 = vsel %vm88, %v703, 0
  %707 = vmatprep.subr.mxu0 0.0
  %708 = vmatpush1.msra.mxu0 %v40
  %709 = vmatprep.subr.mxu0 0.0
  %710 = vmatpush1.msra.mxu0 %v39
  %711 = vmatprep.subr.mxu0 0.0
  %712 = vmatpush1.msra.mxu0 %v38
  %713 = vmatprep.subr.mxu0 0.0
  %714 = vmatpush1.msra.mxu0 %v37
  %715 = vmatprep.subr.mxu0 0.0
  %716 = vmatpush1.msra.mxu0 %v36
  %717 = vmatprep.subr.mxu0 0.0
  %718 = vmatpush1.msra.mxu0 %v35
  %719 = vmatprep.subr.mxu0 0.0
  %720 = vmatpush1.msra.mxu0 %v34
  %721 = vmatprep.subr.mxu0 0.0
  %722 = vmatpush1.msra.mxu0 %v33
  %723 = vmatprep.subr.mxu0 0.0
  %724 = vmatpush1.msra.mxu0 %v32
  %725 = vmatprep.subr.mxu0 0.0
  %726 = vmatpush1.msra.mxu0 %v31
  %727 = vmatprep.subr.mxu0 0.0
  %728 = vmatpush1.msra.mxu0 %v30
  %729 = vmatprep.subr.mxu0 0.0
  %730 = vmatpush1.msra.mxu0 %v29
  %731 = vmatprep.subr.mxu0 0.0
  %732 = vmatpush1.msra.mxu0 %v28
  %733 = vmatprep.subr.mxu0 0.0
  %734 = vmatpush1.msra.mxu0 %v27
  %735 = vmatprep.subr.mxu0 0.0
  %736 = vmatpush1.msra.mxu0 %v26
  %737 = vmatprep.subr.mxu0 0.0
  %738 = vmatpush1.msra.mxu0 %v25
  %739 = vmatprep.subr.mxu0 0.0
  %740 = vmatpush2.msra.mxu0 0.0
  %741 = vmatprep.subr.mxu0 0.0
  %742 = vmatpush2.msra.mxu0 0.0
  %743 = vmatprep.subr.mxu0 0.0
  %744 = vmatpush2.msra.mxu0 0.0
  %745 = vmatprep.subr.mxu0 0.0
  %746 = vmatpush2.msra.mxu0 %v93
  %747 = vmatprep.subr.mxu0 0.0
  %748 = vmatpush2.msra.mxu0 %v52
  %749 = vmatprep.subr.mxu0 0.0
  %750 = vmatpush2.msra.mxu0 %v51
  %751 = vmatprep.subr.mxu0 0.0
  %752 = vmatpush2.msra.mxu0 %v50
  %753 = vmatprep.subr.mxu0 0.0
  %754 = vmatpush2.msra.mxu0 %v49
  %755 = vmatprep.subr.mxu0 0.0
  %756 = vmatpush2.msra.mxu0 %v48
  %757 = vmatprep.subr.mxu0 0.0
  %758 = vmatpush2.msra.mxu0 %v47
  %759 = vmatprep.subr.mxu0 0.0
  %760 = vmatpush2.msra.mxu0 %v46
  %761 = vmatprep.subr.mxu0 0.0
  %762 = vmatpush2.msra.mxu0 %v45
  %763 = vmatprep.subr.mxu0 0.0
  %764 = vmatpush2.msra.mxu0 %v44
  %765 = vmatprep.subr.mxu0 0.0
  %766 = vmatpush2.msra.mxu0 %v43
  %767 = vmatprep.subr.mxu0 0.0
  %768 = vmatpush2.msra.mxu0 %v42
  %769 = vmatprep.subr.mxu0 0.0
  %770 = vmatpush2.msra.mxu0 %v41
  %771 = vmatprep.mubr.f32.mxu0 %v705
  %772 = vmatmul.mubr.f32.gmra.mxu0 %v696
  %v773 = vpop.f32.mrf.mxu0
  %v774 = vadd.f32 %v61, %v773
  %v775 = vpop.f32.mrf.mxu0
  %776 = vdwg.mxu0
  %s777 = scalar_lea.vmem %s0, 7
  %v778 = vld [vmem:[%s777] ss:$8 sm:$0x3]
  %s779 = scalar_lea.vmem %s0, 23
  %v780 = vld [vmem:[%s779] ss:$8 sm:$0x3]
  %v783 = vcombine.low %v778, %v780
  %v785 = vunpack.c.l.s4 1966171168
  %v786 = vunpack.c.0.s8 %v785
  %v787 = vlaneseq
  %v788 = vshrl.u32 %v787, 7
  %v789 = vsub.s32 %v786, %v788
  %v790 = vrot.slane %v783, %v789
  %v791 = vcombine.high %v790, %v790
  %v793 = vunpack.c.l.s4 1966171168
  %v794 = vunpack.c.0.s8 %v793
  %v795 = vlaneseq
  %v796 = vshrl.u32 %v795, 7
  %v797 = vsub.s32 %v794, %v796
  %v798 = vrot.slane %v790, %v797
  %v800 = vunpack.c.l.s4 1966171168
  %v801 = vunpack.c.0.s8 %v800
  %v802 = vlaneseq
  %v803 = vshrl.u32 %v802, 7
  %v804 = vsub.s32 %v801, %v803
  %v805 = vrot.slane %v791, %v804
  %v807 = vsel %vm88, %v805, 0
  %809 = vmatprep.subr.mxu0 0.0
  %810 = vmatpush1.msra.mxu0 %v40
  %811 = vmatprep.subr.mxu0 0.0
  %812 = vmatpush1.msra.mxu0 %v39
  %813 = vmatprep.subr.mxu0 0.0
  %814 = vmatpush1.msra.mxu0 %v38
  %815 = vmatprep.subr.mxu0 0.0
  %816 = vmatpush1.msra.mxu0 %v37
  %817 = vmatprep.subr.mxu0 0.0
  %818 = vmatpush1.msra.mxu0 %v36
  %819 = vmatprep.subr.mxu0 0.0
  %820 = vmatpush1.msra.mxu0 %v35
  %821 = vmatprep.subr.mxu0 0.0
  %822 = vmatpush1.msra.mxu0 %v34
  %823 = vmatprep.subr.mxu0 0.0
  %824 = vmatpush1.msra.mxu0 %v33
  %825 = vmatprep.subr.mxu0 0.0
  %826 = vmatpush1.msra.mxu0 %v32
  %827 = vmatprep.subr.mxu0 0.0
  %828 = vmatpush1.msra.mxu0 %v31
  %829 = vmatprep.subr.mxu0 0.0
  %830 = vmatpush1.msra.mxu0 %v30
  %831 = vmatprep.subr.mxu0 0.0
  %832 = vmatpush1.msra.mxu0 %v29
  %833 = vmatprep.subr.mxu0 0.0
  %834 = vmatpush1.msra.mxu0 %v28
  %835 = vmatprep.subr.mxu0 0.0
  %836 = vmatpush1.msra.mxu0 %v27
  %837 = vmatprep.subr.mxu0 0.0
  %838 = vmatpush1.msra.mxu0 %v26
  %839 = vmatprep.subr.mxu0 0.0
  %840 = vmatpush1.msra.mxu0 %v25
  %841 = vmatprep.subr.mxu0 0.0
  %842 = vmatpush2.msra.mxu0 0.0
  %843 = vmatprep.subr.mxu0 0.0
  %844 = vmatpush2.msra.mxu0 0.0
  %845 = vmatprep.subr.mxu0 0.0
  %846 = vmatpush2.msra.mxu0 0.0
  %847 = vmatprep.subr.mxu0 0.0
  %848 = vmatpush2.msra.mxu0 %v93
  %849 = vmatprep.subr.mxu0 0.0
  %850 = vmatpush2.msra.mxu0 %v52
  %851 = vmatprep.subr.mxu0 0.0
  %852 = vmatpush2.msra.mxu0 %v51
  %853 = vmatprep.subr.mxu0 0.0
  %854 = vmatpush2.msra.mxu0 %v50
  %855 = vmatprep.subr.mxu0 0.0
  %856 = vmatpush2.msra.mxu0 %v49
  %857 = vmatprep.subr.mxu0 0.0
  %858 = vmatpush2.msra.mxu0 %v48
  %859 = vmatprep.subr.mxu0 0.0
  %860 = vmatpush2.msra.mxu0 %v47
  %861 = vmatprep.subr.mxu0 0.0
  %862 = vmatpush2.msra.mxu0 %v46
  %863 = vmatprep.subr.mxu0 0.0
  %864 = vmatpush2.msra.mxu0 %v45
  %865 = vmatprep.subr.mxu0 0.0
  %866 = vmatpush2.msra.mxu0 %v44
  %867 = vmatprep.subr.mxu0 0.0
  %868 = vmatpush2.msra.mxu0 %v43
  %869 = vmatprep.subr.mxu0 0.0
  %870 = vmatpush2.msra.mxu0 %v42
  %871 = vmatprep.subr.mxu0 0.0
  %872 = vmatpush2.msra.mxu0 %v41
  %873 = vmatprep.mubr.f32.mxu0 %v807
  %874 = vmatmul.mubr.f32.gmra.mxu0 %v798
  %v875 = vpop.f32.mrf.mxu0
  %v876 = vadd.f32 %v61, %v875
  %v877 = vpop.f32.mrf.mxu0
  %878 = vdwg.mxu0
  %vm879 = vcmask 39936
  %v881 = vsel %vm879, 0.0, 0
  %vm883 = vcmask 1044480
  %v885 = vsel %vm883, %v11, 0
  %887 = vmatprep.subr.mxu0 0.0
  %888 = vmatpush1.msra.mxu0 0.0
  %889 = vmatprep.subr.mxu0 0.0
  %890 = vmatpush1.msra.mxu0 0.0
  %891 = vmatprep.subr.mxu0 0.0
  %892 = vmatpush1.msra.mxu0 0.0
  %893 = vmatprep.subr.mxu0 0.0
  %894 = vmatpush1.msra.mxu0 0.0
  %895 = vmatprep.subr.mxu0 0.0
  %896 = vmatpush1.msra.mxu0 0.0
  %897 = vmatprep.subr.mxu0 0.0
  %898 = vmatpush1.msra.mxu0 0.0
  %899 = vmatprep.subr.mxu0 0.0
  %900 = vmatpush1.msra.mxu0 0.0
  %901 = vmatprep.subr.mxu0 0.0
  %902 = vmatpush1.msra.mxu0 0.0
  %903 = vmatprep.subr.mxu0 0.0
  %904 = vmatpush1.msra.mxu0 0.0
  %905 = vmatprep.subr.mxu0 0.0
  %906 = vmatpush1.msra.mxu0 0.0
  %907 = vmatprep.subr.mxu0 0.0
  %908 = vmatpush1.msra.mxu0 0.0
  %909 = vmatprep.subr.mxu0 0.0
  %910 = vmatpush1.msra.mxu0 0.0
  %911 = vmatprep.subr.mxu0 0.0
  %912 = vmatpush1.msra.mxu0 0.0
  %913 = vmatprep.subr.mxu0 0.0
  %914 = vmatpush1.msra.mxu0 0.0
  %915 = vmatprep.subr.mxu0 0.0
  %916 = vmatpush1.msra.mxu0 0.0
  %917 = vmatprep.subr.mxu0 0.0
  %918 = vmatpush1.msra.mxu0 %v885
  %919 = vmatprep.subr.mxu0 0.0
  %920 = vmatpush2.msra.mxu0 0.0
  %921 = vmatprep.subr.mxu0 0.0
  %922 = vmatpush2.msra.mxu0 0.0
  %923 = vmatprep.subr.mxu0 0.0
  %924 = vmatpush2.msra.mxu0 0.0
  %925 = vmatprep.subr.mxu0 0.0
  %926 = vmatpush2.msra.mxu0 0.0
  %927 = vmatprep.subr.mxu0 0.0
  %928 = vmatpush2.msra.mxu0 0.0
  %929 = vmatprep.subr.mxu0 0.0
  %930 = vmatpush2.msra.mxu0 0.0
  %931 = vmatprep.subr.mxu0 0.0
  %932 = vmatpush2.msra.mxu0 0.0
  %933 = vmatprep.subr.mxu0 0.0
  %934 = vmatpush2.msra.mxu0 0.0
  %935 = vmatprep.subr.mxu0 0.0
  %936 = vmatpush2.msra.mxu0 0.0
  %937 = vmatprep.subr.mxu0 0.0
  %938 = vmatpush2.msra.mxu0 0.0
  %939 = vmatprep.subr.mxu0 0.0
  %940 = vmatpush2.msra.mxu0 0.0
  %941 = vmatprep.subr.mxu0 0.0
  %942 = vmatpush2.msra.mxu0 0.0
  %943 = vmatprep.subr.mxu0 0.0
  %944 = vmatpush2.msra.mxu0 0.0
  %945 = vmatprep.subr.mxu0 0.0
  %946 = vmatpush2.msra.mxu0 0.0
  %947 = vmatprep.subr.mxu0 0.0
  %948 = vmatpush2.msra.mxu0 0.0
  %949 = vmatprep.subr.mxu0 0.0
  %950 = vmatpush2.msra.mxu0 0.0
  %951 = vmatprep.mubr.f32.mxu0 0.0
  %952 = vmatmul.mubr.f32.gmra.mxu0 %v881
  %v953 = vpop.f32.mrf.mxu0
  %v954 = vadd.f32 0.0, %v953
  %v955 = vpop.f32.mrf.mxu0
  %956 = vdwg.mxu0
  %v957 = vadd.f32 %v162, %v954
  %v958 = vxor.u32 %v957, 2147483648
  %v959 = vmul.f32 %v958, 1.442695
  %v960 = vpow.pop %v959
  %v961 = vadd.f32 %v960, 1.0
  %v962 = vrcp.pop %v961
  %v963 = vmul.f32 1.0, %v962
  %v964 = vmul.f32 %v963, 2.0
  %v965 = vsub.f32 %v964, 1.0
  %v966 = vmul.f32 %v963, 0.0
  %968 = vrot.lane.b32.xlu0 %v965, 118
  %v969 = vpop.permute.xlu0 %968
  %v971 = vmul.f32 %v963, %v969
  %973 = vrot.lane.b32.xlu0 %v971, 5
  %v974 = vpop.permute.xlu0 %973
  %v976 = vadd.f32 %v966, %v974
  %v977 = vtanh.pop %v976
  %979 = vrot.lane.b32.xlu0 %v977, 10
  %v980 = vpop.permute.xlu0 %979
  %v982 = vmul.f32 %v963, %v980
  %984 = vrot.lane.b32.xlu0 %v982, 113
  %v985 = vpop.permute.xlu0 %984
  %v986 = vsel %vm879, %v985, 0
  %988 = vmatprep.subr.mxu0 0.0
  %989 = vmatpush1.msra.mxu0 0.0
  %990 = vmatprep.subr.mxu0 0.0
  %991 = vmatpush1.msra.mxu0 0.0
  %992 = vmatprep.subr.mxu0 0.0
  %993 = vmatpush1.msra.mxu0 0.0
  %994 = vmatprep.subr.mxu0 0.0
  %995 = vmatpush1.msra.mxu0 0.0
  %996 = vmatprep.subr.mxu0 0.0
  %997 = vmatpush1.msra.mxu0 0.0
  %998 = vmatprep.subr.mxu0 0.0
  %999 = vmatpush1.msra.mxu0 0.0
  %1000 = vmatprep.subr.mxu0 0.0
  %1001 = vmatpush1.msra.mxu0 0.0
  %1002 = vmatprep.subr.mxu0 0.0
  %1003 = vmatpush1.msra.mxu0 0.0
  %1004 = vmatprep.subr.mxu0 0.0
  %1005 = vmatpush1.msra.mxu0 0.0
  %1006 = vmatprep.subr.mxu0 0.0
  %1007 = vmatpush1.msra.mxu0 0.0
  %1008 = vmatprep.subr.mxu0 0.0
  %1009 = vmatpush1.msra.mxu0 0.0
  %1010 = vmatprep.subr.mxu0 0.0
  %1011 = vmatpush1.msra.mxu0 0.0
  %1012 = vmatprep.subr.mxu0 0.0
  %1013 = vmatpush1.msra.mxu0 0.0
  %1014 = vmatprep.subr.mxu0 0.0
  %1015 = vmatpush1.msra.mxu0 0.0
  %1016 = vmatprep.subr.mxu0 0.0
  %1017 = vmatpush1.msra.mxu0 0.0
  %1018 = vmatprep.subr.mxu0 0.0
  %1019 = vmatpush1.msra.mxu0 %v885
  %1020 = vmatprep.subr.mxu0 0.0
  %1021 = vmatpush2.msra.mxu0 0.0
  %1022 = vmatprep.subr.mxu0 0.0
  %1023 = vmatpush2.msra.mxu0 0.0
  %1024 = vmatprep.subr.mxu0 0.0
  %1025 = vmatpush2.msra.mxu0 0.0
  %1026 = vmatprep.subr.mxu0 0.0
  %1027 = vmatpush2.msra.mxu0 0.0
  %1028 = vmatprep.subr.mxu0 0.0
  %1029 = vmatpush2.msra.mxu0 0.0
  %1030 = vmatprep.subr.mxu0 0.0
  %1031 = vmatpush2.msra.mxu0 0.0
  %1032 = vmatprep.subr.mxu0 0.0
  %1033 = vmatpush2.msra.mxu0 0.0
  %1034 = vmatprep.subr.mxu0 0.0
  %1035 = vmatpush2.msra.mxu0 0.0
  %1036 = vmatprep.subr.mxu0 0.0
  %1037 = vmatpush2.msra.mxu0 0.0
  %1038 = vmatprep.subr.mxu0 0.0
  %1039 = vmatpush2.msra.mxu0 0.0
  %1040 = vmatprep.subr.mxu0 0.0
  %1041 = vmatpush2.msra.mxu0 0.0
  %1042 = vmatprep.subr.mxu0 0.0
  %1043 = vmatpush2.msra.mxu0 0.0
  %1044 = vmatprep.subr.mxu0 0.0
  %1045 = vmatpush2.msra.mxu0 0.0
  %1046 = vmatprep.subr.mxu0 0.0
  %1047 = vmatpush2.msra.mxu0 0.0
  %1048 = vmatprep.subr.mxu0 0.0
  %1049 = vmatpush2.msra.mxu0 0.0
  %1050 = vmatprep.subr.mxu0 0.0
  %1051 = vmatpush2.msra.mxu0 0.0
  %1052 = vmatprep.mubr.f32.mxu0 0.0
  %1053 = vmatmul.mubr.f32.gmra.mxu0 %v986
  %v1054 = vpop.f32.mrf.mxu0
  %v1055 = vadd.f32 0.0, %v1054
  %v1056 = vpop.f32.mrf.mxu0
  %1057 = vdwg.mxu0
  %v1058 = vadd.f32 %v264, %v1055
  %v1059 = vxor.u32 %v1058, 2147483648
  %v1060 = vmul.f32 %v1059, 1.442695
  %v1061 = vpow.pop %v1060
  %v1062 = vadd.f32 %v1061, 1.0
  %v1063 = vrcp.pop %v1062
  %v1064 = vmul.f32 1.0, %v1063
  %v1065 = vmul.f32 %v1064, 2.0
  %v1066 = vsub.f32 %v1065, 1.0
  %v1067 = vmul.f32 %v1064, %v976
  %1069 = vrot.lane.b32.xlu0 %v1066, 118
  %v1070 = vpop.permute.xlu0 %1069
  %v1072 = vmul.f32 %v1064, %v1070
  %1074 = vrot.lane.b32.xlu0 %v1072, 5
  %v1075 = vpop.permute.xlu0 %1074
  %v1077 = vadd.f32 %v1067, %v1075
  %v1078 = vtanh.pop %v1077
  %1080 = vrot.lane.b32.xlu0 %v1078, 10
  %v1081 = vpop.permute.xlu0 %1080
  %v1083 = vmul.f32 %v1064, %v1081
  %v1085 = vsel %vm883, %v13, 0
  %1087 = vmatprep.subr.mxu0 0.0
  %1088 = vmatpush1.msra.mxu0 0.0
  %1089 = vmatprep.subr.mxu0 0.0
  %1090 = vmatpush1.msra.mxu0 0.0
  %1091 = vmatprep.subr.mxu0 0.0
  %1092 = vmatpush1.msra.mxu0 0.0
  %1093 = vmatprep.subr.mxu0 0.0
  %1094 = vmatpush1.msra.mxu0 0.0
  %1095 = vmatprep.subr.mxu0 0.0
  %1096 = vmatpush1.msra.mxu0 0.0
  %1097 = vmatprep.subr.mxu0 0.0
  %1098 = vmatpush1.msra.mxu0 0.0
  %1099 = vmatprep.subr.mxu0 0.0
  %1100 = vmatpush1.msra.mxu0 0.0
  %1101 = vmatprep.subr.mxu0 0.0
  %1102 = vmatpush1.msra.mxu0 0.0
  %1103 = vmatprep.subr.mxu0 0.0
  %1104 = vmatpush1.msra.mxu0 0.0
  %1105 = vmatprep.subr.mxu0 0.0
  %1106 = vmatpush1.msra.mxu0 0.0
  %1107 = vmatprep.subr.mxu0 0.0
  %1108 = vmatpush1.msra.mxu0 0.0
  %1109 = vmatprep.subr.mxu0 0.0
  %1110 = vmatpush1.msra.mxu0 0.0
  %1111 = vmatprep.subr.mxu0 0.0
  %1112 = vmatpush1.msra.mxu0 0.0
  %1113 = vmatprep.subr.mxu0 0.0
  %1114 = vmatpush1.msra.mxu0 0.0
  %1115 = vmatprep.subr.mxu0 0.0
  %1116 = vmatpush1.msra.mxu0 0.0
  %1117 = vmatprep.subr.mxu0 0.0
  %1118 = vmatpush1.msra.mxu0 %v1085
  %1119 = vmatprep.subr.mxu0 0.0
  %1120 = vmatpush2.msra.mxu0 0.0
  %1121 = vmatprep.subr.mxu0 0.0
  %1122 = vmatpush2.msra.mxu0 0.0
  %1123 = vmatprep.subr.mxu0 0.0
  %1124 = vmatpush2.msra.mxu0 0.0
  %1125 = vmatprep.subr.mxu0 0.0
  %1126 = vmatpush2.msra.mxu0 0.0
  %1127 = vmatprep.subr.mxu0 0.0
  %1128 = vmatpush2.msra.mxu0 0.0
  %1129 = vmatprep.subr.mxu0 0.0
  %1130 = vmatpush2.msra.mxu0 0.0
  %1131 = vmatprep.subr.mxu0 0.0
  %1132 = vmatpush2.msra.mxu0 0.0
  %1133 = vmatprep.subr.mxu0 0.0
  %1134 = vmatpush2.msra.mxu0 0.0
  %1135 = vmatprep.subr.mxu0 0.0
  %1136 = vmatpush2.msra.mxu0 0.0
  %1137 = vmatprep.subr.mxu0 0.0
  %1138 = vmatpush2.msra.mxu0 0.0
  %1139 = vmatprep.subr.mxu0 0.0
  %1140 = vmatpush2.msra.mxu0 0.0
  %1141 = vmatprep.subr.mxu0 0.0
  %1142 = vmatpush2.msra.mxu0 0.0
  %1143 = vmatprep.subr.mxu0 0.0
  %1144 = vmatpush2.msra.mxu0 0.0
  %1145 = vmatprep.subr.mxu0 0.0
  %1146 = vmatpush2.msra.mxu0 0.0
  %1147 = vmatprep.subr.mxu0 0.0
  %1148 = vmatpush2.msra.mxu0 0.0
  %1149 = vmatprep.subr.mxu0 0.0
  %1150 = vmatpush2.msra.mxu0 0.0
  %1151 = vmatprep.mubr.f32.mxu0 0.0
  %1152 = vmatmul.mubr.f32.gmra.mxu0 %v881
  %v1153 = vpop.f32.mrf.mxu0
  %v1154 = vadd.f32 0.0, %v1153
  %v1155 = vpop.f32.mrf.mxu0
  %1156 = vdwg.mxu0
  %v1158 = vsel %vm883, %v12, 0
  %1160 = vmatprep.subr.mxu0 0.0
  %1161 = vmatpush1.msra.mxu0 0.0
  %1162 = vmatprep.subr.mxu0 0.0
  %1163 = vmatpush1.msra.mxu0 0.0
  %1164 = vmatprep.subr.mxu0 0.0
  %1165 = vmatpush1.msra.mxu0 0.0
  %1166 = vmatprep.subr.mxu0 0.0
  %1167 = vmatpush1.msra.mxu0 0.0
  %1168 = vmatprep.subr.mxu0 0.0
  %1169 = vmatpush1.msra.mxu0 0.0
  %1170 = vmatprep.subr.mxu0 0.0
  %1171 = vmatpush1.msra.mxu0 0.0
  %1172 = vmatprep.subr.mxu0 0.0
  %1173 = vmatpush1.msra.mxu0 0.0
  %1174 = vmatprep.subr.mxu0 0.0
  %1175 = vmatpush1.msra.mxu0 0.0
  %1176 = vmatprep.subr.mxu0 0.0
  %1177 = vmatpush1.msra.mxu0 0.0
  %1178 = vmatprep.subr.mxu0 0.0
  %1179 = vmatpush1.msra.mxu0 0.0
  %1180 = vmatprep.subr.mxu0 0.0
  %1181 = vmatpush1.msra.mxu0 0.0
  %1182 = vmatprep.subr.mxu0 0.0
  %1183 = vmatpush1.msra.mxu0 0.0
  %1184 = vmatprep.subr.mxu0 0.0
  %1185 = vmatpush1.msra.mxu0 0.0
  %1186 = vmatprep.subr.mxu0 0.0
  %1187 = vmatpush1.msra.mxu0 0.0
  %1188 = vmatprep.subr.mxu0 0.0
  %1189 = vmatpush1.msra.mxu0 0.0
  %1190 = vmatprep.subr.mxu0 0.0
  %1191 = vmatpush1.msra.mxu0 %v1158
  %1192 = vmatprep.subr.mxu0 0.0
  %1193 = vmatpush2.msra.mxu0 0.0
  %1194 = vmatprep.subr.mxu0 0.0
  %1195 = vmatpush2.msra.mxu0 0.0
  %1196 = vmatprep.subr.mxu0 0.0
  %1197 = vmatpush2.msra.mxu0 0.0
  %1198 = vmatprep.subr.mxu0 0.0
  %1199 = vmatpush2.msra.mxu0 0.0
  %1200 = vmatprep.subr.mxu0 0.0
  %1201 = vmatpush2.msra.mxu0 0.0
  %1202 = vmatprep.subr.mxu0 0.0
  %1203 = vmatpush2.msra.mxu0 0.0
  %1204 = vmatprep.subr.mxu0 0.0
  %1205 = vmatpush2.msra.mxu0 0.0
  %1206 = vmatprep.subr.mxu0 0.0
  %1207 = vmatpush2.msra.mxu0 0.0
  %1208 = vmatprep.subr.mxu0 0.0
  %1209 = vmatpush2.msra.mxu0 0.0
  %1210 = vmatprep.subr.mxu0 0.0
  %1211 = vmatpush2.msra.mxu0 0.0
  %1212 = vmatprep.subr.mxu0 0.0
  %1213 = vmatpush2.msra.mxu0 0.0
  %1214 = vmatprep.subr.mxu0 0.0
  %1215 = vmatpush2.msra.mxu0 0.0
  %1216 = vmatprep.subr.mxu0 0.0
  %1217 = vmatpush2.msra.mxu0 0.0
  %1218 = vmatprep.subr.mxu0 0.0
  %1219 = vmatpush2.msra.mxu0 0.0
  %1220 = vmatprep.subr.mxu0 0.0
  %1221 = vmatpush2.msra.mxu0 0.0
  %1222 = vmatprep.subr.mxu0 0.0
  %1223 = vmatpush2.msra.mxu0 0.0
  %1224 = vmatprep.mubr.f32.mxu0 0.0
  %1225 = vmatmul.mubr.f32.gmra.mxu0 %v986
  %v1226 = vpop.f32.mrf.mxu0
  %v1227 = vadd.f32 %v1154, %v1226
  %v1228 = vpop.f32.mrf.mxu0
  %1229 = vdwg.mxu0
  %v1230 = vlaneseq
  %v1231 = vshrl.u32 %v1230, 7
  %v1232 = vsub.s32 0, %v1231
  %v1233 = vrot.slane %v14, %v1232
  %v1234 = vadd.f32 %v1227, %v1233
  %v1235 = vxor.u32 %v1234, 2147483648
  %v1236 = vmul.f32 %v1235, 1.442695
  %v1237 = vpow.pop %v1236
  %v1238 = vadd.f32 %v1237, 1.0
  %v1239 = vrcp.pop %v1238
  %v1240 = vmul.f32 1.0, %v1239
  %v1241 = vmul.f32 %v1240, 2.0
  %v1242 = vsub.f32 %v1241, 1.0
  %v1243 = vmul.f32 %v1240, 0.0
  %1245 = vrot.lane.b32.xlu0 %v1242, 118
  %v1246 = vpop.permute.xlu0 %1245
  %v1248 = vmul.f32 %v1240, %v1246
  %1250 = vrot.lane.b32.xlu0 %v1248, 5
  %v1251 = vpop.permute.xlu0 %1250
  %v1253 = vadd.f32 %v1243, %v1251
  %v1254 = vtanh.pop %v1253
  %1256 = vrot.lane.b32.xlu0 %v1254, 10
  %v1257 = vpop.permute.xlu0 %1256
  %v1259 = vmul.f32 %v1240, %v1257
  %v1260 = vlaneseq
  %v1261 = vshrl.u32 %v1260, 7
  %v1262 = vsub.s32 0, %v1261
  %v1263 = vrot.slane %v16, %v1262
  %1265 = vrot.lane.b32.xlu0 %v1259, 113
  %v1266 = vpop.permute.xlu0 %1265
  %v1267 = vsel %vm879, %v1266, 0
  %v1270 = vsel %vm883, %v15, 0
  %1272 = vmatprep.subr.mxu0 0.0
  %1273 = vmatpush1.msra.mxu0 0.0
  %1274 = vmatprep.subr.mxu0 0.0
  %1275 = vmatpush1.msra.mxu0 0.0
  %1276 = vmatprep.subr.mxu0 0.0
  %1277 = vmatpush1.msra.mxu0 0.0
  %1278 = vmatprep.subr.mxu0 0.0
  %1279 = vmatpush1.msra.mxu0 0.0
  %1280 = vmatprep.subr.mxu0 0.0
  %1281 = vmatpush1.msra.mxu0 0.0
  %1282 = vmatprep.subr.mxu0 0.0
  %1283 = vmatpush1.msra.mxu0 0.0
  %1284 = vmatprep.subr.mxu0 0.0
  %1285 = vmatpush1.msra.mxu0 0.0
  %1286 = vmatprep.subr.mxu0 0.0
  %1287 = vmatpush1.msra.mxu0 0.0
  %1288 = vmatprep.subr.mxu0 0.0
  %1289 = vmatpush1.msra.mxu0 0.0
  %1290 = vmatprep.subr.mxu0 0.0
  %1291 = vmatpush1.msra.mxu0 0.0
  %1292 = vmatprep.subr.mxu0 0.0
  %1293 = vmatpush1.msra.mxu0 0.0
  %1294 = vmatprep.subr.mxu0 0.0
  %1295 = vmatpush1.msra.mxu0 0.0
  %1296 = vmatprep.subr.mxu0 0.0
  %1297 = vmatpush1.msra.mxu0 0.0
  %1298 = vmatprep.subr.mxu0 0.0
  %1299 = vmatpush1.msra.mxu0 0.0
  %1300 = vmatprep.subr.mxu0 0.0
  %1301 = vmatpush1.msra.mxu0 0.0
  %1302 = vmatprep.subr.mxu0 0.0
  %1303 = vmatpush1.msra.mxu0 %v1270
  %1304 = vmatprep.subr.mxu0 0.0
  %1305 = vmatpush2.msra.mxu0 0.0
  %1306 = vmatprep.subr.mxu0 0.0
  %1307 = vmatpush2.msra.mxu0 0.0
  %1308 = vmatprep.subr.mxu0 0.0
  %1309 = vmatpush2.msra.mxu0 0.0
  %1310 = vmatprep.subr.mxu0 0.0
  %1311 = vmatpush2.msra.mxu0 0.0
  %1312 = vmatprep.subr.mxu0 0.0
  %1313 = vmatpush2.msra.mxu0 0.0
  %1314 = vmatprep.subr.mxu0 0.0
  %1315 = vmatpush2.msra.mxu0 0.0
  %1316 = vmatprep.subr.mxu0 0.0
  %1317 = vmatpush2.msra.mxu0 0.0
  %1318 = vmatprep.subr.mxu0 0.0
  %1319 = vmatpush2.msra.mxu0 0.0
  %1320 = vmatprep.subr.mxu0 0.0
  %1321 = vmatpush2.msra.mxu0 0.0
  %1322 = vmatprep.subr.mxu0 0.0
  %1323 = vmatpush2.msra.mxu0 0.0
  %1324 = vmatprep.subr.mxu0 0.0
  %1325 = vmatpush2.msra.mxu0 0.0
  %1326 = vmatprep.subr.mxu0 0.0
  %1327 = vmatpush2.msra.mxu0 0.0
  %1328 = vmatprep.subr.mxu0 0.0
  %1329 = vmatpush2.msra.mxu0 0.0
  %1330 = vmatprep.subr.mxu0 0.0
  %1331 = vmatpush2.msra.mxu0 0.0
  %1332 = vmatprep.subr.mxu0 0.0
  %1333 = vmatpush2.msra.mxu0 0.0
  %1334 = vmatprep.subr.mxu0 0.0
  %1335 = vmatpush2.msra.mxu0 0.0
  %1336 = vmatprep.mubr.f32.mxu0 0.0
  %1337 = vmatmul.mubr.f32.gmra.mxu0 %v1267
  %v1338 = vpop.f32.mrf.mxu0
  %v1339 = vadd.f32 %v1263, %v1338
  %v1340 = vpop.f32.mrf.mxu0
  %1341 = vdwg.mxu0
  %v1342 = vmax.f32 %v1339, 0.0
  %1344 = vrot.lane.b32.xlu0 %v1083, 113
  %v1345 = vpop.permute.xlu0 %1344
  %v1346 = vsel %vm879, %v1345, 0
  %1348 = vmatprep.subr.mxu0 0.0
  %1349 = vmatpush1.msra.mxu0 0.0
  %1350 = vmatprep.subr.mxu0 0.0
  %1351 = vmatpush1.msra.mxu0 0.0
  %1352 = vmatprep.subr.mxu0 0.0
  %1353 = vmatpush1.msra.mxu0 0.0
  %1354 = vmatprep.subr.mxu0 0.0
  %1355 = vmatpush1.msra.mxu0 0.0
  %1356 = vmatprep.subr.mxu0 0.0
  %1357 = vmatpush1.msra.mxu0 0.0
  %1358 = vmatprep.subr.mxu0 0.0
  %1359 = vmatpush1.msra.mxu0 0.0
  %1360 = vmatprep.subr.mxu0 0.0
  %1361 = vmatpush1.msra.mxu0 0.0
  %1362 = vmatprep.subr.mxu0 0.0
  %1363 = vmatpush1.msra.mxu0 0.0
  %1364 = vmatprep.subr.mxu0 0.0
  %1365 = vmatpush1.msra.mxu0 0.0
  %1366 = vmatprep.subr.mxu0 0.0
  %1367 = vmatpush1.msra.mxu0 0.0
  %1368 = vmatprep.subr.mxu0 0.0
  %1369 = vmatpush1.msra.mxu0 0.0
  %1370 = vmatprep.subr.mxu0 0.0
  %1371 = vmatpush1.msra.mxu0 0.0
  %1372 = vmatprep.subr.mxu0 0.0
  %1373 = vmatpush1.msra.mxu0 0.0
  %1374 = vmatprep.subr.mxu0 0.0
  %1375 = vmatpush1.msra.mxu0 0.0
  %1376 = vmatprep.subr.mxu0 0.0
  %1377 = vmatpush1.msra.mxu0 0.0
  %1378 = vmatprep.subr.mxu0 0.0
  %1379 = vmatpush1.msra.mxu0 %v885
  %1380 = vmatprep.subr.mxu0 0.0
  %1381 = vmatpush2.msra.mxu0 0.0
  %1382 = vmatprep.subr.mxu0 0.0
  %1383 = vmatpush2.msra.mxu0 0.0
  %1384 = vmatprep.subr.mxu0 0.0
  %1385 = vmatpush2.msra.mxu0 0.0
  %1386 = vmatprep.subr.mxu0 0.0
  %1387 = vmatpush2.msra.mxu0 0.0
  %1388 = vmatprep.subr.mxu0 0.0
  %1389 = vmatpush2.msra.mxu0 0.0
  %1390 = vmatprep.subr.mxu0 0.0
  %1391 = vmatpush2.msra.mxu0 0.0
  %1392 = vmatprep.subr.mxu0 0.0
  %1393 = vmatpush2.msra.mxu0 0.0
  %1394 = vmatprep.subr.mxu0 0.0
  %1395 = vmatpush2.msra.mxu0 0.0
  %1396 = vmatprep.subr.mxu0 0.0
  %1397 = vmatpush2.msra.mxu0 0.0
  %1398 = vmatprep.subr.mxu0 0.0
  %1399 = vmatpush2.msra.mxu0 0.0
  %1400 = vmatprep.subr.mxu0 0.0
  %1401 = vmatpush2.msra.mxu0 0.0
  %1402 = vmatprep.subr.mxu0 0.0
  %1403 = vmatpush2.msra.mxu0 0.0
  %1404 = vmatprep.subr.mxu0 0.0
  %1405 = vmatpush2.msra.mxu0 0.0
  %1406 = vmatprep.subr.mxu0 0.0
  %1407 = vmatpush2.msra.mxu0 0.0
  %1408 = vmatprep.subr.mxu0 0.0
  %1409 = vmatpush2.msra.mxu0 0.0
  %1410 = vmatprep.subr.mxu0 0.0
  %1411 = vmatpush2.msra.mxu0 0.0
  %1412 = vmatprep.mubr.f32.mxu0 0.0
  %1413 = vmatmul.mubr.f32.gmra.mxu0 %v1346
  %v1414 = vpop.f32.mrf.mxu0
  %v1415 = vadd.f32 0.0, %v1414
  %v1416 = vpop.f32.mrf.mxu0
  %1417 = vdwg.mxu0
  %v1418 = vadd.f32 %v366, %v1415
  %v1419 = vxor.u32 %v1418, 2147483648
  %v1420 = vmul.f32 %v1419, 1.442695
  %v1421 = vpow.pop %v1420
  %v1422 = vadd.f32 %v1421, 1.0
  %v1423 = vrcp.pop %v1422
  %v1424 = vmul.f32 1.0, %v1423
  %v1425 = vmul.f32 %v1424, 2.0
  %v1426 = vsub.f32 %v1425, 1.0
  %v1427 = vmul.f32 %v1424, %v1077
  %1429 = vrot.lane.b32.xlu0 %v1426, 118
  %v1430 = vpop.permute.xlu0 %1429
  %v1432 = vmul.f32 %v1424, %v1430
  %1434 = vrot.lane.b32.xlu0 %v1432, 5
  %v1435 = vpop.permute.xlu0 %1434
  %v1437 = vadd.f32 %v1427, %v1435
  %v1438 = vtanh.pop %v1437
  %1440 = vrot.lane.b32.xlu0 %v1438, 10
  %v1441 = vpop.permute.xlu0 %1440
  %v1443 = vmul.f32 %v1424, %v1441
  %1444 = vmatprep.subr.mxu0 0.0
  %1445 = vmatpush1.msra.mxu0 0.0
  %1446 = vmatprep.subr.mxu0 0.0
  %1447 = vmatpush1.msra.mxu0 0.0
  %1448 = vmatprep.subr.mxu0 0.0
  %1449 = vmatpush1.msra.mxu0 0.0
  %1450 = vmatprep.subr.mxu0 0.0
  %1451 = vmatpush1.msra.mxu0 0.0
  %1452 = vmatprep.subr.mxu0 0.0
  %1453 = vmatpush1.msra.mxu0 0.0
  %1454 = vmatprep.subr.mxu0 0.0
  %1455 = vmatpush1.msra.mxu0 0.0
  %1456 = vmatprep.subr.mxu0 0.0
  %1457 = vmatpush1.msra.mxu0 0.0
  %1458 = vmatprep.subr.mxu0 0.0
  %1459 = vmatpush1.msra.mxu0 0.0
  %1460 = vmatprep.subr.mxu0 0.0
  %1461 = vmatpush1.msra.mxu0 0.0
  %1462 = vmatprep.subr.mxu0 0.0
  %1463 = vmatpush1.msra.mxu0 0.0
  %1464 = vmatprep.subr.mxu0 0.0
  %1465 = vmatpush1.msra.mxu0 0.0
  %1466 = vmatprep.subr.mxu0 0.0
  %1467 = vmatpush1.msra.mxu0 0.0
  %1468 = vmatprep.subr.mxu0 0.0
  %1469 = vmatpush1.msra.mxu0 0.0
  %1470 = vmatprep.subr.mxu0 0.0
  %1471 = vmatpush1.msra.mxu0 0.0
  %1472 = vmatprep.subr.mxu0 0.0
  %1473 = vmatpush1.msra.mxu0 0.0
  %1474 = vmatprep.subr.mxu0 0.0
  %1475 = vmatpush1.msra.mxu0 %v1085
  %1476 = vmatprep.subr.mxu0 0.0
  %1477 = vmatpush2.msra.mxu0 0.0
  %1478 = vmatprep.subr.mxu0 0.0
  %1479 = vmatpush2.msra.mxu0 0.0
  %1480 = vmatprep.subr.mxu0 0.0
  %1481 = vmatpush2.msra.mxu0 0.0
  %1482 = vmatprep.subr.mxu0 0.0
  %1483 = vmatpush2.msra.mxu0 0.0
  %1484 = vmatprep.subr.mxu0 0.0
  %1485 = vmatpush2.msra.mxu0 0.0
  %1486 = vmatprep.subr.mxu0 0.0
  %1487 = vmatpush2.msra.mxu0 0.0
  %1488 = vmatprep.subr.mxu0 0.0
  %1489 = vmatpush2.msra.mxu0 0.0
  %1490 = vmatprep.subr.mxu0 0.0
  %1491 = vmatpush2.msra.mxu0 0.0
  %1492 = vmatprep.subr.mxu0 0.0
  %1493 = vmatpush2.msra.mxu0 0.0
  %1494 = vmatprep.subr.mxu0 0.0
  %1495 = vmatpush2.msra.mxu0 0.0
  %1496 = vmatprep.subr.mxu0 0.0
  %1497 = vmatpush2.msra.mxu0 0.0
  %1498 = vmatprep.subr.mxu0 0.0
  %1499 = vmatpush2.msra.mxu0 0.0
  %1500 = vmatprep.subr.mxu0 0.0
  %1501 = vmatpush2.msra.mxu0 0.0
  %1502 = vmatprep.subr.mxu0 0.0
  %1503 = vmatpush2.msra.mxu0 0.0
  %1504 = vmatprep.subr.mxu0 0.0
  %1505 = vmatpush2.msra.mxu0 0.0
  %1506 = vmatprep.subr.mxu0 0.0
  %1507 = vmatpush2.msra.mxu0 0.0
  %1508 = vmatprep.mubr.f32.mxu0 0.0
  %1509 = vmatmul.mubr.f32.gmra.mxu0 %v1267
  %v1510 = vpop.f32.mrf.mxu0
  %v1511 = vadd.f32 0.0, %v1510
  %v1512 = vpop.f32.mrf.mxu0
  %1513 = vdwg.mxu0
  %1514 = vmatprep.subr.mxu0 0.0
  %1515 = vmatpush1.msra.mxu0 0.0
  %1516 = vmatprep.subr.mxu0 0.0
  %1517 = vmatpush1.msra.mxu0 0.0
  %1518 = vmatprep.subr.mxu0 0.0
  %1519 = vmatpush1.msra.mxu0 0.0
  %1520 = vmatprep.subr.mxu0 0.0
  %1521 = vmatpush1.msra.mxu0 0.0
  %1522 = vmatprep.subr.mxu0 0.0
  %1523 = vmatpush1.msra.mxu0 0.0
  %1524 = vmatprep.subr.mxu0 0.0
  %1525 = vmatpush1.msra.mxu0 0.0
  %1526 = vmatprep.subr.mxu0 0.0
  %1527 = vmatpush1.msra.mxu0 0.0
  %1528 = vmatprep.subr.mxu0 0.0
  %1529 = vmatpush1.msra.mxu0 0.0
  %1530 = vmatprep.subr.mxu0 0.0
  %1531 = vmatpush1.msra.mxu0 0.0
  %1532 = vmatprep.subr.mxu0 0.0
  %1533 = vmatpush1.msra.mxu0 0.0
  %1534 = vmatprep.subr.mxu0 0.0
  %1535 = vmatpush1.msra.mxu0 0.0
  %1536 = vmatprep.subr.mxu0 0.0
  %1537 = vmatpush1.msra.mxu0 0.0
  %1538 = vmatprep.subr.mxu0 0.0
  %1539 = vmatpush1.msra.mxu0 0.0
  %1540 = vmatprep.subr.mxu0 0.0
  %1541 = vmatpush1.msra.mxu0 0.0
  %1542 = vmatprep.subr.mxu0 0.0
  %1543 = vmatpush1.msra.mxu0 0.0
  %1544 = vmatprep.subr.mxu0 0.0
  %1545 = vmatpush1.msra.mxu0 %v1158
  %1546 = vmatprep.subr.mxu0 0.0
  %1547 = vmatpush2.msra.mxu0 0.0
  %1548 = vmatprep.subr.mxu0 0.0
  %1549 = vmatpush2.msra.mxu0 0.0
  %1550 = vmatprep.subr.mxu0 0.0
  %1551 = vmatpush2.msra.mxu0 0.0
  %1552 = vmatprep.subr.mxu0 0.0
  %1553 = vmatpush2.msra.mxu0 0.0
  %1554 = vmatprep.subr.mxu0 0.0
  %1555 = vmatpush2.msra.mxu0 0.0
  %1556 = vmatprep.subr.mxu0 0.0
  %1557 = vmatpush2.msra.mxu0 0.0
  %1558 = vmatprep.subr.mxu0 0.0
  %1559 = vmatpush2.msra.mxu0 0.0
  %1560 = vmatprep.subr.mxu0 0.0
  %1561 = vmatpush2.msra.mxu0 0.0
  %1562 = vmatprep.subr.mxu0 0.0
  %1563 = vmatpush2.msra.mxu0 0.0
  %1564 = vmatprep.subr.mxu0 0.0
  %1565 = vmatpush2.msra.mxu0 0.0
  %1566 = vmatprep.subr.mxu0 0.0
  %1567 = vmatpush2.msra.mxu0 0.0
  %1568 = vmatprep.subr.mxu0 0.0
  %1569 = vmatpush2.msra.mxu0 0.0
  %1570 = vmatprep.subr.mxu0 0.0
  %1571 = vmatpush2.msra.mxu0 0.0
  %1572 = vmatprep.subr.mxu0 0.0
  %1573 = vmatpush2.msra.mxu0 0.0
  %1574 = vmatprep.subr.mxu0 0.0
  %1575 = vmatpush2.msra.mxu0 0.0
  %1576 = vmatprep.subr.mxu0 0.0
  %1577 = vmatpush2.msra.mxu0 0.0
  %1578 = vmatprep.mubr.f32.mxu0 0.0
  %1579 = vmatmul.mubr.f32.gmra.mxu0 %v1346
  %v1580 = vpop.f32.mrf.mxu0
  %v1581 = vadd.f32 %v1511, %v1580
  %v1582 = vpop.f32.mrf.mxu0
  %1583 = vdwg.mxu0
  %v1584 = vadd.f32 %v1581, %v1233
  %v1585 = vxor.u32 %v1584, 2147483648
  %v1586 = vmul.f32 %v1585, 1.442695
  %v1587 = vpow.pop %v1586
  %v1588 = vadd.f32 %v1587, 1.0
  %v1589 = vrcp.pop %v1588
  %v1590 = vmul.f32 1.0, %v1589
  %v1591 = vmul.f32 %v1590, 2.0
  %v1592 = vsub.f32 %v1591, 1.0
  %v1593 = vmul.f32 %v1590, %v1253
  %1595 = vrot.lane.b32.xlu0 %v1592, 118
  %v1596 = vpop.permute.xlu0 %1595
  %v1598 = vmul.f32 %v1590, %v1596
  %1600 = vrot.lane.b32.xlu0 %v1598, 5
  %v1601 = vpop.permute.xlu0 %1600
  %v1603 = vadd.f32 %v1593, %v1601
  %v1604 = vtanh.pop %v1603
  %1606 = vrot.lane.b32.xlu0 %v1604, 10
  %v1607 = vpop.permute.xlu0 %1606
  %v1609 = vmul.f32 %v1590, %v1607
  %1611 = vrot.lane.b32.xlu0 %v1609, 113
  %v1612 = vpop.permute.xlu0 %1611
  %v1613 = vsel %vm879, %v1612, 0
  %1615 = vmatprep.subr.mxu0 0.0
  %1616 = vmatpush1.msra.mxu0 0.0
  %1617 = vmatprep.subr.mxu0 0.0
  %1618 = vmatpush1.msra.mxu0 0.0
  %1619 = vmatprep.subr.mxu0 0.0
  %1620 = vmatpush1.msra.mxu0 0.0
  %1621 = vmatprep.subr.mxu0 0.0
  %1622 = vmatpush1.msra.mxu0 0.0
  %1623 = vmatprep.subr.mxu0 0.0
  %1624 = vmatpush1.msra.mxu0 0.0
  %1625 = vmatprep.subr.mxu0 0.0
  %1626 = vmatpush1.msra.mxu0 0.0
  %1627 = vmatprep.subr.mxu0 0.0
  %1628 = vmatpush1.msra.mxu0 0.0
  %1629 = vmatprep.subr.mxu0 0.0
  %1630 = vmatpush1.msra.mxu0 0.0
  %1631 = vmatprep.subr.mxu0 0.0
  %1632 = vmatpush1.msra.mxu0 0.0
  %1633 = vmatprep.subr.mxu0 0.0
  %1634 = vmatpush1.msra.mxu0 0.0
  %1635 = vmatprep.subr.mxu0 0.0
  %1636 = vmatpush1.msra.mxu0 0.0
  %1637 = vmatprep.subr.mxu0 0.0
  %1638 = vmatpush1.msra.mxu0 0.0
  %1639 = vmatprep.subr.mxu0 0.0
  %1640 = vmatpush1.msra.mxu0 0.0
  %1641 = vmatprep.subr.mxu0 0.0
  %1642 = vmatpush1.msra.mxu0 0.0
  %1643 = vmatprep.subr.mxu0 0.0
  %1644 = vmatpush1.msra.mxu0 0.0
  %1645 = vmatprep.subr.mxu0 0.0
  %1646 = vmatpush1.msra.mxu0 %v1270
  %1647 = vmatprep.subr.mxu0 0.0
  %1648 = vmatpush2.msra.mxu0 0.0
  %1649 = vmatprep.subr.mxu0 0.0
  %1650 = vmatpush2.msra.mxu0 0.0
  %1651 = vmatprep.subr.mxu0 0.0
  %1652 = vmatpush2.msra.mxu0 0.0
  %1653 = vmatprep.subr.mxu0 0.0
  %1654 = vmatpush2.msra.mxu0 0.0
  %1655 = vmatprep.subr.mxu0 0.0
  %1656 = vmatpush2.msra.mxu0 0.0
  %1657 = vmatprep.subr.mxu0 0.0
  %1658 = vmatpush2.msra.mxu0 0.0
  %1659 = vmatprep.subr.mxu0 0.0
  %1660 = vmatpush2.msra.mxu0 0.0
  %1661 = vmatprep.subr.mxu0 0.0
  %1662 = vmatpush2.msra.mxu0 0.0
  %1663 = vmatprep.subr.mxu0 0.0
  %1664 = vmatpush2.msra.mxu0 0.0
  %1665 = vmatprep.subr.mxu0 0.0
  %1666 = vmatpush2.msra.mxu0 0.0
  %1667 = vmatprep.subr.mxu0 0.0
  %1668 = vmatpush2.msra.mxu0 0.0
  %1669 = vmatprep.subr.mxu0 0.0
  %1670 = vmatpush2.msra.mxu0 0.0
  %1671 = vmatprep.subr.mxu0 0.0
  %1672 = vmatpush2.msra.mxu0 0.0
  %1673 = vmatprep.subr.mxu0 0.0
  %1674 = vmatpush2.msra.mxu0 0.0
  %1675 = vmatprep.subr.mxu0 0.0
  %1676 = vmatpush2.msra.mxu0 0.0
  %1677 = vmatprep.subr.mxu0 0.0
  %1678 = vmatpush2.msra.mxu0 0.0
  %1679 = vmatprep.mubr.f32.mxu0 0.0
  %1680 = vmatmul.mubr.f32.gmra.mxu0 %v1613
  %v1681 = vpop.f32.mrf.mxu0
  %v1682 = vadd.f32 %v1263, %v1681
  %v1683 = vpop.f32.mrf.mxu0
  %1684 = vdwg.mxu0
  %v1685 = vmax.f32 %v1682, 0.0
  %v1687 = vsel %vm883, %v18, 0
  %1689 = vmatprep.subr.mxu0 0.0
  %1690 = vmatpush1.msra.mxu0 0.0
  %1691 = vmatprep.subr.mxu0 0.0
  %1692 = vmatpush1.msra.mxu0 0.0
  %1693 = vmatprep.subr.mxu0 0.0
  %1694 = vmatpush1.msra.mxu0 0.0
  %1695 = vmatprep.subr.mxu0 0.0
  %1696 = vmatpush1.msra.mxu0 0.0
  %1697 = vmatprep.subr.mxu0 0.0
  %1698 = vmatpush1.msra.mxu0 0.0
  %1699 = vmatprep.subr.mxu0 0.0
  %1700 = vmatpush1.msra.mxu0 0.0
  %1701 = vmatprep.subr.mxu0 0.0
  %1702 = vmatpush1.msra.mxu0 0.0
  %1703 = vmatprep.subr.mxu0 0.0
  %1704 = vmatpush1.msra.mxu0 0.0
  %1705 = vmatprep.subr.mxu0 0.0
  %1706 = vmatpush1.msra.mxu0 0.0
  %1707 = vmatprep.subr.mxu0 0.0
  %1708 = vmatpush1.msra.mxu0 0.0
  %1709 = vmatprep.subr.mxu0 0.0
  %1710 = vmatpush1.msra.mxu0 0.0
  %1711 = vmatprep.subr.mxu0 0.0
  %1712 = vmatpush1.msra.mxu0 0.0
  %1713 = vmatprep.subr.mxu0 0.0
  %1714 = vmatpush1.msra.mxu0 0.0
  %1715 = vmatprep.subr.mxu0 0.0
  %1716 = vmatpush1.msra.mxu0 0.0
  %1717 = vmatprep.subr.mxu0 0.0
  %1718 = vmatpush1.msra.mxu0 0.0
  %1719 = vmatprep.subr.mxu0 0.0
  %1720 = vmatpush1.msra.mxu0 %v1687
  %1721 = vmatprep.subr.mxu0 0.0
  %1722 = vmatpush2.msra.mxu0 0.0
  %1723 = vmatprep.subr.mxu0 0.0
  %1724 = vmatpush2.msra.mxu0 0.0
  %1725 = vmatprep.subr.mxu0 0.0
  %1726 = vmatpush2.msra.mxu0 0.0
  %1727 = vmatprep.subr.mxu0 0.0
  %1728 = vmatpush2.msra.mxu0 0.0
  %1729 = vmatprep.subr.mxu0 0.0
  %1730 = vmatpush2.msra.mxu0 0.0
  %1731 = vmatprep.subr.mxu0 0.0
  %1732 = vmatpush2.msra.mxu0 0.0
  %1733 = vmatprep.subr.mxu0 0.0
  %1734 = vmatpush2.msra.mxu0 0.0
  %1735 = vmatprep.subr.mxu0 0.0
  %1736 = vmatpush2.msra.mxu0 0.0
  %1737 = vmatprep.subr.mxu0 0.0
  %1738 = vmatpush2.msra.mxu0 0.0
  %1739 = vmatprep.subr.mxu0 0.0
  %1740 = vmatpush2.msra.mxu0 0.0
  %1741 = vmatprep.subr.mxu0 0.0
  %1742 = vmatpush2.msra.mxu0 0.0
  %1743 = vmatprep.subr.mxu0 0.0
  %1744 = vmatpush2.msra.mxu0 0.0
  %1745 = vmatprep.subr.mxu0 0.0
  %1746 = vmatpush2.msra.mxu0 0.0
  %1747 = vmatprep.subr.mxu0 0.0
  %1748 = vmatpush2.msra.mxu0 0.0
  %1749 = vmatprep.subr.mxu0 0.0
  %1750 = vmatpush2.msra.mxu0 0.0
  %1751 = vmatprep.subr.mxu0 0.0
  %1752 = vmatpush2.msra.mxu0 0.0
  %1753 = vmatprep.mubr.f32.mxu0 0.0
  %1754 = vmatmul.mubr.f32.gmra.mxu0 %v881
  %v1755 = vpop.f32.mrf.mxu0
  %v1756 = vadd.f32 0.0, %v1755
  %v1757 = vpop.f32.mrf.mxu0
  %1758 = vdwg.mxu0
  %v1760 = vsel %vm879, %v1342, 0
  %v1763 = vsel %vm883, %v17, 0
  %1765 = vmatprep.subr.mxu0 0.0
  %1766 = vmatpush1.msra.mxu0 0.0
  %1767 = vmatprep.subr.mxu0 0.0
  %1768 = vmatpush1.msra.mxu0 0.0
  %1769 = vmatprep.subr.mxu0 0.0
  %1770 = vmatpush1.msra.mxu0 0.0
  %1771 = vmatprep.subr.mxu0 0.0
  %1772 = vmatpush1.msra.mxu0 0.0
  %1773 = vmatprep.subr.mxu0 0.0
  %1774 = vmatpush1.msra.mxu0 0.0
  %1775 = vmatprep.subr.mxu0 0.0
  %1776 = vmatpush1.msra.mxu0 0.0
  %1777 = vmatprep.subr.mxu0 0.0
  %1778 = vmatpush1.msra.mxu0 0.0
  %1779 = vmatprep.subr.mxu0 0.0
  %1780 = vmatpush1.msra.mxu0 0.0
  %1781 = vmatprep.subr.mxu0 0.0
  %1782 = vmatpush1.msra.mxu0 0.0
  %1783 = vmatprep.subr.mxu0 0.0
  %1784 = vmatpush1.msra.mxu0 0.0
  %1785 = vmatprep.subr.mxu0 0.0
  %1786 = vmatpush1.msra.mxu0 0.0
  %1787 = vmatprep.subr.mxu0 0.0
  %1788 = vmatpush1.msra.mxu0 0.0
  %1789 = vmatprep.subr.mxu0 0.0
  %1790 = vmatpush1.msra.mxu0 0.0
  %1791 = vmatprep.subr.mxu0 0.0
  %1792 = vmatpush1.msra.mxu0 0.0
  %1793 = vmatprep.subr.mxu0 0.0
  %1794 = vmatpush1.msra.mxu0 0.0
  %1795 = vmatprep.subr.mxu0 0.0
  %1796 = vmatpush1.msra.mxu0 %v1763
  %1797 = vmatprep.subr.mxu0 0.0
  %1798 = vmatpush2.msra.mxu0 0.0
  %1799 = vmatprep.subr.mxu0 0.0
  %1800 = vmatpush2.msra.mxu0 0.0
  %1801 = vmatprep.subr.mxu0 0.0
  %1802 = vmatpush2.msra.mxu0 0.0
  %1803 = vmatprep.subr.mxu0 0.0
  %1804 = vmatpush2.msra.mxu0 0.0
  %1805 = vmatprep.subr.mxu0 0.0
  %1806 = vmatpush2.msra.mxu0 0.0
  %1807 = vmatprep.subr.mxu0 0.0
  %1808 = vmatpush2.msra.mxu0 0.0
  %1809 = vmatprep.subr.mxu0 0.0
  %1810 = vmatpush2.msra.mxu0 0.0
  %1811 = vmatprep.subr.mxu0 0.0
  %1812 = vmatpush2.msra.mxu0 0.0
  %1813 = vmatprep.subr.mxu0 0.0
  %1814 = vmatpush2.msra.mxu0 0.0
  %1815 = vmatprep.subr.mxu0 0.0
  %1816 = vmatpush2.msra.mxu0 0.0
  %1817 = vmatprep.subr.mxu0 0.0
  %1818 = vmatpush2.msra.mxu0 0.0
  %1819 = vmatprep.subr.mxu0 0.0
  %1820 = vmatpush2.msra.mxu0 0.0
  %1821 = vmatprep.subr.mxu0 0.0
  %1822 = vmatpush2.msra.mxu0 0.0
  %1823 = vmatprep.subr.mxu0 0.0
  %1824 = vmatpush2.msra.mxu0 0.0
  %1825 = vmatprep.subr.mxu0 0.0
  %1826 = vmatpush2.msra.mxu0 0.0
  %1827 = vmatprep.subr.mxu0 0.0
  %1828 = vmatpush2.msra.mxu0 0.0
  %1829 = vmatprep.mubr.f32.mxu0 0.0
  %1830 = vmatmul.mubr.f32.gmra.mxu0 %v1760
  %v1831 = vpop.f32.mrf.mxu0
  %v1832 = vadd.f32 %v1756, %v1831
  %v1833 = vpop.f32.mrf.mxu0
  %1834 = vdwg.mxu0
  %v1835 = vlaneseq
  %v1836 = vshrl.u32 %v1835, 7
  %v1837 = vsub.s32 0, %v1836
  %v1838 = vrot.slane %v19, %v1837
  %v1839 = vadd.f32 %v1832, %v1838
  %v1840 = vxor.u32 %v1839, 2147483648
  %v1841 = vmul.f32 %v1840, 1.442695
  %v1842 = vpow.pop %v1841
  %v1843 = vadd.f32 %v1842, 1.0
  %v1844 = vrcp.pop %v1843
  %v1845 = vmul.f32 1.0, %v1844
  %v1846 = vmul.f32 %v1845, 2.0
  %v1847 = vsub.f32 %v1846, 1.0
  %v1848 = vmul.f32 %v1845, 0.0
  %1850 = vrot.lane.b32.xlu0 %v1847, 118
  %v1851 = vpop.permute.xlu0 %1850
  %v1853 = vmul.f32 %v1845, %v1851
  %1855 = vrot.lane.b32.xlu0 %v1853, 5
  %v1856 = vpop.permute.xlu0 %1855
  %v1858 = vadd.f32 %v1848, %v1856
  %v1859 = vtanh.pop %v1858
  %1861 = vrot.lane.b32.xlu0 %v1859, 10
  %v1862 = vpop.permute.xlu0 %1861
  %v1864 = vmul.f32 %v1845, %v1862
  %1866 = vrot.lane.b32.xlu0 %v1443, 113
  %v1867 = vpop.permute.xlu0 %1866
  %v1868 = vsel %vm879, %v1867, 0
  %1870 = vmatprep.subr.mxu0 0.0
  %1871 = vmatpush1.msra.mxu0 0.0
  %1872 = vmatprep.subr.mxu0 0.0
  %1873 = vmatpush1.msra.mxu0 0.0
  %1874 = vmatprep.subr.mxu0 0.0
  %1875 = vmatpush1.msra.mxu0 0.0
  %1876 = vmatprep.subr.mxu0 0.0
  %1877 = vmatpush1.msra.mxu0 0.0
  %1878 = vmatprep.subr.mxu0 0.0
  %1879 = vmatpush1.msra.mxu0 0.0
  %1880 = vmatprep.subr.mxu0 0.0
  %1881 = vmatpush1.msra.mxu0 0.0
  %1882 = vmatprep.subr.mxu0 0.0
  %1883 = vmatpush1.msra.mxu0 0.0
  %1884 = vmatprep.subr.mxu0 0.0
  %1885 = vmatpush1.msra.mxu0 0.0
  %1886 = vmatprep.subr.mxu0 0.0
  %1887 = vmatpush1.msra.mxu0 0.0
  %1888 = vmatprep.subr.mxu0 0.0
  %1889 = vmatpush1.msra.mxu0 0.0
  %1890 = vmatprep.subr.mxu0 0.0
  %1891 = vmatpush1.msra.mxu0 0.0
  %1892 = vmatprep.subr.mxu0 0.0
  %1893 = vmatpush1.msra.mxu0 0.0
  %1894 = vmatprep.subr.mxu0 0.0
  %1895 = vmatpush1.msra.mxu0 0.0
  %1896 = vmatprep.subr.mxu0 0.0
  %1897 = vmatpush1.msra.mxu0 0.0
  %1898 = vmatprep.subr.mxu0 0.0
  %1899 = vmatpush1.msra.mxu0 0.0
  %1900 = vmatprep.subr.mxu0 0.0
  %1901 = vmatpush1.msra.mxu0 %v885
  %1902 = vmatprep.subr.mxu0 0.0
  %1903 = vmatpush2.msra.mxu0 0.0
  %1904 = vmatprep.subr.mxu0 0.0
  %1905 = vmatpush2.msra.mxu0 0.0
  %1906 = vmatprep.subr.mxu0 0.0
  %1907 = vmatpush2.msra.mxu0 0.0
  %1908 = vmatprep.subr.mxu0 0.0
  %1909 = vmatpush2.msra.mxu0 0.0
  %1910 = vmatprep.subr.mxu0 0.0
  %1911 = vmatpush2.msra.mxu0 0.0
  %1912 = vmatprep.subr.mxu0 0.0
  %1913 = vmatpush2.msra.mxu0 0.0
  %1914 = vmatprep.subr.mxu0 0.0
  %1915 = vmatpush2.msra.mxu0 0.0
  %1916 = vmatprep.subr.mxu0 0.0
  %1917 = vmatpush2.msra.mxu0 0.0
  %1918 = vmatprep.subr.mxu0 0.0
  %1919 = vmatpush2.msra.mxu0 0.0
  %1920 = vmatprep.subr.mxu0 0.0
  %1921 = vmatpush2.msra.mxu0 0.0
  %1922 = vmatprep.subr.mxu0 0.0
  %1923 = vmatpush2.msra.mxu0 0.0
  %1924 = vmatprep.subr.mxu0 0.0
  %1925 = vmatpush2.msra.mxu0 0.0
  %1926 = vmatprep.subr.mxu0 0.0
  %1927 = vmatpush2.msra.mxu0 0.0
  %1928 = vmatprep.subr.mxu0 0.0
  %1929 = vmatpush2.msra.mxu0 0.0
  %1930 = vmatprep.subr.mxu0 0.0
  %1931 = vmatpush2.msra.mxu0 0.0
  %1932 = vmatprep.subr.mxu0 0.0
  %1933 = vmatpush2.msra.mxu0 0.0
  %1934 = vmatprep.mubr.f32.mxu0 0.0
  %1935 = vmatmul.mubr.f32.gmra.mxu0 %v1868
  %v1936 = vpop.f32.mrf.mxu0
  %v1937 = vadd.f32 0.0, %v1936
  %v1938 = vpop.f32.mrf.mxu0
  %1939 = vdwg.mxu0
  %v1940 = vadd.f32 %v468, %v1937
  %v1941 = vxor.u32 %v1940, 2147483648
  %v1942 = vmul.f32 %v1941, 1.442695
  %v1943 = vpow.pop %v1942
  %v1944 = vadd.f32 %v1943, 1.0
  %v1945 = vrcp.pop %v1944
  %v1946 = vmul.f32 1.0, %v1945
  %v1947 = vmul.f32 %v1946, 2.0
  %v1948 = vsub.f32 %v1947, 1.0
  %v1949 = vmul.f32 %v1946, %v1437
  %1951 = vrot.lane.b32.xlu0 %v1948, 118
  %v1952 = vpop.permute.xlu0 %1951
  %v1954 = vmul.f32 %v1946, %v1952
  %1956 = vrot.lane.b32.xlu0 %v1954, 5
  %v1957 = vpop.permute.xlu0 %1956
  %v1959 = vadd.f32 %v1949, %v1957
  %v1960 = vtanh.pop %v1959
  %1962 = vrot.lane.b32.xlu0 %v1960, 10
  %v1963 = vpop.permute.xlu0 %1962
  %v1965 = vmul.f32 %v1946, %v1963
  %1966 = vmatprep.subr.mxu0 0.0
  %1967 = vmatpush1.msra.mxu0 0.0
  %1968 = vmatprep.subr.mxu0 0.0
  %1969 = vmatpush1.msra.mxu0 0.0
  %1970 = vmatprep.subr.mxu0 0.0
  %1971 = vmatpush1.msra.mxu0 0.0
  %1972 = vmatprep.subr.mxu0 0.0
  %1973 = vmatpush1.msra.mxu0 0.0
  %1974 = vmatprep.subr.mxu0 0.0
  %1975 = vmatpush1.msra.mxu0 0.0
  %1976 = vmatprep.subr.mxu0 0.0
  %1977 = vmatpush1.msra.mxu0 0.0
  %1978 = vmatprep.subr.mxu0 0.0
  %1979 = vmatpush1.msra.mxu0 0.0
  %1980 = vmatprep.subr.mxu0 0.0
  %1981 = vmatpush1.msra.mxu0 0.0
  %1982 = vmatprep.subr.mxu0 0.0
  %1983 = vmatpush1.msra.mxu0 0.0
  %1984 = vmatprep.subr.mxu0 0.0
  %1985 = vmatpush1.msra.mxu0 0.0
  %1986 = vmatprep.subr.mxu0 0.0
  %1987 = vmatpush1.msra.mxu0 0.0
  %1988 = vmatprep.subr.mxu0 0.0
  %1989 = vmatpush1.msra.mxu0 0.0
  %1990 = vmatprep.subr.mxu0 0.0
  %1991 = vmatpush1.msra.mxu0 0.0
  %1992 = vmatprep.subr.mxu0 0.0
  %1993 = vmatpush1.msra.mxu0 0.0
  %1994 = vmatprep.subr.mxu0 0.0
  %1995 = vmatpush1.msra.mxu0 0.0
  %1996 = vmatprep.subr.mxu0 0.0
  %1997 = vmatpush1.msra.mxu0 %v1085
  %1998 = vmatprep.subr.mxu0 0.0
  %1999 = vmatpush2.msra.mxu0 0.0
  %2000 = vmatprep.subr.mxu0 0.0
  %2001 = vmatpush2.msra.mxu0 0.0
  %2002 = vmatprep.subr.mxu0 0.0
  %2003 = vmatpush2.msra.mxu0 0.0
  %2004 = vmatprep.subr.mxu0 0.0
  %2005 = vmatpush2.msra.mxu0 0.0
  %2006 = vmatprep.subr.mxu0 0.0
  %2007 = vmatpush2.msra.mxu0 0.0
  %2008 = vmatprep.subr.mxu0 0.0
  %2009 = vmatpush2.msra.mxu0 0.0
  %2010 = vmatprep.subr.mxu0 0.0
  %2011 = vmatpush2.msra.mxu0 0.0
  %2012 = vmatprep.subr.mxu0 0.0
  %2013 = vmatpush2.msra.mxu0 0.0
  %2014 = vmatprep.subr.mxu0 0.0
  %2015 = vmatpush2.msra.mxu0 0.0
  %2016 = vmatprep.subr.mxu0 0.0
  %2017 = vmatpush2.msra.mxu0 0.0
  %2018 = vmatprep.subr.mxu0 0.0
  %2019 = vmatpush2.msra.mxu0 0.0
  %2020 = vmatprep.subr.mxu0 0.0
  %2021 = vmatpush2.msra.mxu0 0.0
  %2022 = vmatprep.subr.mxu0 0.0
  %2023 = vmatpush2.msra.mxu0 0.0
  %2024 = vmatprep.subr.mxu0 0.0
  %2025 = vmatpush2.msra.mxu0 0.0
  %2026 = vmatprep.subr.mxu0 0.0
  %2027 = vmatpush2.msra.mxu0 0.0
  %2028 = vmatprep.subr.mxu0 0.0
  %2029 = vmatpush2.msra.mxu0 0.0
  %2030 = vmatprep.mubr.f32.mxu0 0.0
  %2031 = vmatmul.mubr.f32.gmra.mxu0 %v1613
  %v2032 = vpop.f32.mrf.mxu0
  %v2033 = vadd.f32 0.0, %v2032
  %v2034 = vpop.f32.mrf.mxu0
  %2035 = vdwg.mxu0
  %2036 = vmatprep.subr.mxu0 0.0
  %2037 = vmatpush1.msra.mxu0 0.0
  %2038 = vmatprep.subr.mxu0 0.0
  %2039 = vmatpush1.msra.mxu0 0.0
  %2040 = vmatprep.subr.mxu0 0.0
  %2041 = vmatpush1.msra.mxu0 0.0
  %2042 = vmatprep.subr.mxu0 0.0
  %2043 = vmatpush1.msra.mxu0 0.0
  %2044 = vmatprep.subr.mxu0 0.0
  %2045 = vmatpush1.msra.mxu0 0.0
  %2046 = vmatprep.subr.mxu0 0.0
  %2047 = vmatpush1.msra.mxu0 0.0
  %2048 = vmatprep.subr.mxu0 0.0
  %2049 = vmatpush1.msra.mxu0 0.0
  %2050 = vmatprep.subr.mxu0 0.0
  %2051 = vmatpush1.msra.mxu0 0.0
  %2052 = vmatprep.subr.mxu0 0.0
  %2053 = vmatpush1.msra.mxu0 0.0
  %2054 = vmatprep.subr.mxu0 0.0
  %2055 = vmatpush1.msra.mxu0 0.0
  %2056 = vmatprep.subr.mxu0 0.0
  %2057 = vmatpush1.msra.mxu0 0.0
  %2058 = vmatprep.subr.mxu0 0.0
  %2059 = vmatpush1.msra.mxu0 0.0
  %2060 = vmatprep.subr.mxu0 0.0
  %2061 = vmatpush1.msra.mxu0 0.0
  %2062 = vmatprep.subr.mxu0 0.0
  %2063 = vmatpush1.msra.mxu0 0.0
  %2064 = vmatprep.subr.mxu0 0.0
  %2065 = vmatpush1.msra.mxu0 0.0
  %2066 = vmatprep.subr.mxu0 0.0
  %2067 = vmatpush1.msra.mxu0 %v1158
  %2068 = vmatprep.subr.mxu0 0.0
  %2069 = vmatpush2.msra.mxu0 0.0
  %2070 = vmatprep.subr.mxu0 0.0
  %2071 = vmatpush2.msra.mxu0 0.0
  %2072 = vmatprep.subr.mxu0 0.0
  %2073 = vmatpush2.msra.mxu0 0.0
  %2074 = vmatprep.subr.mxu0 0.0
  %2075 = vmatpush2.msra.mxu0 0.0
  %2076 = vmatprep.subr.mxu0 0.0
  %2077 = vmatpush2.msra.mxu0 0.0
  %2078 = vmatprep.subr.mxu0 0.0
  %2079 = vmatpush2.msra.mxu0 0.0
  %2080 = vmatprep.subr.mxu0 0.0
  %2081 = vmatpush2.msra.mxu0 0.0
  %2082 = vmatprep.subr.mxu0 0.0
  %2083 = vmatpush2.msra.mxu0 0.0
  %2084 = vmatprep.subr.mxu0 0.0
  %2085 = vmatpush2.msra.mxu0 0.0
  %2086 = vmatprep.subr.mxu0 0.0
  %2087 = vmatpush2.msra.mxu0 0.0
  %2088 = vmatprep.subr.mxu0 0.0
  %2089 = vmatpush2.msra.mxu0 0.0
  %2090 = vmatprep.subr.mxu0 0.0
  %2091 = vmatpush2.msra.mxu0 0.0
  %2092 = vmatprep.subr.mxu0 0.0
  %2093 = vmatpush2.msra.mxu0 0.0
  %2094 = vmatprep.subr.mxu0 0.0
  %2095 = vmatpush2.msra.mxu0 0.0
  %2096 = vmatprep.subr.mxu0 0.0
  %2097 = vmatpush2.msra.mxu0 0.0
  %2098 = vmatprep.subr.mxu0 0.0
  %2099 = vmatpush2.msra.mxu0 0.0
  %2100 = vmatprep.mubr.f32.mxu0 0.0
  %2101 = vmatmul.mubr.f32.gmra.mxu0 %v1868
  %v2102 = vpop.f32.mrf.mxu0
  %v2103 = vadd.f32 %v2033, %v2102
  %v2104 = vpop.f32.mrf.mxu0
  %2105 = vdwg.mxu0
  %v2106 = vadd.f32 %v2103, %v1233
  %v2107 = vxor.u32 %v2106, 2147483648
  %v2108 = vmul.f32 %v2107, 1.442695
  %v2109 = vpow.pop %v2108
  %v2110 = vadd.f32 %v2109, 1.0
  %v2111 = vrcp.pop %v2110
  %v2112 = vmul.f32 1.0, %v2111
  %v2113 = vmul.f32 %v2112, 2.0
  %v2114 = vsub.f32 %v2113, 1.0
  %v2115 = vmul.f32 %v2112, %v1603
  %2117 = vrot.lane.b32.xlu0 %v2114, 118
  %v2118 = vpop.permute.xlu0 %2117
  %v2120 = vmul.f32 %v2112, %v2118
  %2122 = vrot.lane.b32.xlu0 %v2120, 5
  %v2123 = vpop.permute.xlu0 %2122
  %v2125 = vadd.f32 %v2115, %v2123
  %v2126 = vtanh.pop %v2125
  %2128 = vrot.lane.b32.xlu0 %v2126, 10
  %v2129 = vpop.permute.xlu0 %2128
  %v2131 = vmul.f32 %v2112, %v2129
  %2133 = vrot.lane.b32.xlu0 %v2131, 113
  %v2134 = vpop.permute.xlu0 %2133
  %v2135 = vsel %vm879, %v2134, 0
  %2137 = vmatprep.subr.mxu0 0.0
  %2138 = vmatpush1.msra.mxu0 0.0
  %2139 = vmatprep.subr.mxu0 0.0
  %2140 = vmatpush1.msra.mxu0 0.0
  %2141 = vmatprep.subr.mxu0 0.0
  %2142 = vmatpush1.msra.mxu0 0.0
  %2143 = vmatprep.subr.mxu0 0.0
  %2144 = vmatpush1.msra.mxu0 0.0
  %2145 = vmatprep.subr.mxu0 0.0
  %2146 = vmatpush1.msra.mxu0 0.0
  %2147 = vmatprep.subr.mxu0 0.0
  %2148 = vmatpush1.msra.mxu0 0.0
  %2149 = vmatprep.subr.mxu0 0.0
  %2150 = vmatpush1.msra.mxu0 0.0
  %2151 = vmatprep.subr.mxu0 0.0
  %2152 = vmatpush1.msra.mxu0 0.0
  %2153 = vmatprep.subr.mxu0 0.0
  %2154 = vmatpush1.msra.mxu0 0.0
  %2155 = vmatprep.subr.mxu0 0.0
  %2156 = vmatpush1.msra.mxu0 0.0
  %2157 = vmatprep.subr.mxu0 0.0
  %2158 = vmatpush1.msra.mxu0 0.0
  %2159 = vmatprep.subr.mxu0 0.0
  %2160 = vmatpush1.msra.mxu0 0.0
  %2161 = vmatprep.subr.mxu0 0.0
  %2162 = vmatpush1.msra.mxu0 0.0
  %2163 = vmatprep.subr.mxu0 0.0
  %2164 = vmatpush1.msra.mxu0 0.0
  %2165 = vmatprep.subr.mxu0 0.0
  %2166 = vmatpush1.msra.mxu0 0.0
  %2167 = vmatprep.subr.mxu0 0.0
  %2168 = vmatpush1.msra.mxu0 %v1270
  %2169 = vmatprep.subr.mxu0 0.0
  %2170 = vmatpush2.msra.mxu0 0.0
  %2171 = vmatprep.subr.mxu0 0.0
  %2172 = vmatpush2.msra.mxu0 0.0
  %2173 = vmatprep.subr.mxu0 0.0
  %2174 = vmatpush2.msra.mxu0 0.0
  %2175 = vmatprep.subr.mxu0 0.0
  %2176 = vmatpush2.msra.mxu0 0.0
  %2177 = vmatprep.subr.mxu0 0.0
  %2178 = vmatpush2.msra.mxu0 0.0
  %2179 = vmatprep.subr.mxu0 0.0
  %2180 = vmatpush2.msra.mxu0 0.0
  %2181 = vmatprep.subr.mxu0 0.0
  %2182 = vmatpush2.msra.mxu0 0.0
  %2183 = vmatprep.subr.mxu0 0.0
  %2184 = vmatpush2.msra.mxu0 0.0
  %2185 = vmatprep.subr.mxu0 0.0
  %2186 = vmatpush2.msra.mxu0 0.0
  %2187 = vmatprep.subr.mxu0 0.0
  %2188 = vmatpush2.msra.mxu0 0.0
  %2189 = vmatprep.subr.mxu0 0.0
  %2190 = vmatpush2.msra.mxu0 0.0
  %2191 = vmatprep.subr.mxu0 0.0
  %2192 = vmatpush2.msra.mxu0 0.0
  %2193 = vmatprep.subr.mxu0 0.0
  %2194 = vmatpush2.msra.mxu0 0.0
  %2195 = vmatprep.subr.mxu0 0.0
  %2196 = vmatpush2.msra.mxu0 0.0
  %2197 = vmatprep.subr.mxu0 0.0
  %2198 = vmatpush2.msra.mxu0 0.0
  %2199 = vmatprep.subr.mxu0 0.0
  %2200 = vmatpush2.msra.mxu0 0.0
  %2201 = vmatprep.mubr.f32.mxu0 0.0
  %2202 = vmatmul.mubr.f32.gmra.mxu0 %v2135
  %v2203 = vpop.f32.mrf.mxu0
  %v2204 = vadd.f32 %v1263, %v2203
  %v2205 = vpop.f32.mrf.mxu0
  %2206 = vdwg.mxu0
  %v2207 = vmax.f32 %v2204, 0.0
  %2209 = vrot.lane.b32.xlu0 %v1864, 113
  %v2210 = vpop.permute.xlu0 %2209
  %v2211 = vsel %vm879, %v2210, 0
  %2213 = vmatprep.subr.mxu0 0.0
  %2214 = vmatpush1.msra.mxu0 0.0
  %2215 = vmatprep.subr.mxu0 0.0
  %2216 = vmatpush1.msra.mxu0 0.0
  %2217 = vmatprep.subr.mxu0 0.0
  %2218 = vmatpush1.msra.mxu0 0.0
  %2219 = vmatprep.subr.mxu0 0.0
  %2220 = vmatpush1.msra.mxu0 0.0
  %2221 = vmatprep.subr.mxu0 0.0
  %2222 = vmatpush1.msra.mxu0 0.0
  %2223 = vmatprep.subr.mxu0 0.0
  %2224 = vmatpush1.msra.mxu0 0.0
  %2225 = vmatprep.subr.mxu0 0.0
  %2226 = vmatpush1.msra.mxu0 0.0
  %2227 = vmatprep.subr.mxu0 0.0
  %2228 = vmatpush1.msra.mxu0 0.0
  %2229 = vmatprep.subr.mxu0 0.0
  %2230 = vmatpush1.msra.mxu0 0.0
  %2231 = vmatprep.subr.mxu0 0.0
  %2232 = vmatpush1.msra.mxu0 0.0
  %2233 = vmatprep.subr.mxu0 0.0
  %2234 = vmatpush1.msra.mxu0 0.0
  %2235 = vmatprep.subr.mxu0 0.0
  %2236 = vmatpush1.msra.mxu0 0.0
  %2237 = vmatprep.subr.mxu0 0.0
  %2238 = vmatpush1.msra.mxu0 0.0
  %2239 = vmatprep.subr.mxu0 0.0
  %2240 = vmatpush1.msra.mxu0 0.0
  %2241 = vmatprep.subr.mxu0 0.0
  %2242 = vmatpush1.msra.mxu0 0.0
  %2243 = vmatprep.subr.mxu0 0.0
  %2244 = vmatpush1.msra.mxu0 %v1687
  %2245 = vmatprep.subr.mxu0 0.0
  %2246 = vmatpush2.msra.mxu0 0.0
  %2247 = vmatprep.subr.mxu0 0.0
  %2248 = vmatpush2.msra.mxu0 0.0
  %2249 = vmatprep.subr.mxu0 0.0
  %2250 = vmatpush2.msra.mxu0 0.0
  %2251 = vmatprep.subr.mxu0 0.0
  %2252 = vmatpush2.msra.mxu0 0.0
  %2253 = vmatprep.subr.mxu0 0.0
  %2254 = vmatpush2.msra.mxu0 0.0
  %2255 = vmatprep.subr.mxu0 0.0
  %2256 = vmatpush2.msra.mxu0 0.0
  %2257 = vmatprep.subr.mxu0 0.0
  %2258 = vmatpush2.msra.mxu0 0.0
  %2259 = vmatprep.subr.mxu0 0.0
  %2260 = vmatpush2.msra.mxu0 0.0
  %2261 = vmatprep.subr.mxu0 0.0
  %2262 = vmatpush2.msra.mxu0 0.0
  %2263 = vmatprep.subr.mxu0 0.0
  %2264 = vmatpush2.msra.mxu0 0.0
  %2265 = vmatprep.subr.mxu0 0.0
  %2266 = vmatpush2.msra.mxu0 0.0
  %2267 = vmatprep.subr.mxu0 0.0
  %2268 = vmatpush2.msra.mxu0 0.0
  %2269 = vmatprep.subr.mxu0 0.0
  %2270 = vmatpush2.msra.mxu0 0.0
  %2271 = vmatprep.subr.mxu0 0.0
  %2272 = vmatpush2.msra.mxu0 0.0
  %2273 = vmatprep.subr.mxu0 0.0
  %2274 = vmatpush2.msra.mxu0 0.0
  %2275 = vmatprep.subr.mxu0 0.0
  %2276 = vmatpush2.msra.mxu0 0.0
  %2277 = vmatprep.mubr.f32.mxu0 0.0
  %2278 = vmatmul.mubr.f32.gmra.mxu0 %v2211
  %v2279 = vpop.f32.mrf.mxu0
  %v2280 = vadd.f32 0.0, %v2279
  %v2281 = vpop.f32.mrf.mxu0
  %2282 = vdwg.mxu0
  %v2284 = vsel %vm879, %v1685, 0
  %2286 = vmatprep.subr.mxu0 0.0
  %2287 = vmatpush1.msra.mxu0 0.0
  %2288 = vmatprep.subr.mxu0 0.0
  %2289 = vmatpush1.msra.mxu0 0.0
  %2290 = vmatprep.subr.mxu0 0.0
  %2291 = vmatpush1.msra.mxu0 0.0
  %2292 = vmatprep.subr.mxu0 0.0
  %2293 = vmatpush1.msra.mxu0 0.0
  %2294 = vmatprep.subr.mxu0 0.0
  %2295 = vmatpush1.msra.mxu0 0.0
  %2296 = vmatprep.subr.mxu0 0.0
  %2297 = vmatpush1.msra.mxu0 0.0
  %2298 = vmatprep.subr.mxu0 0.0
  %2299 = vmatpush1.msra.mxu0 0.0
  %2300 = vmatprep.subr.mxu0 0.0
  %2301 = vmatpush1.msra.mxu0 0.0
  %2302 = vmatprep.subr.mxu0 0.0
  %2303 = vmatpush1.msra.mxu0 0.0
  %2304 = vmatprep.subr.mxu0 0.0
  %2305 = vmatpush1.msra.mxu0 0.0
  %2306 = vmatprep.subr.mxu0 0.0
  %2307 = vmatpush1.msra.mxu0 0.0
  %2308 = vmatprep.subr.mxu0 0.0
  %2309 = vmatpush1.msra.mxu0 0.0
  %2310 = vmatprep.subr.mxu0 0.0
  %2311 = vmatpush1.msra.mxu0 0.0
  %2312 = vmatprep.subr.mxu0 0.0
  %2313 = vmatpush1.msra.mxu0 0.0
  %2314 = vmatprep.subr.mxu0 0.0
  %2315 = vmatpush1.msra.mxu0 0.0
  %2316 = vmatprep.subr.mxu0 0.0
  %2317 = vmatpush1.msra.mxu0 %v1763
  %2318 = vmatprep.subr.mxu0 0.0
  %2319 = vmatpush2.msra.mxu0 0.0
  %2320 = vmatprep.subr.mxu0 0.0
  %2321 = vmatpush2.msra.mxu0 0.0
  %2322 = vmatprep.subr.mxu0 0.0
  %2323 = vmatpush2.msra.mxu0 0.0
  %2324 = vmatprep.subr.mxu0 0.0
  %2325 = vmatpush2.msra.mxu0 0.0
  %2326 = vmatprep.subr.mxu0 0.0
  %2327 = vmatpush2.msra.mxu0 0.0
  %2328 = vmatprep.subr.mxu0 0.0
  %2329 = vmatpush2.msra.mxu0 0.0
  %2330 = vmatprep.subr.mxu0 0.0
  %2331 = vmatpush2.msra.mxu0 0.0
  %2332 = vmatprep.subr.mxu0 0.0
  %2333 = vmatpush2.msra.mxu0 0.0
  %2334 = vmatprep.subr.mxu0 0.0
  %2335 = vmatpush2.msra.mxu0 0.0
  %2336 = vmatprep.subr.mxu0 0.0
  %2337 = vmatpush2.msra.mxu0 0.0
  %2338 = vmatprep.subr.mxu0 0.0
  %2339 = vmatpush2.msra.mxu0 0.0
  %2340 = vmatprep.subr.mxu0 0.0
  %2341 = vmatpush2.msra.mxu0 0.0
  %2342 = vmatprep.subr.mxu0 0.0
  %2343 = vmatpush2.msra.mxu0 0.0
  %2344 = vmatprep.subr.mxu0 0.0
  %2345 = vmatpush2.msra.mxu0 0.0
  %2346 = vmatprep.subr.mxu0 0.0
  %2347 = vmatpush2.msra.mxu0 0.0
  %2348 = vmatprep.subr.mxu0 0.0
  %2349 = vmatpush2.msra.mxu0 0.0
  %2350 = vmatprep.mubr.f32.mxu0 0.0
  %2351 = vmatmul.mubr.f32.gmra.mxu0 %v2284
  %v2352 = vpop.f32.mrf.mxu0
  %v2353 = vadd.f32 %v2280, %v2352
  %v2354 = vpop.f32.mrf.mxu0
  %2355 = vdwg.mxu0
  %v2356 = vadd.f32 %v2353, %v1838
  %v2357 = vxor.u32 %v2356, 2147483648
  %v2358 = vmul.f32 %v2357, 1.442695
  %v2359 = vpow.pop %v2358
  %v2360 = vadd.f32 %v2359, 1.0
  %v2361 = vrcp.pop %v2360
  %v2362 = vmul.f32 1.0, %v2361
  %v2363 = vmul.f32 %v2362, 2.0
  %v2364 = vsub.f32 %v2363, 1.0
  %v2365 = vmul.f32 %v2362, %v1858
  %2367 = vrot.lane.b32.xlu0 %v2364, 118
  %v2368 = vpop.permute.xlu0 %2367
  %v2370 = vmul.f32 %v2362, %v2368
  %2372 = vrot.lane.b32.xlu0 %v2370, 5
  %v2373 = vpop.permute.xlu0 %2372
  %v2375 = vadd.f32 %v2365, %v2373
  %v2376 = vtanh.pop %v2375
  %2378 = vrot.lane.b32.xlu0 %v2376, 10
  %v2379 = vpop.permute.xlu0 %2378
  %v2381 = vmul.f32 %v2362, %v2379
  %v2383 = vsel %vm883, %v21, 0
  %2385 = vmatprep.subr.mxu0 0.0
  %2386 = vmatpush1.msra.mxu0 0.0
  %2387 = vmatprep.subr.mxu0 0.0
  %2388 = vmatpush1.msra.mxu0 0.0
  %2389 = vmatprep.subr.mxu0 0.0
  %2390 = vmatpush1.msra.mxu0 0.0
  %2391 = vmatprep.subr.mxu0 0.0
  %2392 = vmatpush1.msra.mxu0 0.0
  %2393 = vmatprep.subr.mxu0 0.0
  %2394 = vmatpush1.msra.mxu0 0.0
  %2395 = vmatprep.subr.mxu0 0.0
  %2396 = vmatpush1.msra.mxu0 0.0
  %2397 = vmatprep.subr.mxu0 0.0
  %2398 = vmatpush1.msra.mxu0 0.0
  %2399 = vmatprep.subr.mxu0 0.0
  %2400 = vmatpush1.msra.mxu0 0.0
  %2401 = vmatprep.subr.mxu0 0.0
  %2402 = vmatpush1.msra.mxu0 0.0
  %2403 = vmatprep.subr.mxu0 0.0
  %2404 = vmatpush1.msra.mxu0 0.0
  %2405 = vmatprep.subr.mxu0 0.0
  %2406 = vmatpush1.msra.mxu0 0.0
  %2407 = vmatprep.subr.mxu0 0.0
  %2408 = vmatpush1.msra.mxu0 0.0
  %2409 = vmatprep.subr.mxu0 0.0
  %2410 = vmatpush1.msra.mxu0 0.0
  %2411 = vmatprep.subr.mxu0 0.0
  %2412 = vmatpush1.msra.mxu0 0.0
  %2413 = vmatprep.subr.mxu0 0.0
  %2414 = vmatpush1.msra.mxu0 0.0
  %2415 = vmatprep.subr.mxu0 0.0
  %2416 = vmatpush1.msra.mxu0 %v2383
  %2417 = vmatprep.subr.mxu0 0.0
  %2418 = vmatpush2.msra.mxu0 0.0
  %2419 = vmatprep.subr.mxu0 0.0
  %2420 = vmatpush2.msra.mxu0 0.0
  %2421 = vmatprep.subr.mxu0 0.0
  %2422 = vmatpush2.msra.mxu0 0.0
  %2423 = vmatprep.subr.mxu0 0.0
  %2424 = vmatpush2.msra.mxu0 0.0
  %2425 = vmatprep.subr.mxu0 0.0
  %2426 = vmatpush2.msra.mxu0 0.0
  %2427 = vmatprep.subr.mxu0 0.0
  %2428 = vmatpush2.msra.mxu0 0.0
  %2429 = vmatprep.subr.mxu0 0.0
  %2430 = vmatpush2.msra.mxu0 0.0
  %2431 = vmatprep.subr.mxu0 0.0
  %2432 = vmatpush2.msra.mxu0 0.0
  %2433 = vmatprep.subr.mxu0 0.0
  %2434 = vmatpush2.msra.mxu0 0.0
  %2435 = vmatprep.subr.mxu0 0.0
  %2436 = vmatpush2.msra.mxu0 0.0
  %2437 = vmatprep.subr.mxu0 0.0
  %2438 = vmatpush2.msra.mxu0 0.0
  %2439 = vmatprep.subr.mxu0 0.0
  %2440 = vmatpush2.msra.mxu0 0.0
  %2441 = vmatprep.subr.mxu0 0.0
  %2442 = vmatpush2.msra.mxu0 0.0
  %2443 = vmatprep.subr.mxu0 0.0
  %2444 = vmatpush2.msra.mxu0 0.0
  %2445 = vmatprep.subr.mxu0 0.0
  %2446 = vmatpush2.msra.mxu0 0.0
  %2447 = vmatprep.subr.mxu0 0.0
  %2448 = vmatpush2.msra.mxu0 0.0
  %2449 = vmatprep.mubr.f32.mxu0 0.0
  %2450 = vmatmul.mubr.f32.gmra.mxu0 %v881
  %v2451 = vpop.f32.mrf.mxu0
  %v2452 = vadd.f32 0.0, %v2451
  %v2453 = vpop.f32.mrf.mxu0
  %2454 = vdwg.mxu0
  %v2456 = vsel %vm883, %v20, 0
  %2458 = vmatprep.subr.mxu0 0.0
  %2459 = vmatpush1.msra.mxu0 0.0
  %2460 = vmatprep.subr.mxu0 0.0
  %2461 = vmatpush1.msra.mxu0 0.0
  %2462 = vmatprep.subr.mxu0 0.0
  %2463 = vmatpush1.msra.mxu0 0.0
  %2464 = vmatprep.subr.mxu0 0.0
  %2465 = vmatpush1.msra.mxu0 0.0
  %2466 = vmatprep.subr.mxu0 0.0
  %2467 = vmatpush1.msra.mxu0 0.0
  %2468 = vmatprep.subr.mxu0 0.0
  %2469 = vmatpush1.msra.mxu0 0.0
  %2470 = vmatprep.subr.mxu0 0.0
  %2471 = vmatpush1.msra.mxu0 0.0
  %2472 = vmatprep.subr.mxu0 0.0
  %2473 = vmatpush1.msra.mxu0 0.0
  %2474 = vmatprep.subr.mxu0 0.0
  %2475 = vmatpush1.msra.mxu0 0.0
  %2476 = vmatprep.subr.mxu0 0.0
  %2477 = vmatpush1.msra.mxu0 0.0
  %2478 = vmatprep.subr.mxu0 0.0
  %2479 = vmatpush1.msra.mxu0 0.0
  %2480 = vmatprep.subr.mxu0 0.0
  %2481 = vmatpush1.msra.mxu0 0.0
  %2482 = vmatprep.subr.mxu0 0.0
  %2483 = vmatpush1.msra.mxu0 0.0
  %2484 = vmatprep.subr.mxu0 0.0
  %2485 = vmatpush1.msra.mxu0 0.0
  %2486 = vmatprep.subr.mxu0 0.0
  %2487 = vmatpush1.msra.mxu0 0.0
  %2488 = vmatprep.subr.mxu0 0.0
  %2489 = vmatpush1.msra.mxu0 %v2456
  %2490 = vmatprep.subr.mxu0 0.0
  %2491 = vmatpush2.msra.mxu0 0.0
  %2492 = vmatprep.subr.mxu0 0.0
  %2493 = vmatpush2.msra.mxu0 0.0
  %2494 = vmatprep.subr.mxu0 0.0
  %2495 = vmatpush2.msra.mxu0 0.0
  %2496 = vmatprep.subr.mxu0 0.0
  %2497 = vmatpush2.msra.mxu0 0.0
  %2498 = vmatprep.subr.mxu0 0.0
  %2499 = vmatpush2.msra.mxu0 0.0
  %2500 = vmatprep.subr.mxu0 0.0
  %2501 = vmatpush2.msra.mxu0 0.0
  %2502 = vmatprep.subr.mxu0 0.0
  %2503 = vmatpush2.msra.mxu0 0.0
  %2504 = vmatprep.subr.mxu0 0.0
  %2505 = vmatpush2.msra.mxu0 0.0
  %2506 = vmatprep.subr.mxu0 0.0
  %2507 = vmatpush2.msra.mxu0 0.0
  %2508 = vmatprep.subr.mxu0 0.0
  %2509 = vmatpush2.msra.mxu0 0.0
  %2510 = vmatprep.subr.mxu0 0.0
  %2511 = vmatpush2.msra.mxu0 0.0
  %2512 = vmatprep.subr.mxu0 0.0
  %2513 = vmatpush2.msra.mxu0 0.0
  %2514 = vmatprep.subr.mxu0 0.0
  %2515 = vmatpush2.msra.mxu0 0.0
  %2516 = vmatprep.subr.mxu0 0.0
  %2517 = vmatpush2.msra.mxu0 0.0
  %2518 = vmatprep.subr.mxu0 0.0
  %2519 = vmatpush2.msra.mxu0 0.0
  %2520 = vmatprep.subr.mxu0 0.0
  %2521 = vmatpush2.msra.mxu0 0.0
  %2522 = vmatprep.mubr.f32.mxu0 0.0
  %2523 = vmatmul.mubr.f32.gmra.mxu0 %v2211
  %v2524 = vpop.f32.mrf.mxu0
  %v2525 = vadd.f32 %v2452, %v2524
  %v2526 = vpop.f32.mrf.mxu0
  %2527 = vdwg.mxu0
  %v2528 = vlaneseq
  %v2529 = vshrl.u32 %v2528, 7
  %v2530 = vsub.s32 0, %v2529
  %v2531 = vrot.slane %v22, %v2530
  %v2532 = vadd.f32 %v2525, %v2531
  %v2533 = vxor.u32 %v2532, 2147483648
  %v2534 = vmul.f32 %v2533, 1.442695
  %v2535 = vpow.pop %v2534
  %v2536 = vadd.f32 %v2535, 1.0
  %v2537 = vrcp.pop %v2536
  %v2538 = vmul.f32 1.0, %v2537
  %v2539 = vmul.f32 %v2538, 2.0
  %v2540 = vsub.f32 %v2539, 1.0
  %v2541 = vmul.f32 %v2538, 0.0
  %2543 = vrot.lane.b32.xlu0 %v2540, 118
  %v2544 = vpop.permute.xlu0 %2543
  %v2546 = vmul.f32 %v2538, %v2544
  %2548 = vrot.lane.b32.xlu0 %v2546, 5
  %v2549 = vpop.permute.xlu0 %2548
  %v2551 = vadd.f32 %v2541, %v2549
  %v2552 = vtanh.pop %v2551
  %2554 = vrot.lane.b32.xlu0 %v2552, 10
  %v2555 = vpop.permute.xlu0 %2554
  %v2557 = vmul.f32 %v2538, %v2555
  %v2558 = vlaneseq
  %v2559 = vshrl.u32 %v2558, 7
  %v2560 = vsub.s32 0, %v2559
  %v2561 = vrot.slane %v24, %v2560
  %2563 = vrot.lane.b32.xlu0 %v2557, 113
  %v2564 = vpop.permute.xlu0 %2563
  %v2565 = vsel %vm879, %v2564, 0
  %v2568 = vsel %vm883, %v23, 0
  %2570 = vmatprep.subr.mxu0 0.0
  %2571 = vmatpush1.msra.mxu0 0.0
  %2572 = vmatprep.subr.mxu0 0.0
  %2573 = vmatpush1.msra.mxu0 0.0
  %2574 = vmatprep.subr.mxu0 0.0
  %2575 = vmatpush1.msra.mxu0 0.0
  %2576 = vmatprep.subr.mxu0 0.0
  %2577 = vmatpush1.msra.mxu0 0.0
  %2578 = vmatprep.subr.mxu0 0.0
  %2579 = vmatpush1.msra.mxu0 0.0
  %2580 = vmatprep.subr.mxu0 0.0
  %2581 = vmatpush1.msra.mxu0 0.0
  %2582 = vmatprep.subr.mxu0 0.0
  %2583 = vmatpush1.msra.mxu0 0.0
  %2584 = vmatprep.subr.mxu0 0.0
  %2585 = vmatpush1.msra.mxu0 0.0
  %2586 = vmatprep.subr.mxu0 0.0
  %2587 = vmatpush1.msra.mxu0 0.0
  %2588 = vmatprep.subr.mxu0 0.0
  %2589 = vmatpush1.msra.mxu0 0.0
  %2590 = vmatprep.subr.mxu0 0.0
  %2591 = vmatpush1.msra.mxu0 0.0
  %2592 = vmatprep.subr.mxu0 0.0
  %2593 = vmatpush1.msra.mxu0 0.0
  %2594 = vmatprep.subr.mxu0 0.0
  %2595 = vmatpush1.msra.mxu0 0.0
  %2596 = vmatprep.subr.mxu0 0.0
  %2597 = vmatpush1.msra.mxu0 0.0
  %2598 = vmatprep.subr.mxu0 0.0
  %2599 = vmatpush1.msra.mxu0 0.0
  %2600 = vmatprep.subr.mxu0 0.0
  %2601 = vmatpush1.msra.mxu0 %v2568
  %2602 = vmatprep.subr.mxu0 0.0
  %2603 = vmatpush2.msra.mxu0 0.0
  %2604 = vmatprep.subr.mxu0 0.0
  %2605 = vmatpush2.msra.mxu0 0.0
  %2606 = vmatprep.subr.mxu0 0.0
  %2607 = vmatpush2.msra.mxu0 0.0
  %2608 = vmatprep.subr.mxu0 0.0
  %2609 = vmatpush2.msra.mxu0 0.0
  %2610 = vmatprep.subr.mxu0 0.0
  %2611 = vmatpush2.msra.mxu0 0.0
  %2612 = vmatprep.subr.mxu0 0.0
  %2613 = vmatpush2.msra.mxu0 0.0
  %2614 = vmatprep.subr.mxu0 0.0
  %2615 = vmatpush2.msra.mxu0 0.0
  %2616 = vmatprep.subr.mxu0 0.0
  %2617 = vmatpush2.msra.mxu0 0.0
  %2618 = vmatprep.subr.mxu0 0.0
  %2619 = vmatpush2.msra.mxu0 0.0
  %2620 = vmatprep.subr.mxu0 0.0
  %2621 = vmatpush2.msra.mxu0 0.0
  %2622 = vmatprep.subr.mxu0 0.0
  %2623 = vmatpush2.msra.mxu0 0.0
  %2624 = vmatprep.subr.mxu0 0.0
  %2625 = vmatpush2.msra.mxu0 0.0
  %2626 = vmatprep.subr.mxu0 0.0
  %2627 = vmatpush2.msra.mxu0 0.0
  %2628 = vmatprep.subr.mxu0 0.0
  %2629 = vmatpush2.msra.mxu0 0.0
  %2630 = vmatprep.subr.mxu0 0.0
  %2631 = vmatpush2.msra.mxu0 0.0
  %2632 = vmatprep.subr.mxu0 0.0
  %2633 = vmatpush2.msra.mxu0 0.0
  %2634 = vmatprep.mubr.f32.mxu0 0.0
  %2635 = vmatmul.mubr.f32.gmra.mxu0 %v2565
  %v2636 = vpop.f32.mrf.mxu0
  %v2637 = vadd.f32 %v2561, %v2636
  %v2638 = vpop.f32.mrf.mxu0
  %2639 = vdwg.mxu0
  %v2640 = vxor.u32 %v2637, 2147483648
  %v2641 = vmul.f32 %v2640, 1.442695
  %v2642 = vpow.pop %v2641
  %v2643 = vadd.f32 %v2642, 1.0
  %v2644 = vrcp.pop %v2643
  %v2645 = vmul.f32 1.0, %v2644
  %2647 = vrot.lane.b32.xlu0 %v1965, 113
  %v2648 = vpop.permute.xlu0 %2647
  %v2649 = vsel %vm879, %v2648, 0
  %2651 = vmatprep.subr.mxu0 0.0
  %2652 = vmatpush1.msra.mxu0 0.0
  %2653 = vmatprep.subr.mxu0 0.0
  %2654 = vmatpush1.msra.mxu0 0.0
  %2655 = vmatprep.subr.mxu0 0.0
  %2656 = vmatpush1.msra.mxu0 0.0
  %2657 = vmatprep.subr.mxu0 0.0
  %2658 = vmatpush1.msra.mxu0 0.0
  %2659 = vmatprep.subr.mxu0 0.0
  %2660 = vmatpush1.msra.mxu0 0.0
  %2661 = vmatprep.subr.mxu0 0.0
  %2662 = vmatpush1.msra.mxu0 0.0
  %2663 = vmatprep.subr.mxu0 0.0
  %2664 = vmatpush1.msra.mxu0 0.0
  %2665 = vmatprep.subr.mxu0 0.0
  %2666 = vmatpush1.msra.mxu0 0.0
  %2667 = vmatprep.subr.mxu0 0.0
  %2668 = vmatpush1.msra.mxu0 0.0
  %2669 = vmatprep.subr.mxu0 0.0
  %2670 = vmatpush1.msra.mxu0 0.0
  %2671 = vmatprep.subr.mxu0 0.0
  %2672 = vmatpush1.msra.mxu0 0.0
  %2673 = vmatprep.subr.mxu0 0.0
  %2674 = vmatpush1.msra.mxu0 0.0
  %2675 = vmatprep.subr.mxu0 0.0
  %2676 = vmatpush1.msra.mxu0 0.0
  %2677 = vmatprep.subr.mxu0 0.0
  %2678 = vmatpush1.msra.mxu0 0.0
  %2679 = vmatprep.subr.mxu0 0.0
  %2680 = vmatpush1.msra.mxu0 0.0
  %2681 = vmatprep.subr.mxu0 0.0
  %2682 = vmatpush1.msra.mxu0 %v885
  %2683 = vmatprep.subr.mxu0 0.0
  %2684 = vmatpush2.msra.mxu0 0.0
  %2685 = vmatprep.subr.mxu0 0.0
  %2686 = vmatpush2.msra.mxu0 0.0
  %2687 = vmatprep.subr.mxu0 0.0
  %2688 = vmatpush2.msra.mxu0 0.0
  %2689 = vmatprep.subr.mxu0 0.0
  %2690 = vmatpush2.msra.mxu0 0.0
  %2691 = vmatprep.subr.mxu0 0.0
  %2692 = vmatpush2.msra.mxu0 0.0
  %2693 = vmatprep.subr.mxu0 0.0
  %2694 = vmatpush2.msra.mxu0 0.0
  %2695 = vmatprep.subr.mxu0 0.0
  %2696 = vmatpush2.msra.mxu0 0.0
  %2697 = vmatprep.subr.mxu0 0.0
  %2698 = vmatpush2.msra.mxu0 0.0
  %2699 = vmatprep.subr.mxu0 0.0
  %2700 = vmatpush2.msra.mxu0 0.0
  %2701 = vmatprep.subr.mxu0 0.0
  %2702 = vmatpush2.msra.mxu0 0.0
  %2703 = vmatprep.subr.mxu0 0.0
  %2704 = vmatpush2.msra.mxu0 0.0
  %2705 = vmatprep.subr.mxu0 0.0
  %2706 = vmatpush2.msra.mxu0 0.0
  %2707 = vmatprep.subr.mxu0 0.0
  %2708 = vmatpush2.msra.mxu0 0.0
  %2709 = vmatprep.subr.mxu0 0.0
  %2710 = vmatpush2.msra.mxu0 0.0
  %2711 = vmatprep.subr.mxu0 0.0
  %2712 = vmatpush2.msra.mxu0 0.0
  %2713 = vmatprep.subr.mxu0 0.0
  %2714 = vmatpush2.msra.mxu0 0.0
  %2715 = vmatprep.mubr.f32.mxu0 0.0
  %2716 = vmatmul.mubr.f32.gmra.mxu0 %v2649
  %v2717 = vpop.f32.mrf.mxu0
  %v2718 = vadd.f32 0.0, %v2717
  %v2719 = vpop.f32.mrf.mxu0
  %2720 = vdwg.mxu0
  %v2721 = vadd.f32 %v570, %v2718
  %v2722 = vxor.u32 %v2721, 2147483648
  %v2723 = vmul.f32 %v2722, 1.442695
  %v2724 = vpow.pop %v2723
  %v2725 = vadd.f32 %v2724, 1.0
  %v2726 = vrcp.pop %v2725
  %v2727 = vmul.f32 1.0, %v2726
  %v2728 = vmul.f32 %v2727, 2.0
  %v2729 = vsub.f32 %v2728, 1.0
  %v2730 = vmul.f32 %v2727, %v1959
  %2732 = vrot.lane.b32.xlu0 %v2729, 118
  %v2733 = vpop.permute.xlu0 %2732
  %v2735 = vmul.f32 %v2727, %v2733
  %2737 = vrot.lane.b32.xlu0 %v2735, 5
  %v2738 = vpop.permute.xlu0 %2737
  %v2740 = vadd.f32 %v2730, %v2738
  %v2741 = vtanh.pop %v2740
  %2743 = vrot.lane.b32.xlu0 %v2741, 10
  %v2744 = vpop.permute.xlu0 %2743
  %v2746 = vmul.f32 %v2727, %v2744
  %2747 = vmatprep.subr.mxu0 0.0
  %2748 = vmatpush1.msra.mxu0 0.0
  %2749 = vmatprep.subr.mxu0 0.0
  %2750 = vmatpush1.msra.mxu0 0.0
  %2751 = vmatprep.subr.mxu0 0.0
  %2752 = vmatpush1.msra.mxu0 0.0
  %2753 = vmatprep.subr.mxu0 0.0
  %2754 = vmatpush1.msra.mxu0 0.0
  %2755 = vmatprep.subr.mxu0 0.0
  %2756 = vmatpush1.msra.mxu0 0.0
  %2757 = vmatprep.subr.mxu0 0.0
  %2758 = vmatpush1.msra.mxu0 0.0
  %2759 = vmatprep.subr.mxu0 0.0
  %2760 = vmatpush1.msra.mxu0 0.0
  %2761 = vmatprep.subr.mxu0 0.0
  %2762 = vmatpush1.msra.mxu0 0.0
  %2763 = vmatprep.subr.mxu0 0.0
  %2764 = vmatpush1.msra.mxu0 0.0
  %2765 = vmatprep.subr.mxu0 0.0
  %2766 = vmatpush1.msra.mxu0 0.0
  %2767 = vmatprep.subr.mxu0 0.0
  %2768 = vmatpush1.msra.mxu0 0.0
  %2769 = vmatprep.subr.mxu0 0.0
  %2770 = vmatpush1.msra.mxu0 0.0
  %2771 = vmatprep.subr.mxu0 0.0
  %2772 = vmatpush1.msra.mxu0 0.0
  %2773 = vmatprep.subr.mxu0 0.0
  %2774 = vmatpush1.msra.mxu0 0.0
  %2775 = vmatprep.subr.mxu0 0.0
  %2776 = vmatpush1.msra.mxu0 0.0
  %2777 = vmatprep.subr.mxu0 0.0
  %2778 = vmatpush1.msra.mxu0 %v1085
  %2779 = vmatprep.subr.mxu0 0.0
  %2780 = vmatpush2.msra.mxu0 0.0
  %2781 = vmatprep.subr.mxu0 0.0
  %2782 = vmatpush2.msra.mxu0 0.0
  %2783 = vmatprep.subr.mxu0 0.0
  %2784 = vmatpush2.msra.mxu0 0.0
  %2785 = vmatprep.subr.mxu0 0.0
  %2786 = vmatpush2.msra.mxu0 0.0
  %2787 = vmatprep.subr.mxu0 0.0
  %2788 = vmatpush2.msra.mxu0 0.0
  %2789 = vmatprep.subr.mxu0 0.0
  %2790 = vmatpush2.msra.mxu0 0.0
  %2791 = vmatprep.subr.mxu0 0.0
  %2792 = vmatpush2.msra.mxu0 0.0
  %2793 = vmatprep.subr.mxu0 0.0
  %2794 = vmatpush2.msra.mxu0 0.0
  %2795 = vmatprep.subr.mxu0 0.0
  %2796 = vmatpush2.msra.mxu0 0.0
  %2797 = vmatprep.subr.mxu0 0.0
  %2798 = vmatpush2.msra.mxu0 0.0
  %2799 = vmatprep.subr.mxu0 0.0
  %2800 = vmatpush2.msra.mxu0 0.0
  %2801 = vmatprep.subr.mxu0 0.0
  %2802 = vmatpush2.msra.mxu0 0.0
  %2803 = vmatprep.subr.mxu0 0.0
  %2804 = vmatpush2.msra.mxu0 0.0
  %2805 = vmatprep.subr.mxu0 0.0
  %2806 = vmatpush2.msra.mxu0 0.0
  %2807 = vmatprep.subr.mxu0 0.0
  %2808 = vmatpush2.msra.mxu0 0.0
  %2809 = vmatprep.subr.mxu0 0.0
  %2810 = vmatpush2.msra.mxu0 0.0
  %2811 = vmatprep.mubr.f32.mxu0 0.0
  %2812 = vmatmul.mubr.f32.gmra.mxu0 %v2135
  %v2813 = vpop.f32.mrf.mxu0
  %v2814 = vadd.f32 0.0, %v2813
  %v2815 = vpop.f32.mrf.mxu0
  %2816 = vdwg.mxu0
  %2817 = vmatprep.subr.mxu0 0.0
  %2818 = vmatpush1.msra.mxu0 0.0
  %2819 = vmatprep.subr.mxu0 0.0
  %2820 = vmatpush1.msra.mxu0 0.0
  %2821 = vmatprep.subr.mxu0 0.0
  %2822 = vmatpush1.msra.mxu0 0.0
  %2823 = vmatprep.subr.mxu0 0.0
  %2824 = vmatpush1.msra.mxu0 0.0
  %2825 = vmatprep.subr.mxu0 0.0
  %2826 = vmatpush1.msra.mxu0 0.0
  %2827 = vmatprep.subr.mxu0 0.0
  %2828 = vmatpush1.msra.mxu0 0.0
  %2829 = vmatprep.subr.mxu0 0.0
  %2830 = vmatpush1.msra.mxu0 0.0
  %2831 = vmatprep.subr.mxu0 0.0
  %2832 = vmatpush1.msra.mxu0 0.0
  %2833 = vmatprep.subr.mxu0 0.0
  %2834 = vmatpush1.msra.mxu0 0.0
  %2835 = vmatprep.subr.mxu0 0.0
  %2836 = vmatpush1.msra.mxu0 0.0
  %2837 = vmatprep.subr.mxu0 0.0
  %2838 = vmatpush1.msra.mxu0 0.0
  %2839 = vmatprep.subr.mxu0 0.0
  %2840 = vmatpush1.msra.mxu0 0.0
  %2841 = vmatprep.subr.mxu0 0.0
  %2842 = vmatpush1.msra.mxu0 0.0
  %2843 = vmatprep.subr.mxu0 0.0
  %2844 = vmatpush1.msra.mxu0 0.0
  %2845 = vmatprep.subr.mxu0 0.0
  %2846 = vmatpush1.msra.mxu0 0.0
  %2847 = vmatprep.subr.mxu0 0.0
  %2848 = vmatpush1.msra.mxu0 %v1158
  %2849 = vmatprep.subr.mxu0 0.0
  %2850 = vmatpush2.msra.mxu0 0.0
  %2851 = vmatprep.subr.mxu0 0.0
  %2852 = vmatpush2.msra.mxu0 0.0
  %2853 = vmatprep.subr.mxu0 0.0
  %2854 = vmatpush2.msra.mxu0 0.0
  %2855 = vmatprep.subr.mxu0 0.0
  %2856 = vmatpush2.msra.mxu0 0.0
  %2857 = vmatprep.subr.mxu0 0.0
  %2858 = vmatpush2.msra.mxu0 0.0
  %2859 = vmatprep.subr.mxu0 0.0
  %2860 = vmatpush2.msra.mxu0 0.0
  %2861 = vmatprep.subr.mxu0 0.0
  %2862 = vmatpush2.msra.mxu0 0.0
  %2863 = vmatprep.subr.mxu0 0.0
  %2864 = vmatpush2.msra.mxu0 0.0
  %2865 = vmatprep.subr.mxu0 0.0
  %2866 = vmatpush2.msra.mxu0 0.0
  %2867 = vmatprep.subr.mxu0 0.0
  %2868 = vmatpush2.msra.mxu0 0.0
  %2869 = vmatprep.subr.mxu0 0.0
  %2870 = vmatpush2.msra.mxu0 0.0
  %2871 = vmatprep.subr.mxu0 0.0
  %2872 = vmatpush2.msra.mxu0 0.0
  %2873 = vmatprep.subr.mxu0 0.0
  %2874 = vmatpush2.msra.mxu0 0.0
  %2875 = vmatprep.subr.mxu0 0.0
  %2876 = vmatpush2.msra.mxu0 0.0
  %2877 = vmatprep.subr.mxu0 0.0
  %2878 = vmatpush2.msra.mxu0 0.0
  %2879 = vmatprep.subr.mxu0 0.0
  %2880 = vmatpush2.msra.mxu0 0.0
  %2881 = vmatprep.mubr.f32.mxu0 0.0
  %2882 = vmatmul.mubr.f32.gmra.mxu0 %v2649
  %v2883 = vpop.f32.mrf.mxu0
  %v2884 = vadd.f32 %v2814, %v2883
  %v2885 = vpop.f32.mrf.mxu0
  %2886 = vdwg.mxu0
  %v2887 = vadd.f32 %v2884, %v1233
  %v2888 = vxor.u32 %v2887, 2147483648
  %v2889 = vmul.f32 %v2888, 1.442695
  %v2890 = vpow.pop %v2889
  %v2891 = vadd.f32 %v2890, 1.0
  %v2892 = vrcp.pop %v2891
  %v2893 = vmul.f32 1.0, %v2892
  %v2894 = vmul.f32 %v2893, 2.0
  %v2895 = vsub.f32 %v2894, 1.0
  %v2896 = vmul.f32 %v2893, %v2125
  %2898 = vrot.lane.b32.xlu0 %v2895, 118
  %v2899 = vpop.permute.xlu0 %2898
  %v2901 = vmul.f32 %v2893, %v2899
  %2903 = vrot.lane.b32.xlu0 %v2901, 5
  %v2904 = vpop.permute.xlu0 %2903
  %v2906 = vadd.f32 %v2896, %v2904
  %v2907 = vtanh.pop %v2906
  %2909 = vrot.lane.b32.xlu0 %v2907, 10
  %v2910 = vpop.permute.xlu0 %2909
  %v2912 = vmul.f32 %v2893, %v2910
  %2914 = vrot.lane.b32.xlu0 %v2912, 113
  %v2915 = vpop.permute.xlu0 %2914
  %v2916 = vsel %vm879, %v2915, 0
  %2918 = vmatprep.subr.mxu0 0.0
  %2919 = vmatpush1.msra.mxu0 0.0
  %2920 = vmatprep.subr.mxu0 0.0
  %2921 = vmatpush1.msra.mxu0 0.0
  %2922 = vmatprep.subr.mxu0 0.0
  %2923 = vmatpush1.msra.mxu0 0.0
  %2924 = vmatprep.subr.mxu0 0.0
  %2925 = vmatpush1.msra.mxu0 0.0
  %2926 = vmatprep.subr.mxu0 0.0
  %2927 = vmatpush1.msra.mxu0 0.0
  %2928 = vmatprep.subr.mxu0 0.0
  %2929 = vmatpush1.msra.mxu0 0.0
  %2930 = vmatprep.subr.mxu0 0.0
  %2931 = vmatpush1.msra.mxu0 0.0
  %2932 = vmatprep.subr.mxu0 0.0
  %2933 = vmatpush1.msra.mxu0 0.0
  %2934 = vmatprep.subr.mxu0 0.0
  %2935 = vmatpush1.msra.mxu0 0.0
  %2936 = vmatprep.subr.mxu0 0.0
  %2937 = vmatpush1.msra.mxu0 0.0
  %2938 = vmatprep.subr.mxu0 0.0
  %2939 = vmatpush1.msra.mxu0 0.0
  %2940 = vmatprep.subr.mxu0 0.0
  %2941 = vmatpush1.msra.mxu0 0.0
  %2942 = vmatprep.subr.mxu0 0.0
  %2943 = vmatpush1.msra.mxu0 0.0
  %2944 = vmatprep.subr.mxu0 0.0
  %2945 = vmatpush1.msra.mxu0 0.0
  %2946 = vmatprep.subr.mxu0 0.0
  %2947 = vmatpush1.msra.mxu0 0.0
  %2948 = vmatprep.subr.mxu0 0.0
  %2949 = vmatpush1.msra.mxu0 %v1270
  %2950 = vmatprep.subr.mxu0 0.0
  %2951 = vmatpush2.msra.mxu0 0.0
  %2952 = vmatprep.subr.mxu0 0.0
  %2953 = vmatpush2.msra.mxu0 0.0
  %2954 = vmatprep.subr.mxu0 0.0
  %2955 = vmatpush2.msra.mxu0 0.0
  %2956 = vmatprep.subr.mxu0 0.0
  %2957 = vmatpush2.msra.mxu0 0.0
  %2958 = vmatprep.subr.mxu0 0.0
  %2959 = vmatpush2.msra.mxu0 0.0
  %2960 = vmatprep.subr.mxu0 0.0
  %2961 = vmatpush2.msra.mxu0 0.0
  %2962 = vmatprep.subr.mxu0 0.0
  %2963 = vmatpush2.msra.mxu0 0.0
  %2964 = vmatprep.subr.mxu0 0.0
  %2965 = vmatpush2.msra.mxu0 0.0
  %2966 = vmatprep.subr.mxu0 0.0
  %2967 = vmatpush2.msra.mxu0 0.0
  %2968 = vmatprep.subr.mxu0 0.0
  %2969 = vmatpush2.msra.mxu0 0.0
  %2970 = vmatprep.subr.mxu0 0.0
  %2971 = vmatpush2.msra.mxu0 0.0
  %2972 = vmatprep.subr.mxu0 0.0
  %2973 = vmatpush2.msra.mxu0 0.0
  %2974 = vmatprep.subr.mxu0 0.0
  %2975 = vmatpush2.msra.mxu0 0.0
  %2976 = vmatprep.subr.mxu0 0.0
  %2977 = vmatpush2.msra.mxu0 0.0
  %2978 = vmatprep.subr.mxu0 0.0
  %2979 = vmatpush2.msra.mxu0 0.0
  %2980 = vmatprep.subr.mxu0 0.0
  %2981 = vmatpush2.msra.mxu0 0.0
  %2982 = vmatprep.mubr.f32.mxu0 0.0
  %2983 = vmatmul.mubr.f32.gmra.mxu0 %v2916
  %v2984 = vpop.f32.mrf.mxu0
  %v2985 = vadd.f32 %v1263, %v2984
  %v2986 = vpop.f32.mrf.mxu0
  %2987 = vdwg.mxu0
  %v2988 = vmax.f32 %v2985, 0.0
  %2990 = vrot.lane.b32.xlu0 %v2381, 113
  %v2991 = vpop.permute.xlu0 %2990
  %v2992 = vsel %vm879, %v2991, 0
  %2994 = vmatprep.subr.mxu0 0.0
  %2995 = vmatpush1.msra.mxu0 0.0
  %2996 = vmatprep.subr.mxu0 0.0
  %2997 = vmatpush1.msra.mxu0 0.0
  %2998 = vmatprep.subr.mxu0 0.0
  %2999 = vmatpush1.msra.mxu0 0.0
  %3000 = vmatprep.subr.mxu0 0.0
  %3001 = vmatpush1.msra.mxu0 0.0
  %3002 = vmatprep.subr.mxu0 0.0
  %3003 = vmatpush1.msra.mxu0 0.0
  %3004 = vmatprep.subr.mxu0 0.0
  %3005 = vmatpush1.msra.mxu0 0.0
  %3006 = vmatprep.subr.mxu0 0.0
  %3007 = vmatpush1.msra.mxu0 0.0
  %3008 = vmatprep.subr.mxu0 0.0
  %3009 = vmatpush1.msra.mxu0 0.0
  %3010 = vmatprep.subr.mxu0 0.0
  %3011 = vmatpush1.msra.mxu0 0.0
  %3012 = vmatprep.subr.mxu0 0.0
  %3013 = vmatpush1.msra.mxu0 0.0
  %3014 = vmatprep.subr.mxu0 0.0
  %3015 = vmatpush1.msra.mxu0 0.0
  %3016 = vmatprep.subr.mxu0 0.0
  %3017 = vmatpush1.msra.mxu0 0.0
  %3018 = vmatprep.subr.mxu0 0.0
  %3019 = vmatpush1.msra.mxu0 0.0
  %3020 = vmatprep.subr.mxu0 0.0
  %3021 = vmatpush1.msra.mxu0 0.0
  %3022 = vmatprep.subr.mxu0 0.0
  %3023 = vmatpush1.msra.mxu0 0.0
  %3024 = vmatprep.subr.mxu0 0.0
  %3025 = vmatpush1.msra.mxu0 %v1687
  %3026 = vmatprep.subr.mxu0 0.0
  %3027 = vmatpush2.msra.mxu0 0.0
  %3028 = vmatprep.subr.mxu0 0.0
  %3029 = vmatpush2.msra.mxu0 0.0
  %3030 = vmatprep.subr.mxu0 0.0
  %3031 = vmatpush2.msra.mxu0 0.0
  %3032 = vmatprep.subr.mxu0 0.0
  %3033 = vmatpush2.msra.mxu0 0.0
  %3034 = vmatprep.subr.mxu0 0.0
  %3035 = vmatpush2.msra.mxu0 0.0
  %3036 = vmatprep.subr.mxu0 0.0
  %3037 = vmatpush2.msra.mxu0 0.0
  %3038 = vmatprep.subr.mxu0 0.0
  %3039 = vmatpush2.msra.mxu0 0.0
  %3040 = vmatprep.subr.mxu0 0.0
  %3041 = vmatpush2.msra.mxu0 0.0
  %3042 = vmatprep.subr.mxu0 0.0
  %3043 = vmatpush2.msra.mxu0 0.0
  %3044 = vmatprep.subr.mxu0 0.0
  %3045 = vmatpush2.msra.mxu0 0.0
  %3046 = vmatprep.subr.mxu0 0.0
  %3047 = vmatpush2.msra.mxu0 0.0
  %3048 = vmatprep.subr.mxu0 0.0
  %3049 = vmatpush2.msra.mxu0 0.0
  %3050 = vmatprep.subr.mxu0 0.0
  %3051 = vmatpush2.msra.mxu0 0.0
  %3052 = vmatprep.subr.mxu0 0.0
  %3053 = vmatpush2.msra.mxu0 0.0
  %3054 = vmatprep.subr.mxu0 0.0
  %3055 = vmatpush2.msra.mxu0 0.0
  %3056 = vmatprep.subr.mxu0 0.0
  %3057 = vmatpush2.msra.mxu0 0.0
  %3058 = vmatprep.mubr.f32.mxu0 0.0
  %3059 = vmatmul.mubr.f32.gmra.mxu0 %v2992
  %v3060 = vpop.f32.mrf.mxu0
  %v3061 = vadd.f32 0.0, %v3060
  %v3062 = vpop.f32.mrf.mxu0
  %3063 = vdwg.mxu0
  %v3065 = vsel %vm879, %v2207, 0
  %3067 = vmatprep.subr.mxu0 0.0
  %3068 = vmatpush1.msra.mxu0 0.0
  %3069 = vmatprep.subr.mxu0 0.0
  %3070 = vmatpush1.msra.mxu0 0.0
  %3071 = vmatprep.subr.mxu0 0.0
  %3072 = vmatpush1.msra.mxu0 0.0
  %3073 = vmatprep.subr.mxu0 0.0
  %3074 = vmatpush1.msra.mxu0 0.0
  %3075 = vmatprep.subr.mxu0 0.0
  %3076 = vmatpush1.msra.mxu0 0.0
  %3077 = vmatprep.subr.mxu0 0.0
  %3078 = vmatpush1.msra.mxu0 0.0
  %3079 = vmatprep.subr.mxu0 0.0
  %3080 = vmatpush1.msra.mxu0 0.0
  %3081 = vmatprep.subr.mxu0 0.0
  %3082 = vmatpush1.msra.mxu0 0.0
  %3083 = vmatprep.subr.mxu0 0.0
  %3084 = vmatpush1.msra.mxu0 0.0
  %3085 = vmatprep.subr.mxu0 0.0
  %3086 = vmatpush1.msra.mxu0 0.0
  %3087 = vmatprep.subr.mxu0 0.0
  %3088 = vmatpush1.msra.mxu0 0.0
  %3089 = vmatprep.subr.mxu0 0.0
  %3090 = vmatpush1.msra.mxu0 0.0
  %3091 = vmatprep.subr.mxu0 0.0
  %3092 = vmatpush1.msra.mxu0 0.0
  %3093 = vmatprep.subr.mxu0 0.0
  %3094 = vmatpush1.msra.mxu0 0.0
  %3095 = vmatprep.subr.mxu0 0.0
  %3096 = vmatpush1.msra.mxu0 0.0
  %3097 = vmatprep.subr.mxu0 0.0
  %3098 = vmatpush1.msra.mxu0 %v1763
  %3099 = vmatprep.subr.mxu0 0.0
  %3100 = vmatpush2.msra.mxu0 0.0
  %3101 = vmatprep.subr.mxu0 0.0
  %3102 = vmatpush2.msra.mxu0 0.0
  %3103 = vmatprep.subr.mxu0 0.0
  %3104 = vmatpush2.msra.mxu0 0.0
  %3105 = vmatprep.subr.mxu0 0.0
  %3106 = vmatpush2.msra.mxu0 0.0
  %3107 = vmatprep.subr.mxu0 0.0
  %3108 = vmatpush2.msra.mxu0 0.0
  %3109 = vmatprep.subr.mxu0 0.0
  %3110 = vmatpush2.msra.mxu0 0.0
  %3111 = vmatprep.subr.mxu0 0.0
  %3112 = vmatpush2.msra.mxu0 0.0
  %3113 = vmatprep.subr.mxu0 0.0
  %3114 = vmatpush2.msra.mxu0 0.0
  %3115 = vmatprep.subr.mxu0 0.0
  %3116 = vmatpush2.msra.mxu0 0.0
  %3117 = vmatprep.subr.mxu0 0.0
  %3118 = vmatpush2.msra.mxu0 0.0
  %3119 = vmatprep.subr.mxu0 0.0
  %3120 = vmatpush2.msra.mxu0 0.0
  %3121 = vmatprep.subr.mxu0 0.0
  %3122 = vmatpush2.msra.mxu0 0.0
  %3123 = vmatprep.subr.mxu0 0.0
  %3124 = vmatpush2.msra.mxu0 0.0
  %3125 = vmatprep.subr.mxu0 0.0
  %3126 = vmatpush2.msra.mxu0 0.0
  %3127 = vmatprep.subr.mxu0 0.0
  %3128 = vmatpush2.msra.mxu0 0.0
  %3129 = vmatprep.subr.mxu0 0.0
  %3130 = vmatpush2.msra.mxu0 0.0
  %3131 = vmatprep.mubr.f32.mxu0 0.0
  %3132 = vmatmul.mubr.f32.gmra.mxu0 %v3065
  %v3133 = vpop.f32.mrf.mxu0
  %v3134 = vadd.f32 %v3061, %v3133
  %v3135 = vpop.f32.mrf.mxu0
  %3136 = vdwg.mxu0
  %v3137 = vadd.f32 %v3134, %v1838
  %v3138 = vxor.u32 %v3137, 2147483648
  %v3139 = vmul.f32 %v3138, 1.442695
  %v3140 = vpow.pop %v3139
  %v3141 = vadd.f32 %v3140, 1.0
  %v3142 = vrcp.pop %v3141
  %v3143 = vmul.f32 1.0, %v3142
  %v3144 = vmul.f32 %v3143, 2.0
  %v3145 = vsub.f32 %v3144, 1.0
  %v3146 = vmul.f32 %v3143, %v2375
  %3148 = vrot.lane.b32.xlu0 %v3145, 118
  %v3149 = vpop.permute.xlu0 %3148
  %v3151 = vmul.f32 %v3143, %v3149
  %3153 = vrot.lane.b32.xlu0 %v3151, 5
  %v3154 = vpop.permute.xlu0 %3153
  %v3156 = vadd.f32 %v3146, %v3154
  %v3157 = vtanh.pop %v3156
  %3159 = vrot.lane.b32.xlu0 %v3157, 10
  %v3160 = vpop.permute.xlu0 %3159
  %v3162 = vmul.f32 %v3143, %v3160
  %3163 = vmatprep.subr.mxu0 0.0
  %3164 = vmatpush1.msra.mxu0 0.0
  %3165 = vmatprep.subr.mxu0 0.0
  %3166 = vmatpush1.msra.mxu0 0.0
  %3167 = vmatprep.subr.mxu0 0.0
  %3168 = vmatpush1.msra.mxu0 0.0
  %3169 = vmatprep.subr.mxu0 0.0
  %3170 = vmatpush1.msra.mxu0 0.0
  %3171 = vmatprep.subr.mxu0 0.0
  %3172 = vmatpush1.msra.mxu0 0.0
  %3173 = vmatprep.subr.mxu0 0.0
  %3174 = vmatpush1.msra.mxu0 0.0
  %3175 = vmatprep.subr.mxu0 0.0
  %3176 = vmatpush1.msra.mxu0 0.0
  %3177 = vmatprep.subr.mxu0 0.0
  %3178 = vmatpush1.msra.mxu0 0.0
  %3179 = vmatprep.subr.mxu0 0.0
  %3180 = vmatpush1.msra.mxu0 0.0
  %3181 = vmatprep.subr.mxu0 0.0
  %3182 = vmatpush1.msra.mxu0 0.0
  %3183 = vmatprep.subr.mxu0 0.0
  %3184 = vmatpush1.msra.mxu0 0.0
  %3185 = vmatprep.subr.mxu0 0.0
  %3186 = vmatpush1.msra.mxu0 0.0
  %3187 = vmatprep.subr.mxu0 0.0
  %3188 = vmatpush1.msra.mxu0 0.0
  %3189 = vmatprep.subr.mxu0 0.0
  %3190 = vmatpush1.msra.mxu0 0.0
  %3191 = vmatprep.subr.mxu0 0.0
  %3192 = vmatpush1.msra.mxu0 0.0
  %3193 = vmatprep.subr.mxu0 0.0
  %3194 = vmatpush1.msra.mxu0 %v2383
  %3195 = vmatprep.subr.mxu0 0.0
  %3196 = vmatpush2.msra.mxu0 0.0
  %3197 = vmatprep.subr.mxu0 0.0
  %3198 = vmatpush2.msra.mxu0 0.0
  %3199 = vmatprep.subr.mxu0 0.0
  %3200 = vmatpush2.msra.mxu0 0.0
  %3201 = vmatprep.subr.mxu0 0.0
  %3202 = vmatpush2.msra.mxu0 0.0
  %3203 = vmatprep.subr.mxu0 0.0
  %3204 = vmatpush2.msra.mxu0 0.0
  %3205 = vmatprep.subr.mxu0 0.0
  %3206 = vmatpush2.msra.mxu0 0.0
  %3207 = vmatprep.subr.mxu0 0.0
  %3208 = vmatpush2.msra.mxu0 0.0
  %3209 = vmatprep.subr.mxu0 0.0
  %3210 = vmatpush2.msra.mxu0 0.0
  %3211 = vmatprep.subr.mxu0 0.0
  %3212 = vmatpush2.msra.mxu0 0.0
  %3213 = vmatprep.subr.mxu0 0.0
  %3214 = vmatpush2.msra.mxu0 0.0
  %3215 = vmatprep.subr.mxu0 0.0
  %3216 = vmatpush2.msra.mxu0 0.0
  %3217 = vmatprep.subr.mxu0 0.0
  %3218 = vmatpush2.msra.mxu0 0.0
  %3219 = vmatprep.subr.mxu0 0.0
  %3220 = vmatpush2.msra.mxu0 0.0
  %3221 = vmatprep.subr.mxu0 0.0
  %3222 = vmatpush2.msra.mxu0 0.0
  %3223 = vmatprep.subr.mxu0 0.0
  %3224 = vmatpush2.msra.mxu0 0.0
  %3225 = vmatprep.subr.mxu0 0.0
  %3226 = vmatpush2.msra.mxu0 0.0
  %3227 = vmatprep.mubr.f32.mxu0 0.0
  %3228 = vmatmul.mubr.f32.gmra.mxu0 %v2565
  %v3229 = vpop.f32.mrf.mxu0
  %v3230 = vadd.f32 0.0, %v3229
  %v3231 = vpop.f32.mrf.mxu0
  %3232 = vdwg.mxu0
  %3233 = vmatprep.subr.mxu0 0.0
  %3234 = vmatpush1.msra.mxu0 0.0
  %3235 = vmatprep.subr.mxu0 0.0
  %3236 = vmatpush1.msra.mxu0 0.0
  %3237 = vmatprep.subr.mxu0 0.0
  %3238 = vmatpush1.msra.mxu0 0.0
  %3239 = vmatprep.subr.mxu0 0.0
  %3240 = vmatpush1.msra.mxu0 0.0
  %3241 = vmatprep.subr.mxu0 0.0
  %3242 = vmatpush1.msra.mxu0 0.0
  %3243 = vmatprep.subr.mxu0 0.0
  %3244 = vmatpush1.msra.mxu0 0.0
  %3245 = vmatprep.subr.mxu0 0.0
  %3246 = vmatpush1.msra.mxu0 0.0
  %3247 = vmatprep.subr.mxu0 0.0
  %3248 = vmatpush1.msra.mxu0 0.0
  %3249 = vmatprep.subr.mxu0 0.0
  %3250 = vmatpush1.msra.mxu0 0.0
  %3251 = vmatprep.subr.mxu0 0.0
  %3252 = vmatpush1.msra.mxu0 0.0
  %3253 = vmatprep.subr.mxu0 0.0
  %3254 = vmatpush1.msra.mxu0 0.0
  %3255 = vmatprep.subr.mxu0 0.0
  %3256 = vmatpush1.msra.mxu0 0.0
  %3257 = vmatprep.subr.mxu0 0.0
  %3258 = vmatpush1.msra.mxu0 0.0
  %3259 = vmatprep.subr.mxu0 0.0
  %3260 = vmatpush1.msra.mxu0 0.0
  %3261 = vmatprep.subr.mxu0 0.0
  %3262 = vmatpush1.msra.mxu0 0.0
  %3263 = vmatprep.subr.mxu0 0.0
  %3264 = vmatpush1.msra.mxu0 %v2456
  %3265 = vmatprep.subr.mxu0 0.0
  %3266 = vmatpush2.msra.mxu0 0.0
  %3267 = vmatprep.subr.mxu0 0.0
  %3268 = vmatpush2.msra.mxu0 0.0
  %3269 = vmatprep.subr.mxu0 0.0
  %3270 = vmatpush2.msra.mxu0 0.0
  %3271 = vmatprep.subr.mxu0 0.0
  %3272 = vmatpush2.msra.mxu0 0.0
  %3273 = vmatprep.subr.mxu0 0.0
  %3274 = vmatpush2.msra.mxu0 0.0
  %3275 = vmatprep.subr.mxu0 0.0
  %3276 = vmatpush2.msra.mxu0 0.0
  %3277 = vmatprep.subr.mxu0 0.0
  %3278 = vmatpush2.msra.mxu0 0.0
  %3279 = vmatprep.subr.mxu0 0.0
  %3280 = vmatpush2.msra.mxu0 0.0
  %3281 = vmatprep.subr.mxu0 0.0
  %3282 = vmatpush2.msra.mxu0 0.0
  %3283 = vmatprep.subr.mxu0 0.0
  %3284 = vmatpush2.msra.mxu0 0.0
  %3285 = vmatprep.subr.mxu0 0.0
  %3286 = vmatpush2.msra.mxu0 0.0
  %3287 = vmatprep.subr.mxu0 0.0
  %3288 = vmatpush2.msra.mxu0 0.0
  %3289 = vmatprep.subr.mxu0 0.0
  %3290 = vmatpush2.msra.mxu0 0.0
  %3291 = vmatprep.subr.mxu0 0.0
  %3292 = vmatpush2.msra.mxu0 0.0
  %3293 = vmatprep.subr.mxu0 0.0
  %3294 = vmatpush2.msra.mxu0 0.0
  %3295 = vmatprep.subr.mxu0 0.0
  %3296 = vmatpush2.msra.mxu0 0.0
  %3297 = vmatprep.mubr.f32.mxu0 0.0
  %3298 = vmatmul.mubr.f32.gmra.mxu0 %v2992
  %v3299 = vpop.f32.mrf.mxu0
  %v3300 = vadd.f32 %v3230, %v3299
  %v3301 = vpop.f32.mrf.mxu0
  %3302 = vdwg.mxu0
  %v3303 = vadd.f32 %v3300, %v2531
  %v3304 = vxor.u32 %v3303, 2147483648
  %v3305 = vmul.f32 %v3304, 1.442695
  %v3306 = vpow.pop %v3305
  %v3307 = vadd.f32 %v3306, 1.0
  %v3308 = vrcp.pop %v3307
  %v3309 = vmul.f32 1.0, %v3308
  %v3310 = vmul.f32 %v3309, 2.0
  %v3311 = vsub.f32 %v3310, 1.0
  %v3312 = vmul.f32 %v3309, %v2551
  %3314 = vrot.lane.b32.xlu0 %v3311, 118
  %v3315 = vpop.permute.xlu0 %3314
  %v3317 = vmul.f32 %v3309, %v3315
  %3319 = vrot.lane.b32.xlu0 %v3317, 5
  %v3320 = vpop.permute.xlu0 %3319
  %v3322 = vadd.f32 %v3312, %v3320
  %v3323 = vtanh.pop %v3322
  %3325 = vrot.lane.b32.xlu0 %v3323, 10
  %v3326 = vpop.permute.xlu0 %3325
  %v3328 = vmul.f32 %v3309, %v3326
  %3330 = vrot.lane.b32.xlu0 %v3328, 113
  %v3331 = vpop.permute.xlu0 %3330
  %v3332 = vsel %vm879, %v3331, 0
  %3334 = vmatprep.subr.mxu0 0.0
  %3335 = vmatpush1.msra.mxu0 0.0
  %3336 = vmatprep.subr.mxu0 0.0
  %3337 = vmatpush1.msra.mxu0 0.0
  %3338 = vmatprep.subr.mxu0 0.0
  %3339 = vmatpush1.msra.mxu0 0.0
  %3340 = vmatprep.subr.mxu0 0.0
  %3341 = vmatpush1.msra.mxu0 0.0
  %3342 = vmatprep.subr.mxu0 0.0
  %3343 = vmatpush1.msra.mxu0 0.0
  %3344 = vmatprep.subr.mxu0 0.0
  %3345 = vmatpush1.msra.mxu0 0.0
  %3346 = vmatprep.subr.mxu0 0.0
  %3347 = vmatpush1.msra.mxu0 0.0
  %3348 = vmatprep.subr.mxu0 0.0
  %3349 = vmatpush1.msra.mxu0 0.0
  %3350 = vmatprep.subr.mxu0 0.0
  %3351 = vmatpush1.msra.mxu0 0.0
  %3352 = vmatprep.subr.mxu0 0.0
  %3353 = vmatpush1.msra.mxu0 0.0
  %3354 = vmatprep.subr.mxu0 0.0
  %3355 = vmatpush1.msra.mxu0 0.0
  %3356 = vmatprep.subr.mxu0 0.0
  %3357 = vmatpush1.msra.mxu0 0.0
  %3358 = vmatprep.subr.mxu0 0.0
  %3359 = vmatpush1.msra.mxu0 0.0
  %3360 = vmatprep.subr.mxu0 0.0
  %3361 = vmatpush1.msra.mxu0 0.0
  %3362 = vmatprep.subr.mxu0 0.0
  %3363 = vmatpush1.msra.mxu0 0.0
  %3364 = vmatprep.subr.mxu0 0.0
  %3365 = vmatpush1.msra.mxu0 %v2568
  %3366 = vmatprep.subr.mxu0 0.0
  %3367 = vmatpush2.msra.mxu0 0.0
  %3368 = vmatprep.subr.mxu0 0.0
  %3369 = vmatpush2.msra.mxu0 0.0
  %3370 = vmatprep.subr.mxu0 0.0
  %3371 = vmatpush2.msra.mxu0 0.0
  %3372 = vmatprep.subr.mxu0 0.0
  %3373 = vmatpush2.msra.mxu0 0.0
  %3374 = vmatprep.subr.mxu0 0.0
  %3375 = vmatpush2.msra.mxu0 0.0
  %3376 = vmatprep.subr.mxu0 0.0
  %3377 = vmatpush2.msra.mxu0 0.0
  %3378 = vmatprep.subr.mxu0 0.0
  %3379 = vmatpush2.msra.mxu0 0.0
  %3380 = vmatprep.subr.mxu0 0.0
  %3381 = vmatpush2.msra.mxu0 0.0
  %3382 = vmatprep.subr.mxu0 0.0
  %3383 = vmatpush2.msra.mxu0 0.0
  %3384 = vmatprep.subr.mxu0 0.0
  %3385 = vmatpush2.msra.mxu0 0.0
  %3386 = vmatprep.subr.mxu0 0.0
  %3387 = vmatpush2.msra.mxu0 0.0
  %3388 = vmatprep.subr.mxu0 0.0
  %3389 = vmatpush2.msra.mxu0 0.0
  %3390 = vmatprep.subr.mxu0 0.0
  %3391 = vmatpush2.msra.mxu0 0.0
  %3392 = vmatprep.subr.mxu0 0.0
  %3393 = vmatpush2.msra.mxu0 0.0
  %3394 = vmatprep.subr.mxu0 0.0
  %3395 = vmatpush2.msra.mxu0 0.0
  %3396 = vmatprep.subr.mxu0 0.0
  %3397 = vmatpush2.msra.mxu0 0.0
  %3398 = vmatprep.mubr.f32.mxu0 0.0
  %3399 = vmatmul.mubr.f32.gmra.mxu0 %v3332
  %v3400 = vpop.f32.mrf.mxu0
  %v3401 = vadd.f32 %v2561, %v3400
  %v3402 = vpop.f32.mrf.mxu0
  %3403 = vdwg.mxu0
  %v3404 = vxor.u32 %v3401, 2147483648
  %v3405 = vmul.f32 %v3404, 1.442695
  %v3406 = vpow.pop %v3405
  %v3407 = vadd.f32 %v3406, 1.0
  %v3408 = vrcp.pop %v3407
  %v3409 = vmul.f32 1.0, %v3408
  %3411 = vrot.lane.b32.xlu0 %v2746, 113
  %v3412 = vpop.permute.xlu0 %3411
  %v3413 = vsel %vm879, %v3412, 0
  %3415 = vmatprep.subr.mxu0 0.0
  %3416 = vmatpush1.msra.mxu0 0.0
  %3417 = vmatprep.subr.mxu0 0.0
  %3418 = vmatpush1.msra.mxu0 0.0
  %3419 = vmatprep.subr.mxu0 0.0
  %3420 = vmatpush1.msra.mxu0 0.0
  %3421 = vmatprep.subr.mxu0 0.0
  %3422 = vmatpush1.msra.mxu0 0.0
  %3423 = vmatprep.subr.mxu0 0.0
  %3424 = vmatpush1.msra.mxu0 0.0
  %3425 = vmatprep.subr.mxu0 0.0
  %3426 = vmatpush1.msra.mxu0 0.0
  %3427 = vmatprep.subr.mxu0 0.0
  %3428 = vmatpush1.msra.mxu0 0.0
  %3429 = vmatprep.subr.mxu0 0.0
  %3430 = vmatpush1.msra.mxu0 0.0
  %3431 = vmatprep.subr.mxu0 0.0
  %3432 = vmatpush1.msra.mxu0 0.0
  %3433 = vmatprep.subr.mxu0 0.0
  %3434 = vmatpush1.msra.mxu0 0.0
  %3435 = vmatprep.subr.mxu0 0.0
  %3436 = vmatpush1.msra.mxu0 0.0
  %3437 = vmatprep.subr.mxu0 0.0
  %3438 = vmatpush1.msra.mxu0 0.0
  %3439 = vmatprep.subr.mxu0 0.0
  %3440 = vmatpush1.msra.mxu0 0.0
  %3441 = vmatprep.subr.mxu0 0.0
  %3442 = vmatpush1.msra.mxu0 0.0
  %3443 = vmatprep.subr.mxu0 0.0
  %3444 = vmatpush1.msra.mxu0 0.0
  %3445 = vmatprep.subr.mxu0 0.0
  %3446 = vmatpush1.msra.mxu0 %v885
  %3447 = vmatprep.subr.mxu0 0.0
  %3448 = vmatpush2.msra.mxu0 0.0
  %3449 = vmatprep.subr.mxu0 0.0
  %3450 = vmatpush2.msra.mxu0 0.0
  %3451 = vmatprep.subr.mxu0 0.0
  %3452 = vmatpush2.msra.mxu0 0.0
  %3453 = vmatprep.subr.mxu0 0.0
  %3454 = vmatpush2.msra.mxu0 0.0
  %3455 = vmatprep.subr.mxu0 0.0
  %3456 = vmatpush2.msra.mxu0 0.0
  %3457 = vmatprep.subr.mxu0 0.0
  %3458 = vmatpush2.msra.mxu0 0.0
  %3459 = vmatprep.subr.mxu0 0.0
  %3460 = vmatpush2.msra.mxu0 0.0
  %3461 = vmatprep.subr.mxu0 0.0
  %3462 = vmatpush2.msra.mxu0 0.0
  %3463 = vmatprep.subr.mxu0 0.0
  %3464 = vmatpush2.msra.mxu0 0.0
  %3465 = vmatprep.subr.mxu0 0.0
  %3466 = vmatpush2.msra.mxu0 0.0
  %3467 = vmatprep.subr.mxu0 0.0
  %3468 = vmatpush2.msra.mxu0 0.0
  %3469 = vmatprep.subr.mxu0 0.0
  %3470 = vmatpush2.msra.mxu0 0.0
  %3471 = vmatprep.subr.mxu0 0.0
  %3472 = vmatpush2.msra.mxu0 0.0
  %3473 = vmatprep.subr.mxu0 0.0
  %3474 = vmatpush2.msra.mxu0 0.0
  %3475 = vmatprep.subr.mxu0 0.0
  %3476 = vmatpush2.msra.mxu0 0.0
  %3477 = vmatprep.subr.mxu0 0.0
  %3478 = vmatpush2.msra.mxu0 0.0
  %3479 = vmatprep.mubr.f32.mxu0 0.0
  %3480 = vmatmul.mubr.f32.gmra.mxu0 %v3413
  %v3481 = vpop.f32.mrf.mxu0
  %v3482 = vadd.f32 0.0, %v3481
  %v3483 = vpop.f32.mrf.mxu0
  %3484 = vdwg.mxu0
  %v3485 = vadd.f32 %v672, %v3482
  %v3486 = vxor.u32 %v3485, 2147483648
  %v3487 = vmul.f32 %v3486, 1.442695
  %v3488 = vpow.pop %v3487
  %v3489 = vadd.f32 %v3488, 1.0
  %v3490 = vrcp.pop %v3489
  %v3491 = vmul.f32 1.0, %v3490
  %v3492 = vmul.f32 %v3491, 2.0
  %v3493 = vsub.f32 %v3492, 1.0
  %v3494 = vmul.f32 %v3491, %v2740
  %3496 = vrot.lane.b32.xlu0 %v3493, 118
  %v3497 = vpop.permute.xlu0 %3496
  %v3499 = vmul.f32 %v3491, %v3497
  %3501 = vrot.lane.b32.xlu0 %v3499, 5
  %v3502 = vpop.permute.xlu0 %3501
  %v3504 = vadd.f32 %v3494, %v3502
  %v3505 = vtanh.pop %v3504
  %3507 = vrot.lane.b32.xlu0 %v3505, 10
  %v3508 = vpop.permute.xlu0 %3507
  %v3510 = vmul.f32 %v3491, %v3508
  %3511 = vmatprep.subr.mxu0 0.0
  %3512 = vmatpush1.msra.mxu0 0.0
  %3513 = vmatprep.subr.mxu0 0.0
  %3514 = vmatpush1.msra.mxu0 0.0
  %3515 = vmatprep.subr.mxu0 0.0
  %3516 = vmatpush1.msra.mxu0 0.0
  %3517 = vmatprep.subr.mxu0 0.0
  %3518 = vmatpush1.msra.mxu0 0.0
  %3519 = vmatprep.subr.mxu0 0.0
  %3520 = vmatpush1.msra.mxu0 0.0
  %3521 = vmatprep.subr.mxu0 0.0
  %3522 = vmatpush1.msra.mxu0 0.0
  %3523 = vmatprep.subr.mxu0 0.0
  %3524 = vmatpush1.msra.mxu0 0.0
  %3525 = vmatprep.subr.mxu0 0.0
  %3526 = vmatpush1.msra.mxu0 0.0
  %3527 = vmatprep.subr.mxu0 0.0
  %3528 = vmatpush1.msra.mxu0 0.0
  %3529 = vmatprep.subr.mxu0 0.0
  %3530 = vmatpush1.msra.mxu0 0.0
  %3531 = vmatprep.subr.mxu0 0.0
  %3532 = vmatpush1.msra.mxu0 0.0
  %3533 = vmatprep.subr.mxu0 0.0
  %3534 = vmatpush1.msra.mxu0 0.0
  %3535 = vmatprep.subr.mxu0 0.0
  %3536 = vmatpush1.msra.mxu0 0.0
  %3537 = vmatprep.subr.mxu0 0.0
  %3538 = vmatpush1.msra.mxu0 0.0
  %3539 = vmatprep.subr.mxu0 0.0
  %3540 = vmatpush1.msra.mxu0 0.0
  %3541 = vmatprep.subr.mxu0 0.0
  %3542 = vmatpush1.msra.mxu0 %v1085
  %3543 = vmatprep.subr.mxu0 0.0
  %3544 = vmatpush2.msra.mxu0 0.0
  %3545 = vmatprep.subr.mxu0 0.0
  %3546 = vmatpush2.msra.mxu0 0.0
  %3547 = vmatprep.subr.mxu0 0.0
  %3548 = vmatpush2.msra.mxu0 0.0
  %3549 = vmatprep.subr.mxu0 0.0
  %3550 = vmatpush2.msra.mxu0 0.0
  %3551 = vmatprep.subr.mxu0 0.0
  %3552 = vmatpush2.msra.mxu0 0.0
  %3553 = vmatprep.subr.mxu0 0.0
  %3554 = vmatpush2.msra.mxu0 0.0
  %3555 = vmatprep.subr.mxu0 0.0
  %3556 = vmatpush2.msra.mxu0 0.0
  %3557 = vmatprep.subr.mxu0 0.0
  %3558 = vmatpush2.msra.mxu0 0.0
  %3559 = vmatprep.subr.mxu0 0.0
  %3560 = vmatpush2.msra.mxu0 0.0
  %3561 = vmatprep.subr.mxu0 0.0
  %3562 = vmatpush2.msra.mxu0 0.0
  %3563 = vmatprep.subr.mxu0 0.0
  %3564 = vmatpush2.msra.mxu0 0.0
  %3565 = vmatprep.subr.mxu0 0.0
  %3566 = vmatpush2.msra.mxu0 0.0
  %3567 = vmatprep.subr.mxu0 0.0
  %3568 = vmatpush2.msra.mxu0 0.0
  %3569 = vmatprep.subr.mxu0 0.0
  %3570 = vmatpush2.msra.mxu0 0.0
  %3571 = vmatprep.subr.mxu0 0.0
  %3572 = vmatpush2.msra.mxu0 0.0
  %3573 = vmatprep.subr.mxu0 0.0
  %3574 = vmatpush2.msra.mxu0 0.0
  %3575 = vmatprep.mubr.f32.mxu0 0.0
  %3576 = vmatmul.mubr.f32.gmra.mxu0 %v2916
  %v3577 = vpop.f32.mrf.mxu0
  %v3578 = vadd.f32 0.0, %v3577
  %v3579 = vpop.f32.mrf.mxu0
  %3580 = vdwg.mxu0
  %3581 = vmatprep.subr.mxu0 0.0
  %3582 = vmatpush1.msra.mxu0 0.0
  %3583 = vmatprep.subr.mxu0 0.0
  %3584 = vmatpush1.msra.mxu0 0.0
  %3585 = vmatprep.subr.mxu0 0.0
  %3586 = vmatpush1.msra.mxu0 0.0
  %3587 = vmatprep.subr.mxu0 0.0
  %3588 = vmatpush1.msra.mxu0 0.0
  %3589 = vmatprep.subr.mxu0 0.0
  %3590 = vmatpush1.msra.mxu0 0.0
  %3591 = vmatprep.subr.mxu0 0.0
  %3592 = vmatpush1.msra.mxu0 0.0
  %3593 = vmatprep.subr.mxu0 0.0
  %3594 = vmatpush1.msra.mxu0 0.0
  %3595 = vmatprep.subr.mxu0 0.0
  %3596 = vmatpush1.msra.mxu0 0.0
  %3597 = vmatprep.subr.mxu0 0.0
  %3598 = vmatpush1.msra.mxu0 0.0
  %3599 = vmatprep.subr.mxu0 0.0
  %3600 = vmatpush1.msra.mxu0 0.0
  %3601 = vmatprep.subr.mxu0 0.0
  %3602 = vmatpush1.msra.mxu0 0.0
  %3603 = vmatprep.subr.mxu0 0.0
  %3604 = vmatpush1.msra.mxu0 0.0
  %3605 = vmatprep.subr.mxu0 0.0
  %3606 = vmatpush1.msra.mxu0 0.0
  %3607 = vmatprep.subr.mxu0 0.0
  %3608 = vmatpush1.msra.mxu0 0.0
  %3609 = vmatprep.subr.mxu0 0.0
  %3610 = vmatpush1.msra.mxu0 0.0
  %3611 = vmatprep.subr.mxu0 0.0
  %3612 = vmatpush1.msra.mxu0 %v1158
  %3613 = vmatprep.subr.mxu0 0.0
  %3614 = vmatpush2.msra.mxu0 0.0
  %3615 = vmatprep.subr.mxu0 0.0
  %3616 = vmatpush2.msra.mxu0 0.0
  %3617 = vmatprep.subr.mxu0 0.0
  %3618 = vmatpush2.msra.mxu0 0.0
  %3619 = vmatprep.subr.mxu0 0.0
  %3620 = vmatpush2.msra.mxu0 0.0
  %3621 = vmatprep.subr.mxu0 0.0
  %3622 = vmatpush2.msra.mxu0 0.0
  %3623 = vmatprep.subr.mxu0 0.0
  %3624 = vmatpush2.msra.mxu0 0.0
  %3625 = vmatprep.subr.mxu0 0.0
  %3626 = vmatpush2.msra.mxu0 0.0
  %3627 = vmatprep.subr.mxu0 0.0
  %3628 = vmatpush2.msra.mxu0 0.0
  %3629 = vmatprep.subr.mxu0 0.0
  %3630 = vmatpush2.msra.mxu0 0.0
  %3631 = vmatprep.subr.mxu0 0.0
  %3632 = vmatpush2.msra.mxu0 0.0
  %3633 = vmatprep.subr.mxu0 0.0
  %3634 = vmatpush2.msra.mxu0 0.0
  %3635 = vmatprep.subr.mxu0 0.0
  %3636 = vmatpush2.msra.mxu0 0.0
  %3637 = vmatprep.subr.mxu0 0.0
  %3638 = vmatpush2.msra.mxu0 0.0
  %3639 = vmatprep.subr.mxu0 0.0
  %3640 = vmatpush2.msra.mxu0 0.0
  %3641 = vmatprep.subr.mxu0 0.0
  %3642 = vmatpush2.msra.mxu0 0.0
  %3643 = vmatprep.subr.mxu0 0.0
  %3644 = vmatpush2.msra.mxu0 0.0
  %3645 = vmatprep.mubr.f32.mxu0 0.0
  %3646 = vmatmul.mubr.f32.gmra.mxu0 %v3413
  %v3647 = vpop.f32.mrf.mxu0
  %v3648 = vadd.f32 %v3578, %v3647
  %v3649 = vpop.f32.mrf.mxu0
  %3650 = vdwg.mxu0
  %v3651 = vadd.f32 %v3648, %v1233
  %v3652 = vxor.u32 %v3651, 2147483648
  %v3653 = vmul.f32 %v3652, 1.442695
  %v3654 = vpow.pop %v3653
  %v3655 = vadd.f32 %v3654, 1.0
  %v3656 = vrcp.pop %v3655
  %v3657 = vmul.f32 1.0, %v3656
  %v3658 = vmul.f32 %v3657, 2.0
  %v3659 = vsub.f32 %v3658, 1.0
  %v3660 = vmul.f32 %v3657, %v2906
  %3662 = vrot.lane.b32.xlu0 %v3659, 118
  %v3663 = vpop.permute.xlu0 %3662
  %v3665 = vmul.f32 %v3657, %v3663
  %3667 = vrot.lane.b32.xlu0 %v3665, 5
  %v3668 = vpop.permute.xlu0 %3667
  %v3670 = vadd.f32 %v3660, %v3668
  %v3671 = vtanh.pop %v3670
  %3673 = vrot.lane.b32.xlu0 %v3671, 10
  %v3674 = vpop.permute.xlu0 %3673
  %v3676 = vmul.f32 %v3657, %v3674
  %3678 = vrot.lane.b32.xlu0 %v3676, 113
  %v3679 = vpop.permute.xlu0 %3678
  %v3680 = vsel %vm879, %v3679, 0
  %3682 = vmatprep.subr.mxu0 0.0
  %3683 = vmatpush1.msra.mxu0 0.0
  %3684 = vmatprep.subr.mxu0 0.0
  %3685 = vmatpush1.msra.mxu0 0.0
  %3686 = vmatprep.subr.mxu0 0.0
  %3687 = vmatpush1.msra.mxu0 0.0
  %3688 = vmatprep.subr.mxu0 0.0
  %3689 = vmatpush1.msra.mxu0 0.0
  %3690 = vmatprep.subr.mxu0 0.0
  %3691 = vmatpush1.msra.mxu0 0.0
  %3692 = vmatprep.subr.mxu0 0.0
  %3693 = vmatpush1.msra.mxu0 0.0
  %3694 = vmatprep.subr.mxu0 0.0
  %3695 = vmatpush1.msra.mxu0 0.0
  %3696 = vmatprep.subr.mxu0 0.0
  %3697 = vmatpush1.msra.mxu0 0.0
  %3698 = vmatprep.subr.mxu0 0.0
  %3699 = vmatpush1.msra.mxu0 0.0
  %3700 = vmatprep.subr.mxu0 0.0
  %3701 = vmatpush1.msra.mxu0 0.0
  %3702 = vmatprep.subr.mxu0 0.0
  %3703 = vmatpush1.msra.mxu0 0.0
  %3704 = vmatprep.subr.mxu0 0.0
  %3705 = vmatpush1.msra.mxu0 0.0
  %3706 = vmatprep.subr.mxu0 0.0
  %3707 = vmatpush1.msra.mxu0 0.0
  %3708 = vmatprep.subr.mxu0 0.0
  %3709 = vmatpush1.msra.mxu0 0.0
  %3710 = vmatprep.subr.mxu0 0.0
  %3711 = vmatpush1.msra.mxu0 0.0
  %3712 = vmatprep.subr.mxu0 0.0
  %3713 = vmatpush1.msra.mxu0 %v1270
  %3714 = vmatprep.subr.mxu0 0.0
  %3715 = vmatpush2.msra.mxu0 0.0
  %3716 = vmatprep.subr.mxu0 0.0
  %3717 = vmatpush2.msra.mxu0 0.0
  %3718 = vmatprep.subr.mxu0 0.0
  %3719 = vmatpush2.msra.mxu0 0.0
  %3720 = vmatprep.subr.mxu0 0.0
  %3721 = vmatpush2.msra.mxu0 0.0
  %3722 = vmatprep.subr.mxu0 0.0
  %3723 = vmatpush2.msra.mxu0 0.0
  %3724 = vmatprep.subr.mxu0 0.0
  %3725 = vmatpush2.msra.mxu0 0.0
  %3726 = vmatprep.subr.mxu0 0.0
  %3727 = vmatpush2.msra.mxu0 0.0
  %3728 = vmatprep.subr.mxu0 0.0
  %3729 = vmatpush2.msra.mxu0 0.0
  %3730 = vmatprep.subr.mxu0 0.0
  %3731 = vmatpush2.msra.mxu0 0.0
  %3732 = vmatprep.subr.mxu0 0.0
  %3733 = vmatpush2.msra.mxu0 0.0
  %3734 = vmatprep.subr.mxu0 0.0
  %3735 = vmatpush2.msra.mxu0 0.0
  %3736 = vmatprep.subr.mxu0 0.0
  %3737 = vmatpush2.msra.mxu0 0.0
  %3738 = vmatprep.subr.mxu0 0.0
  %3739 = vmatpush2.msra.mxu0 0.0
  %3740 = vmatprep.subr.mxu0 0.0
  %3741 = vmatpush2.msra.mxu0 0.0
  %3742 = vmatprep.subr.mxu0 0.0
  %3743 = vmatpush2.msra.mxu0 0.0
  %3744 = vmatprep.subr.mxu0 0.0
  %3745 = vmatpush2.msra.mxu0 0.0
  %3746 = vmatprep.mubr.f32.mxu0 0.0
  %3747 = vmatmul.mubr.f32.gmra.mxu0 %v3680
  %v3748 = vpop.f32.mrf.mxu0
  %v3749 = vadd.f32 %v1263, %v3748
  %v3750 = vpop.f32.mrf.mxu0
  %3751 = vdwg.mxu0
  %v3752 = vmax.f32 %v3749, 0.0
  %3754 = vrot.lane.b32.xlu0 %v3162, 113
  %v3755 = vpop.permute.xlu0 %3754
  %v3756 = vsel %vm879, %v3755, 0
  %3758 = vmatprep.subr.mxu0 0.0
  %3759 = vmatpush1.msra.mxu0 0.0
  %3760 = vmatprep.subr.mxu0 0.0
  %3761 = vmatpush1.msra.mxu0 0.0
  %3762 = vmatprep.subr.mxu0 0.0
  %3763 = vmatpush1.msra.mxu0 0.0
  %3764 = vmatprep.subr.mxu0 0.0
  %3765 = vmatpush1.msra.mxu0 0.0
  %3766 = vmatprep.subr.mxu0 0.0
  %3767 = vmatpush1.msra.mxu0 0.0
  %3768 = vmatprep.subr.mxu0 0.0
  %3769 = vmatpush1.msra.mxu0 0.0
  %3770 = vmatprep.subr.mxu0 0.0
  %3771 = vmatpush1.msra.mxu0 0.0
  %3772 = vmatprep.subr.mxu0 0.0
  %3773 = vmatpush1.msra.mxu0 0.0
  %3774 = vmatprep.subr.mxu0 0.0
  %3775 = vmatpush1.msra.mxu0 0.0
  %3776 = vmatprep.subr.mxu0 0.0
  %3777 = vmatpush1.msra.mxu0 0.0
  %3778 = vmatprep.subr.mxu0 0.0
  %3779 = vmatpush1.msra.mxu0 0.0
  %3780 = vmatprep.subr.mxu0 0.0
  %3781 = vmatpush1.msra.mxu0 0.0
  %3782 = vmatprep.subr.mxu0 0.0
  %3783 = vmatpush1.msra.mxu0 0.0
  %3784 = vmatprep.subr.mxu0 0.0
  %3785 = vmatpush1.msra.mxu0 0.0
  %3786 = vmatprep.subr.mxu0 0.0
  %3787 = vmatpush1.msra.mxu0 0.0
  %3788 = vmatprep.subr.mxu0 0.0
  %3789 = vmatpush1.msra.mxu0 %v1687
  %3790 = vmatprep.subr.mxu0 0.0
  %3791 = vmatpush2.msra.mxu0 0.0
  %3792 = vmatprep.subr.mxu0 0.0
  %3793 = vmatpush2.msra.mxu0 0.0
  %3794 = vmatprep.subr.mxu0 0.0
  %3795 = vmatpush2.msra.mxu0 0.0
  %3796 = vmatprep.subr.mxu0 0.0
  %3797 = vmatpush2.msra.mxu0 0.0
  %3798 = vmatprep.subr.mxu0 0.0
  %3799 = vmatpush2.msra.mxu0 0.0
  %3800 = vmatprep.subr.mxu0 0.0
  %3801 = vmatpush2.msra.mxu0 0.0
  %3802 = vmatprep.subr.mxu0 0.0
  %3803 = vmatpush2.msra.mxu0 0.0
  %3804 = vmatprep.subr.mxu0 0.0
  %3805 = vmatpush2.msra.mxu0 0.0
  %3806 = vmatprep.subr.mxu0 0.0
  %3807 = vmatpush2.msra.mxu0 0.0
  %3808 = vmatprep.subr.mxu0 0.0
  %3809 = vmatpush2.msra.mxu0 0.0
  %3810 = vmatprep.subr.mxu0 0.0
  %3811 = vmatpush2.msra.mxu0 0.0
  %3812 = vmatprep.subr.mxu0 0.0
  %3813 = vmatpush2.msra.mxu0 0.0
  %3814 = vmatprep.subr.mxu0 0.0
  %3815 = vmatpush2.msra.mxu0 0.0
  %3816 = vmatprep.subr.mxu0 0.0
  %3817 = vmatpush2.msra.mxu0 0.0
  %3818 = vmatprep.subr.mxu0 0.0
  %3819 = vmatpush2.msra.mxu0 0.0
  %3820 = vmatprep.subr.mxu0 0.0
  %3821 = vmatpush2.msra.mxu0 0.0
  %3822 = vmatprep.mubr.f32.mxu0 0.0
  %3823 = vmatmul.mubr.f32.gmra.mxu0 %v3756
  %v3824 = vpop.f32.mrf.mxu0
  %v3825 = vadd.f32 0.0, %v3824
  %v3826 = vpop.f32.mrf.mxu0
  %3827 = vdwg.mxu0
  %v3829 = vsel %vm879, %v2988, 0
  %3831 = vmatprep.subr.mxu0 0.0
  %3832 = vmatpush1.msra.mxu0 0.0
  %3833 = vmatprep.subr.mxu0 0.0
  %3834 = vmatpush1.msra.mxu0 0.0
  %3835 = vmatprep.subr.mxu0 0.0
  %3836 = vmatpush1.msra.mxu0 0.0
  %3837 = vmatprep.subr.mxu0 0.0
  %3838 = vmatpush1.msra.mxu0 0.0
  %3839 = vmatprep.subr.mxu0 0.0
  %3840 = vmatpush1.msra.mxu0 0.0
  %3841 = vmatprep.subr.mxu0 0.0
  %3842 = vmatpush1.msra.mxu0 0.0
  %3843 = vmatprep.subr.mxu0 0.0
  %3844 = vmatpush1.msra.mxu0 0.0
  %3845 = vmatprep.subr.mxu0 0.0
  %3846 = vmatpush1.msra.mxu0 0.0
  %3847 = vmatprep.subr.mxu0 0.0
  %3848 = vmatpush1.msra.mxu0 0.0
  %3849 = vmatprep.subr.mxu0 0.0
  %3850 = vmatpush1.msra.mxu0 0.0
  %3851 = vmatprep.subr.mxu0 0.0
  %3852 = vmatpush1.msra.mxu0 0.0
  %3853 = vmatprep.subr.mxu0 0.0
  %3854 = vmatpush1.msra.mxu0 0.0
  %3855 = vmatprep.subr.mxu0 0.0
  %3856 = vmatpush1.msra.mxu0 0.0
  %3857 = vmatprep.subr.mxu0 0.0
  %3858 = vmatpush1.msra.mxu0 0.0
  %3859 = vmatprep.subr.mxu0 0.0
  %3860 = vmatpush1.msra.mxu0 0.0
  %3861 = vmatprep.subr.mxu0 0.0
  %3862 = vmatpush1.msra.mxu0 %v1763
  %3863 = vmatprep.subr.mxu0 0.0
  %3864 = vmatpush2.msra.mxu0 0.0
  %3865 = vmatprep.subr.mxu0 0.0
  %3866 = vmatpush2.msra.mxu0 0.0
  %3867 = vmatprep.subr.mxu0 0.0
  %3868 = vmatpush2.msra.mxu0 0.0
  %3869 = vmatprep.subr.mxu0 0.0
  %3870 = vmatpush2.msra.mxu0 0.0
  %3871 = vmatprep.subr.mxu0 0.0
  %3872 = vmatpush2.msra.mxu0 0.0
  %3873 = vmatprep.subr.mxu0 0.0
  %3874 = vmatpush2.msra.mxu0 0.0
  %3875 = vmatprep.subr.mxu0 0.0
  %3876 = vmatpush2.msra.mxu0 0.0
  %3877 = vmatprep.subr.mxu0 0.0
  %3878 = vmatpush2.msra.mxu0 0.0
  %3879 = vmatprep.subr.mxu0 0.0
  %3880 = vmatpush2.msra.mxu0 0.0
  %3881 = vmatprep.subr.mxu0 0.0
  %3882 = vmatpush2.msra.mxu0 0.0
  %3883 = vmatprep.subr.mxu0 0.0
  %3884 = vmatpush2.msra.mxu0 0.0
  %3885 = vmatprep.subr.mxu0 0.0
  %3886 = vmatpush2.msra.mxu0 0.0
  %3887 = vmatprep.subr.mxu0 0.0
  %3888 = vmatpush2.msra.mxu0 0.0
  %3889 = vmatprep.subr.mxu0 0.0
  %3890 = vmatpush2.msra.mxu0 0.0
  %3891 = vmatprep.subr.mxu0 0.0
  %3892 = vmatpush2.msra.mxu0 0.0
  %3893 = vmatprep.subr.mxu0 0.0
  %3894 = vmatpush2.msra.mxu0 0.0
  %3895 = vmatprep.mubr.f32.mxu0 0.0
  %3896 = vmatmul.mubr.f32.gmra.mxu0 %v3829
  %v3897 = vpop.f32.mrf.mxu0
  %v3898 = vadd.f32 %v3825, %v3897
  %v3899 = vpop.f32.mrf.mxu0
  %3900 = vdwg.mxu0
  %v3901 = vadd.f32 %v3898, %v1838
  %v3902 = vxor.u32 %v3901, 2147483648
  %v3903 = vmul.f32 %v3902, 1.442695
  %v3904 = vpow.pop %v3903
  %v3905 = vadd.f32 %v3904, 1.0
  %v3906 = vrcp.pop %v3905
  %v3907 = vmul.f32 1.0, %v3906
  %v3908 = vmul.f32 %v3907, 2.0
  %v3909 = vsub.f32 %v3908, 1.0
  %v3910 = vmul.f32 %v3907, %v3156
  %3912 = vrot.lane.b32.xlu0 %v3909, 118
  %v3913 = vpop.permute.xlu0 %3912
  %v3915 = vmul.f32 %v3907, %v3913
  %3917 = vrot.lane.b32.xlu0 %v3915, 5
  %v3918 = vpop.permute.xlu0 %3917
  %v3920 = vadd.f32 %v3910, %v3918
  %v3921 = vtanh.pop %v3920
  %3923 = vrot.lane.b32.xlu0 %v3921, 10
  %v3924 = vpop.permute.xlu0 %3923
  %v3926 = vmul.f32 %v3907, %v3924
  %3927 = vmatprep.subr.mxu0 0.0
  %3928 = vmatpush1.msra.mxu0 0.0
  %3929 = vmatprep.subr.mxu0 0.0
  %3930 = vmatpush1.msra.mxu0 0.0
  %3931 = vmatprep.subr.mxu0 0.0
  %3932 = vmatpush1.msra.mxu0 0.0
  %3933 = vmatprep.subr.mxu0 0.0
  %3934 = vmatpush1.msra.mxu0 0.0
  %3935 = vmatprep.subr.mxu0 0.0
  %3936 = vmatpush1.msra.mxu0 0.0
  %3937 = vmatprep.subr.mxu0 0.0
  %3938 = vmatpush1.msra.mxu0 0.0
  %3939 = vmatprep.subr.mxu0 0.0
  %3940 = vmatpush1.msra.mxu0 0.0
  %3941 = vmatprep.subr.mxu0 0.0
  %3942 = vmatpush1.msra.mxu0 0.0
  %3943 = vmatprep.subr.mxu0 0.0
  %3944 = vmatpush1.msra.mxu0 0.0
  %3945 = vmatprep.subr.mxu0 0.0
  %3946 = vmatpush1.msra.mxu0 0.0
  %3947 = vmatprep.subr.mxu0 0.0
  %3948 = vmatpush1.msra.mxu0 0.0
  %3949 = vmatprep.subr.mxu0 0.0
  %3950 = vmatpush1.msra.mxu0 0.0
  %3951 = vmatprep.subr.mxu0 0.0
  %3952 = vmatpush1.msra.mxu0 0.0
  %3953 = vmatprep.subr.mxu0 0.0
  %3954 = vmatpush1.msra.mxu0 0.0
  %3955 = vmatprep.subr.mxu0 0.0
  %3956 = vmatpush1.msra.mxu0 0.0
  %3957 = vmatprep.subr.mxu0 0.0
  %3958 = vmatpush1.msra.mxu0 %v2383
  %3959 = vmatprep.subr.mxu0 0.0
  %3960 = vmatpush2.msra.mxu0 0.0
  %3961 = vmatprep.subr.mxu0 0.0
  %3962 = vmatpush2.msra.mxu0 0.0
  %3963 = vmatprep.subr.mxu0 0.0
  %3964 = vmatpush2.msra.mxu0 0.0
  %3965 = vmatprep.subr.mxu0 0.0
  %3966 = vmatpush2.msra.mxu0 0.0
  %3967 = vmatprep.subr.mxu0 0.0
  %3968 = vmatpush2.msra.mxu0 0.0
  %3969 = vmatprep.subr.mxu0 0.0
  %3970 = vmatpush2.msra.mxu0 0.0
  %3971 = vmatprep.subr.mxu0 0.0
  %3972 = vmatpush2.msra.mxu0 0.0
  %3973 = vmatprep.subr.mxu0 0.0
  %3974 = vmatpush2.msra.mxu0 0.0
  %3975 = vmatprep.subr.mxu0 0.0
  %3976 = vmatpush2.msra.mxu0 0.0
  %3977 = vmatprep.subr.mxu0 0.0
  %3978 = vmatpush2.msra.mxu0 0.0
  %3979 = vmatprep.subr.mxu0 0.0
  %3980 = vmatpush2.msra.mxu0 0.0
  %3981 = vmatprep.subr.mxu0 0.0
  %3982 = vmatpush2.msra.mxu0 0.0
  %3983 = vmatprep.subr.mxu0 0.0
  %3984 = vmatpush2.msra.mxu0 0.0
  %3985 = vmatprep.subr.mxu0 0.0
  %3986 = vmatpush2.msra.mxu0 0.0
  %3987 = vmatprep.subr.mxu0 0.0
  %3988 = vmatpush2.msra.mxu0 0.0
  %3989 = vmatprep.subr.mxu0 0.0
  %3990 = vmatpush2.msra.mxu0 0.0
  %3991 = vmatprep.mubr.f32.mxu0 0.0
  %3992 = vmatmul.mubr.f32.gmra.mxu0 %v3332
  %v3993 = vpop.f32.mrf.mxu0
  %v3994 = vadd.f32 0.0, %v3993
  %v3995 = vpop.f32.mrf.mxu0
  %3996 = vdwg.mxu0
  %3997 = vmatprep.subr.mxu0 0.0
  %3998 = vmatpush1.msra.mxu0 0.0
  %3999 = vmatprep.subr.mxu0 0.0
  %4000 = vmatpush1.msra.mxu0 0.0
  %4001 = vmatprep.subr.mxu0 0.0
  %4002 = vmatpush1.msra.mxu0 0.0
  %4003 = vmatprep.subr.mxu0 0.0
  %4004 = vmatpush1.msra.mxu0 0.0
  %4005 = vmatprep.subr.mxu0 0.0
  %4006 = vmatpush1.msra.mxu0 0.0
  %4007 = vmatprep.subr.mxu0 0.0
  %4008 = vmatpush1.msra.mxu0 0.0
  %4009 = vmatprep.subr.mxu0 0.0
  %4010 = vmatpush1.msra.mxu0 0.0
  %4011 = vmatprep.subr.mxu0 0.0
  %4012 = vmatpush1.msra.mxu0 0.0
  %4013 = vmatprep.subr.mxu0 0.0
  %4014 = vmatpush1.msra.mxu0 0.0
  %4015 = vmatprep.subr.mxu0 0.0
  %4016 = vmatpush1.msra.mxu0 0.0
  %4017 = vmatprep.subr.mxu0 0.0
  %4018 = vmatpush1.msra.mxu0 0.0
  %4019 = vmatprep.subr.mxu0 0.0
  %4020 = vmatpush1.msra.mxu0 0.0
  %4021 = vmatprep.subr.mxu0 0.0
  %4022 = vmatpush1.msra.mxu0 0.0
  %4023 = vmatprep.subr.mxu0 0.0
  %4024 = vmatpush1.msra.mxu0 0.0
  %4025 = vmatprep.subr.mxu0 0.0
  %4026 = vmatpush1.msra.mxu0 0.0
  %4027 = vmatprep.subr.mxu0 0.0
  %4028 = vmatpush1.msra.mxu0 %v2456
  %4029 = vmatprep.subr.mxu0 0.0
  %4030 = vmatpush2.msra.mxu0 0.0
  %4031 = vmatprep.subr.mxu0 0.0
  %4032 = vmatpush2.msra.mxu0 0.0
  %4033 = vmatprep.subr.mxu0 0.0
  %4034 = vmatpush2.msra.mxu0 0.0
  %4035 = vmatprep.subr.mxu0 0.0
  %4036 = vmatpush2.msra.mxu0 0.0
  %4037 = vmatprep.subr.mxu0 0.0
  %4038 = vmatpush2.msra.mxu0 0.0
  %4039 = vmatprep.subr.mxu0 0.0
  %4040 = vmatpush2.msra.mxu0 0.0
  %4041 = vmatprep.subr.mxu0 0.0
  %4042 = vmatpush2.msra.mxu0 0.0
  %4043 = vmatprep.subr.mxu0 0.0
  %4044 = vmatpush2.msra.mxu0 0.0
  %4045 = vmatprep.subr.mxu0 0.0
  %4046 = vmatpush2.msra.mxu0 0.0
  %4047 = vmatprep.subr.mxu0 0.0
  %4048 = vmatpush2.msra.mxu0 0.0
  %4049 = vmatprep.subr.mxu0 0.0
  %4050 = vmatpush2.msra.mxu0 0.0
  %4051 = vmatprep.subr.mxu0 0.0
  %4052 = vmatpush2.msra.mxu0 0.0
  %4053 = vmatprep.subr.mxu0 0.0
  %4054 = vmatpush2.msra.mxu0 0.0
  %4055 = vmatprep.subr.mxu0 0.0
  %4056 = vmatpush2.msra.mxu0 0.0
  %4057 = vmatprep.subr.mxu0 0.0
  %4058 = vmatpush2.msra.mxu0 0.0
  %4059 = vmatprep.subr.mxu0 0.0
  %4060 = vmatpush2.msra.mxu0 0.0
  %4061 = vmatprep.mubr.f32.mxu0 0.0
  %4062 = vmatmul.mubr.f32.gmra.mxu0 %v3756
  %v4063 = vpop.f32.mrf.mxu0
  %v4064 = vadd.f32 %v3994, %v4063
  %v4065 = vpop.f32.mrf.mxu0
  %4066 = vdwg.mxu0
  %v4067 = vadd.f32 %v4064, %v2531
  %v4068 = vxor.u32 %v4067, 2147483648
  %v4069 = vmul.f32 %v4068, 1.442695
  %v4070 = vpow.pop %v4069
  %v4071 = vadd.f32 %v4070, 1.0
  %v4072 = vrcp.pop %v4071
  %v4073 = vmul.f32 1.0, %v4072
  %v4074 = vmul.f32 %v4073, 2.0
  %v4075 = vsub.f32 %v4074, 1.0
  %v4076 = vmul.f32 %v4073, %v3322
  %4078 = vrot.lane.b32.xlu0 %v4075, 118
  %v4079 = vpop.permute.xlu0 %4078
  %v4081 = vmul.f32 %v4073, %v4079
  %4083 = vrot.lane.b32.xlu0 %v4081, 5
  %v4084 = vpop.permute.xlu0 %4083
  %v4086 = vadd.f32 %v4076, %v4084
  %v4087 = vtanh.pop %v4086
  %4089 = vrot.lane.b32.xlu0 %v4087, 10
  %v4090 = vpop.permute.xlu0 %4089
  %v4092 = vmul.f32 %v4073, %v4090
  %4094 = vrot.lane.b32.xlu0 %v4092, 113
  %v4095 = vpop.permute.xlu0 %4094
  %v4096 = vsel %vm879, %v4095, 0
  %4098 = vmatprep.subr.mxu0 0.0
  %4099 = vmatpush1.msra.mxu0 0.0
  %4100 = vmatprep.subr.mxu0 0.0
  %4101 = vmatpush1.msra.mxu0 0.0
  %4102 = vmatprep.subr.mxu0 0.0
  %4103 = vmatpush1.msra.mxu0 0.0
  %4104 = vmatprep.subr.mxu0 0.0
  %4105 = vmatpush1.msra.mxu0 0.0
  %4106 = vmatprep.subr.mxu0 0.0
  %4107 = vmatpush1.msra.mxu0 0.0
  %4108 = vmatprep.subr.mxu0 0.0
  %4109 = vmatpush1.msra.mxu0 0.0
  %4110 = vmatprep.subr.mxu0 0.0
  %4111 = vmatpush1.msra.mxu0 0.0
  %4112 = vmatprep.subr.mxu0 0.0
  %4113 = vmatpush1.msra.mxu0 0.0
  %4114 = vmatprep.subr.mxu0 0.0
  %4115 = vmatpush1.msra.mxu0 0.0
  %4116 = vmatprep.subr.mxu0 0.0
  %4117 = vmatpush1.msra.mxu0 0.0
  %4118 = vmatprep.subr.mxu0 0.0
  %4119 = vmatpush1.msra.mxu0 0.0
  %4120 = vmatprep.subr.mxu0 0.0
  %4121 = vmatpush1.msra.mxu0 0.0
  %4122 = vmatprep.subr.mxu0 0.0
  %4123 = vmatpush1.msra.mxu0 0.0
  %4124 = vmatprep.subr.mxu0 0.0
  %4125 = vmatpush1.msra.mxu0 0.0
  %4126 = vmatprep.subr.mxu0 0.0
  %4127 = vmatpush1.msra.mxu0 0.0
  %4128 = vmatprep.subr.mxu0 0.0
  %4129 = vmatpush1.msra.mxu0 %v2568
  %4130 = vmatprep.subr.mxu0 0.0
  %4131 = vmatpush2.msra.mxu0 0.0
  %4132 = vmatprep.subr.mxu0 0.0
  %4133 = vmatpush2.msra.mxu0 0.0
  %4134 = vmatprep.subr.mxu0 0.0
  %4135 = vmatpush2.msra.mxu0 0.0
  %4136 = vmatprep.subr.mxu0 0.0
  %4137 = vmatpush2.msra.mxu0 0.0
  %4138 = vmatprep.subr.mxu0 0.0
  %4139 = vmatpush2.msra.mxu0 0.0
  %4140 = vmatprep.subr.mxu0 0.0
  %4141 = vmatpush2.msra.mxu0 0.0
  %4142 = vmatprep.subr.mxu0 0.0
  %4143 = vmatpush2.msra.mxu0 0.0
  %4144 = vmatprep.subr.mxu0 0.0
  %4145 = vmatpush2.msra.mxu0 0.0
  %4146 = vmatprep.subr.mxu0 0.0
  %4147 = vmatpush2.msra.mxu0 0.0
  %4148 = vmatprep.subr.mxu0 0.0
  %4149 = vmatpush2.msra.mxu0 0.0
  %4150 = vmatprep.subr.mxu0 0.0
  %4151 = vmatpush2.msra.mxu0 0.0
  %4152 = vmatprep.subr.mxu0 0.0
  %4153 = vmatpush2.msra.mxu0 0.0
  %4154 = vmatprep.subr.mxu0 0.0
  %4155 = vmatpush2.msra.mxu0 0.0
  %4156 = vmatprep.subr.mxu0 0.0
  %4157 = vmatpush2.msra.mxu0 0.0
  %4158 = vmatprep.subr.mxu0 0.0
  %4159 = vmatpush2.msra.mxu0 0.0
  %4160 = vmatprep.subr.mxu0 0.0
  %4161 = vmatpush2.msra.mxu0 0.0
  %4162 = vmatprep.mubr.f32.mxu0 0.0
  %4163 = vmatmul.mubr.f32.gmra.mxu0 %v4096
  %v4164 = vpop.f32.mrf.mxu0
  %v4165 = vadd.f32 %v2561, %v4164
  %v4166 = vpop.f32.mrf.mxu0
  %4167 = vdwg.mxu0
  %v4168 = vxor.u32 %v4165, 2147483648
  %v4169 = vmul.f32 %v4168, 1.442695
  %v4170 = vpow.pop %v4169
  %v4171 = vadd.f32 %v4170, 1.0
  %v4172 = vrcp.pop %v4171
  %v4173 = vmul.f32 1.0, %v4172
  %4175 = vrot.lane.b32.xlu0 %v3510, 113
  %v4176 = vpop.permute.xlu0 %4175
  %v4177 = vsel %vm879, %v4176, 0
  %4179 = vmatprep.subr.mxu0 0.0
  %4180 = vmatpush1.msra.mxu0 0.0
  %4181 = vmatprep.subr.mxu0 0.0
  %4182 = vmatpush1.msra.mxu0 0.0
  %4183 = vmatprep.subr.mxu0 0.0
  %4184 = vmatpush1.msra.mxu0 0.0
  %4185 = vmatprep.subr.mxu0 0.0
  %4186 = vmatpush1.msra.mxu0 0.0
  %4187 = vmatprep.subr.mxu0 0.0
  %4188 = vmatpush1.msra.mxu0 0.0
  %4189 = vmatprep.subr.mxu0 0.0
  %4190 = vmatpush1.msra.mxu0 0.0
  %4191 = vmatprep.subr.mxu0 0.0
  %4192 = vmatpush1.msra.mxu0 0.0
  %4193 = vmatprep.subr.mxu0 0.0
  %4194 = vmatpush1.msra.mxu0 0.0
  %4195 = vmatprep.subr.mxu0 0.0
  %4196 = vmatpush1.msra.mxu0 0.0
  %4197 = vmatprep.subr.mxu0 0.0
  %4198 = vmatpush1.msra.mxu0 0.0
  %4199 = vmatprep.subr.mxu0 0.0
  %4200 = vmatpush1.msra.mxu0 0.0
  %4201 = vmatprep.subr.mxu0 0.0
  %4202 = vmatpush1.msra.mxu0 0.0
  %4203 = vmatprep.subr.mxu0 0.0
  %4204 = vmatpush1.msra.mxu0 0.0
  %4205 = vmatprep.subr.mxu0 0.0
  %4206 = vmatpush1.msra.mxu0 0.0
  %4207 = vmatprep.subr.mxu0 0.0
  %4208 = vmatpush1.msra.mxu0 0.0
  %4209 = vmatprep.subr.mxu0 0.0
  %4210 = vmatpush1.msra.mxu0 %v885
  %4211 = vmatprep.subr.mxu0 0.0
  %4212 = vmatpush2.msra.mxu0 0.0
  %4213 = vmatprep.subr.mxu0 0.0
  %4214 = vmatpush2.msra.mxu0 0.0
  %4215 = vmatprep.subr.mxu0 0.0
  %4216 = vmatpush2.msra.mxu0 0.0
  %4217 = vmatprep.subr.mxu0 0.0
  %4218 = vmatpush2.msra.mxu0 0.0
  %4219 = vmatprep.subr.mxu0 0.0
  %4220 = vmatpush2.msra.mxu0 0.0
  %4221 = vmatprep.subr.mxu0 0.0
  %4222 = vmatpush2.msra.mxu0 0.0
  %4223 = vmatprep.subr.mxu0 0.0
  %4224 = vmatpush2.msra.mxu0 0.0
  %4225 = vmatprep.subr.mxu0 0.0
  %4226 = vmatpush2.msra.mxu0 0.0
  %4227 = vmatprep.subr.mxu0 0.0
  %4228 = vmatpush2.msra.mxu0 0.0
  %4229 = vmatprep.subr.mxu0 0.0
  %4230 = vmatpush2.msra.mxu0 0.0
  %4231 = vmatprep.subr.mxu0 0.0
  %4232 = vmatpush2.msra.mxu0 0.0
  %4233 = vmatprep.subr.mxu0 0.0
  %4234 = vmatpush2.msra.mxu0 0.0
  %4235 = vmatprep.subr.mxu0 0.0
  %4236 = vmatpush2.msra.mxu0 0.0
  %4237 = vmatprep.subr.mxu0 0.0
  %4238 = vmatpush2.msra.mxu0 0.0
  %4239 = vmatprep.subr.mxu0 0.0
  %4240 = vmatpush2.msra.mxu0 0.0
  %4241 = vmatprep.subr.mxu0 0.0
  %4242 = vmatpush2.msra.mxu0 0.0
  %4243 = vmatprep.mubr.f32.mxu0 0.0
  %4244 = vmatmul.mubr.f32.gmra.mxu0 %v4177
  %v4245 = vpop.f32.mrf.mxu0
  %v4246 = vadd.f32 0.0, %v4245
  %v4247 = vpop.f32.mrf.mxu0
  %4248 = vdwg.mxu0
  %v4249 = vadd.f32 %v774, %v4246
  %v4250 = vxor.u32 %v4249, 2147483648
  %v4251 = vmul.f32 %v4250, 1.442695
  %v4252 = vpow.pop %v4251
  %v4253 = vadd.f32 %v4252, 1.0
  %v4254 = vrcp.pop %v4253
  %v4255 = vmul.f32 1.0, %v4254
  %v4256 = vmul.f32 %v4255, 2.0
  %v4257 = vsub.f32 %v4256, 1.0
  %v4258 = vmul.f32 %v4255, %v3504
  %4260 = vrot.lane.b32.xlu0 %v4257, 118
  %v4261 = vpop.permute.xlu0 %4260
  %v4263 = vmul.f32 %v4255, %v4261
  %4265 = vrot.lane.b32.xlu0 %v4263, 5
  %v4266 = vpop.permute.xlu0 %4265
  %v4268 = vadd.f32 %v4258, %v4266
  %v4269 = vtanh.pop %v4268
  %4271 = vrot.lane.b32.xlu0 %v4269, 10
  %v4272 = vpop.permute.xlu0 %4271
  %v4274 = vmul.f32 %v4255, %v4272
  %4275 = vmatprep.subr.mxu0 0.0
  %4276 = vmatpush1.msra.mxu0 0.0
  %4277 = vmatprep.subr.mxu0 0.0
  %4278 = vmatpush1.msra.mxu0 0.0
  %4279 = vmatprep.subr.mxu0 0.0
  %4280 = vmatpush1.msra.mxu0 0.0
  %4281 = vmatprep.subr.mxu0 0.0
  %4282 = vmatpush1.msra.mxu0 0.0
  %4283 = vmatprep.subr.mxu0 0.0
  %4284 = vmatpush1.msra.mxu0 0.0
  %4285 = vmatprep.subr.mxu0 0.0
  %4286 = vmatpush1.msra.mxu0 0.0
  %4287 = vmatprep.subr.mxu0 0.0
  %4288 = vmatpush1.msra.mxu0 0.0
  %4289 = vmatprep.subr.mxu0 0.0
  %4290 = vmatpush1.msra.mxu0 0.0
  %4291 = vmatprep.subr.mxu0 0.0
  %4292 = vmatpush1.msra.mxu0 0.0
  %4293 = vmatprep.subr.mxu0 0.0
  %4294 = vmatpush1.msra.mxu0 0.0
  %4295 = vmatprep.subr.mxu0 0.0
  %4296 = vmatpush1.msra.mxu0 0.0
  %4297 = vmatprep.subr.mxu0 0.0
  %4298 = vmatpush1.msra.mxu0 0.0
  %4299 = vmatprep.subr.mxu0 0.0
  %4300 = vmatpush1.msra.mxu0 0.0
  %4301 = vmatprep.subr.mxu0 0.0
  %4302 = vmatpush1.msra.mxu0 0.0
  %4303 = vmatprep.subr.mxu0 0.0
  %4304 = vmatpush1.msra.mxu0 0.0
  %4305 = vmatprep.subr.mxu0 0.0
  %4306 = vmatpush1.msra.mxu0 %v1085
  %4307 = vmatprep.subr.mxu0 0.0
  %4308 = vmatpush2.msra.mxu0 0.0
  %4309 = vmatprep.subr.mxu0 0.0
  %4310 = vmatpush2.msra.mxu0 0.0
  %4311 = vmatprep.subr.mxu0 0.0
  %4312 = vmatpush2.msra.mxu0 0.0
  %4313 = vmatprep.subr.mxu0 0.0
  %4314 = vmatpush2.msra.mxu0 0.0
  %4315 = vmatprep.subr.mxu0 0.0
  %4316 = vmatpush2.msra.mxu0 0.0
  %4317 = vmatprep.subr.mxu0 0.0
  %4318 = vmatpush2.msra.mxu0 0.0
  %4319 = vmatprep.subr.mxu0 0.0
  %4320 = vmatpush2.msra.mxu0 0.0
  %4321 = vmatprep.subr.mxu0 0.0
  %4322 = vmatpush2.msra.mxu0 0.0
  %4323 = vmatprep.subr.mxu0 0.0
  %4324 = vmatpush2.msra.mxu0 0.0
  %4325 = vmatprep.subr.mxu0 0.0
  %4326 = vmatpush2.msra.mxu0 0.0
  %4327 = vmatprep.subr.mxu0 0.0
  %4328 = vmatpush2.msra.mxu0 0.0
  %4329 = vmatprep.subr.mxu0 0.0
  %4330 = vmatpush2.msra.mxu0 0.0
  %4331 = vmatprep.subr.mxu0 0.0
  %4332 = vmatpush2.msra.mxu0 0.0
  %4333 = vmatprep.subr.mxu0 0.0
  %4334 = vmatpush2.msra.mxu0 0.0
  %4335 = vmatprep.subr.mxu0 0.0
  %4336 = vmatpush2.msra.mxu0 0.0
  %4337 = vmatprep.subr.mxu0 0.0
  %4338 = vmatpush2.msra.mxu0 0.0
  %4339 = vmatprep.mubr.f32.mxu0 0.0
  %4340 = vmatmul.mubr.f32.gmra.mxu0 %v3680
  %v4341 = vpop.f32.mrf.mxu0
  %v4342 = vadd.f32 0.0, %v4341
  %v4343 = vpop.f32.mrf.mxu0
  %4344 = vdwg.mxu0
  %4345 = vmatprep.subr.mxu0 0.0
  %4346 = vmatpush1.msra.mxu0 0.0
  %4347 = vmatprep.subr.mxu0 0.0
  %4348 = vmatpush1.msra.mxu0 0.0
  %4349 = vmatprep.subr.mxu0 0.0
  %4350 = vmatpush1.msra.mxu0 0.0
  %4351 = vmatprep.subr.mxu0 0.0
  %4352 = vmatpush1.msra.mxu0 0.0
  %4353 = vmatprep.subr.mxu0 0.0
  %4354 = vmatpush1.msra.mxu0 0.0
  %4355 = vmatprep.subr.mxu0 0.0
  %4356 = vmatpush1.msra.mxu0 0.0
  %4357 = vmatprep.subr.mxu0 0.0
  %4358 = vmatpush1.msra.mxu0 0.0
  %4359 = vmatprep.subr.mxu0 0.0
  %4360 = vmatpush1.msra.mxu0 0.0
  %4361 = vmatprep.subr.mxu0 0.0
  %4362 = vmatpush1.msra.mxu0 0.0
  %4363 = vmatprep.subr.mxu0 0.0
  %4364 = vmatpush1.msra.mxu0 0.0
  %4365 = vmatprep.subr.mxu0 0.0
  %4366 = vmatpush1.msra.mxu0 0.0
  %4367 = vmatprep.subr.mxu0 0.0
  %4368 = vmatpush1.msra.mxu0 0.0
  %4369 = vmatprep.subr.mxu0 0.0
  %4370 = vmatpush1.msra.mxu0 0.0
  %4371 = vmatprep.subr.mxu0 0.0
  %4372 = vmatpush1.msra.mxu0 0.0
  %4373 = vmatprep.subr.mxu0 0.0
  %4374 = vmatpush1.msra.mxu0 0.0
  %4375 = vmatprep.subr.mxu0 0.0
  %4376 = vmatpush1.msra.mxu0 %v1158
  %4377 = vmatprep.subr.mxu0 0.0
  %4378 = vmatpush2.msra.mxu0 0.0
  %4379 = vmatprep.subr.mxu0 0.0
  %4380 = vmatpush2.msra.mxu0 0.0
  %4381 = vmatprep.subr.mxu0 0.0
  %4382 = vmatpush2.msra.mxu0 0.0
  %4383 = vmatprep.subr.mxu0 0.0
  %4384 = vmatpush2.msra.mxu0 0.0
  %4385 = vmatprep.subr.mxu0 0.0
  %4386 = vmatpush2.msra.mxu0 0.0
  %4387 = vmatprep.subr.mxu0 0.0
  %4388 = vmatpush2.msra.mxu0 0.0
  %4389 = vmatprep.subr.mxu0 0.0
  %4390 = vmatpush2.msra.mxu0 0.0
  %4391 = vmatprep.subr.mxu0 0.0
  %4392 = vmatpush2.msra.mxu0 0.0
  %4393 = vmatprep.subr.mxu0 0.0
  %4394 = vmatpush2.msra.mxu0 0.0
  %4395 = vmatprep.subr.mxu0 0.0
  %4396 = vmatpush2.msra.mxu0 0.0
  %4397 = vmatprep.subr.mxu0 0.0
  %4398 = vmatpush2.msra.mxu0 0.0
  %4399 = vmatprep.subr.mxu0 0.0
  %4400 = vmatpush2.msra.mxu0 0.0
  %4401 = vmatprep.subr.mxu0 0.0
  %4402 = vmatpush2.msra.mxu0 0.0
  %4403 = vmatprep.subr.mxu0 0.0
  %4404 = vmatpush2.msra.mxu0 0.0
  %4405 = vmatprep.subr.mxu0 0.0
  %4406 = vmatpush2.msra.mxu0 0.0
  %4407 = vmatprep.subr.mxu0 0.0
  %4408 = vmatpush2.msra.mxu0 0.0
  %4409 = vmatprep.mubr.f32.mxu0 0.0
  %4410 = vmatmul.mubr.f32.gmra.mxu0 %v4177
  %v4411 = vpop.f32.mrf.mxu0
  %v4412 = vadd.f32 %v4342, %v4411
  %v4413 = vpop.f32.mrf.mxu0
  %4414 = vdwg.mxu0
  %v4415 = vadd.f32 %v4412, %v1233
  %v4416 = vxor.u32 %v4415, 2147483648
  %v4417 = vmul.f32 %v4416, 1.442695
  %v4418 = vpow.pop %v4417
  %v4419 = vadd.f32 %v4418, 1.0
  %v4420 = vrcp.pop %v4419
  %v4421 = vmul.f32 1.0, %v4420
  %v4422 = vmul.f32 %v4421, 2.0
  %v4423 = vsub.f32 %v4422, 1.0
  %v4424 = vmul.f32 %v4421, %v3670
  %4426 = vrot.lane.b32.xlu0 %v4423, 118
  %v4427 = vpop.permute.xlu0 %4426
  %v4429 = vmul.f32 %v4421, %v4427
  %4431 = vrot.lane.b32.xlu0 %v4429, 5
  %v4432 = vpop.permute.xlu0 %4431
  %v4434 = vadd.f32 %v4424, %v4432
  %v4435 = vtanh.pop %v4434
  %4437 = vrot.lane.b32.xlu0 %v4435, 10
  %v4438 = vpop.permute.xlu0 %4437
  %v4440 = vmul.f32 %v4421, %v4438
  %4442 = vrot.lane.b32.xlu0 %v4440, 113
  %v4443 = vpop.permute.xlu0 %4442
  %v4444 = vsel %vm879, %v4443, 0
  %4446 = vmatprep.subr.mxu0 0.0
  %4447 = vmatpush1.msra.mxu0 0.0
  %4448 = vmatprep.subr.mxu0 0.0
  %4449 = vmatpush1.msra.mxu0 0.0
  %4450 = vmatprep.subr.mxu0 0.0
  %4451 = vmatpush1.msra.mxu0 0.0
  %4452 = vmatprep.subr.mxu0 0.0
  %4453 = vmatpush1.msra.mxu0 0.0
  %4454 = vmatprep.subr.mxu0 0.0
  %4455 = vmatpush1.msra.mxu0 0.0
  %4456 = vmatprep.subr.mxu0 0.0
  %4457 = vmatpush1.msra.mxu0 0.0
  %4458 = vmatprep.subr.mxu0 0.0
  %4459 = vmatpush1.msra.mxu0 0.0
  %4460 = vmatprep.subr.mxu0 0.0
  %4461 = vmatpush1.msra.mxu0 0.0
  %4462 = vmatprep.subr.mxu0 0.0
  %4463 = vmatpush1.msra.mxu0 0.0
  %4464 = vmatprep.subr.mxu0 0.0
  %4465 = vmatpush1.msra.mxu0 0.0
  %4466 = vmatprep.subr.mxu0 0.0
  %4467 = vmatpush1.msra.mxu0 0.0
  %4468 = vmatprep.subr.mxu0 0.0
  %4469 = vmatpush1.msra.mxu0 0.0
  %4470 = vmatprep.subr.mxu0 0.0
  %4471 = vmatpush1.msra.mxu0 0.0
  %4472 = vmatprep.subr.mxu0 0.0
  %4473 = vmatpush1.msra.mxu0 0.0
  %4474 = vmatprep.subr.mxu0 0.0
  %4475 = vmatpush1.msra.mxu0 0.0
  %4476 = vmatprep.subr.mxu0 0.0
  %4477 = vmatpush1.msra.mxu0 %v1270
  %4478 = vmatprep.subr.mxu0 0.0
  %4479 = vmatpush2.msra.mxu0 0.0
  %4480 = vmatprep.subr.mxu0 0.0
  %4481 = vmatpush2.msra.mxu0 0.0
  %4482 = vmatprep.subr.mxu0 0.0
  %4483 = vmatpush2.msra.mxu0 0.0
  %4484 = vmatprep.subr.mxu0 0.0
  %4485 = vmatpush2.msra.mxu0 0.0
  %4486 = vmatprep.subr.mxu0 0.0
  %4487 = vmatpush2.msra.mxu0 0.0
  %4488 = vmatprep.subr.mxu0 0.0
  %4489 = vmatpush2.msra.mxu0 0.0
  %4490 = vmatprep.subr.mxu0 0.0
  %4491 = vmatpush2.msra.mxu0 0.0
  %4492 = vmatprep.subr.mxu0 0.0
  %4493 = vmatpush2.msra.mxu0 0.0
  %4494 = vmatprep.subr.mxu0 0.0
  %4495 = vmatpush2.msra.mxu0 0.0
  %4496 = vmatprep.subr.mxu0 0.0
  %4497 = vmatpush2.msra.mxu0 0.0
  %4498 = vmatprep.subr.mxu0 0.0
  %4499 = vmatpush2.msra.mxu0 0.0
  %4500 = vmatprep.subr.mxu0 0.0
  %4501 = vmatpush2.msra.mxu0 0.0
  %4502 = vmatprep.subr.mxu0 0.0
  %4503 = vmatpush2.msra.mxu0 0.0
  %4504 = vmatprep.subr.mxu0 0.0
  %4505 = vmatpush2.msra.mxu0 0.0
  %4506 = vmatprep.subr.mxu0 0.0
  %4507 = vmatpush2.msra.mxu0 0.0
  %4508 = vmatprep.subr.mxu0 0.0
  %4509 = vmatpush2.msra.mxu0 0.0
  %4510 = vmatprep.mubr.f32.mxu0 0.0
  %4511 = vmatmul.mubr.f32.gmra.mxu0 %v4444
  %v4512 = vpop.f32.mrf.mxu0
  %v4513 = vadd.f32 %v1263, %v4512
  %v4514 = vpop.f32.mrf.mxu0
  %4515 = vdwg.mxu0
  %v4516 = vmax.f32 %v4513, 0.0
  %4518 = vrot.lane.b32.xlu0 %v3926, 113
  %v4519 = vpop.permute.xlu0 %4518
  %v4520 = vsel %vm879, %v4519, 0
  %4522 = vmatprep.subr.mxu0 0.0
  %4523 = vmatpush1.msra.mxu0 0.0
  %4524 = vmatprep.subr.mxu0 0.0
  %4525 = vmatpush1.msra.mxu0 0.0
  %4526 = vmatprep.subr.mxu0 0.0
  %4527 = vmatpush1.msra.mxu0 0.0
  %4528 = vmatprep.subr.mxu0 0.0
  %4529 = vmatpush1.msra.mxu0 0.0
  %4530 = vmatprep.subr.mxu0 0.0
  %4531 = vmatpush1.msra.mxu0 0.0
  %4532 = vmatprep.subr.mxu0 0.0
  %4533 = vmatpush1.msra.mxu0 0.0
  %4534 = vmatprep.subr.mxu0 0.0
  %4535 = vmatpush1.msra.mxu0 0.0
  %4536 = vmatprep.subr.mxu0 0.0
  %4537 = vmatpush1.msra.mxu0 0.0
  %4538 = vmatprep.subr.mxu0 0.0
  %4539 = vmatpush1.msra.mxu0 0.0
  %4540 = vmatprep.subr.mxu0 0.0
  %4541 = vmatpush1.msra.mxu0 0.0
  %4542 = vmatprep.subr.mxu0 0.0
  %4543 = vmatpush1.msra.mxu0 0.0
  %4544 = vmatprep.subr.mxu0 0.0
  %4545 = vmatpush1.msra.mxu0 0.0
  %4546 = vmatprep.subr.mxu0 0.0
  %4547 = vmatpush1.msra.mxu0 0.0
  %4548 = vmatprep.subr.mxu0 0.0
  %4549 = vmatpush1.msra.mxu0 0.0
  %4550 = vmatprep.subr.mxu0 0.0
  %4551 = vmatpush1.msra.mxu0 0.0
  %4552 = vmatprep.subr.mxu0 0.0
  %4553 = vmatpush1.msra.mxu0 %v1687
  %4554 = vmatprep.subr.mxu0 0.0
  %4555 = vmatpush2.msra.mxu0 0.0
  %4556 = vmatprep.subr.mxu0 0.0
  %4557 = vmatpush2.msra.mxu0 0.0
  %4558 = vmatprep.subr.mxu0 0.0
  %4559 = vmatpush2.msra.mxu0 0.0
  %4560 = vmatprep.subr.mxu0 0.0
  %4561 = vmatpush2.msra.mxu0 0.0
  %4562 = vmatprep.subr.mxu0 0.0
  %4563 = vmatpush2.msra.mxu0 0.0
  %4564 = vmatprep.subr.mxu0 0.0
  %4565 = vmatpush2.msra.mxu0 0.0
  %4566 = vmatprep.subr.mxu0 0.0
  %4567 = vmatpush2.msra.mxu0 0.0
  %4568 = vmatprep.subr.mxu0 0.0
  %4569 = vmatpush2.msra.mxu0 0.0
  %4570 = vmatprep.subr.mxu0 0.0
  %4571 = vmatpush2.msra.mxu0 0.0
  %4572 = vmatprep.subr.mxu0 0.0
  %4573 = vmatpush2.msra.mxu0 0.0
  %4574 = vmatprep.subr.mxu0 0.0
  %4575 = vmatpush2.msra.mxu0 0.0
  %4576 = vmatprep.subr.mxu0 0.0
  %4577 = vmatpush2.msra.mxu0 0.0
  %4578 = vmatprep.subr.mxu0 0.0
  %4579 = vmatpush2.msra.mxu0 0.0
  %4580 = vmatprep.subr.mxu0 0.0
  %4581 = vmatpush2.msra.mxu0 0.0
  %4582 = vmatprep.subr.mxu0 0.0
  %4583 = vmatpush2.msra.mxu0 0.0
  %4584 = vmatprep.subr.mxu0 0.0
  %4585 = vmatpush2.msra.mxu0 0.0
  %4586 = vmatprep.mubr.f32.mxu0 0.0
  %4587 = vmatmul.mubr.f32.gmra.mxu0 %v4520
  %v4588 = vpop.f32.mrf.mxu0
  %v4589 = vadd.f32 0.0, %v4588
  %v4590 = vpop.f32.mrf.mxu0
  %4591 = vdwg.mxu0
  %v4593 = vsel %vm879, %v3752, 0
  %4595 = vmatprep.subr.mxu0 0.0
  %4596 = vmatpush1.msra.mxu0 0.0
  %4597 = vmatprep.subr.mxu0 0.0
  %4598 = vmatpush1.msra.mxu0 0.0
  %4599 = vmatprep.subr.mxu0 0.0
  %4600 = vmatpush1.msra.mxu0 0.0
  %4601 = vmatprep.subr.mxu0 0.0
  %4602 = vmatpush1.msra.mxu0 0.0
  %4603 = vmatprep.subr.mxu0 0.0
  %4604 = vmatpush1.msra.mxu0 0.0
  %4605 = vmatprep.subr.mxu0 0.0
  %4606 = vmatpush1.msra.mxu0 0.0
  %4607 = vmatprep.subr.mxu0 0.0
  %4608 = vmatpush1.msra.mxu0 0.0
  %4609 = vmatprep.subr.mxu0 0.0
  %4610 = vmatpush1.msra.mxu0 0.0
  %4611 = vmatprep.subr.mxu0 0.0
  %4612 = vmatpush1.msra.mxu0 0.0
  %4613 = vmatprep.subr.mxu0 0.0
  %4614 = vmatpush1.msra.mxu0 0.0
  %4615 = vmatprep.subr.mxu0 0.0
  %4616 = vmatpush1.msra.mxu0 0.0
  %4617 = vmatprep.subr.mxu0 0.0
  %4618 = vmatpush1.msra.mxu0 0.0
  %4619 = vmatprep.subr.mxu0 0.0
  %4620 = vmatpush1.msra.mxu0 0.0
  %4621 = vmatprep.subr.mxu0 0.0
  %4622 = vmatpush1.msra.mxu0 0.0
  %4623 = vmatprep.subr.mxu0 0.0
  %4624 = vmatpush1.msra.mxu0 0.0
  %4625 = vmatprep.subr.mxu0 0.0
  %4626 = vmatpush1.msra.mxu0 %v1763
  %4627 = vmatprep.subr.mxu0 0.0
  %4628 = vmatpush2.msra.mxu0 0.0
  %4629 = vmatprep.subr.mxu0 0.0
  %4630 = vmatpush2.msra.mxu0 0.0
  %4631 = vmatprep.subr.mxu0 0.0
  %4632 = vmatpush2.msra.mxu0 0.0
  %4633 = vmatprep.subr.mxu0 0.0
  %4634 = vmatpush2.msra.mxu0 0.0
  %4635 = vmatprep.subr.mxu0 0.0
  %4636 = vmatpush2.msra.mxu0 0.0
  %4637 = vmatprep.subr.mxu0 0.0
  %4638 = vmatpush2.msra.mxu0 0.0
  %4639 = vmatprep.subr.mxu0 0.0
  %4640 = vmatpush2.msra.mxu0 0.0
  %4641 = vmatprep.subr.mxu0 0.0
  %4642 = vmatpush2.msra.mxu0 0.0
  %4643 = vmatprep.subr.mxu0 0.0
  %4644 = vmatpush2.msra.mxu0 0.0
  %4645 = vmatprep.subr.mxu0 0.0
  %4646 = vmatpush2.msra.mxu0 0.0
  %4647 = vmatprep.subr.mxu0 0.0
  %4648 = vmatpush2.msra.mxu0 0.0
  %4649 = vmatprep.subr.mxu0 0.0
  %4650 = vmatpush2.msra.mxu0 0.0
  %4651 = vmatprep.subr.mxu0 0.0
  %4652 = vmatpush2.msra.mxu0 0.0
  %4653 = vmatprep.subr.mxu0 0.0
  %4654 = vmatpush2.msra.mxu0 0.0
  %4655 = vmatprep.subr.mxu0 0.0
  %4656 = vmatpush2.msra.mxu0 0.0
  %4657 = vmatprep.subr.mxu0 0.0
  %4658 = vmatpush2.msra.mxu0 0.0
  %4659 = vmatprep.mubr.f32.mxu0 0.0
  %4660 = vmatmul.mubr.f32.gmra.mxu0 %v4593
  %v4661 = vpop.f32.mrf.mxu0
  %v4662 = vadd.f32 %v4589, %v4661
  %v4663 = vpop.f32.mrf.mxu0
  %4664 = vdwg.mxu0
  %v4665 = vadd.f32 %v4662, %v1838
  %v4666 = vxor.u32 %v4665, 2147483648
  %v4667 = vmul.f32 %v4666, 1.442695
  %v4668 = vpow.pop %v4667
  %v4669 = vadd.f32 %v4668, 1.0
  %v4670 = vrcp.pop %v4669
  %v4671 = vmul.f32 1.0, %v4670
  %v4672 = vmul.f32 %v4671, 2.0
  %v4673 = vsub.f32 %v4672, 1.0
  %v4674 = vmul.f32 %v4671, %v3920
  %4676 = vrot.lane.b32.xlu0 %v4673, 118
  %v4677 = vpop.permute.xlu0 %4676
  %v4679 = vmul.f32 %v4671, %v4677
  %4681 = vrot.lane.b32.xlu0 %v4679, 5
  %v4682 = vpop.permute.xlu0 %4681
  %v4684 = vadd.f32 %v4674, %v4682
  %v4685 = vtanh.pop %v4684
  %4687 = vrot.lane.b32.xlu0 %v4685, 10
  %v4688 = vpop.permute.xlu0 %4687
  %v4690 = vmul.f32 %v4671, %v4688
  %4691 = vmatprep.subr.mxu0 0.0
  %4692 = vmatpush1.msra.mxu0 0.0
  %4693 = vmatprep.subr.mxu0 0.0
  %4694 = vmatpush1.msra.mxu0 0.0
  %4695 = vmatprep.subr.mxu0 0.0
  %4696 = vmatpush1.msra.mxu0 0.0
  %4697 = vmatprep.subr.mxu0 0.0
  %4698 = vmatpush1.msra.mxu0 0.0
  %4699 = vmatprep.subr.mxu0 0.0
  %4700 = vmatpush1.msra.mxu0 0.0
  %4701 = vmatprep.subr.mxu0 0.0
  %4702 = vmatpush1.msra.mxu0 0.0
  %4703 = vmatprep.subr.mxu0 0.0
  %4704 = vmatpush1.msra.mxu0 0.0
  %4705 = vmatprep.subr.mxu0 0.0
  %4706 = vmatpush1.msra.mxu0 0.0
  %4707 = vmatprep.subr.mxu0 0.0
  %4708 = vmatpush1.msra.mxu0 0.0
  %4709 = vmatprep.subr.mxu0 0.0
  %4710 = vmatpush1.msra.mxu0 0.0
  %4711 = vmatprep.subr.mxu0 0.0
  %4712 = vmatpush1.msra.mxu0 0.0
  %4713 = vmatprep.subr.mxu0 0.0
  %4714 = vmatpush1.msra.mxu0 0.0
  %4715 = vmatprep.subr.mxu0 0.0
  %4716 = vmatpush1.msra.mxu0 0.0
  %4717 = vmatprep.subr.mxu0 0.0
  %4718 = vmatpush1.msra.mxu0 0.0
  %4719 = vmatprep.subr.mxu0 0.0
  %4720 = vmatpush1.msra.mxu0 0.0
  %4721 = vmatprep.subr.mxu0 0.0
  %4722 = vmatpush1.msra.mxu0 %v2383
  %4723 = vmatprep.subr.mxu0 0.0
  %4724 = vmatpush2.msra.mxu0 0.0
  %4725 = vmatprep.subr.mxu0 0.0
  %4726 = vmatpush2.msra.mxu0 0.0
  %4727 = vmatprep.subr.mxu0 0.0
  %4728 = vmatpush2.msra.mxu0 0.0
  %4729 = vmatprep.subr.mxu0 0.0
  %4730 = vmatpush2.msra.mxu0 0.0
  %4731 = vmatprep.subr.mxu0 0.0
  %4732 = vmatpush2.msra.mxu0 0.0
  %4733 = vmatprep.subr.mxu0 0.0
  %4734 = vmatpush2.msra.mxu0 0.0
  %4735 = vmatprep.subr.mxu0 0.0
  %4736 = vmatpush2.msra.mxu0 0.0
  %4737 = vmatprep.subr.mxu0 0.0
  %4738 = vmatpush2.msra.mxu0 0.0
  %4739 = vmatprep.subr.mxu0 0.0
  %4740 = vmatpush2.msra.mxu0 0.0
  %4741 = vmatprep.subr.mxu0 0.0
  %4742 = vmatpush2.msra.mxu0 0.0
  %4743 = vmatprep.subr.mxu0 0.0
  %4744 = vmatpush2.msra.mxu0 0.0
  %4745 = vmatprep.subr.mxu0 0.0
  %4746 = vmatpush2.msra.mxu0 0.0
  %4747 = vmatprep.subr.mxu0 0.0
  %4748 = vmatpush2.msra.mxu0 0.0
  %4749 = vmatprep.subr.mxu0 0.0
  %4750 = vmatpush2.msra.mxu0 0.0
  %4751 = vmatprep.subr.mxu0 0.0
  %4752 = vmatpush2.msra.mxu0 0.0
  %4753 = vmatprep.subr.mxu0 0.0
  %4754 = vmatpush2.msra.mxu0 0.0
  %4755 = vmatprep.mubr.f32.mxu0 0.0
  %4756 = vmatmul.mubr.f32.gmra.mxu0 %v4096
  %v4757 = vpop.f32.mrf.mxu0
  %v4758 = vadd.f32 0.0, %v4757
  %v4759 = vpop.f32.mrf.mxu0
  %4760 = vdwg.mxu0
  %4761 = vmatprep.subr.mxu0 0.0
  %4762 = vmatpush1.msra.mxu0 0.0
  %4763 = vmatprep.subr.mxu0 0.0
  %4764 = vmatpush1.msra.mxu0 0.0
  %4765 = vmatprep.subr.mxu0 0.0
  %4766 = vmatpush1.msra.mxu0 0.0
  %4767 = vmatprep.subr.mxu0 0.0
  %4768 = vmatpush1.msra.mxu0 0.0
  %4769 = vmatprep.subr.mxu0 0.0
  %4770 = vmatpush1.msra.mxu0 0.0
  %4771 = vmatprep.subr.mxu0 0.0
  %4772 = vmatpush1.msra.mxu0 0.0
  %4773 = vmatprep.subr.mxu0 0.0
  %4774 = vmatpush1.msra.mxu0 0.0
  %4775 = vmatprep.subr.mxu0 0.0
  %4776 = vmatpush1.msra.mxu0 0.0
  %4777 = vmatprep.subr.mxu0 0.0
  %4778 = vmatpush1.msra.mxu0 0.0
  %4779 = vmatprep.subr.mxu0 0.0
  %4780 = vmatpush1.msra.mxu0 0.0
  %4781 = vmatprep.subr.mxu0 0.0
  %4782 = vmatpush1.msra.mxu0 0.0
  %4783 = vmatprep.subr.mxu0 0.0
  %4784 = vmatpush1.msra.mxu0 0.0
  %4785 = vmatprep.subr.mxu0 0.0
  %4786 = vmatpush1.msra.mxu0 0.0
  %4787 = vmatprep.subr.mxu0 0.0
  %4788 = vmatpush1.msra.mxu0 0.0
  %4789 = vmatprep.subr.mxu0 0.0
  %4790 = vmatpush1.msra.mxu0 0.0
  %4791 = vmatprep.subr.mxu0 0.0
  %4792 = vmatpush1.msra.mxu0 %v2456
  %4793 = vmatprep.subr.mxu0 0.0
  %4794 = vmatpush2.msra.mxu0 0.0
  %4795 = vmatprep.subr.mxu0 0.0
  %4796 = vmatpush2.msra.mxu0 0.0
  %4797 = vmatprep.subr.mxu0 0.0
  %4798 = vmatpush2.msra.mxu0 0.0
  %4799 = vmatprep.subr.mxu0 0.0
  %4800 = vmatpush2.msra.mxu0 0.0
  %4801 = vmatprep.subr.mxu0 0.0
  %4802 = vmatpush2.msra.mxu0 0.0
  %4803 = vmatprep.subr.mxu0 0.0
  %4804 = vmatpush2.msra.mxu0 0.0
  %4805 = vmatprep.subr.mxu0 0.0
  %4806 = vmatpush2.msra.mxu0 0.0
  %4807 = vmatprep.subr.mxu0 0.0
  %4808 = vmatpush2.msra.mxu0 0.0
  %4809 = vmatprep.subr.mxu0 0.0
  %4810 = vmatpush2.msra.mxu0 0.0
  %4811 = vmatprep.subr.mxu0 0.0
  %4812 = vmatpush2.msra.mxu0 0.0
  %4813 = vmatprep.subr.mxu0 0.0
  %4814 = vmatpush2.msra.mxu0 0.0
  %4815 = vmatprep.subr.mxu0 0.0
  %4816 = vmatpush2.msra.mxu0 0.0
  %4817 = vmatprep.subr.mxu0 0.0
  %4818 = vmatpush2.msra.mxu0 0.0
  %4819 = vmatprep.subr.mxu0 0.0
  %4820 = vmatpush2.msra.mxu0 0.0
  %4821 = vmatprep.subr.mxu0 0.0
  %4822 = vmatpush2.msra.mxu0 0.0
  %4823 = vmatprep.subr.mxu0 0.0
  %4824 = vmatpush2.msra.mxu0 0.0
  %4825 = vmatprep.mubr.f32.mxu0 0.0
  %4826 = vmatmul.mubr.f32.gmra.mxu0 %v4520
  %v4827 = vpop.f32.mrf.mxu0
  %v4828 = vadd.f32 %v4758, %v4827
  %v4829 = vpop.f32.mrf.mxu0
  %4830 = vdwg.mxu0
  %v4831 = vadd.f32 %v4828, %v2531
  %v4832 = vxor.u32 %v4831, 2147483648
  %v4833 = vmul.f32 %v4832, 1.442695
  %v4834 = vpow.pop %v4833
  %v4835 = vadd.f32 %v4834, 1.0
  %v4836 = vrcp.pop %v4835
  %v4837 = vmul.f32 1.0, %v4836
  %v4838 = vmul.f32 %v4837, 2.0
  %v4839 = vsub.f32 %v4838, 1.0
  %v4840 = vmul.f32 %v4837, %v4086
  %4842 = vrot.lane.b32.xlu0 %v4839, 118
  %v4843 = vpop.permute.xlu0 %4842
  %v4845 = vmul.f32 %v4837, %v4843
  %4847 = vrot.lane.b32.xlu0 %v4845, 5
  %v4848 = vpop.permute.xlu0 %4847
  %v4850 = vadd.f32 %v4840, %v4848
  %v4851 = vtanh.pop %v4850
  %4853 = vrot.lane.b32.xlu0 %v4851, 10
  %v4854 = vpop.permute.xlu0 %4853
  %v4856 = vmul.f32 %v4837, %v4854
  %4858 = vrot.lane.b32.xlu0 %v4856, 113
  %v4859 = vpop.permute.xlu0 %4858
  %v4860 = vsel %vm879, %v4859, 0
  %4862 = vmatprep.subr.mxu0 0.0
  %4863 = vmatpush1.msra.mxu0 0.0
  %4864 = vmatprep.subr.mxu0 0.0
  %4865 = vmatpush1.msra.mxu0 0.0
  %4866 = vmatprep.subr.mxu0 0.0
  %4867 = vmatpush1.msra.mxu0 0.0
  %4868 = vmatprep.subr.mxu0 0.0
  %4869 = vmatpush1.msra.mxu0 0.0
  %4870 = vmatprep.subr.mxu0 0.0
  %4871 = vmatpush1.msra.mxu0 0.0
  %4872 = vmatprep.subr.mxu0 0.0
  %4873 = vmatpush1.msra.mxu0 0.0
  %4874 = vmatprep.subr.mxu0 0.0
  %4875 = vmatpush1.msra.mxu0 0.0
  %4876 = vmatprep.subr.mxu0 0.0
  %4877 = vmatpush1.msra.mxu0 0.0
  %4878 = vmatprep.subr.mxu0 0.0
  %4879 = vmatpush1.msra.mxu0 0.0
  %4880 = vmatprep.subr.mxu0 0.0
  %4881 = vmatpush1.msra.mxu0 0.0
  %4882 = vmatprep.subr.mxu0 0.0
  %4883 = vmatpush1.msra.mxu0 0.0
  %4884 = vmatprep.subr.mxu0 0.0
  %4885 = vmatpush1.msra.mxu0 0.0
  %4886 = vmatprep.subr.mxu0 0.0
  %4887 = vmatpush1.msra.mxu0 0.0
  %4888 = vmatprep.subr.mxu0 0.0
  %4889 = vmatpush1.msra.mxu0 0.0
  %4890 = vmatprep.subr.mxu0 0.0
  %4891 = vmatpush1.msra.mxu0 0.0
  %4892 = vmatprep.subr.mxu0 0.0
  %4893 = vmatpush1.msra.mxu0 %v2568
  %4894 = vmatprep.subr.mxu0 0.0
  %4895 = vmatpush2.msra.mxu0 0.0
  %4896 = vmatprep.subr.mxu0 0.0
  %4897 = vmatpush2.msra.mxu0 0.0
  %4898 = vmatprep.subr.mxu0 0.0
  %4899 = vmatpush2.msra.mxu0 0.0
  %4900 = vmatprep.subr.mxu0 0.0
  %4901 = vmatpush2.msra.mxu0 0.0
  %4902 = vmatprep.subr.mxu0 0.0
  %4903 = vmatpush2.msra.mxu0 0.0
  %4904 = vmatprep.subr.mxu0 0.0
  %4905 = vmatpush2.msra.mxu0 0.0
  %4906 = vmatprep.subr.mxu0 0.0
  %4907 = vmatpush2.msra.mxu0 0.0
  %4908 = vmatprep.subr.mxu0 0.0
  %4909 = vmatpush2.msra.mxu0 0.0
  %4910 = vmatprep.subr.mxu0 0.0
  %4911 = vmatpush2.msra.mxu0 0.0
  %4912 = vmatprep.subr.mxu0 0.0
  %4913 = vmatpush2.msra.mxu0 0.0
  %4914 = vmatprep.subr.mxu0 0.0
  %4915 = vmatpush2.msra.mxu0 0.0
  %4916 = vmatprep.subr.mxu0 0.0
  %4917 = vmatpush2.msra.mxu0 0.0
  %4918 = vmatprep.subr.mxu0 0.0
  %4919 = vmatpush2.msra.mxu0 0.0
  %4920 = vmatprep.subr.mxu0 0.0
  %4921 = vmatpush2.msra.mxu0 0.0
  %4922 = vmatprep.subr.mxu0 0.0
  %4923 = vmatpush2.msra.mxu0 0.0
  %4924 = vmatprep.subr.mxu0 0.0
  %4925 = vmatpush2.msra.mxu0 0.0
  %4926 = vmatprep.mubr.f32.mxu0 0.0
  %4927 = vmatmul.mubr.f32.gmra.mxu0 %v4860
  %v4928 = vpop.f32.mrf.mxu0
  %v4929 = vadd.f32 %v2561, %v4928
  %v4930 = vpop.f32.mrf.mxu0
  %4931 = vdwg.mxu0
  %v4932 = vxor.u32 %v4929, 2147483648
  %v4933 = vmul.f32 %v4932, 1.442695
  %v4934 = vpow.pop %v4933
  %v4935 = vadd.f32 %v4934, 1.0
  %v4936 = vrcp.pop %v4935
  %v4937 = vmul.f32 1.0, %v4936
  %4939 = vrot.lane.b32.xlu0 %v4274, 113
  %v4940 = vpop.permute.xlu0 %4939
  %v4941 = vsel %vm879, %v4940, 0
  %4943 = vmatprep.subr.mxu0 0.0
  %4944 = vmatpush1.msra.mxu0 0.0
  %4945 = vmatprep.subr.mxu0 0.0
  %4946 = vmatpush1.msra.mxu0 0.0
  %4947 = vmatprep.subr.mxu0 0.0
  %4948 = vmatpush1.msra.mxu0 0.0
  %4949 = vmatprep.subr.mxu0 0.0
  %4950 = vmatpush1.msra.mxu0 0.0
  %4951 = vmatprep.subr.mxu0 0.0
  %4952 = vmatpush1.msra.mxu0 0.0
  %4953 = vmatprep.subr.mxu0 0.0
  %4954 = vmatpush1.msra.mxu0 0.0
  %4955 = vmatprep.subr.mxu0 0.0
  %4956 = vmatpush1.msra.mxu0 0.0
  %4957 = vmatprep.subr.mxu0 0.0
  %4958 = vmatpush1.msra.mxu0 0.0
  %4959 = vmatprep.subr.mxu0 0.0
  %4960 = vmatpush1.msra.mxu0 0.0
  %4961 = vmatprep.subr.mxu0 0.0
  %4962 = vmatpush1.msra.mxu0 0.0
  %4963 = vmatprep.subr.mxu0 0.0
  %4964 = vmatpush1.msra.mxu0 0.0
  %4965 = vmatprep.subr.mxu0 0.0
  %4966 = vmatpush1.msra.mxu0 0.0
  %4967 = vmatprep.subr.mxu0 0.0
  %4968 = vmatpush1.msra.mxu0 0.0
  %4969 = vmatprep.subr.mxu0 0.0
  %4970 = vmatpush1.msra.mxu0 0.0
  %4971 = vmatprep.subr.mxu0 0.0
  %4972 = vmatpush1.msra.mxu0 0.0
  %4973 = vmatprep.subr.mxu0 0.0
  %4974 = vmatpush1.msra.mxu0 %v885
  %4975 = vmatprep.subr.mxu0 0.0
  %4976 = vmatpush2.msra.mxu0 0.0
  %4977 = vmatprep.subr.mxu0 0.0
  %4978 = vmatpush2.msra.mxu0 0.0
  %4979 = vmatprep.subr.mxu0 0.0
  %4980 = vmatpush2.msra.mxu0 0.0
  %4981 = vmatprep.subr.mxu0 0.0
  %4982 = vmatpush2.msra.mxu0 0.0
  %4983 = vmatprep.subr.mxu0 0.0
  %4984 = vmatpush2.msra.mxu0 0.0
  %4985 = vmatprep.subr.mxu0 0.0
  %4986 = vmatpush2.msra.mxu0 0.0
  %4987 = vmatprep.subr.mxu0 0.0
  %4988 = vmatpush2.msra.mxu0 0.0
  %4989 = vmatprep.subr.mxu0 0.0
  %4990 = vmatpush2.msra.mxu0 0.0
  %4991 = vmatprep.subr.mxu0 0.0
  %4992 = vmatpush2.msra.mxu0 0.0
  %4993 = vmatprep.subr.mxu0 0.0
  %4994 = vmatpush2.msra.mxu0 0.0
  %4995 = vmatprep.subr.mxu0 0.0
  %4996 = vmatpush2.msra.mxu0 0.0
  %4997 = vmatprep.subr.mxu0 0.0
  %4998 = vmatpush2.msra.mxu0 0.0
  %4999 = vmatprep.subr.mxu0 0.0
  %5000 = vmatpush2.msra.mxu0 0.0
  %5001 = vmatprep.subr.mxu0 0.0
  %5002 = vmatpush2.msra.mxu0 0.0
  %5003 = vmatprep.subr.mxu0 0.0
  %5004 = vmatpush2.msra.mxu0 0.0
  %5005 = vmatprep.subr.mxu0 0.0
  %5006 = vmatpush2.msra.mxu0 0.0
  %5007 = vmatprep.mubr.f32.mxu0 0.0
  %5008 = vmatmul.mubr.f32.gmra.mxu0 %v4941
  %v5009 = vpop.f32.mrf.mxu0
  %v5010 = vadd.f32 0.0, %v5009
  %v5011 = vpop.f32.mrf.mxu0
  %5012 = vdwg.mxu0
  %v5013 = vadd.f32 %v876, %v5010
  %v5014 = vxor.u32 %v5013, 2147483648
  %v5015 = vmul.f32 %v5014, 1.442695
  %v5016 = vpow.pop %v5015
  %v5017 = vadd.f32 %v5016, 1.0
  %v5018 = vrcp.pop %v5017
  %v5019 = vmul.f32 1.0, %v5018
  %v5020 = vmul.f32 %v5019, 2.0
  %v5021 = vsub.f32 %v5020, 1.0
  %v5022 = vmul.f32 %v5019, %v4268
  %5024 = vrot.lane.b32.xlu0 %v5021, 118
  %v5025 = vpop.permute.xlu0 %5024
  %v5027 = vmul.f32 %v5019, %v5025
  %5029 = vrot.lane.b32.xlu0 %v5027, 5
  %v5030 = vpop.permute.xlu0 %5029
  %v5032 = vadd.f32 %v5022, %v5030
  %v5033 = vtanh.pop %v5032
  %5035 = vrot.lane.b32.xlu0 %v5033, 10
  %v5036 = vpop.permute.xlu0 %5035
  %v5038 = vmul.f32 %v5019, %v5036
  %5039 = vmatprep.subr.mxu0 0.0
  %5040 = vmatpush1.msra.mxu0 0.0
  %5041 = vmatprep.subr.mxu0 0.0
  %5042 = vmatpush1.msra.mxu0 0.0
  %5043 = vmatprep.subr.mxu0 0.0
  %5044 = vmatpush1.msra.mxu0 0.0
  %5045 = vmatprep.subr.mxu0 0.0
  %5046 = vmatpush1.msra.mxu0 0.0
  %5047 = vmatprep.subr.mxu0 0.0
  %5048 = vmatpush1.msra.mxu0 0.0
  %5049 = vmatprep.subr.mxu0 0.0
  %5050 = vmatpush1.msra.mxu0 0.0
  %5051 = vmatprep.subr.mxu0 0.0
  %5052 = vmatpush1.msra.mxu0 0.0
  %5053 = vmatprep.subr.mxu0 0.0
  %5054 = vmatpush1.msra.mxu0 0.0
  %5055 = vmatprep.subr.mxu0 0.0
  %5056 = vmatpush1.msra.mxu0 0.0
  %5057 = vmatprep.subr.mxu0 0.0
  %5058 = vmatpush1.msra.mxu0 0.0
  %5059 = vmatprep.subr.mxu0 0.0
  %5060 = vmatpush1.msra.mxu0 0.0
  %5061 = vmatprep.subr.mxu0 0.0
  %5062 = vmatpush1.msra.mxu0 0.0
  %5063 = vmatprep.subr.mxu0 0.0
  %5064 = vmatpush1.msra.mxu0 0.0
  %5065 = vmatprep.subr.mxu0 0.0
  %5066 = vmatpush1.msra.mxu0 0.0
  %5067 = vmatprep.subr.mxu0 0.0
  %5068 = vmatpush1.msra.mxu0 0.0
  %5069 = vmatprep.subr.mxu0 0.0
  %5070 = vmatpush1.msra.mxu0 %v1085
  %5071 = vmatprep.subr.mxu0 0.0
  %5072 = vmatpush2.msra.mxu0 0.0
  %5073 = vmatprep.subr.mxu0 0.0
  %5074 = vmatpush2.msra.mxu0 0.0
  %5075 = vmatprep.subr.mxu0 0.0
  %5076 = vmatpush2.msra.mxu0 0.0
  %5077 = vmatprep.subr.mxu0 0.0
  %5078 = vmatpush2.msra.mxu0 0.0
  %5079 = vmatprep.subr.mxu0 0.0
  %5080 = vmatpush2.msra.mxu0 0.0
  %5081 = vmatprep.subr.mxu0 0.0
  %5082 = vmatpush2.msra.mxu0 0.0
  %5083 = vmatprep.subr.mxu0 0.0
  %5084 = vmatpush2.msra.mxu0 0.0
  %5085 = vmatprep.subr.mxu0 0.0
  %5086 = vmatpush2.msra.mxu0 0.0
  %5087 = vmatprep.subr.mxu0 0.0
  %5088 = vmatpush2.msra.mxu0 0.0
  %5089 = vmatprep.subr.mxu0 0.0
  %5090 = vmatpush2.msra.mxu0 0.0
  %5091 = vmatprep.subr.mxu0 0.0
  %5092 = vmatpush2.msra.mxu0 0.0
  %5093 = vmatprep.subr.mxu0 0.0
  %5094 = vmatpush2.msra.mxu0 0.0
  %5095 = vmatprep.subr.mxu0 0.0
  %5096 = vmatpush2.msra.mxu0 0.0
  %5097 = vmatprep.subr.mxu0 0.0
  %5098 = vmatpush2.msra.mxu0 0.0
  %5099 = vmatprep.subr.mxu0 0.0
  %5100 = vmatpush2.msra.mxu0 0.0
  %5101 = vmatprep.subr.mxu0 0.0
  %5102 = vmatpush2.msra.mxu0 0.0
  %5103 = vmatprep.mubr.f32.mxu0 0.0
  %5104 = vmatmul.mubr.f32.gmra.mxu0 %v4444
  %v5105 = vpop.f32.mrf.mxu0
  %v5106 = vadd.f32 0.0, %v5105
  %v5107 = vpop.f32.mrf.mxu0
  %5108 = vdwg.mxu0
  %5109 = vmatprep.subr.mxu0 0.0
  %5110 = vmatpush1.msra.mxu0 0.0
  %5111 = vmatprep.subr.mxu0 0.0
  %5112 = vmatpush1.msra.mxu0 0.0
  %5113 = vmatprep.subr.mxu0 0.0
  %5114 = vmatpush1.msra.mxu0 0.0
  %5115 = vmatprep.subr.mxu0 0.0
  %5116 = vmatpush1.msra.mxu0 0.0
  %5117 = vmatprep.subr.mxu0 0.0
  %5118 = vmatpush1.msra.mxu0 0.0
  %5119 = vmatprep.subr.mxu0 0.0
  %5120 = vmatpush1.msra.mxu0 0.0
  %5121 = vmatprep.subr.mxu0 0.0
  %5122 = vmatpush1.msra.mxu0 0.0
  %5123 = vmatprep.subr.mxu0 0.0
  %5124 = vmatpush1.msra.mxu0 0.0
  %5125 = vmatprep.subr.mxu0 0.0
  %5126 = vmatpush1.msra.mxu0 0.0
  %5127 = vmatprep.subr.mxu0 0.0
  %5128 = vmatpush1.msra.mxu0 0.0
  %5129 = vmatprep.subr.mxu0 0.0
  %5130 = vmatpush1.msra.mxu0 0.0
  %5131 = vmatprep.subr.mxu0 0.0
  %5132 = vmatpush1.msra.mxu0 0.0
  %5133 = vmatprep.subr.mxu0 0.0
  %5134 = vmatpush1.msra.mxu0 0.0
  %5135 = vmatprep.subr.mxu0 0.0
  %5136 = vmatpush1.msra.mxu0 0.0
  %5137 = vmatprep.subr.mxu0 0.0
  %5138 = vmatpush1.msra.mxu0 0.0
  %5139 = vmatprep.subr.mxu0 0.0
  %5140 = vmatpush1.msra.mxu0 %v1158
  %5141 = vmatprep.subr.mxu0 0.0
  %5142 = vmatpush2.msra.mxu0 0.0
  %5143 = vmatprep.subr.mxu0 0.0
  %5144 = vmatpush2.msra.mxu0 0.0
  %5145 = vmatprep.subr.mxu0 0.0
  %5146 = vmatpush2.msra.mxu0 0.0
  %5147 = vmatprep.subr.mxu0 0.0
  %5148 = vmatpush2.msra.mxu0 0.0
  %5149 = vmatprep.subr.mxu0 0.0
  %5150 = vmatpush2.msra.mxu0 0.0
  %5151 = vmatprep.subr.mxu0 0.0
  %5152 = vmatpush2.msra.mxu0 0.0
  %5153 = vmatprep.subr.mxu0 0.0
  %5154 = vmatpush2.msra.mxu0 0.0
  %5155 = vmatprep.subr.mxu0 0.0
  %5156 = vmatpush2.msra.mxu0 0.0
  %5157 = vmatprep.subr.mxu0 0.0
  %5158 = vmatpush2.msra.mxu0 0.0
  %5159 = vmatprep.subr.mxu0 0.0
  %5160 = vmatpush2.msra.mxu0 0.0
  %5161 = vmatprep.subr.mxu0 0.0
  %5162 = vmatpush2.msra.mxu0 0.0
  %5163 = vmatprep.subr.mxu0 0.0
  %5164 = vmatpush2.msra.mxu0 0.0
  %5165 = vmatprep.subr.mxu0 0.0
  %5166 = vmatpush2.msra.mxu0 0.0
  %5167 = vmatprep.subr.mxu0 0.0
  %5168 = vmatpush2.msra.mxu0 0.0
  %5169 = vmatprep.subr.mxu0 0.0
  %5170 = vmatpush2.msra.mxu0 0.0
  %5171 = vmatprep.subr.mxu0 0.0
  %5172 = vmatpush2.msra.mxu0 0.0
  %5173 = vmatprep.mubr.f32.mxu0 0.0
  %5174 = vmatmul.mubr.f32.gmra.mxu0 %v4941
  %v5175 = vpop.f32.mrf.mxu0
  %v5176 = vadd.f32 %v5106, %v5175
  %v5177 = vpop.f32.mrf.mxu0
  %5178 = vdwg.mxu0
  %v5179 = vadd.f32 %v5176, %v1233
  %v5180 = vxor.u32 %v5179, 2147483648
  %v5181 = vmul.f32 %v5180, 1.442695
  %v5182 = vpow.pop %v5181
  %v5183 = vadd.f32 %v5182, 1.0
  %v5184 = vrcp.pop %v5183
  %v5185 = vmul.f32 1.0, %v5184
  %v5186 = vmul.f32 %v5185, 2.0
  %v5187 = vsub.f32 %v5186, 1.0
  %v5188 = vmul.f32 %v5185, %v4434
  %5190 = vrot.lane.b32.xlu0 %v5187, 118
  %v5191 = vpop.permute.xlu0 %5190
  %v5193 = vmul.f32 %v5185, %v5191
  %5195 = vrot.lane.b32.xlu0 %v5193, 5
  %v5196 = vpop.permute.xlu0 %5195
  %v5198 = vadd.f32 %v5188, %v5196
  %v5199 = vtanh.pop %v5198
  %5201 = vrot.lane.b32.xlu0 %v5199, 10
  %v5202 = vpop.permute.xlu0 %5201
  %v5204 = vmul.f32 %v5185, %v5202
  %5206 = vrot.lane.b32.xlu0 %v5204, 113
  %v5207 = vpop.permute.xlu0 %5206
  %v5208 = vsel %vm879, %v5207, 0
  %5210 = vmatprep.subr.mxu0 0.0
  %5211 = vmatpush1.msra.mxu0 0.0
  %5212 = vmatprep.subr.mxu0 0.0
  %5213 = vmatpush1.msra.mxu0 0.0
  %5214 = vmatprep.subr.mxu0 0.0
  %5215 = vmatpush1.msra.mxu0 0.0
  %5216 = vmatprep.subr.mxu0 0.0
  %5217 = vmatpush1.msra.mxu0 0.0
  %5218 = vmatprep.subr.mxu0 0.0
  %5219 = vmatpush1.msra.mxu0 0.0
  %5220 = vmatprep.subr.mxu0 0.0
  %5221 = vmatpush1.msra.mxu0 0.0
  %5222 = vmatprep.subr.mxu0 0.0
  %5223 = vmatpush1.msra.mxu0 0.0
  %5224 = vmatprep.subr.mxu0 0.0
  %5225 = vmatpush1.msra.mxu0 0.0
  %5226 = vmatprep.subr.mxu0 0.0
  %5227 = vmatpush1.msra.mxu0 0.0
  %5228 = vmatprep.subr.mxu0 0.0
  %5229 = vmatpush1.msra.mxu0 0.0
  %5230 = vmatprep.subr.mxu0 0.0
  %5231 = vmatpush1.msra.mxu0 0.0
  %5232 = vmatprep.subr.mxu0 0.0
  %5233 = vmatpush1.msra.mxu0 0.0
  %5234 = vmatprep.subr.mxu0 0.0
  %5235 = vmatpush1.msra.mxu0 0.0
  %5236 = vmatprep.subr.mxu0 0.0
  %5237 = vmatpush1.msra.mxu0 0.0
  %5238 = vmatprep.subr.mxu0 0.0
  %5239 = vmatpush1.msra.mxu0 0.0
  %5240 = vmatprep.subr.mxu0 0.0
  %5241 = vmatpush1.msra.mxu0 %v1270
  %5242 = vmatprep.subr.mxu0 0.0
  %5243 = vmatpush2.msra.mxu0 0.0
  %5244 = vmatprep.subr.mxu0 0.0
  %5245 = vmatpush2.msra.mxu0 0.0
  %5246 = vmatprep.subr.mxu0 0.0
  %5247 = vmatpush2.msra.mxu0 0.0
  %5248 = vmatprep.subr.mxu0 0.0
  %5249 = vmatpush2.msra.mxu0 0.0
  %5250 = vmatprep.subr.mxu0 0.0
  %5251 = vmatpush2.msra.mxu0 0.0
  %5252 = vmatprep.subr.mxu0 0.0
  %5253 = vmatpush2.msra.mxu0 0.0
  %5254 = vmatprep.subr.mxu0 0.0
  %5255 = vmatpush2.msra.mxu0 0.0
  %5256 = vmatprep.subr.mxu0 0.0
  %5257 = vmatpush2.msra.mxu0 0.0
  %5258 = vmatprep.subr.mxu0 0.0
  %5259 = vmatpush2.msra.mxu0 0.0
  %5260 = vmatprep.subr.mxu0 0.0
  %5261 = vmatpush2.msra.mxu0 0.0
  %5262 = vmatprep.subr.mxu0 0.0
  %5263 = vmatpush2.msra.mxu0 0.0
  %5264 = vmatprep.subr.mxu0 0.0
  %5265 = vmatpush2.msra.mxu0 0.0
  %5266 = vmatprep.subr.mxu0 0.0
  %5267 = vmatpush2.msra.mxu0 0.0
  %5268 = vmatprep.subr.mxu0 0.0
  %5269 = vmatpush2.msra.mxu0 0.0
  %5270 = vmatprep.subr.mxu0 0.0
  %5271 = vmatpush2.msra.mxu0 0.0
  %5272 = vmatprep.subr.mxu0 0.0
  %5273 = vmatpush2.msra.mxu0 0.0
  %5274 = vmatprep.mubr.f32.mxu0 0.0
  %5275 = vmatmul.mubr.f32.gmra.mxu0 %v5208
  %v5276 = vpop.f32.mrf.mxu0
  %v5277 = vadd.f32 %v1263, %v5276
  %v5278 = vpop.f32.mrf.mxu0
  %5279 = vdwg.mxu0
  %v5280 = vmax.f32 %v5277, 0.0
  %5282 = vrot.lane.b32.xlu0 %v4690, 113
  %v5283 = vpop.permute.xlu0 %5282
  %v5284 = vsel %vm879, %v5283, 0
  %5286 = vmatprep.subr.mxu0 0.0
  %5287 = vmatpush1.msra.mxu0 0.0
  %5288 = vmatprep.subr.mxu0 0.0
  %5289 = vmatpush1.msra.mxu0 0.0
  %5290 = vmatprep.subr.mxu0 0.0
  %5291 = vmatpush1.msra.mxu0 0.0
  %5292 = vmatprep.subr.mxu0 0.0
  %5293 = vmatpush1.msra.mxu0 0.0
  %5294 = vmatprep.subr.mxu0 0.0
  %5295 = vmatpush1.msra.mxu0 0.0
  %5296 = vmatprep.subr.mxu0 0.0
  %5297 = vmatpush1.msra.mxu0 0.0
  %5298 = vmatprep.subr.mxu0 0.0
  %5299 = vmatpush1.msra.mxu0 0.0
  %5300 = vmatprep.subr.mxu0 0.0
  %5301 = vmatpush1.msra.mxu0 0.0
  %5302 = vmatprep.subr.mxu0 0.0
  %5303 = vmatpush1.msra.mxu0 0.0
  %5304 = vmatprep.subr.mxu0 0.0
  %5305 = vmatpush1.msra.mxu0 0.0
  %5306 = vmatprep.subr.mxu0 0.0
  %5307 = vmatpush1.msra.mxu0 0.0
  %5308 = vmatprep.subr.mxu0 0.0
  %5309 = vmatpush1.msra.mxu0 0.0
  %5310 = vmatprep.subr.mxu0 0.0
  %5311 = vmatpush1.msra.mxu0 0.0
  %5312 = vmatprep.subr.mxu0 0.0
  %5313 = vmatpush1.msra.mxu0 0.0
  %5314 = vmatprep.subr.mxu0 0.0
  %5315 = vmatpush1.msra.mxu0 0.0
  %5316 = vmatprep.subr.mxu0 0.0
  %5317 = vmatpush1.msra.mxu0 %v1687
  %5318 = vmatprep.subr.mxu0 0.0
  %5319 = vmatpush2.msra.mxu0 0.0
  %5320 = vmatprep.subr.mxu0 0.0
  %5321 = vmatpush2.msra.mxu0 0.0
  %5322 = vmatprep.subr.mxu0 0.0
  %5323 = vmatpush2.msra.mxu0 0.0
  %5324 = vmatprep.subr.mxu0 0.0
  %5325 = vmatpush2.msra.mxu0 0.0
  %5326 = vmatprep.subr.mxu0 0.0
  %5327 = vmatpush2.msra.mxu0 0.0
  %5328 = vmatprep.subr.mxu0 0.0
  %5329 = vmatpush2.msra.mxu0 0.0
  %5330 = vmatprep.subr.mxu0 0.0
  %5331 = vmatpush2.msra.mxu0 0.0
  %5332 = vmatprep.subr.mxu0 0.0
  %5333 = vmatpush2.msra.mxu0 0.0
  %5334 = vmatprep.subr.mxu0 0.0
  %5335 = vmatpush2.msra.mxu0 0.0
  %5336 = vmatprep.subr.mxu0 0.0
  %5337 = vmatpush2.msra.mxu0 0.0
  %5338 = vmatprep.subr.mxu0 0.0
  %5339 = vmatpush2.msra.mxu0 0.0
  %5340 = vmatprep.subr.mxu0 0.0
  %5341 = vmatpush2.msra.mxu0 0.0
  %5342 = vmatprep.subr.mxu0 0.0
  %5343 = vmatpush2.msra.mxu0 0.0
  %5344 = vmatprep.subr.mxu0 0.0
  %5345 = vmatpush2.msra.mxu0 0.0
  %5346 = vmatprep.subr.mxu0 0.0
  %5347 = vmatpush2.msra.mxu0 0.0
  %5348 = vmatprep.subr.mxu0 0.0
  %5349 = vmatpush2.msra.mxu0 0.0
  %5350 = vmatprep.mubr.f32.mxu0 0.0
  %5351 = vmatmul.mubr.f32.gmra.mxu0 %v5284
  %v5352 = vpop.f32.mrf.mxu0
  %v5353 = vadd.f32 0.0, %v5352
  %v5354 = vpop.f32.mrf.mxu0
  %5355 = vdwg.mxu0
  %v5357 = vsel %vm879, %v4516, 0
  %5359 = vmatprep.subr.mxu0 0.0
  %5360 = vmatpush1.msra.mxu0 0.0
  %5361 = vmatprep.subr.mxu0 0.0
  %5362 = vmatpush1.msra.mxu0 0.0
  %5363 = vmatprep.subr.mxu0 0.0
  %5364 = vmatpush1.msra.mxu0 0.0
  %5365 = vmatprep.subr.mxu0 0.0
  %5366 = vmatpush1.msra.mxu0 0.0
  %5367 = vmatprep.subr.mxu0 0.0
  %5368 = vmatpush1.msra.mxu0 0.0
  %5369 = vmatprep.subr.mxu0 0.0
  %5370 = vmatpush1.msra.mxu0 0.0
  %5371 = vmatprep.subr.mxu0 0.0
  %5372 = vmatpush1.msra.mxu0 0.0
  %5373 = vmatprep.subr.mxu0 0.0
  %5374 = vmatpush1.msra.mxu0 0.0
  %5375 = vmatprep.subr.mxu0 0.0
  %5376 = vmatpush1.msra.mxu0 0.0
  %5377 = vmatprep.subr.mxu0 0.0
  %5378 = vmatpush1.msra.mxu0 0.0
  %5379 = vmatprep.subr.mxu0 0.0
  %5380 = vmatpush1.msra.mxu0 0.0
  %5381 = vmatprep.subr.mxu0 0.0
  %5382 = vmatpush1.msra.mxu0 0.0
  %5383 = vmatprep.subr.mxu0 0.0
  %5384 = vmatpush1.msra.mxu0 0.0
  %5385 = vmatprep.subr.mxu0 0.0
  %5386 = vmatpush1.msra.mxu0 0.0
  %5387 = vmatprep.subr.mxu0 0.0
  %5388 = vmatpush1.msra.mxu0 0.0
  %5389 = vmatprep.subr.mxu0 0.0
  %5390 = vmatpush1.msra.mxu0 %v1763
  %5391 = vmatprep.subr.mxu0 0.0
  %5392 = vmatpush2.msra.mxu0 0.0
  %5393 = vmatprep.subr.mxu0 0.0
  %5394 = vmatpush2.msra.mxu0 0.0
  %5395 = vmatprep.subr.mxu0 0.0
  %5396 = vmatpush2.msra.mxu0 0.0
  %5397 = vmatprep.subr.mxu0 0.0
  %5398 = vmatpush2.msra.mxu0 0.0
  %5399 = vmatprep.subr.mxu0 0.0
  %5400 = vmatpush2.msra.mxu0 0.0
  %5401 = vmatprep.subr.mxu0 0.0
  %5402 = vmatpush2.msra.mxu0 0.0
  %5403 = vmatprep.subr.mxu0 0.0
  %5404 = vmatpush2.msra.mxu0 0.0
  %5405 = vmatprep.subr.mxu0 0.0
  %5406 = vmatpush2.msra.mxu0 0.0
  %5407 = vmatprep.subr.mxu0 0.0
  %5408 = vmatpush2.msra.mxu0 0.0
  %5409 = vmatprep.subr.mxu0 0.0
  %5410 = vmatpush2.msra.mxu0 0.0
  %5411 = vmatprep.subr.mxu0 0.0
  %5412 = vmatpush2.msra.mxu0 0.0
  %5413 = vmatprep.subr.mxu0 0.0
  %5414 = vmatpush2.msra.mxu0 0.0
  %5415 = vmatprep.subr.mxu0 0.0
  %5416 = vmatpush2.msra.mxu0 0.0
  %5417 = vmatprep.subr.mxu0 0.0
  %5418 = vmatpush2.msra.mxu0 0.0
  %5419 = vmatprep.subr.mxu0 0.0
  %5420 = vmatpush2.msra.mxu0 0.0
  %5421 = vmatprep.subr.mxu0 0.0
  %5422 = vmatpush2.msra.mxu0 0.0
  %5423 = vmatprep.mubr.f32.mxu0 0.0
  %5424 = vmatmul.mubr.f32.gmra.mxu0 %v5357
  %v5425 = vpop.f32.mrf.mxu0
  %v5426 = vadd.f32 %v5353, %v5425
  %v5427 = vpop.f32.mrf.mxu0
  %5428 = vdwg.mxu0
  %v5429 = vadd.f32 %v5426, %v1838
  %v5430 = vxor.u32 %v5429, 2147483648
  %v5431 = vmul.f32 %v5430, 1.442695
  %v5432 = vpow.pop %v5431
  %v5433 = vadd.f32 %v5432, 1.0
  %v5434 = vrcp.pop %v5433
  %v5435 = vmul.f32 1.0, %v5434
  %v5436 = vmul.f32 %v5435, 2.0
  %v5437 = vsub.f32 %v5436, 1.0
  %v5438 = vmul.f32 %v5435, %v4684
  %5440 = vrot.lane.b32.xlu0 %v5437, 118
  %v5441 = vpop.permute.xlu0 %5440
  %v5443 = vmul.f32 %v5435, %v5441
  %5445 = vrot.lane.b32.xlu0 %v5443, 5
  %v5446 = vpop.permute.xlu0 %5445
  %v5448 = vadd.f32 %v5438, %v5446
  %v5449 = vtanh.pop %v5448
  %5451 = vrot.lane.b32.xlu0 %v5449, 10
  %v5452 = vpop.permute.xlu0 %5451
  %v5454 = vmul.f32 %v5435, %v5452
  %5455 = vmatprep.subr.mxu0 0.0
  %5456 = vmatpush1.msra.mxu0 0.0
  %5457 = vmatprep.subr.mxu0 0.0
  %5458 = vmatpush1.msra.mxu0 0.0
  %5459 = vmatprep.subr.mxu0 0.0
  %5460 = vmatpush1.msra.mxu0 0.0
  %5461 = vmatprep.subr.mxu0 0.0
  %5462 = vmatpush1.msra.mxu0 0.0
  %5463 = vmatprep.subr.mxu0 0.0
  %5464 = vmatpush1.msra.mxu0 0.0
  %5465 = vmatprep.subr.mxu0 0.0
  %5466 = vmatpush1.msra.mxu0 0.0
  %5467 = vmatprep.subr.mxu0 0.0
  %5468 = vmatpush1.msra.mxu0 0.0
  %5469 = vmatprep.subr.mxu0 0.0
  %5470 = vmatpush1.msra.mxu0 0.0
  %5471 = vmatprep.subr.mxu0 0.0
  %5472 = vmatpush1.msra.mxu0 0.0
  %5473 = vmatprep.subr.mxu0 0.0
  %5474 = vmatpush1.msra.mxu0 0.0
  %5475 = vmatprep.subr.mxu0 0.0
  %5476 = vmatpush1.msra.mxu0 0.0
  %5477 = vmatprep.subr.mxu0 0.0
  %5478 = vmatpush1.msra.mxu0 0.0
  %5479 = vmatprep.subr.mxu0 0.0
  %5480 = vmatpush1.msra.mxu0 0.0
  %5481 = vmatprep.subr.mxu0 0.0
  %5482 = vmatpush1.msra.mxu0 0.0
  %5483 = vmatprep.subr.mxu0 0.0
  %5484 = vmatpush1.msra.mxu0 0.0
  %5485 = vmatprep.subr.mxu0 0.0
  %5486 = vmatpush1.msra.mxu0 %v2383
  %5487 = vmatprep.subr.mxu0 0.0
  %5488 = vmatpush2.msra.mxu0 0.0
  %5489 = vmatprep.subr.mxu0 0.0
  %5490 = vmatpush2.msra.mxu0 0.0
  %5491 = vmatprep.subr.mxu0 0.0
  %5492 = vmatpush2.msra.mxu0 0.0
  %5493 = vmatprep.subr.mxu0 0.0
  %5494 = vmatpush2.msra.mxu0 0.0
  %5495 = vmatprep.subr.mxu0 0.0
  %5496 = vmatpush2.msra.mxu0 0.0
  %5497 = vmatprep.subr.mxu0 0.0
  %5498 = vmatpush2.msra.mxu0 0.0
  %5499 = vmatprep.subr.mxu0 0.0
  %5500 = vmatpush2.msra.mxu0 0.0
  %5501 = vmatprep.subr.mxu0 0.0
  %5502 = vmatpush2.msra.mxu0 0.0
  %5503 = vmatprep.subr.mxu0 0.0
  %5504 = vmatpush2.msra.mxu0 0.0
  %5505 = vmatprep.subr.mxu0 0.0
  %5506 = vmatpush2.msra.mxu0 0.0
  %5507 = vmatprep.subr.mxu0 0.0
  %5508 = vmatpush2.msra.mxu0 0.0
  %5509 = vmatprep.subr.mxu0 0.0
  %5510 = vmatpush2.msra.mxu0 0.0
  %5511 = vmatprep.subr.mxu0 0.0
  %5512 = vmatpush2.msra.mxu0 0.0
  %5513 = vmatprep.subr.mxu0 0.0
  %5514 = vmatpush2.msra.mxu0 0.0
  %5515 = vmatprep.subr.mxu0 0.0
  %5516 = vmatpush2.msra.mxu0 0.0
  %5517 = vmatprep.subr.mxu0 0.0
  %5518 = vmatpush2.msra.mxu0 0.0
  %5519 = vmatprep.mubr.f32.mxu0 0.0
  %5520 = vmatmul.mubr.f32.gmra.mxu0 %v4860
  %v5521 = vpop.f32.mrf.mxu0
  %v5522 = vadd.f32 0.0, %v5521
  %v5523 = vpop.f32.mrf.mxu0
  %5524 = vdwg.mxu0
  %5525 = vmatprep.subr.mxu0 0.0
  %5526 = vmatpush1.msra.mxu0 0.0
  %5527 = vmatprep.subr.mxu0 0.0
  %5528 = vmatpush1.msra.mxu0 0.0
  %5529 = vmatprep.subr.mxu0 0.0
  %5530 = vmatpush1.msra.mxu0 0.0
  %5531 = vmatprep.subr.mxu0 0.0
  %5532 = vmatpush1.msra.mxu0 0.0
  %5533 = vmatprep.subr.mxu0 0.0
  %5534 = vmatpush1.msra.mxu0 0.0
  %5535 = vmatprep.subr.mxu0 0.0
  %5536 = vmatpush1.msra.mxu0 0.0
  %5537 = vmatprep.subr.mxu0 0.0
  %5538 = vmatpush1.msra.mxu0 0.0
  %5539 = vmatprep.subr.mxu0 0.0
  %5540 = vmatpush1.msra.mxu0 0.0
  %5541 = vmatprep.subr.mxu0 0.0
  %5542 = vmatpush1.msra.mxu0 0.0
  %5543 = vmatprep.subr.mxu0 0.0
  %5544 = vmatpush1.msra.mxu0 0.0
  %5545 = vmatprep.subr.mxu0 0.0
  %5546 = vmatpush1.msra.mxu0 0.0
  %5547 = vmatprep.subr.mxu0 0.0
  %5548 = vmatpush1.msra.mxu0 0.0
  %5549 = vmatprep.subr.mxu0 0.0
  %5550 = vmatpush1.msra.mxu0 0.0
  %5551 = vmatprep.subr.mxu0 0.0
  %5552 = vmatpush1.msra.mxu0 0.0
  %5553 = vmatprep.subr.mxu0 0.0
  %5554 = vmatpush1.msra.mxu0 0.0
  %5555 = vmatprep.subr.mxu0 0.0
  %5556 = vmatpush1.msra.mxu0 %v2456
  %5557 = vmatprep.subr.mxu0 0.0
  %5558 = vmatpush2.msra.mxu0 0.0
  %5559 = vmatprep.subr.mxu0 0.0
  %5560 = vmatpush2.msra.mxu0 0.0
  %5561 = vmatprep.subr.mxu0 0.0
  %5562 = vmatpush2.msra.mxu0 0.0
  %5563 = vmatprep.subr.mxu0 0.0
  %5564 = vmatpush2.msra.mxu0 0.0
  %5565 = vmatprep.subr.mxu0 0.0
  %5566 = vmatpush2.msra.mxu0 0.0
  %5567 = vmatprep.subr.mxu0 0.0
  %5568 = vmatpush2.msra.mxu0 0.0
  %5569 = vmatprep.subr.mxu0 0.0
  %5570 = vmatpush2.msra.mxu0 0.0
  %5571 = vmatprep.subr.mxu0 0.0
  %5572 = vmatpush2.msra.mxu0 0.0
  %5573 = vmatprep.subr.mxu0 0.0
  %5574 = vmatpush2.msra.mxu0 0.0
  %5575 = vmatprep.subr.mxu0 0.0
  %5576 = vmatpush2.msra.mxu0 0.0
  %5577 = vmatprep.subr.mxu0 0.0
  %5578 = vmatpush2.msra.mxu0 0.0
  %5579 = vmatprep.subr.mxu0 0.0
  %5580 = vmatpush2.msra.mxu0 0.0
  %5581 = vmatprep.subr.mxu0 0.0
  %5582 = vmatpush2.msra.mxu0 0.0
  %5583 = vmatprep.subr.mxu0 0.0
  %5584 = vmatpush2.msra.mxu0 0.0
  %5585 = vmatprep.subr.mxu0 0.0
  %5586 = vmatpush2.msra.mxu0 0.0
  %5587 = vmatprep.subr.mxu0 0.0
  %5588 = vmatpush2.msra.mxu0 0.0
  %5589 = vmatprep.mubr.f32.mxu0 0.0
  %5590 = vmatmul.mubr.f32.gmra.mxu0 %v5284
  %v5591 = vpop.f32.mrf.mxu0
  %v5592 = vadd.f32 %v5522, %v5591
  %v5593 = vpop.f32.mrf.mxu0
  %5594 = vdwg.mxu0
  %v5595 = vadd.f32 %v5592, %v2531
  %v5596 = vxor.u32 %v5595, 2147483648
  %v5597 = vmul.f32 %v5596, 1.442695
  %v5598 = vpow.pop %v5597
  %v5599 = vadd.f32 %v5598, 1.0
  %v5600 = vrcp.pop %v5599
  %v5601 = vmul.f32 1.0, %v5600
  %v5602 = vmul.f32 %v5601, 2.0
  %v5603 = vsub.f32 %v5602, 1.0
  %v5604 = vmul.f32 %v5601, %v4850
  %5606 = vrot.lane.b32.xlu0 %v5603, 118
  %v5607 = vpop.permute.xlu0 %5606
  %v5609 = vmul.f32 %v5601, %v5607
  %5611 = vrot.lane.b32.xlu0 %v5609, 5
  %v5612 = vpop.permute.xlu0 %5611
  %v5614 = vadd.f32 %v5604, %v5612
  %v5615 = vtanh.pop %v5614
  %5617 = vrot.lane.b32.xlu0 %v5615, 10
  %v5618 = vpop.permute.xlu0 %5617
  %v5620 = vmul.f32 %v5601, %v5618
  %5622 = vrot.lane.b32.xlu0 %v5620, 113
  %v5623 = vpop.permute.xlu0 %5622
  %v5624 = vsel %vm879, %v5623, 0
  %5626 = vmatprep.subr.mxu0 0.0
  %5627 = vmatpush1.msra.mxu0 0.0
  %5628 = vmatprep.subr.mxu0 0.0
  %5629 = vmatpush1.msra.mxu0 0.0
  %5630 = vmatprep.subr.mxu0 0.0
  %5631 = vmatpush1.msra.mxu0 0.0
  %5632 = vmatprep.subr.mxu0 0.0
  %5633 = vmatpush1.msra.mxu0 0.0
  %5634 = vmatprep.subr.mxu0 0.0
  %5635 = vmatpush1.msra.mxu0 0.0
  %5636 = vmatprep.subr.mxu0 0.0
  %5637 = vmatpush1.msra.mxu0 0.0
  %5638 = vmatprep.subr.mxu0 0.0
  %5639 = vmatpush1.msra.mxu0 0.0
  %5640 = vmatprep.subr.mxu0 0.0
  %5641 = vmatpush1.msra.mxu0 0.0
  %5642 = vmatprep.subr.mxu0 0.0
  %5643 = vmatpush1.msra.mxu0 0.0
  %5644 = vmatprep.subr.mxu0 0.0
  %5645 = vmatpush1.msra.mxu0 0.0
  %5646 = vmatprep.subr.mxu0 0.0
  %5647 = vmatpush1.msra.mxu0 0.0
  %5648 = vmatprep.subr.mxu0 0.0
  %5649 = vmatpush1.msra.mxu0 0.0
  %5650 = vmatprep.subr.mxu0 0.0
  %5651 = vmatpush1.msra.mxu0 0.0
  %5652 = vmatprep.subr.mxu0 0.0
  %5653 = vmatpush1.msra.mxu0 0.0
  %5654 = vmatprep.subr.mxu0 0.0
  %5655 = vmatpush1.msra.mxu0 0.0
  %5656 = vmatprep.subr.mxu0 0.0
  %5657 = vmatpush1.msra.mxu0 %v2568
  %5658 = vmatprep.subr.mxu0 0.0
  %5659 = vmatpush2.msra.mxu0 0.0
  %5660 = vmatprep.subr.mxu0 0.0
  %5661 = vmatpush2.msra.mxu0 0.0
  %5662 = vmatprep.subr.mxu0 0.0
  %5663 = vmatpush2.msra.mxu0 0.0
  %5664 = vmatprep.subr.mxu0 0.0
  %5665 = vmatpush2.msra.mxu0 0.0
  %5666 = vmatprep.subr.mxu0 0.0
  %5667 = vmatpush2.msra.mxu0 0.0
  %5668 = vmatprep.subr.mxu0 0.0
  %5669 = vmatpush2.msra.mxu0 0.0
  %5670 = vmatprep.subr.mxu0 0.0
  %5671 = vmatpush2.msra.mxu0 0.0
  %5672 = vmatprep.subr.mxu0 0.0
  %5673 = vmatpush2.msra.mxu0 0.0
  %5674 = vmatprep.subr.mxu0 0.0
  %5675 = vmatpush2.msra.mxu0 0.0
  %5676 = vmatprep.subr.mxu0 0.0
  %5677 = vmatpush2.msra.mxu0 0.0
  %5678 = vmatprep.subr.mxu0 0.0
  %5679 = vmatpush2.msra.mxu0 0.0
  %5680 = vmatprep.subr.mxu0 0.0
  %5681 = vmatpush2.msra.mxu0 0.0
  %5682 = vmatprep.subr.mxu0 0.0
  %5683 = vmatpush2.msra.mxu0 0.0
  %5684 = vmatprep.subr.mxu0 0.0
  %5685 = vmatpush2.msra.mxu0 0.0
  %5686 = vmatprep.subr.mxu0 0.0
  %5687 = vmatpush2.msra.mxu0 0.0
  %5688 = vmatprep.subr.mxu0 0.0
  %5689 = vmatpush2.msra.mxu0 0.0
  %5690 = vmatprep.mubr.f32.mxu0 0.0
  %5691 = vmatmul.mubr.f32.gmra.mxu0 %v5624
  %v5692 = vpop.f32.mrf.mxu0
  %v5693 = vadd.f32 %v2561, %v5692
  %v5694 = vpop.f32.mrf.mxu0
  %5695 = vdwg.mxu0
  %v5696 = vxor.u32 %v5693, 2147483648
  %v5697 = vmul.f32 %v5696, 1.442695
  %v5698 = vpow.pop %v5697
  %v5699 = vadd.f32 %v5698, 1.0
  %v5700 = vrcp.pop %v5699
  %v5701 = vmul.f32 1.0, %v5700
  %5702 = vmatprep.subr.mxu0 0.0
  %5703 = vmatpush1.msra.mxu0 0.0
  %5704 = vmatprep.subr.mxu0 0.0
  %5705 = vmatpush1.msra.mxu0 0.0
  %5706 = vmatprep.subr.mxu0 0.0
  %5707 = vmatpush1.msra.mxu0 0.0
  %5708 = vmatprep.subr.mxu0 0.0
  %5709 = vmatpush1.msra.mxu0 0.0
  %5710 = vmatprep.subr.mxu0 0.0
  %5711 = vmatpush1.msra.mxu0 0.0
  %5712 = vmatprep.subr.mxu0 0.0
  %5713 = vmatpush1.msra.mxu0 0.0
  %5714 = vmatprep.subr.mxu0 0.0
  %5715 = vmatpush1.msra.mxu0 0.0
  %5716 = vmatprep.subr.mxu0 0.0
  %5717 = vmatpush1.msra.mxu0 0.0
  %5718 = vmatprep.subr.mxu0 0.0
  %5719 = vmatpush1.msra.mxu0 0.0
  %5720 = vmatprep.subr.mxu0 0.0
  %5721 = vmatpush1.msra.mxu0 0.0
  %5722 = vmatprep.subr.mxu0 0.0
  %5723 = vmatpush1.msra.mxu0 0.0
  %5724 = vmatprep.subr.mxu0 0.0
  %5725 = vmatpush1.msra.mxu0 0.0
  %5726 = vmatprep.subr.mxu0 0.0
  %5727 = vmatpush1.msra.mxu0 0.0
  %5728 = vmatprep.subr.mxu0 0.0
  %5729 = vmatpush1.msra.mxu0 0.0
  %5730 = vmatprep.subr.mxu0 0.0
  %5731 = vmatpush1.msra.mxu0 0.0
  %5732 = vmatprep.subr.mxu0 0.0
  %5733 = vmatpush1.msra.mxu0 %v1085
  %5734 = vmatprep.subr.mxu0 0.0
  %5735 = vmatpush2.msra.mxu0 0.0
  %5736 = vmatprep.subr.mxu0 0.0
  %5737 = vmatpush2.msra.mxu0 0.0
  %5738 = vmatprep.subr.mxu0 0.0
  %5739 = vmatpush2.msra.mxu0 0.0
  %5740 = vmatprep.subr.mxu0 0.0
  %5741 = vmatpush2.msra.mxu0 0.0
  %5742 = vmatprep.subr.mxu0 0.0
  %5743 = vmatpush2.msra.mxu0 0.0
  %5744 = vmatprep.subr.mxu0 0.0
  %5745 = vmatpush2.msra.mxu0 0.0
  %5746 = vmatprep.subr.mxu0 0.0
  %5747 = vmatpush2.msra.mxu0 0.0
  %5748 = vmatprep.subr.mxu0 0.0
  %5749 = vmatpush2.msra.mxu0 0.0
  %5750 = vmatprep.subr.mxu0 0.0
  %5751 = vmatpush2.msra.mxu0 0.0
  %5752 = vmatprep.subr.mxu0 0.0
  %5753 = vmatpush2.msra.mxu0 0.0
  %5754 = vmatprep.subr.mxu0 0.0
  %5755 = vmatpush2.msra.mxu0 0.0
  %5756 = vmatprep.subr.mxu0 0.0
  %5757 = vmatpush2.msra.mxu0 0.0
  %5758 = vmatprep.subr.mxu0 0.0
  %5759 = vmatpush2.msra.mxu0 0.0
  %5760 = vmatprep.subr.mxu0 0.0
  %5761 = vmatpush2.msra.mxu0 0.0
  %5762 = vmatprep.subr.mxu0 0.0
  %5763 = vmatpush2.msra.mxu0 0.0
  %5764 = vmatprep.subr.mxu0 0.0
  %5765 = vmatpush2.msra.mxu0 0.0
  %5766 = vmatprep.mubr.f32.mxu0 0.0
  %5767 = vmatmul.mubr.f32.gmra.mxu0 %v5208
  %v5768 = vpop.f32.mrf.mxu0
  %v5769 = vadd.f32 0.0, %v5768
  %v5770 = vpop.f32.mrf.mxu0
  %5771 = vdwg.mxu0
  %5773 = vrot.lane.b32.xlu0 %v5038, 113
  %v5774 = vpop.permute.xlu0 %5773
  %v5775 = vsel %vm879, %v5774, 0
  %5777 = vmatprep.subr.mxu0 0.0
  %5778 = vmatpush1.msra.mxu0 0.0
  %5779 = vmatprep.subr.mxu0 0.0
  %5780 = vmatpush1.msra.mxu0 0.0
  %5781 = vmatprep.subr.mxu0 0.0
  %5782 = vmatpush1.msra.mxu0 0.0
  %5783 = vmatprep.subr.mxu0 0.0
  %5784 = vmatpush1.msra.mxu0 0.0
  %5785 = vmatprep.subr.mxu0 0.0
  %5786 = vmatpush1.msra.mxu0 0.0
  %5787 = vmatprep.subr.mxu0 0.0
  %5788 = vmatpush1.msra.mxu0 0.0
  %5789 = vmatprep.subr.mxu0 0.0
  %5790 = vmatpush1.msra.mxu0 0.0
  %5791 = vmatprep.subr.mxu0 0.0
  %5792 = vmatpush1.msra.mxu0 0.0
  %5793 = vmatprep.subr.mxu0 0.0
  %5794 = vmatpush1.msra.mxu0 0.0
  %5795 = vmatprep.subr.mxu0 0.0
  %5796 = vmatpush1.msra.mxu0 0.0
  %5797 = vmatprep.subr.mxu0 0.0
  %5798 = vmatpush1.msra.mxu0 0.0
  %5799 = vmatprep.subr.mxu0 0.0
  %5800 = vmatpush1.msra.mxu0 0.0
  %5801 = vmatprep.subr.mxu0 0.0
  %5802 = vmatpush1.msra.mxu0 0.0
  %5803 = vmatprep.subr.mxu0 0.0
  %5804 = vmatpush1.msra.mxu0 0.0
  %5805 = vmatprep.subr.mxu0 0.0
  %5806 = vmatpush1.msra.mxu0 0.0
  %5807 = vmatprep.subr.mxu0 0.0
  %5808 = vmatpush1.msra.mxu0 %v1158
  %5809 = vmatprep.subr.mxu0 0.0
  %5810 = vmatpush2.msra.mxu0 0.0
  %5811 = vmatprep.subr.mxu0 0.0
  %5812 = vmatpush2.msra.mxu0 0.0
  %5813 = vmatprep.subr.mxu0 0.0
  %5814 = vmatpush2.msra.mxu0 0.0
  %5815 = vmatprep.subr.mxu0 0.0
  %5816 = vmatpush2.msra.mxu0 0.0
  %5817 = vmatprep.subr.mxu0 0.0
  %5818 = vmatpush2.msra.mxu0 0.0
  %5819 = vmatprep.subr.mxu0 0.0
  %5820 = vmatpush2.msra.mxu0 0.0
  %5821 = vmatprep.subr.mxu0 0.0
  %5822 = vmatpush2.msra.mxu0 0.0
  %5823 = vmatprep.subr.mxu0 0.0
  %5824 = vmatpush2.msra.mxu0 0.0
  %5825 = vmatprep.subr.mxu0 0.0
  %5826 = vmatpush2.msra.mxu0 0.0
  %5827 = vmatprep.subr.mxu0 0.0
  %5828 = vmatpush2.msra.mxu0 0.0
  %5829 = vmatprep.subr.mxu0 0.0
  %5830 = vmatpush2.msra.mxu0 0.0
  %5831 = vmatprep.subr.mxu0 0.0
  %5832 = vmatpush2.msra.mxu0 0.0
  %5833 = vmatprep.subr.mxu0 0.0
  %5834 = vmatpush2.msra.mxu0 0.0
  %5835 = vmatprep.subr.mxu0 0.0
  %5836 = vmatpush2.msra.mxu0 0.0
  %5837 = vmatprep.subr.mxu0 0.0
  %5838 = vmatpush2.msra.mxu0 0.0
  %5839 = vmatprep.subr.mxu0 0.0
  %5840 = vmatpush2.msra.mxu0 0.0
  %5841 = vmatprep.mubr.f32.mxu0 0.0
  %5842 = vmatmul.mubr.f32.gmra.mxu0 %v5775
  %v5843 = vpop.f32.mrf.mxu0
  %v5844 = vadd.f32 %v5769, %v5843
  %v5845 = vpop.f32.mrf.mxu0
  %5846 = vdwg.mxu0
  %v5847 = vadd.f32 %v5844, %v1233
  %v5848 = vxor.u32 %v5847, 2147483648
  %v5849 = vmul.f32 %v5848, 1.442695
  %v5850 = vpow.pop %v5849
  %v5851 = vadd.f32 %v5850, 1.0
  %v5852 = vrcp.pop %v5851
  %v5853 = vmul.f32 1.0, %v5852
  %v5854 = vmul.f32 %v5853, 2.0
  %v5855 = vsub.f32 %v5854, 1.0
  %v5856 = vmul.f32 %v5853, %v5198
  %5858 = vrot.lane.b32.xlu0 %v5855, 118
  %v5859 = vpop.permute.xlu0 %5858
  %v5861 = vmul.f32 %v5853, %v5859
  %5863 = vrot.lane.b32.xlu0 %v5861, 5
  %v5864 = vpop.permute.xlu0 %5863
  %v5866 = vadd.f32 %v5856, %v5864
  %v5867 = vtanh.pop %v5866
  %5869 = vrot.lane.b32.xlu0 %v5867, 10
  %v5870 = vpop.permute.xlu0 %5869
  %v5872 = vmul.f32 %v5853, %v5870
  %5874 = vrot.lane.b32.xlu0 %v5872, 113
  %v5875 = vpop.permute.xlu0 %5874
  %v5876 = vsel %vm879, %v5875, 0
  %5878 = vmatprep.subr.mxu0 0.0
  %5879 = vmatpush1.msra.mxu0 0.0
  %5880 = vmatprep.subr.mxu0 0.0
  %5881 = vmatpush1.msra.mxu0 0.0
  %5882 = vmatprep.subr.mxu0 0.0
  %5883 = vmatpush1.msra.mxu0 0.0
  %5884 = vmatprep.subr.mxu0 0.0
  %5885 = vmatpush1.msra.mxu0 0.0
  %5886 = vmatprep.subr.mxu0 0.0
  %5887 = vmatpush1.msra.mxu0 0.0
  %5888 = vmatprep.subr.mxu0 0.0
  %5889 = vmatpush1.msra.mxu0 0.0
  %5890 = vmatprep.subr.mxu0 0.0
  %5891 = vmatpush1.msra.mxu0 0.0
  %5892 = vmatprep.subr.mxu0 0.0
  %5893 = vmatpush1.msra.mxu0 0.0
  %5894 = vmatprep.subr.mxu0 0.0
  %5895 = vmatpush1.msra.mxu0 0.0
  %5896 = vmatprep.subr.mxu0 0.0
  %5897 = vmatpush1.msra.mxu0 0.0
  %5898 = vmatprep.subr.mxu0 0.0
  %5899 = vmatpush1.msra.mxu0 0.0
  %5900 = vmatprep.subr.mxu0 0.0
  %5901 = vmatpush1.msra.mxu0 0.0
  %5902 = vmatprep.subr.mxu0 0.0
  %5903 = vmatpush1.msra.mxu0 0.0
  %5904 = vmatprep.subr.mxu0 0.0
  %5905 = vmatpush1.msra.mxu0 0.0
  %5906 = vmatprep.subr.mxu0 0.0
  %5907 = vmatpush1.msra.mxu0 0.0
  %5908 = vmatprep.subr.mxu0 0.0
  %5909 = vmatpush1.msra.mxu0 %v1270
  %5910 = vmatprep.subr.mxu0 0.0
  %5911 = vmatpush2.msra.mxu0 0.0
  %5912 = vmatprep.subr.mxu0 0.0
  %5913 = vmatpush2.msra.mxu0 0.0
  %5914 = vmatprep.subr.mxu0 0.0
  %5915 = vmatpush2.msra.mxu0 0.0
  %5916 = vmatprep.subr.mxu0 0.0
  %5917 = vmatpush2.msra.mxu0 0.0
  %5918 = vmatprep.subr.mxu0 0.0
  %5919 = vmatpush2.msra.mxu0 0.0
  %5920 = vmatprep.subr.mxu0 0.0
  %5921 = vmatpush2.msra.mxu0 0.0
  %5922 = vmatprep.subr.mxu0 0.0
  %5923 = vmatpush2.msra.mxu0 0.0
  %5924 = vmatprep.subr.mxu0 0.0
  %5925 = vmatpush2.msra.mxu0 0.0
  %5926 = vmatprep.subr.mxu0 0.0
  %5927 = vmatpush2.msra.mxu0 0.0
  %5928 = vmatprep.subr.mxu0 0.0
  %5929 = vmatpush2.msra.mxu0 0.0
  %5930 = vmatprep.subr.mxu0 0.0
  %5931 = vmatpush2.msra.mxu0 0.0
  %5932 = vmatprep.subr.mxu0 0.0
  %5933 = vmatpush2.msra.mxu0 0.0
  %5934 = vmatprep.subr.mxu0 0.0
  %5935 = vmatpush2.msra.mxu0 0.0
  %5936 = vmatprep.subr.mxu0 0.0
  %5937 = vmatpush2.msra.mxu0 0.0
  %5938 = vmatprep.subr.mxu0 0.0
  %5939 = vmatpush2.msra.mxu0 0.0
  %5940 = vmatprep.subr.mxu0 0.0
  %5941 = vmatpush2.msra.mxu0 0.0
  %5942 = vmatprep.mubr.f32.mxu0 0.0
  %5943 = vmatmul.mubr.f32.gmra.mxu0 %v5876
  %v5944 = vpop.f32.mrf.mxu0
  %v5945 = vadd.f32 %v1263, %v5944
  %v5946 = vpop.f32.mrf.mxu0
  %5947 = vdwg.mxu0
  %v5948 = vmax.f32 %v5945, 0.0
  %5950 = vrot.lane.b32.xlu0 %v5454, 113
  %v5951 = vpop.permute.xlu0 %5950
  %v5952 = vsel %vm879, %v5951, 0
  %5954 = vmatprep.subr.mxu0 0.0
  %5955 = vmatpush1.msra.mxu0 0.0
  %5956 = vmatprep.subr.mxu0 0.0
  %5957 = vmatpush1.msra.mxu0 0.0
  %5958 = vmatprep.subr.mxu0 0.0
  %5959 = vmatpush1.msra.mxu0 0.0
  %5960 = vmatprep.subr.mxu0 0.0
  %5961 = vmatpush1.msra.mxu0 0.0
  %5962 = vmatprep.subr.mxu0 0.0
  %5963 = vmatpush1.msra.mxu0 0.0
  %5964 = vmatprep.subr.mxu0 0.0
  %5965 = vmatpush1.msra.mxu0 0.0
  %5966 = vmatprep.subr.mxu0 0.0
  %5967 = vmatpush1.msra.mxu0 0.0
  %5968 = vmatprep.subr.mxu0 0.0
  %5969 = vmatpush1.msra.mxu0 0.0
  %5970 = vmatprep.subr.mxu0 0.0
  %5971 = vmatpush1.msra.mxu0 0.0
  %5972 = vmatprep.subr.mxu0 0.0
  %5973 = vmatpush1.msra.mxu0 0.0
  %5974 = vmatprep.subr.mxu0 0.0
  %5975 = vmatpush1.msra.mxu0 0.0
  %5976 = vmatprep.subr.mxu0 0.0
  %5977 = vmatpush1.msra.mxu0 0.0
  %5978 = vmatprep.subr.mxu0 0.0
  %5979 = vmatpush1.msra.mxu0 0.0
  %5980 = vmatprep.subr.mxu0 0.0
  %5981 = vmatpush1.msra.mxu0 0.0
  %5982 = vmatprep.subr.mxu0 0.0
  %5983 = vmatpush1.msra.mxu0 0.0
  %5984 = vmatprep.subr.mxu0 0.0
  %5985 = vmatpush1.msra.mxu0 %v1687
  %5986 = vmatprep.subr.mxu0 0.0
  %5987 = vmatpush2.msra.mxu0 0.0
  %5988 = vmatprep.subr.mxu0 0.0
  %5989 = vmatpush2.msra.mxu0 0.0
  %5990 = vmatprep.subr.mxu0 0.0
  %5991 = vmatpush2.msra.mxu0 0.0
  %5992 = vmatprep.subr.mxu0 0.0
  %5993 = vmatpush2.msra.mxu0 0.0
  %5994 = vmatprep.subr.mxu0 0.0
  %5995 = vmatpush2.msra.mxu0 0.0
  %5996 = vmatprep.subr.mxu0 0.0
  %5997 = vmatpush2.msra.mxu0 0.0
  %5998 = vmatprep.subr.mxu0 0.0
  %5999 = vmatpush2.msra.mxu0 0.0
  %6000 = vmatprep.subr.mxu0 0.0
  %6001 = vmatpush2.msra.mxu0 0.0
  %6002 = vmatprep.subr.mxu0 0.0
  %6003 = vmatpush2.msra.mxu0 0.0
  %6004 = vmatprep.subr.mxu0 0.0
  %6005 = vmatpush2.msra.mxu0 0.0
  %6006 = vmatprep.subr.mxu0 0.0
  %6007 = vmatpush2.msra.mxu0 0.0
  %6008 = vmatprep.subr.mxu0 0.0
  %6009 = vmatpush2.msra.mxu0 0.0
  %6010 = vmatprep.subr.mxu0 0.0
  %6011 = vmatpush2.msra.mxu0 0.0
  %6012 = vmatprep.subr.mxu0 0.0
  %6013 = vmatpush2.msra.mxu0 0.0
  %6014 = vmatprep.subr.mxu0 0.0
  %6015 = vmatpush2.msra.mxu0 0.0
  %6016 = vmatprep.subr.mxu0 0.0
  %6017 = vmatpush2.msra.mxu0 0.0
  %6018 = vmatprep.mubr.f32.mxu0 0.0
  %6019 = vmatmul.mubr.f32.gmra.mxu0 %v5952
  %v6020 = vpop.f32.mrf.mxu0
  %v6021 = vadd.f32 0.0, %v6020
  %v6022 = vpop.f32.mrf.mxu0
  %6023 = vdwg.mxu0
  %v6025 = vsel %vm879, %v5280, 0
  %6027 = vmatprep.subr.mxu0 0.0
  %6028 = vmatpush1.msra.mxu0 0.0
  %6029 = vmatprep.subr.mxu0 0.0
  %6030 = vmatpush1.msra.mxu0 0.0
  %6031 = vmatprep.subr.mxu0 0.0
  %6032 = vmatpush1.msra.mxu0 0.0
  %6033 = vmatprep.subr.mxu0 0.0
  %6034 = vmatpush1.msra.mxu0 0.0
  %6035 = vmatprep.subr.mxu0 0.0
  %6036 = vmatpush1.msra.mxu0 0.0
  %6037 = vmatprep.subr.mxu0 0.0
  %6038 = vmatpush1.msra.mxu0 0.0
  %6039 = vmatprep.subr.mxu0 0.0
  %6040 = vmatpush1.msra.mxu0 0.0
  %6041 = vmatprep.subr.mxu0 0.0
  %6042 = vmatpush1.msra.mxu0 0.0
  %6043 = vmatprep.subr.mxu0 0.0
  %6044 = vmatpush1.msra.mxu0 0.0
  %6045 = vmatprep.subr.mxu0 0.0
  %6046 = vmatpush1.msra.mxu0 0.0
  %6047 = vmatprep.subr.mxu0 0.0
  %6048 = vmatpush1.msra.mxu0 0.0
  %6049 = vmatprep.subr.mxu0 0.0
  %6050 = vmatpush1.msra.mxu0 0.0
  %6051 = vmatprep.subr.mxu0 0.0
  %6052 = vmatpush1.msra.mxu0 0.0
  %6053 = vmatprep.subr.mxu0 0.0
  %6054 = vmatpush1.msra.mxu0 0.0
  %6055 = vmatprep.subr.mxu0 0.0
  %6056 = vmatpush1.msra.mxu0 0.0
  %6057 = vmatprep.subr.mxu0 0.0
  %6058 = vmatpush1.msra.mxu0 %v1763
  %6059 = vmatprep.subr.mxu0 0.0
  %6060 = vmatpush2.msra.mxu0 0.0
  %6061 = vmatprep.subr.mxu0 0.0
  %6062 = vmatpush2.msra.mxu0 0.0
  %6063 = vmatprep.subr.mxu0 0.0
  %6064 = vmatpush2.msra.mxu0 0.0
  %6065 = vmatprep.subr.mxu0 0.0
  %6066 = vmatpush2.msra.mxu0 0.0
  %6067 = vmatprep.subr.mxu0 0.0
  %6068 = vmatpush2.msra.mxu0 0.0
  %6069 = vmatprep.subr.mxu0 0.0
  %6070 = vmatpush2.msra.mxu0 0.0
  %6071 = vmatprep.subr.mxu0 0.0
  %6072 = vmatpush2.msra.mxu0 0.0
  %6073 = vmatprep.subr.mxu0 0.0
  %6074 = vmatpush2.msra.mxu0 0.0
  %6075 = vmatprep.subr.mxu0 0.0
  %6076 = vmatpush2.msra.mxu0 0.0
  %6077 = vmatprep.subr.mxu0 0.0
  %6078 = vmatpush2.msra.mxu0 0.0
  %6079 = vmatprep.subr.mxu0 0.0
  %6080 = vmatpush2.msra.mxu0 0.0
  %6081 = vmatprep.subr.mxu0 0.0
  %6082 = vmatpush2.msra.mxu0 0.0
  %6083 = vmatprep.subr.mxu0 0.0
  %6084 = vmatpush2.msra.mxu0 0.0
  %6085 = vmatprep.subr.mxu0 0.0
  %6086 = vmatpush2.msra.mxu0 0.0
  %6087 = vmatprep.subr.mxu0 0.0
  %6088 = vmatpush2.msra.mxu0 0.0
  %6089 = vmatprep.subr.mxu0 0.0
  %6090 = vmatpush2.msra.mxu0 0.0
  %6091 = vmatprep.mubr.f32.mxu0 0.0
  %6092 = vmatmul.mubr.f32.gmra.mxu0 %v6025
  %v6093 = vpop.f32.mrf.mxu0
  %v6094 = vadd.f32 %v6021, %v6093
  %v6095 = vpop.f32.mrf.mxu0
  %6096 = vdwg.mxu0
  %v6097 = vadd.f32 %v6094, %v1838
  %v6098 = vxor.u32 %v6097, 2147483648
  %v6099 = vmul.f32 %v6098, 1.442695
  %v6100 = vpow.pop %v6099
  %v6101 = vadd.f32 %v6100, 1.0
  %v6102 = vrcp.pop %v6101
  %v6103 = vmul.f32 1.0, %v6102
  %v6104 = vmul.f32 %v6103, 2.0
  %v6105 = vsub.f32 %v6104, 1.0
  %v6106 = vmul.f32 %v6103, %v5448
  %6108 = vrot.lane.b32.xlu0 %v6105, 118
  %v6109 = vpop.permute.xlu0 %6108
  %v6111 = vmul.f32 %v6103, %v6109
  %6113 = vrot.lane.b32.xlu0 %v6111, 5
  %v6114 = vpop.permute.xlu0 %6113
  %v6116 = vadd.f32 %v6106, %v6114
  %v6117 = vtanh.pop %v6116
  %6119 = vrot.lane.b32.xlu0 %v6117, 10
  %v6120 = vpop.permute.xlu0 %6119
  %v6122 = vmul.f32 %v6103, %v6120
  %6123 = vmatprep.subr.mxu0 0.0
  %6124 = vmatpush1.msra.mxu0 0.0
  %6125 = vmatprep.subr.mxu0 0.0
  %6126 = vmatpush1.msra.mxu0 0.0
  %6127 = vmatprep.subr.mxu0 0.0
  %6128 = vmatpush1.msra.mxu0 0.0
  %6129 = vmatprep.subr.mxu0 0.0
  %6130 = vmatpush1.msra.mxu0 0.0
  %6131 = vmatprep.subr.mxu0 0.0
  %6132 = vmatpush1.msra.mxu0 0.0
  %6133 = vmatprep.subr.mxu0 0.0
  %6134 = vmatpush1.msra.mxu0 0.0
  %6135 = vmatprep.subr.mxu0 0.0
  %6136 = vmatpush1.msra.mxu0 0.0
  %6137 = vmatprep.subr.mxu0 0.0
  %6138 = vmatpush1.msra.mxu0 0.0
  %6139 = vmatprep.subr.mxu0 0.0
  %6140 = vmatpush1.msra.mxu0 0.0
  %6141 = vmatprep.subr.mxu0 0.0
  %6142 = vmatpush1.msra.mxu0 0.0
  %6143 = vmatprep.subr.mxu0 0.0
  %6144 = vmatpush1.msra.mxu0 0.0
  %6145 = vmatprep.subr.mxu0 0.0
  %6146 = vmatpush1.msra.mxu0 0.0
  %6147 = vmatprep.subr.mxu0 0.0
  %6148 = vmatpush1.msra.mxu0 0.0
  %6149 = vmatprep.subr.mxu0 0.0
  %6150 = vmatpush1.msra.mxu0 0.0
  %6151 = vmatprep.subr.mxu0 0.0
  %6152 = vmatpush1.msra.mxu0 0.0
  %6153 = vmatprep.subr.mxu0 0.0
  %6154 = vmatpush1.msra.mxu0 %v2383
  %6155 = vmatprep.subr.mxu0 0.0
  %6156 = vmatpush2.msra.mxu0 0.0
  %6157 = vmatprep.subr.mxu0 0.0
  %6158 = vmatpush2.msra.mxu0 0.0
  %6159 = vmatprep.subr.mxu0 0.0
  %6160 = vmatpush2.msra.mxu0 0.0
  %6161 = vmatprep.subr.mxu0 0.0
  %6162 = vmatpush2.msra.mxu0 0.0
  %6163 = vmatprep.subr.mxu0 0.0
  %6164 = vmatpush2.msra.mxu0 0.0
  %6165 = vmatprep.subr.mxu0 0.0
  %6166 = vmatpush2.msra.mxu0 0.0
  %6167 = vmatprep.subr.mxu0 0.0
  %6168 = vmatpush2.msra.mxu0 0.0
  %6169 = vmatprep.subr.mxu0 0.0
  %6170 = vmatpush2.msra.mxu0 0.0
  %6171 = vmatprep.subr.mxu0 0.0
  %6172 = vmatpush2.msra.mxu0 0.0
  %6173 = vmatprep.subr.mxu0 0.0
  %6174 = vmatpush2.msra.mxu0 0.0
  %6175 = vmatprep.subr.mxu0 0.0
  %6176 = vmatpush2.msra.mxu0 0.0
  %6177 = vmatprep.subr.mxu0 0.0
  %6178 = vmatpush2.msra.mxu0 0.0
  %6179 = vmatprep.subr.mxu0 0.0
  %6180 = vmatpush2.msra.mxu0 0.0
  %6181 = vmatprep.subr.mxu0 0.0
  %6182 = vmatpush2.msra.mxu0 0.0
  %6183 = vmatprep.subr.mxu0 0.0
  %6184 = vmatpush2.msra.mxu0 0.0
  %6185 = vmatprep.subr.mxu0 0.0
  %6186 = vmatpush2.msra.mxu0 0.0
  %6187 = vmatprep.mubr.f32.mxu0 0.0
  %6188 = vmatmul.mubr.f32.gmra.mxu0 %v5624
  %v6189 = vpop.f32.mrf.mxu0
  %v6190 = vadd.f32 0.0, %v6189
  %v6191 = vpop.f32.mrf.mxu0
  %6192 = vdwg.mxu0
  %6193 = vmatprep.subr.mxu0 0.0
  %6194 = vmatpush1.msra.mxu0 0.0
  %6195 = vmatprep.subr.mxu0 0.0
  %6196 = vmatpush1.msra.mxu0 0.0
  %6197 = vmatprep.subr.mxu0 0.0
  %6198 = vmatpush1.msra.mxu0 0.0
  %6199 = vmatprep.subr.mxu0 0.0
  %6200 = vmatpush1.msra.mxu0 0.0
  %6201 = vmatprep.subr.mxu0 0.0
  %6202 = vmatpush1.msra.mxu0 0.0
  %6203 = vmatprep.subr.mxu0 0.0
  %6204 = vmatpush1.msra.mxu0 0.0
  %6205 = vmatprep.subr.mxu0 0.0
  %6206 = vmatpush1.msra.mxu0 0.0
  %6207 = vmatprep.subr.mxu0 0.0
  %6208 = vmatpush1.msra.mxu0 0.0
  %6209 = vmatprep.subr.mxu0 0.0
  %6210 = vmatpush1.msra.mxu0 0.0
  %6211 = vmatprep.subr.mxu0 0.0
  %6212 = vmatpush1.msra.mxu0 0.0
  %6213 = vmatprep.subr.mxu0 0.0
  %6214 = vmatpush1.msra.mxu0 0.0
  %6215 = vmatprep.subr.mxu0 0.0
  %6216 = vmatpush1.msra.mxu0 0.0
  %6217 = vmatprep.subr.mxu0 0.0
  %6218 = vmatpush1.msra.mxu0 0.0
  %6219 = vmatprep.subr.mxu0 0.0
  %6220 = vmatpush1.msra.mxu0 0.0
  %6221 = vmatprep.subr.mxu0 0.0
  %6222 = vmatpush1.msra.mxu0 0.0
  %6223 = vmatprep.subr.mxu0 0.0
  %6224 = vmatpush1.msra.mxu0 %v2456
  %6225 = vmatprep.subr.mxu0 0.0
  %6226 = vmatpush2.msra.mxu0 0.0
  %6227 = vmatprep.subr.mxu0 0.0
  %6228 = vmatpush2.msra.mxu0 0.0
  %6229 = vmatprep.subr.mxu0 0.0
  %6230 = vmatpush2.msra.mxu0 0.0
  %6231 = vmatprep.subr.mxu0 0.0
  %6232 = vmatpush2.msra.mxu0 0.0
  %6233 = vmatprep.subr.mxu0 0.0
  %6234 = vmatpush2.msra.mxu0 0.0
  %6235 = vmatprep.subr.mxu0 0.0
  %6236 = vmatpush2.msra.mxu0 0.0
  %6237 = vmatprep.subr.mxu0 0.0
  %6238 = vmatpush2.msra.mxu0 0.0
  %6239 = vmatprep.subr.mxu0 0.0
  %6240 = vmatpush2.msra.mxu0 0.0
  %6241 = vmatprep.subr.mxu0 0.0
  %6242 = vmatpush2.msra.mxu0 0.0
  %6243 = vmatprep.subr.mxu0 0.0
  %6244 = vmatpush2.msra.mxu0 0.0
  %6245 = vmatprep.subr.mxu0 0.0
  %6246 = vmatpush2.msra.mxu0 0.0
  %6247 = vmatprep.subr.mxu0 0.0
  %6248 = vmatpush2.msra.mxu0 0.0
  %6249 = vmatprep.subr.mxu0 0.0
  %6250 = vmatpush2.msra.mxu0 0.0
  %6251 = vmatprep.subr.mxu0 0.0
  %6252 = vmatpush2.msra.mxu0 0.0
  %6253 = vmatprep.subr.mxu0 0.0
  %6254 = vmatpush2.msra.mxu0 0.0
  %6255 = vmatprep.subr.mxu0 0.0
  %6256 = vmatpush2.msra.mxu0 0.0
  %6257 = vmatprep.mubr.f32.mxu0 0.0
  %6258 = vmatmul.mubr.f32.gmra.mxu0 %v5952
  %v6259 = vpop.f32.mrf.mxu0
  %v6260 = vadd.f32 %v6190, %v6259
  %v6261 = vpop.f32.mrf.mxu0
  %6262 = vdwg.mxu0
  %v6263 = vadd.f32 %v6260, %v2531
  %v6264 = vxor.u32 %v6263, 2147483648
  %v6265 = vmul.f32 %v6264, 1.442695
  %v6266 = vpow.pop %v6265
  %v6267 = vadd.f32 %v6266, 1.0
  %v6268 = vrcp.pop %v6267
  %v6269 = vmul.f32 1.0, %v6268
  %v6270 = vmul.f32 %v6269, 2.0
  %v6271 = vsub.f32 %v6270, 1.0
  %v6272 = vmul.f32 %v6269, %v5614
  %6274 = vrot.lane.b32.xlu0 %v6271, 118
  %v6275 = vpop.permute.xlu0 %6274
  %v6277 = vmul.f32 %v6269, %v6275
  %6279 = vrot.lane.b32.xlu0 %v6277, 5
  %v6280 = vpop.permute.xlu0 %6279
  %v6282 = vadd.f32 %v6272, %v6280
  %v6283 = vtanh.pop %v6282
  %6285 = vrot.lane.b32.xlu0 %v6283, 10
  %v6286 = vpop.permute.xlu0 %6285
  %v6288 = vmul.f32 %v6269, %v6286
  %6290 = vrot.lane.b32.xlu0 %v6288, 113
  %v6291 = vpop.permute.xlu0 %6290
  %v6292 = vsel %vm879, %v6291, 0
  %6294 = vmatprep.subr.mxu0 0.0
  %6295 = vmatpush1.msra.mxu0 0.0
  %6296 = vmatprep.subr.mxu0 0.0
  %6297 = vmatpush1.msra.mxu0 0.0
  %6298 = vmatprep.subr.mxu0 0.0
  %6299 = vmatpush1.msra.mxu0 0.0
  %6300 = vmatprep.subr.mxu0 0.0
  %6301 = vmatpush1.msra.mxu0 0.0
  %6302 = vmatprep.subr.mxu0 0.0
  %6303 = vmatpush1.msra.mxu0 0.0
  %6304 = vmatprep.subr.mxu0 0.0
  %6305 = vmatpush1.msra.mxu0 0.0
  %6306 = vmatprep.subr.mxu0 0.0
  %6307 = vmatpush1.msra.mxu0 0.0
  %6308 = vmatprep.subr.mxu0 0.0
  %6309 = vmatpush1.msra.mxu0 0.0
  %6310 = vmatprep.subr.mxu0 0.0
  %6311 = vmatpush1.msra.mxu0 0.0
  %6312 = vmatprep.subr.mxu0 0.0
  %6313 = vmatpush1.msra.mxu0 0.0
  %6314 = vmatprep.subr.mxu0 0.0
  %6315 = vmatpush1.msra.mxu0 0.0
  %6316 = vmatprep.subr.mxu0 0.0
  %6317 = vmatpush1.msra.mxu0 0.0
  %6318 = vmatprep.subr.mxu0 0.0
  %6319 = vmatpush1.msra.mxu0 0.0
  %6320 = vmatprep.subr.mxu0 0.0
  %6321 = vmatpush1.msra.mxu0 0.0
  %6322 = vmatprep.subr.mxu0 0.0
  %6323 = vmatpush1.msra.mxu0 0.0
  %6324 = vmatprep.subr.mxu0 0.0
  %6325 = vmatpush1.msra.mxu0 %v2568
  %6326 = vmatprep.subr.mxu0 0.0
  %6327 = vmatpush2.msra.mxu0 0.0
  %6328 = vmatprep.subr.mxu0 0.0
  %6329 = vmatpush2.msra.mxu0 0.0
  %6330 = vmatprep.subr.mxu0 0.0
  %6331 = vmatpush2.msra.mxu0 0.0
  %6332 = vmatprep.subr.mxu0 0.0
  %6333 = vmatpush2.msra.mxu0 0.0
  %6334 = vmatprep.subr.mxu0 0.0
  %6335 = vmatpush2.msra.mxu0 0.0
  %6336 = vmatprep.subr.mxu0 0.0
  %6337 = vmatpush2.msra.mxu0 0.0
  %6338 = vmatprep.subr.mxu0 0.0
  %6339 = vmatpush2.msra.mxu0 0.0
  %6340 = vmatprep.subr.mxu0 0.0
  %6341 = vmatpush2.msra.mxu0 0.0
  %6342 = vmatprep.subr.mxu0 0.0
  %6343 = vmatpush2.msra.mxu0 0.0
  %6344 = vmatprep.subr.mxu0 0.0
  %6345 = vmatpush2.msra.mxu0 0.0
  %6346 = vmatprep.subr.mxu0 0.0
  %6347 = vmatpush2.msra.mxu0 0.0
  %6348 = vmatprep.subr.mxu0 0.0
  %6349 = vmatpush2.msra.mxu0 0.0
  %6350 = vmatprep.subr.mxu0 0.0
  %6351 = vmatpush2.msra.mxu0 0.0
  %6352 = vmatprep.subr.mxu0 0.0
  %6353 = vmatpush2.msra.mxu0 0.0
  %6354 = vmatprep.subr.mxu0 0.0
  %6355 = vmatpush2.msra.mxu0 0.0
  %6356 = vmatprep.subr.mxu0 0.0
  %6357 = vmatpush2.msra.mxu0 0.0
  %6358 = vmatprep.mubr.f32.mxu0 0.0
  %6359 = vmatmul.mubr.f32.gmra.mxu0 %v6292
  %v6360 = vpop.f32.mrf.mxu0
  %v6361 = vadd.f32 %v2561, %v6360
  %v6362 = vpop.f32.mrf.mxu0
  %6363 = vdwg.mxu0
  %v6364 = vxor.u32 %v6361, 2147483648
  %v6365 = vmul.f32 %v6364, 1.442695
  %v6366 = vpow.pop %v6365
  %v6367 = vadd.f32 %v6366, 1.0
  %v6368 = vrcp.pop %v6367
  %v6369 = vmul.f32 1.0, %v6368
  %6371 = vrot.lane.b32.xlu0 %v6122, 113
  %v6372 = vpop.permute.xlu0 %6371
  %v6373 = vsel %vm879, %v6372, 0
  %6375 = vmatprep.subr.mxu0 0.0
  %6376 = vmatpush1.msra.mxu0 0.0
  %6377 = vmatprep.subr.mxu0 0.0
  %6378 = vmatpush1.msra.mxu0 0.0
  %6379 = vmatprep.subr.mxu0 0.0
  %6380 = vmatpush1.msra.mxu0 0.0
  %6381 = vmatprep.subr.mxu0 0.0
  %6382 = vmatpush1.msra.mxu0 0.0
  %6383 = vmatprep.subr.mxu0 0.0
  %6384 = vmatpush1.msra.mxu0 0.0
  %6385 = vmatprep.subr.mxu0 0.0
  %6386 = vmatpush1.msra.mxu0 0.0
  %6387 = vmatprep.subr.mxu0 0.0
  %6388 = vmatpush1.msra.mxu0 0.0
  %6389 = vmatprep.subr.mxu0 0.0
  %6390 = vmatpush1.msra.mxu0 0.0
  %6391 = vmatprep.subr.mxu0 0.0
  %6392 = vmatpush1.msra.mxu0 0.0
  %6393 = vmatprep.subr.mxu0 0.0
  %6394 = vmatpush1.msra.mxu0 0.0
  %6395 = vmatprep.subr.mxu0 0.0
  %6396 = vmatpush1.msra.mxu0 0.0
  %6397 = vmatprep.subr.mxu0 0.0
  %6398 = vmatpush1.msra.mxu0 0.0
  %6399 = vmatprep.subr.mxu0 0.0
  %6400 = vmatpush1.msra.mxu0 0.0
  %6401 = vmatprep.subr.mxu0 0.0
  %6402 = vmatpush1.msra.mxu0 0.0
  %6403 = vmatprep.subr.mxu0 0.0
  %6404 = vmatpush1.msra.mxu0 0.0
  %6405 = vmatprep.subr.mxu0 0.0
  %6406 = vmatpush1.msra.mxu0 %v1687
  %6407 = vmatprep.subr.mxu0 0.0
  %6408 = vmatpush2.msra.mxu0 0.0
  %6409 = vmatprep.subr.mxu0 0.0
  %6410 = vmatpush2.msra.mxu0 0.0
  %6411 = vmatprep.subr.mxu0 0.0
  %6412 = vmatpush2.msra.mxu0 0.0
  %6413 = vmatprep.subr.mxu0 0.0
  %6414 = vmatpush2.msra.mxu0 0.0
  %6415 = vmatprep.subr.mxu0 0.0
  %6416 = vmatpush2.msra.mxu0 0.0
  %6417 = vmatprep.subr.mxu0 0.0
  %6418 = vmatpush2.msra.mxu0 0.0
  %6419 = vmatprep.subr.mxu0 0.0
  %6420 = vmatpush2.msra.mxu0 0.0
  %6421 = vmatprep.subr.mxu0 0.0
  %6422 = vmatpush2.msra.mxu0 0.0
  %6423 = vmatprep.subr.mxu0 0.0
  %6424 = vmatpush2.msra.mxu0 0.0
  %6425 = vmatprep.subr.mxu0 0.0
  %6426 = vmatpush2.msra.mxu0 0.0
  %6427 = vmatprep.subr.mxu0 0.0
  %6428 = vmatpush2.msra.mxu0 0.0
  %6429 = vmatprep.subr.mxu0 0.0
  %6430 = vmatpush2.msra.mxu0 0.0
  %6431 = vmatprep.subr.mxu0 0.0
  %6432 = vmatpush2.msra.mxu0 0.0
  %6433 = vmatprep.subr.mxu0 0.0
  %6434 = vmatpush2.msra.mxu0 0.0
  %6435 = vmatprep.subr.mxu0 0.0
  %6436 = vmatpush2.msra.mxu0 0.0
  %6437 = vmatprep.subr.mxu0 0.0
  %6438 = vmatpush2.msra.mxu0 0.0
  %6439 = vmatprep.mubr.f32.mxu0 0.0
  %6440 = vmatmul.mubr.f32.gmra.mxu0 %v6373
  %v6441 = vpop.f32.mrf.mxu0
  %v6442 = vadd.f32 0.0, %v6441
  %v6443 = vpop.f32.mrf.mxu0
  %6444 = vdwg.mxu0
  %v6446 = vsel %vm879, %v5948, 0
  %6448 = vmatprep.subr.mxu0 0.0
  %6449 = vmatpush1.msra.mxu0 0.0
  %6450 = vmatprep.subr.mxu0 0.0
  %6451 = vmatpush1.msra.mxu0 0.0
  %6452 = vmatprep.subr.mxu0 0.0
  %6453 = vmatpush1.msra.mxu0 0.0
  %6454 = vmatprep.subr.mxu0 0.0
  %6455 = vmatpush1.msra.mxu0 0.0
  %6456 = vmatprep.subr.mxu0 0.0
  %6457 = vmatpush1.msra.mxu0 0.0
  %6458 = vmatprep.subr.mxu0 0.0
  %6459 = vmatpush1.msra.mxu0 0.0
  %6460 = vmatprep.subr.mxu0 0.0
  %6461 = vmatpush1.msra.mxu0 0.0
  %6462 = vmatprep.subr.mxu0 0.0
  %6463 = vmatpush1.msra.mxu0 0.0
  %6464 = vmatprep.subr.mxu0 0.0
  %6465 = vmatpush1.msra.mxu0 0.0
  %6466 = vmatprep.subr.mxu0 0.0
  %6467 = vmatpush1.msra.mxu0 0.0
  %6468 = vmatprep.subr.mxu0 0.0
  %6469 = vmatpush1.msra.mxu0 0.0
  %6470 = vmatprep.subr.mxu0 0.0
  %6471 = vmatpush1.msra.mxu0 0.0
  %6472 = vmatprep.subr.mxu0 0.0
  %6473 = vmatpush1.msra.mxu0 0.0
  %6474 = vmatprep.subr.mxu0 0.0
  %6475 = vmatpush1.msra.mxu0 0.0
  %6476 = vmatprep.subr.mxu0 0.0
  %6477 = vmatpush1.msra.mxu0 0.0
  %6478 = vmatprep.subr.mxu0 0.0
  %6479 = vmatpush1.msra.mxu0 %v1763
  %6480 = vmatprep.subr.mxu0 0.0
  %6481 = vmatpush2.msra.mxu0 0.0
  %6482 = vmatprep.subr.mxu0 0.0
  %6483 = vmatpush2.msra.mxu0 0.0
  %6484 = vmatprep.subr.mxu0 0.0
  %6485 = vmatpush2.msra.mxu0 0.0
  %6486 = vmatprep.subr.mxu0 0.0
  %6487 = vmatpush2.msra.mxu0 0.0
  %6488 = vmatprep.subr.mxu0 0.0
  %6489 = vmatpush2.msra.mxu0 0.0
  %6490 = vmatprep.subr.mxu0 0.0
  %6491 = vmatpush2.msra.mxu0 0.0
  %6492 = vmatprep.subr.mxu0 0.0
  %6493 = vmatpush2.msra.mxu0 0.0
  %6494 = vmatprep.subr.mxu0 0.0
  %6495 = vmatpush2.msra.mxu0 0.0
  %6496 = vmatprep.subr.mxu0 0.0
  %6497 = vmatpush2.msra.mxu0 0.0
  %6498 = vmatprep.subr.mxu0 0.0
  %6499 = vmatpush2.msra.mxu0 0.0
  %6500 = vmatprep.subr.mxu0 0.0
  %6501 = vmatpush2.msra.mxu0 0.0
  %6502 = vmatprep.subr.mxu0 0.0
  %6503 = vmatpush2.msra.mxu0 0.0
  %6504 = vmatprep.subr.mxu0 0.0
  %6505 = vmatpush2.msra.mxu0 0.0
  %6506 = vmatprep.subr.mxu0 0.0
  %6507 = vmatpush2.msra.mxu0 0.0
  %6508 = vmatprep.subr.mxu0 0.0
  %6509 = vmatpush2.msra.mxu0 0.0
  %6510 = vmatprep.subr.mxu0 0.0
  %6511 = vmatpush2.msra.mxu0 0.0
  %6512 = vmatprep.mubr.f32.mxu0 0.0
  %6513 = vmatmul.mubr.f32.gmra.mxu0 %v6446
  %v6514 = vpop.f32.mrf.mxu0
  %v6515 = vadd.f32 %v6442, %v6514
  %v6516 = vpop.f32.mrf.mxu0
  %6517 = vdwg.mxu0
  %v6518 = vadd.f32 %v6515, %v1838
  %v6519 = vxor.u32 %v6518, 2147483648
  %v6520 = vmul.f32 %v6519, 1.442695
  %v6521 = vpow.pop %v6520
  %v6522 = vadd.f32 %v6521, 1.0
  %v6523 = vrcp.pop %v6522
  %v6524 = vmul.f32 1.0, %v6523
  %v6525 = vmul.f32 %v6524, 2.0
  %v6526 = vsub.f32 %v6525, 1.0
  %v6527 = vmul.f32 %v6524, %v6116
  %6529 = vrot.lane.b32.xlu0 %v6526, 118
  %v6530 = vpop.permute.xlu0 %6529
  %v6532 = vmul.f32 %v6524, %v6530
  %6534 = vrot.lane.b32.xlu0 %v6532, 5
  %v6535 = vpop.permute.xlu0 %6534
  %v6537 = vadd.f32 %v6527, %v6535
  %v6538 = vtanh.pop %v6537
  %6540 = vrot.lane.b32.xlu0 %v6538, 10
  %v6541 = vpop.permute.xlu0 %6540
  %v6543 = vmul.f32 %v6524, %v6541
  %6544 = vmatprep.subr.mxu0 0.0
  %6545 = vmatpush1.msra.mxu0 0.0
  %6546 = vmatprep.subr.mxu0 0.0
  %6547 = vmatpush1.msra.mxu0 0.0
  %6548 = vmatprep.subr.mxu0 0.0
  %6549 = vmatpush1.msra.mxu0 0.0
  %6550 = vmatprep.subr.mxu0 0.0
  %6551 = vmatpush1.msra.mxu0 0.0
  %6552 = vmatprep.subr.mxu0 0.0
  %6553 = vmatpush1.msra.mxu0 0.0
  %6554 = vmatprep.subr.mxu0 0.0
  %6555 = vmatpush1.msra.mxu0 0.0
  %6556 = vmatprep.subr.mxu0 0.0
  %6557 = vmatpush1.msra.mxu0 0.0
  %6558 = vmatprep.subr.mxu0 0.0
  %6559 = vmatpush1.msra.mxu0 0.0
  %6560 = vmatprep.subr.mxu0 0.0
  %6561 = vmatpush1.msra.mxu0 0.0
  %6562 = vmatprep.subr.mxu0 0.0
  %6563 = vmatpush1.msra.mxu0 0.0
  %6564 = vmatprep.subr.mxu0 0.0
  %6565 = vmatpush1.msra.mxu0 0.0
  %6566 = vmatprep.subr.mxu0 0.0
  %6567 = vmatpush1.msra.mxu0 0.0
  %6568 = vmatprep.subr.mxu0 0.0
  %6569 = vmatpush1.msra.mxu0 0.0
  %6570 = vmatprep.subr.mxu0 0.0
  %6571 = vmatpush1.msra.mxu0 0.0
  %6572 = vmatprep.subr.mxu0 0.0
  %6573 = vmatpush1.msra.mxu0 0.0
  %6574 = vmatprep.subr.mxu0 0.0
  %6575 = vmatpush1.msra.mxu0 %v2383
  %6576 = vmatprep.subr.mxu0 0.0
  %6577 = vmatpush2.msra.mxu0 0.0
  %6578 = vmatprep.subr.mxu0 0.0
  %6579 = vmatpush2.msra.mxu0 0.0
  %6580 = vmatprep.subr.mxu0 0.0
  %6581 = vmatpush2.msra.mxu0 0.0
  %6582 = vmatprep.subr.mxu0 0.0
  %6583 = vmatpush2.msra.mxu0 0.0
  %6584 = vmatprep.subr.mxu0 0.0
  %6585 = vmatpush2.msra.mxu0 0.0
  %6586 = vmatprep.subr.mxu0 0.0
  %6587 = vmatpush2.msra.mxu0 0.0
  %6588 = vmatprep.subr.mxu0 0.0
  %6589 = vmatpush2.msra.mxu0 0.0
  %6590 = vmatprep.subr.mxu0 0.0
  %6591 = vmatpush2.msra.mxu0 0.0
  %6592 = vmatprep.subr.mxu0 0.0
  %6593 = vmatpush2.msra.mxu0 0.0
  %6594 = vmatprep.subr.mxu0 0.0
  %6595 = vmatpush2.msra.mxu0 0.0
  %6596 = vmatprep.subr.mxu0 0.0
  %6597 = vmatpush2.msra.mxu0 0.0
  %6598 = vmatprep.subr.mxu0 0.0
  %6599 = vmatpush2.msra.mxu0 0.0
  %6600 = vmatprep.subr.mxu0 0.0
  %6601 = vmatpush2.msra.mxu0 0.0
  %6602 = vmatprep.subr.mxu0 0.0
  %6603 = vmatpush2.msra.mxu0 0.0
  %6604 = vmatprep.subr.mxu0 0.0
  %6605 = vmatpush2.msra.mxu0 0.0
  %6606 = vmatprep.subr.mxu0 0.0
  %6607 = vmatpush2.msra.mxu0 0.0
  %6608 = vmatprep.mubr.f32.mxu0 0.0
  %6609 = vmatmul.mubr.f32.gmra.mxu0 %v6292
  %v6610 = vpop.f32.mrf.mxu0
  %v6611 = vadd.f32 0.0, %v6610
  %v6612 = vpop.f32.mrf.mxu0
  %6613 = vdwg.mxu0
  %6614 = vmatprep.subr.mxu0 0.0
  %6615 = vmatpush1.msra.mxu0 0.0
  %6616 = vmatprep.subr.mxu0 0.0
  %6617 = vmatpush1.msra.mxu0 0.0
  %6618 = vmatprep.subr.mxu0 0.0
  %6619 = vmatpush1.msra.mxu0 0.0
  %6620 = vmatprep.subr.mxu0 0.0
  %6621 = vmatpush1.msra.mxu0 0.0
  %6622 = vmatprep.subr.mxu0 0.0
  %6623 = vmatpush1.msra.mxu0 0.0
  %6624 = vmatprep.subr.mxu0 0.0
  %6625 = vmatpush1.msra.mxu0 0.0
  %6626 = vmatprep.subr.mxu0 0.0
  %6627 = vmatpush1.msra.mxu0 0.0
  %6628 = vmatprep.subr.mxu0 0.0
  %6629 = vmatpush1.msra.mxu0 0.0
  %6630 = vmatprep.subr.mxu0 0.0
  %6631 = vmatpush1.msra.mxu0 0.0
  %6632 = vmatprep.subr.mxu0 0.0
  %6633 = vmatpush1.msra.mxu0 0.0
  %6634 = vmatprep.subr.mxu0 0.0
  %6635 = vmatpush1.msra.mxu0 0.0
  %6636 = vmatprep.subr.mxu0 0.0
  %6637 = vmatpush1.msra.mxu0 0.0
  %6638 = vmatprep.subr.mxu0 0.0
  %6639 = vmatpush1.msra.mxu0 0.0
  %6640 = vmatprep.subr.mxu0 0.0
  %6641 = vmatpush1.msra.mxu0 0.0
  %6642 = vmatprep.subr.mxu0 0.0
  %6643 = vmatpush1.msra.mxu0 0.0
  %6644 = vmatprep.subr.mxu0 0.0
  %6645 = vmatpush1.msra.mxu0 %v2456
  %6646 = vmatprep.subr.mxu0 0.0
  %6647 = vmatpush2.msra.mxu0 0.0
  %6648 = vmatprep.subr.mxu0 0.0
  %6649 = vmatpush2.msra.mxu0 0.0
  %6650 = vmatprep.subr.mxu0 0.0
  %6651 = vmatpush2.msra.mxu0 0.0
  %6652 = vmatprep.subr.mxu0 0.0
  %6653 = vmatpush2.msra.mxu0 0.0
  %6654 = vmatprep.subr.mxu0 0.0
  %6655 = vmatpush2.msra.mxu0 0.0
  %6656 = vmatprep.subr.mxu0 0.0
  %6657 = vmatpush2.msra.mxu0 0.0
  %6658 = vmatprep.subr.mxu0 0.0
  %6659 = vmatpush2.msra.mxu0 0.0
  %6660 = vmatprep.subr.mxu0 0.0
  %6661 = vmatpush2.msra.mxu0 0.0
  %6662 = vmatprep.subr.mxu0 0.0
  %6663 = vmatpush2.msra.mxu0 0.0
  %6664 = vmatprep.subr.mxu0 0.0
  %6665 = vmatpush2.msra.mxu0 0.0
  %6666 = vmatprep.subr.mxu0 0.0
  %6667 = vmatpush2.msra.mxu0 0.0
  %6668 = vmatprep.subr.mxu0 0.0
  %6669 = vmatpush2.msra.mxu0 0.0
  %6670 = vmatprep.subr.mxu0 0.0
  %6671 = vmatpush2.msra.mxu0 0.0
  %6672 = vmatprep.subr.mxu0 0.0
  %6673 = vmatpush2.msra.mxu0 0.0
  %6674 = vmatprep.subr.mxu0 0.0
  %6675 = vmatpush2.msra.mxu0 0.0
  %6676 = vmatprep.subr.mxu0 0.0
  %6677 = vmatpush2.msra.mxu0 0.0
  %6678 = vmatprep.mubr.f32.mxu0 0.0
  %6679 = vmatmul.mubr.f32.gmra.mxu0 %v6373
  %v6680 = vpop.f32.mrf.mxu0
  %v6681 = vadd.f32 %v6611, %v6680
  %v6682 = vpop.f32.mrf.mxu0
  %6683 = vdwg.mxu0
  %v6684 = vadd.f32 %v6681, %v2531
  %v6685 = vxor.u32 %v6684, 2147483648
  %v6686 = vmul.f32 %v6685, 1.442695
  %v6687 = vpow.pop %v6686
  %v6688 = vadd.f32 %v6687, 1.0
  %v6689 = vrcp.pop %v6688
  %v6690 = vmul.f32 1.0, %v6689
  %v6691 = vmul.f32 %v6690, 2.0
  %v6692 = vsub.f32 %v6691, 1.0
  %v6693 = vmul.f32 %v6690, %v6282
  %6695 = vrot.lane.b32.xlu0 %v6692, 118
  %v6696 = vpop.permute.xlu0 %6695
  %v6698 = vmul.f32 %v6690, %v6696
  %6700 = vrot.lane.b32.xlu0 %v6698, 5
  %v6701 = vpop.permute.xlu0 %6700
  %v6703 = vadd.f32 %v6693, %v6701
  %v6704 = vtanh.pop %v6703
  %6706 = vrot.lane.b32.xlu0 %v6704, 10
  %v6707 = vpop.permute.xlu0 %6706
  %v6709 = vmul.f32 %v6690, %v6707
  %6711 = vrot.lane.b32.xlu0 %v6709, 113
  %v6712 = vpop.permute.xlu0 %6711
  %v6713 = vsel %vm879, %v6712, 0
  %6715 = vmatprep.subr.mxu0 0.0
  %6716 = vmatpush1.msra.mxu0 0.0
  %6717 = vmatprep.subr.mxu0 0.0
  %6718 = vmatpush1.msra.mxu0 0.0
  %6719 = vmatprep.subr.mxu0 0.0
  %6720 = vmatpush1.msra.mxu0 0.0
  %6721 = vmatprep.subr.mxu0 0.0
  %6722 = vmatpush1.msra.mxu0 0.0
  %6723 = vmatprep.subr.mxu0 0.0
  %6724 = vmatpush1.msra.mxu0 0.0
  %6725 = vmatprep.subr.mxu0 0.0
  %6726 = vmatpush1.msra.mxu0 0.0
  %6727 = vmatprep.subr.mxu0 0.0
  %6728 = vmatpush1.msra.mxu0 0.0
  %6729 = vmatprep.subr.mxu0 0.0
  %6730 = vmatpush1.msra.mxu0 0.0
  %6731 = vmatprep.subr.mxu0 0.0
  %6732 = vmatpush1.msra.mxu0 0.0
  %6733 = vmatprep.subr.mxu0 0.0
  %6734 = vmatpush1.msra.mxu0 0.0
  %6735 = vmatprep.subr.mxu0 0.0
  %6736 = vmatpush1.msra.mxu0 0.0
  %6737 = vmatprep.subr.mxu0 0.0
  %6738 = vmatpush1.msra.mxu0 0.0
  %6739 = vmatprep.subr.mxu0 0.0
  %6740 = vmatpush1.msra.mxu0 0.0
  %6741 = vmatprep.subr.mxu0 0.0
  %6742 = vmatpush1.msra.mxu0 0.0
  %6743 = vmatprep.subr.mxu0 0.0
  %6744 = vmatpush1.msra.mxu0 0.0
  %6745 = vmatprep.subr.mxu0 0.0
  %6746 = vmatpush1.msra.mxu0 %v2568
  %6747 = vmatprep.subr.mxu0 0.0
  %6748 = vmatpush2.msra.mxu0 0.0
  %6749 = vmatprep.subr.mxu0 0.0
  %6750 = vmatpush2.msra.mxu0 0.0
  %6751 = vmatprep.subr.mxu0 0.0
  %6752 = vmatpush2.msra.mxu0 0.0
  %6753 = vmatprep.subr.mxu0 0.0
  %6754 = vmatpush2.msra.mxu0 0.0
  %6755 = vmatprep.subr.mxu0 0.0
  %6756 = vmatpush2.msra.mxu0 0.0
  %6757 = vmatprep.subr.mxu0 0.0
  %6758 = vmatpush2.msra.mxu0 0.0
  %6759 = vmatprep.subr.mxu0 0.0
  %6760 = vmatpush2.msra.mxu0 0.0
  %6761 = vmatprep.subr.mxu0 0.0
  %6762 = vmatpush2.msra.mxu0 0.0
  %6763 = vmatprep.subr.mxu0 0.0
  %6764 = vmatpush2.msra.mxu0 0.0
  %6765 = vmatprep.subr.mxu0 0.0
  %6766 = vmatpush2.msra.mxu0 0.0
  %6767 = vmatprep.subr.mxu0 0.0
  %6768 = vmatpush2.msra.mxu0 0.0
  %6769 = vmatprep.subr.mxu0 0.0
  %6770 = vmatpush2.msra.mxu0 0.0
  %6771 = vmatprep.subr.mxu0 0.0
  %6772 = vmatpush2.msra.mxu0 0.0
  %6773 = vmatprep.subr.mxu0 0.0
  %6774 = vmatpush2.msra.mxu0 0.0
  %6775 = vmatprep.subr.mxu0 0.0
  %6776 = vmatpush2.msra.mxu0 0.0
  %6777 = vmatprep.subr.mxu0 0.0
  %6778 = vmatpush2.msra.mxu0 0.0
  %6779 = vmatprep.mubr.f32.mxu0 0.0
  %6780 = vmatmul.mubr.f32.gmra.mxu0 %v6713
  %v6781 = vpop.f32.mrf.mxu0
  %v6782 = vadd.f32 %v2561, %v6781
  %v6783 = vpop.f32.mrf.mxu0
  %6784 = vdwg.mxu0
  %v6785 = vxor.u32 %v6782, 2147483648
  %v6786 = vmul.f32 %v6785, 1.442695
  %v6787 = vpow.pop %v6786
  %v6788 = vadd.f32 %v6787, 1.0
  %v6789 = vrcp.pop %v6788
  %v6790 = vmul.f32 1.0, %v6789
  %6791 = vmatprep.subr.mxu0 0.0
  %6792 = vmatpush1.msra.mxu0 0.0
  %6793 = vmatprep.subr.mxu0 0.0
  %6794 = vmatpush1.msra.mxu0 0.0
  %6795 = vmatprep.subr.mxu0 0.0
  %6796 = vmatpush1.msra.mxu0 0.0
  %6797 = vmatprep.subr.mxu0 0.0
  %6798 = vmatpush1.msra.mxu0 0.0
  %6799 = vmatprep.subr.mxu0 0.0
  %6800 = vmatpush1.msra.mxu0 0.0
  %6801 = vmatprep.subr.mxu0 0.0
  %6802 = vmatpush1.msra.mxu0 0.0
  %6803 = vmatprep.subr.mxu0 0.0
  %6804 = vmatpush1.msra.mxu0 0.0
  %6805 = vmatprep.subr.mxu0 0.0
  %6806 = vmatpush1.msra.mxu0 0.0
  %6807 = vmatprep.subr.mxu0 0.0
  %6808 = vmatpush1.msra.mxu0 0.0
  %6809 = vmatprep.subr.mxu0 0.0
  %6810 = vmatpush1.msra.mxu0 0.0
  %6811 = vmatprep.subr.mxu0 0.0
  %6812 = vmatpush1.msra.mxu0 0.0
  %6813 = vmatprep.subr.mxu0 0.0
  %6814 = vmatpush1.msra.mxu0 0.0
  %6815 = vmatprep.subr.mxu0 0.0
  %6816 = vmatpush1.msra.mxu0 0.0
  %6817 = vmatprep.subr.mxu0 0.0
  %6818 = vmatpush1.msra.mxu0 0.0
  %6819 = vmatprep.subr.mxu0 0.0
  %6820 = vmatpush1.msra.mxu0 0.0
  %6821 = vmatprep.subr.mxu0 0.0
  %6822 = vmatpush1.msra.mxu0 %v2383
  %6823 = vmatprep.subr.mxu0 0.0
  %6824 = vmatpush2.msra.mxu0 0.0
  %6825 = vmatprep.subr.mxu0 0.0
  %6826 = vmatpush2.msra.mxu0 0.0
  %6827 = vmatprep.subr.mxu0 0.0
  %6828 = vmatpush2.msra.mxu0 0.0
  %6829 = vmatprep.subr.mxu0 0.0
  %6830 = vmatpush2.msra.mxu0 0.0
  %6831 = vmatprep.subr.mxu0 0.0
  %6832 = vmatpush2.msra.mxu0 0.0
  %6833 = vmatprep.subr.mxu0 0.0
  %6834 = vmatpush2.msra.mxu0 0.0
  %6835 = vmatprep.subr.mxu0 0.0
  %6836 = vmatpush2.msra.mxu0 0.0
  %6837 = vmatprep.subr.mxu0 0.0
  %6838 = vmatpush2.msra.mxu0 0.0
  %6839 = vmatprep.subr.mxu0 0.0
  %6840 = vmatpush2.msra.mxu0 0.0
  %6841 = vmatprep.subr.mxu0 0.0
  %6842 = vmatpush2.msra.mxu0 0.0
  %6843 = vmatprep.subr.mxu0 0.0
  %6844 = vmatpush2.msra.mxu0 0.0
  %6845 = vmatprep.subr.mxu0 0.0
  %6846 = vmatpush2.msra.mxu0 0.0
  %6847 = vmatprep.subr.mxu0 0.0
  %6848 = vmatpush2.msra.mxu0 0.0
  %6849 = vmatprep.subr.mxu0 0.0
  %6850 = vmatpush2.msra.mxu0 0.0
  %6851 = vmatprep.subr.mxu0 0.0
  %6852 = vmatpush2.msra.mxu0 0.0
  %6853 = vmatprep.subr.mxu0 0.0
  %6854 = vmatpush2.msra.mxu0 0.0
  %6855 = vmatprep.mubr.f32.mxu0 0.0
  %6856 = vmatmul.mubr.f32.gmra.mxu0 %v6713
  %v6857 = vpop.f32.mrf.mxu0
  %v6858 = vadd.f32 0.0, %v6857
  %v6859 = vpop.f32.mrf.mxu0
  %6860 = vdwg.mxu0
  %6862 = vrot.lane.b32.xlu0 %v6543, 113
  %v6863 = vpop.permute.xlu0 %6862
  %v6864 = vsel %vm879, %v6863, 0
  %6866 = vmatprep.subr.mxu0 0.0
  %6867 = vmatpush1.msra.mxu0 0.0
  %6868 = vmatprep.subr.mxu0 0.0
  %6869 = vmatpush1.msra.mxu0 0.0
  %6870 = vmatprep.subr.mxu0 0.0
  %6871 = vmatpush1.msra.mxu0 0.0
  %6872 = vmatprep.subr.mxu0 0.0
  %6873 = vmatpush1.msra.mxu0 0.0
  %6874 = vmatprep.subr.mxu0 0.0
  %6875 = vmatpush1.msra.mxu0 0.0
  %6876 = vmatprep.subr.mxu0 0.0
  %6877 = vmatpush1.msra.mxu0 0.0
  %6878 = vmatprep.subr.mxu0 0.0
  %6879 = vmatpush1.msra.mxu0 0.0
  %6880 = vmatprep.subr.mxu0 0.0
  %6881 = vmatpush1.msra.mxu0 0.0
  %6882 = vmatprep.subr.mxu0 0.0
  %6883 = vmatpush1.msra.mxu0 0.0
  %6884 = vmatprep.subr.mxu0 0.0
  %6885 = vmatpush1.msra.mxu0 0.0
  %6886 = vmatprep.subr.mxu0 0.0
  %6887 = vmatpush1.msra.mxu0 0.0
  %6888 = vmatprep.subr.mxu0 0.0
  %6889 = vmatpush1.msra.mxu0 0.0
  %6890 = vmatprep.subr.mxu0 0.0
  %6891 = vmatpush1.msra.mxu0 0.0
  %6892 = vmatprep.subr.mxu0 0.0
  %6893 = vmatpush1.msra.mxu0 0.0
  %6894 = vmatprep.subr.mxu0 0.0
  %6895 = vmatpush1.msra.mxu0 0.0
  %6896 = vmatprep.subr.mxu0 0.0
  %6897 = vmatpush1.msra.mxu0 %v2456
  %6898 = vmatprep.subr.mxu0 0.0
  %6899 = vmatpush2.msra.mxu0 0.0
  %6900 = vmatprep.subr.mxu0 0.0
  %6901 = vmatpush2.msra.mxu0 0.0
  %6902 = vmatprep.subr.mxu0 0.0
  %6903 = vmatpush2.msra.mxu0 0.0
  %6904 = vmatprep.subr.mxu0 0.0
  %6905 = vmatpush2.msra.mxu0 0.0
  %6906 = vmatprep.subr.mxu0 0.0
  %6907 = vmatpush2.msra.mxu0 0.0
  %6908 = vmatprep.subr.mxu0 0.0
  %6909 = vmatpush2.msra.mxu0 0.0
  %6910 = vmatprep.subr.mxu0 0.0
  %6911 = vmatpush2.msra.mxu0 0.0
  %6912 = vmatprep.subr.mxu0 0.0
  %6913 = vmatpush2.msra.mxu0 0.0
  %6914 = vmatprep.subr.mxu0 0.0
  %6915 = vmatpush2.msra.mxu0 0.0
  %6916 = vmatprep.subr.mxu0 0.0
  %6917 = vmatpush2.msra.mxu0 0.0
  %6918 = vmatprep.subr.mxu0 0.0
  %6919 = vmatpush2.msra.mxu0 0.0
  %6920 = vmatprep.subr.mxu0 0.0
  %6921 = vmatpush2.msra.mxu0 0.0
  %6922 = vmatprep.subr.mxu0 0.0
  %6923 = vmatpush2.msra.mxu0 0.0
  %6924 = vmatprep.subr.mxu0 0.0
  %6925 = vmatpush2.msra.mxu0 0.0
  %6926 = vmatprep.subr.mxu0 0.0
  %6927 = vmatpush2.msra.mxu0 0.0
  %6928 = vmatprep.subr.mxu0 0.0
  %6929 = vmatpush2.msra.mxu0 0.0
  %6930 = vmatprep.mubr.f32.mxu0 0.0
  %6931 = vmatmul.mubr.f32.gmra.mxu0 %v6864
  %v6932 = vpop.f32.mrf.mxu0
  %v6933 = vadd.f32 %v6858, %v6932
  %v6934 = vpop.f32.mrf.mxu0
  %6935 = vdwg.mxu0
  %v6936 = vadd.f32 %v6933, %v2531
  %v6937 = vxor.u32 %v6936, 2147483648
  %v6938 = vmul.f32 %v6937, 1.442695
  %v6939 = vpow.pop %v6938
  %v6940 = vadd.f32 %v6939, 1.0
  %v6941 = vrcp.pop %v6940
  %v6942 = vmul.f32 1.0, %v6941
  %v6943 = vmul.f32 %v6942, 2.0
  %v6944 = vsub.f32 %v6943, 1.0
  %v6945 = vmul.f32 %v6942, %v6703
  %6947 = vrot.lane.b32.xlu0 %v6944, 118
  %v6948 = vpop.permute.xlu0 %6947
  %v6950 = vmul.f32 %v6942, %v6948
  %6952 = vrot.lane.b32.xlu0 %v6950, 5
  %v6953 = vpop.permute.xlu0 %6952
  %v6955 = vadd.f32 %v6945, %v6953
  %v6956 = vtanh.pop %v6955
  %6958 = vrot.lane.b32.xlu0 %v6956, 10
  %v6959 = vpop.permute.xlu0 %6958
  %v6961 = vmul.f32 %v6942, %v6959
  %6963 = vrot.lane.b32.xlu0 %v6961, 113
  %v6964 = vpop.permute.xlu0 %6963
  %v6965 = vsel %vm879, %v6964, 0
  %6967 = vmatprep.subr.mxu0 0.0
  %6968 = vmatpush1.msra.mxu0 0.0
  %6969 = vmatprep.subr.mxu0 0.0
  %6970 = vmatpush1.msra.mxu0 0.0
  %6971 = vmatprep.subr.mxu0 0.0
  %6972 = vmatpush1.msra.mxu0 0.0
  %6973 = vmatprep.subr.mxu0 0.0
  %6974 = vmatpush1.msra.mxu0 0.0
  %6975 = vmatprep.subr.mxu0 0.0
  %6976 = vmatpush1.msra.mxu0 0.0
  %6977 = vmatprep.subr.mxu0 0.0
  %6978 = vmatpush1.msra.mxu0 0.0
  %6979 = vmatprep.subr.mxu0 0.0
  %6980 = vmatpush1.msra.mxu0 0.0
  %6981 = vmatprep.subr.mxu0 0.0
  %6982 = vmatpush1.msra.mxu0 0.0
  %6983 = vmatprep.subr.mxu0 0.0
  %6984 = vmatpush1.msra.mxu0 0.0
  %6985 = vmatprep.subr.mxu0 0.0
  %6986 = vmatpush1.msra.mxu0 0.0
  %6987 = vmatprep.subr.mxu0 0.0
  %6988 = vmatpush1.msra.mxu0 0.0
  %6989 = vmatprep.subr.mxu0 0.0
  %6990 = vmatpush1.msra.mxu0 0.0
  %6991 = vmatprep.subr.mxu0 0.0
  %6992 = vmatpush1.msra.mxu0 0.0
  %6993 = vmatprep.subr.mxu0 0.0
  %6994 = vmatpush1.msra.mxu0 0.0
  %6995 = vmatprep.subr.mxu0 0.0
  %6996 = vmatpush1.msra.mxu0 0.0
  %6997 = vmatprep.subr.mxu0 0.0
  %6998 = vmatpush1.msra.mxu0 %v2568
  %6999 = vmatprep.subr.mxu0 0.0
  %7000 = vmatpush2.msra.mxu0 0.0
  %7001 = vmatprep.subr.mxu0 0.0
  %7002 = vmatpush2.msra.mxu0 0.0
  %7003 = vmatprep.subr.mxu0 0.0
  %7004 = vmatpush2.msra.mxu0 0.0
  %7005 = vmatprep.subr.mxu0 0.0
  %7006 = vmatpush2.msra.mxu0 0.0
  %7007 = vmatprep.subr.mxu0 0.0
  %7008 = vmatpush2.msra.mxu0 0.0
  %7009 = vmatprep.subr.mxu0 0.0
  %7010 = vmatpush2.msra.mxu0 0.0
  %7011 = vmatprep.subr.mxu0 0.0
  %7012 = vmatpush2.msra.mxu0 0.0
  %7013 = vmatprep.subr.mxu0 0.0
  %7014 = vmatpush2.msra.mxu0 0.0
  %7015 = vmatprep.subr.mxu0 0.0
  %7016 = vmatpush2.msra.mxu0 0.0
  %7017 = vmatprep.subr.mxu0 0.0
  %7018 = vmatpush2.msra.mxu0 0.0
  %7019 = vmatprep.subr.mxu0 0.0
  %7020 = vmatpush2.msra.mxu0 0.0
  %7021 = vmatprep.subr.mxu0 0.0
  %7022 = vmatpush2.msra.mxu0 0.0
  %7023 = vmatprep.subr.mxu0 0.0
  %7024 = vmatpush2.msra.mxu0 0.0
  %7025 = vmatprep.subr.mxu0 0.0
  %7026 = vmatpush2.msra.mxu0 0.0
  %7027 = vmatprep.subr.mxu0 0.0
  %7028 = vmatpush2.msra.mxu0 0.0
  %7029 = vmatprep.subr.mxu0 0.0
  %7030 = vmatpush2.msra.mxu0 0.0
  %7031 = vmatprep.mubr.f32.mxu0 0.0
  %7032 = vmatmul.mubr.f32.gmra.mxu0 %v6965
  %v7033 = vpop.f32.mrf.mxu0
  %v7034 = vadd.f32 %v2561, %v7033
  %v7035 = vpop.f32.mrf.mxu0
  %7036 = vdwg.mxu0
  %v7037 = vxor.u32 %v7034, 2147483648
  %v7038 = vmul.f32 %v7037, 1.442695
  %v7039 = vpow.pop %v7038
  %v7040 = vadd.f32 %v7039, 1.0
  %v7041 = vrcp.pop %v7040
  %v7042 = vmul.f32 1.0, %v7041
  %7044 = vrot.lane.b32.xlu0 %v3409, 5
  %v7045 = vpop.permute.xlu0 %7044
  %7048 = vrot.lane.b32.xlu0 %v4173, 10
  %v7049 = vpop.permute.xlu0 %7048
  %7052 = vrot.lane.b32.xlu0 %v4937, 15
  %v7053 = vpop.permute.xlu0 %7052
  %7056 = vrot.lane.b32.xlu0 %v5701, 20
  %v7057 = vpop.permute.xlu0 %7056
  %7060 = vrot.lane.b32.xlu0 %v6369, 25
  %v7061 = vpop.permute.xlu0 %7060
  %7064 = vrot.lane.b32.xlu0 %v6790, 30
  %v7065 = vpop.permute.xlu0 %7064
  %7068 = vrot.lane.b32.xlu0 %v7042, 35
  %v7069 = vpop.permute.xlu0 %7068
  %v7071 = vsel %vm879, %v2645, %v7045
  %vm7072 = vcmask 80896
  %v7073 = vsel %vm7072, %v7071, %v7049
  %vm7074 = vcmask 121856
  %v7075 = vsel %vm7074, %v7073, %v7053
  %vm7076 = vcmask 162816
  %v7077 = vsel %vm7076, %v7075, %v7057
  %vm7078 = vcmask 203776
  %v7079 = vsel %vm7078, %v7077, %v7061
  %vm7080 = vcmask 244736
  %v7081 = vsel %vm7080, %v7079, %v7065
  %vm7082 = vcmask 285696
  %v7083 = vsel %vm7082, %v7081, %v7069
  %vm7084 = vcmask 320512
  %7085 = vst.msk [vmem:[%s2] sm:$0x3] %vm7084, %v7083
  // Predicated region
  $region10: #{lstm_model_forward.1} parent=0 // pred_check
    _
  $region11: #{lstm_model_forward.1} parent=0 // pred_check_branch
    %7087 = sbr.rel (0) target = $region13
  $region12: #{lstm_model_forward.1} parent=0 // pred_region
    _
  $region13: #{lstm_model_forward.1} parent=0 // pred_fallthru
    _
  // Predicated region
  $region14: #{lstm_model_forward.1} parent=0 // pred_check
    _
  $region15: #{lstm_model_forward.1} parent=0 // pred_check_branch
    %7089 = sbr.rel (0) target = $region17
  $region16: #{lstm_model_forward.1} parent=0 // pred_region
    _
  $region17: #{lstm_model_forward.1} parent=0 // pred_fallthru
    _

</llo_original>
